<compile_context>
chip_gen: v7x
topology: tpu7x:2x2x1
jax: 0.10.0
libtpu: 0.0.40
codegen_flags: <defaults>
</compile_context>

<pallas_src>
import math
import jax
import jax.numpy as jnp
from jax.experimental import pallas as pl
from jax.experimental.pallas import tpu as pltpu

NEG_INF = -1e9  # additive mask value (softmax-equivalent to torch.finfo.min)

_PAR = pltpu.CompilerParams(dimension_semantics=("parallel",))


# --------------------------------------------------------------------------
# In-kernel helpers (operate on VMEM-resident values / refs)
# --------------------------------------------------------------------------
def _rms(x, w, eps=1e-6):
    # T5LayerNorm: RMS norm, no mean subtraction, no bias.  Kept in f32.
    var = jnp.mean(x * x, axis=-1, keepdims=True)
    return x * jax.lax.rsqrt(var + eps) * w


def _softmax_rows(s):
    m = jnp.max(s, axis=-1, keepdims=True)
    p = jnp.exp(s - m)
    # divide -> EUP approximate reciprocal (frees VALU slots)
    return p * pl.reciprocal(jnp.sum(p, axis=-1, keepdims=True), approx=True)


def _qkT(q, k):
    # q @ k.T via dot_general contracting dims (no explicit transpose).
    return jax.lax.dot_general(q, k, (((1,), (1,)), ((), ())),
                               preferred_element_type=jnp.float32)


def _attend_heads(q_all, k_all, v_all, bias_of_head, wo_ref, H, Dh, res_like):
    """Multi-head attention over all heads of one batch element, fully in VMEM.

    q_all: (Sq, H*Dh), k_all/v_all: (Sk, H*Dh), bias_of_head(h) -> (Sq or 1, Sk).
    The per-head slice of the output projection wo (H*Dh, D) is folded into the
    accumulation, so no lane-concatenate of head outputs is needed.
    Returns (Sq, D).  T5: NO 1/sqrt(d_k) scaling of the scores.
    """
    attn = jnp.zeros_like(res_like)
    for hd in range(H):
        q = q_all[:, hd * Dh:(hd + 1) * Dh]
        k = k_all[:, hd * Dh:(hd + 1) * Dh]
        v = v_all[:, hd * Dh:(hd + 1) * Dh]
        s = _qkT(q, k) + bias_of_head(hd)
        p = _softmax_rows(s)
        oh = jnp.dot(p, v, preferred_element_type=jnp.float32)        # (Sq, Dh)
        attn = attn + jnp.dot(oh, wo_ref[hd * Dh:(hd + 1) * Dh, :],
                              preferred_element_type=jnp.float32)     # (Sq, D)
    return attn


# --------------------------------------------------------------------------
# Fused Pallas kernels
# --------------------------------------------------------------------------
def _make_encoder_layer_kernel(H, Dh):
    inner = H * Dh

    def kernel(x_ref, bias_ref, mask_ref,
               ln1_ref, wqkv_ref, wo_ref,
               ln2_ref, wi_ref, wo_ff_ref, o_ref):
        x = x_ref[0]                                                   # (S, D)

        # ---- self-attention block (pre-norm, residual) ----
        h = _rms(x, ln1_ref[...])
        qkv = jnp.dot(h, wqkv_ref[...], preferred_element_type=jnp.float32)
        attn = _attend_heads(qkv[:, :inner], qkv[:, inner:2 * inner],
                             qkv[:, 2 * inner:],
                             lambda hd: bias_ref[hd] + mask_ref[0],
                             wo_ref, H, Dh, x)
        x = x + attn

        # ---- feed-forward block (T5DenseActDense: ReLU) ----
        h = _rms(x, ln2_ref[...])
        u = jnp.maximum(jnp.dot(h, wi_ref[...],
                                preferred_element_type=jnp.float32), 0.0)
        x = x + jnp.dot(u, wo_ff_ref[...], preferred_element_type=jnp.float32)

        o_ref[0] = x

    return kernel


def _make_decoder_layer_kernel(H, Dh):
    inner = H * Dh

    def kernel(y_ref, enc_ref, sbias_ref, cmask_ref,
               ln1_ref, wqkv_s_ref, wo_s_ref,
               ln2_ref, wq_c_ref, wkv_c_ref, wo_c_ref,
               ln3_ref, wi_ref, wo_ff_ref, o_ref):
        y = y_ref[0]                                                   # (Sd, D)
        e = enc_ref[0]                                                 # (Se, D)

        # ---- causal self-attention block ----
        h = _rms(y, ln1_ref[...])
        qkv = jnp.dot(h, wqkv_s_ref[...], preferred_element_type=jnp.float32)
        attn = _attend_heads(qkv[:, :inner], qkv[:, inner:2 * inner],
                             qkv[:, 2 * inner:],
                             lambda hd: sbias_ref[hd],
                             wo_s_ref, H, Dh, y)
        y = y + attn

        # ---- cross-attention block (no position bias; encoder pad mask) ----
        h = _rms(y, ln2_ref[...])
        q_all = jnp.dot(h, wq_c_ref[...], preferred_element_type=jnp.float32)
        kv = jnp.dot(e, wkv_c_ref[...], preferred_element_type=jnp.float32)
        attn = _attend_heads(q_all, kv[:, :inner], kv[:, inner:],
                             lambda hd: cmask_ref[0],
                             wo_c_ref, H, Dh, y)
        y = y + attn

        # ---- feed-forward block ----
        h = _rms(y, ln3_ref[...])
        u = jnp.maximum(jnp.dot(h, wi_ref[...],
                                preferred_element_type=jnp.float32), 0.0)
        y = y + jnp.dot(u, wo_ff_ref[...], preferred_element_type=jnp.float32)

        o_ref[0] = y

    return kernel


def _enc_final_kernel(x_ref, ln_ref, hid_ref, pool_ref):
    # final encoder RMSNorm + mean pooling over the sequence, fused.
    h = _rms(x_ref[0], ln_ref[...])
    hid_ref[0] = h
    pool_ref[0] = jnp.mean(h, axis=0, keepdims=True)


def _make_lm_head_kernel(scale):
    def kernel(y_ref, ln_ref, emb_t_ref, o_ref):
        # final decoder RMSNorm + tied-embedding rescale + LM head matmul.
        h = _rms(y_ref[0], ln_ref[...]) * scale
        o_ref[0] = jnp.dot(h, emb_t_ref[...], preferred_element_type=jnp.float32)
    return kernel


# --------------------------------------------------------------------------
# pallas_call wrappers
# --------------------------------------------------------------------------
def encoder_layer(x, rel_bias, mask_add, p, cfg):
    B, S, D = x.shape
    H, Dh, F = cfg.num_heads, cfg.d_kv, cfg.d_ff
    inner = H * Dh
    return pl.pallas_call(
        _make_encoder_layer_kernel(H, Dh),
        out_shape=jax.ShapeDtypeStruct((B, S, D), jnp.float32),
        grid=(B,),
        in_specs=[
            pl.BlockSpec((1, S, D), lambda i: (i, 0, 0)),        # hidden states
            pl.BlockSpec((H, S, S), lambda i: (0, 0, 0)),        # rel-pos bias (shared)
            pl.BlockSpec((1, 1, S), lambda i: (i, 0, 0)),        # additive pad mask
            pl.BlockSpec((1, D), lambda i: (0, 0)),              # ln1
            pl.BlockSpec((D, 3 * inner), lambda i: (0, 0)),      # fused Wq|Wk|Wv
            pl.BlockSpec((inner, D), lambda i: (0, 0)),          # attention Wo
            pl.BlockSpec((1, D), lambda i: (0, 0)),              # ln2
            pl.BlockSpec((D, F), lambda i: (0, 0)),              # wi
            pl.BlockSpec((F, D), lambda i: (0, 0)),              # wo_ff
        ],
        out_specs=pl.BlockSpec((1, S, D), lambda i: (i, 0, 0)),
        compiler_params=_PAR,
    )(x, rel_bias, mask_add, p['ln1'], p['wqkv'], p['wo_attn'],
      p['ln2'], p['wi'], p['wo_ff'])


def decoder_layer(y, enc_h, self_bias, cross_mask, p, cfg):
    B, Sd, D = y.shape
    Se = enc_h.shape[1]
    H, Dh, F = cfg.num_heads, cfg.d_kv, cfg.d_ff
    inner = H * Dh
    return pl.pallas_call(
        _make_decoder_layer_kernel(H, Dh),
        out_shape=jax.ShapeDtypeStruct((B, Sd, D), jnp.float32),
        grid=(B,),
        in_specs=[
            pl.BlockSpec((1, Sd, D), lambda i: (i, 0, 0)),       # decoder hidden
            pl.BlockSpec((1, Se, D), lambda i: (i, 0, 0)),       # encoder hidden
            pl.BlockSpec((H, Sd, Sd), lambda i: (0, 0, 0)),      # rel bias + causal
            pl.BlockSpec((1, 1, Se), lambda i: (i, 0, 0)),       # enc pad mask
            pl.BlockSpec((1, D), lambda i: (0, 0)),              # ln1
            pl.BlockSpec((D, 3 * inner), lambda i: (0, 0)),      # self Wq|Wk|Wv
            pl.BlockSpec((inner, D), lambda i: (0, 0)),          # self Wo
            pl.BlockSpec((1, D), lambda i: (0, 0)),              # ln2
            pl.BlockSpec((D, inner), lambda i: (0, 0)),          # cross Wq
            pl.BlockSpec((D, 2 * inner), lambda i: (0, 0)),      # cross Wk|Wv
            pl.BlockSpec((inner, D), lambda i: (0, 0)),          # cross Wo
            pl.BlockSpec((1, D), lambda i: (0, 0)),              # ln3
            pl.BlockSpec((D, F), lambda i: (0, 0)),              # wi
            pl.BlockSpec((F, D), lambda i: (0, 0)),              # wo_ff
        ],
        out_specs=pl.BlockSpec((1, Sd, D), lambda i: (i, 0, 0)),
        compiler_params=_PAR,
    )(y, enc_h, self_bias, cross_mask,
      p['ln1'], p['wqkv_self'], p['wo_self'],
      p['ln2'], p['wq_cross'], p['wkv_cross'], p['wo_cross'],
      p['ln3'], p['wi'], p['wo_ff'])


def encoder_finalize(x, ln_w):
    """Final encoder RMSNorm + mean pool over seq. Returns (hidden, pooled)."""
    B, S, D = x.shape
    hid, pooled3 = pl.pallas_call(
        _enc_final_kernel,
        out_shape=(jax.ShapeDtypeStruct((B, S, D), jnp.float32),
                   jax.ShapeDtypeStruct((B, 1, D), jnp.float32)),
        grid=(B,),
        in_specs=[pl.BlockSpec((1, S, D), lambda i: (i, 0, 0)),
                  pl.BlockSpec((1, D), lambda i: (0, 0))],
        out_specs=(pl.BlockSpec((1, S, D), lambda i: (i, 0, 0)),
                   pl.BlockSpec((1, 1, D), lambda i: (i, 0, 0))),
        compiler_params=_PAR,
    )(x, ln_w)
    return hid, pooled3[:, 0, :]


def lm_head(y, ln_w, emb_t):
    """Final decoder RMSNorm + d_model**-0.5 scale + tied LM-head projection."""
    B, Sd, D = y.shape
    V = emb_t.shape[1]
    # NOTE: at real T5 sizes (V ~ 32k, D >= 512) this matmul must be tiled over
    # (N, K) with an f32 accumulator scratch and bf16 operands; the full-array
    # block is only valid at these toy dimensions.
    return pl.pallas_call(
        _make_lm_head_kernel(D ** -0.5),
        out_shape=jax.ShapeDtypeStruct((B, Sd, V), jnp.float32),
        grid=(B,),
        in_specs=[pl.BlockSpec((1, Sd, D), lambda i: (i, 0, 0)),
                  pl.BlockSpec((1, D), lambda i: (0, 0)),
                  pl.BlockSpec((D, V), lambda i: (0, 0))],
        out_specs=pl.BlockSpec((1, Sd, V), lambda i: (i, 0, 0)),
        compiler_params=_PAR,
    )(y, ln_w, emb_t)


# --------------------------------------------------------------------------
# T5 config / parameters (deterministic synthetic init — no checkpoint load)
# --------------------------------------------------------------------------
class Cfg:
    vocab_size = 64
    d_model = 32
    d_kv = 8
    num_heads = 4
    d_ff = 64
    num_layers = 2            # encoder layers == decoder layers
    rel_buckets = 32
    rel_max_distance = 128


def init_params(key, cfg):
    D, H, Dh, F, V = cfg.d_model, cfg.num_heads, cfg.d_kv, cfg.d_ff, cfg.vocab_size
    inner = H * Dh
    keys = iter(jax.random.split(key, 512))

    def nrm(shape, scale=0.05):
        return scale * jax.random.normal(next(keys), shape, dtype=jnp.float32)

    def enc_layer():
        return dict(ln1=jnp.ones((1, D), jnp.float32),
                    wqkv=nrm((D, 3 * inner)),          # fused Wq|Wk|Wv
                    wo_attn=nrm((inner, D)),
                    ln2=jnp.ones((1, D), jnp.float32),
                    wi=nrm((D, F)), wo_ff=nrm((F, D)))

    def dec_layer():
        return dict(ln1=jnp.ones((1, D), jnp.float32),
                    wqkv_self=nrm((D, 3 * inner)),
                    wo_self=nrm((inner, D)),
                    ln2=jnp.ones((1, D), jnp.float32),
                    wq_cross=nrm((D, inner)),
                    wkv_cross=nrm((D, 2 * inner)),     # fused Wk|Wv (cross)
                    wo_cross=nrm((inner, D)),
                    ln3=jnp.ones((1, D), jnp.float32),
                    wi=nrm((D, F)), wo_ff=nrm((F, D)))

    shared = nrm((V, D))                               # tied embedding / lm_head
    return dict(
        shared=shared,
        shared_T=shared.T,                             # pre-transposed once (D, V)
        enc_rel_bias=nrm((cfg.rel_buckets, H)),        # layer-0 relative attn bias
        dec_rel_bias=nrm((cfg.rel_buckets, H)),
        encoder=[enc_layer() for _ in range(cfg.num_layers)],
        enc_final_ln=jnp.ones((1, D), jnp.float32),
        decoder=[dec_layer() for _ in range(cfg.num_layers)],
        dec_final_ln=jnp.ones((1, D), jnp.float32),
    )


# --------------------------------------------------------------------------
# Model glue (all heavy compute is inside the fused Pallas kernels above)
# --------------------------------------------------------------------------
def _relative_position_bucket(rel_pos, bidirectional, num_buckets, max_distance):
    buckets = jnp.zeros_like(rel_pos)
    if bidirectional:
        num_buckets //= 2
        buckets += (rel_pos > 0).astype(jnp.int32) * num_buckets
        rel_pos = jnp.abs(rel_pos)
    else:
        rel_pos = -jnp.minimum(rel_pos, 0)
    max_exact = num_buckets // 2
    is_small = rel_pos < max_exact
    rel_large = max_exact + (
        jnp.log(jnp.maximum(rel_pos, 1).astype(jnp.float32) / max_exact)
        / math.log(max_distance / max_exact) * (num_buckets - max_exact)
    ).astype(jnp.int32)
    rel_large = jnp.minimum(rel_large, num_buckets - 1)
    return buckets + jnp.where(is_small, rel_pos, rel_large)


def compute_position_bias(rel_emb, q_len, k_len, bidirectional, cfg):
    ctx = jnp.arange(q_len, dtype=jnp.int32)[:, None]
    mem = jnp.arange(k_len, dtype=jnp.int32)[None, :]
    buckets = _relative_position_bucket(mem - ctx, bidirectional,
                                        cfg.rel_buckets, cfg.rel_max_distance)
    values = rel_emb[buckets]                    # (q, k, H)
    return jnp.transpose(values, (2, 0, 1))      # (H, q, k) — shared across batch


def hf_t5_forward(params, input_ids, attention_mask, decoder_input_ids, cfg=Cfg):
    """Mirrors HFT5Model.forward -> (logits, encoder_pooled_output)."""
    B, Se = input_ids.shape
    Sd = decoder_input_ids.shape[1]
    emb = params['shared']

    # ----- encoder -----
    x = emb[input_ids]                                               # (B, Se, D)
    enc_bias = compute_position_bias(params['enc_rel_bias'], Se, Se, True, cfg)
    # additive pad mask, kept un-broadcast (added to scores inside the kernel)
    mask_add = ((1.0 - attention_mask.astype(jnp.float32)) * NEG_INF)[:, None, :]
    for layer in params['encoder']:
        x = encoder_layer(x, enc_bias, mask_add, layer, cfg)
    enc_hidden, pooled = encoder_finalize(x, params['enc_final_ln'])  # last hid, mean(·,1)

    # ----- decoder -----
    y = emb[decoder_input_ids]                                       # (B, Sd, D)
    dec_bias = compute_position_bias(params['dec_rel_bias'], Sd, Sd, False, cfg)
    causal = jnp.where(jnp.arange(Sd)[None, :] <= jnp.arange(Sd)[:, None],
                       0.0, NEG_INF)
    self_bias = dec_bias + causal[None]                              # (H, Sd, Sd)
    for layer in params['decoder']:
        y = decoder_layer(y, enc_hidden, self_bias, mask_add, layer, cfg)

    # tied word embeddings: rescale by d_model**-0.5, project with emb^T (fused)
    logits = lm_head(y, params['dec_final_ln'], params['shared_T'])
    return logits, pooled


# --------------------------------------------------------------------------
if __name__ == "__main__":
    cfg = Cfg
    key = jax.random.PRNGKey(0)
    kp, ki, kd = jax.random.split(key, 3)
    params = init_params(kp, cfg)

    B, Se, Sd = 2, 8, 8
    input_ids = jax.random.randint(ki, (B, Se), 0, cfg.vocab_size, dtype=jnp.int32)
    # batch 0 fully attended, batch 1 has 2 padded positions
    attention_mask = jnp.array([[1] * Se, [1] * (Se - 2) + [0] * 2], dtype=jnp.int32)
    decoder_input_ids = jax.random.randint(kd, (B, Sd), 0, cfg.vocab_size, dtype=jnp.int32)
    decoder_input_ids = decoder_input_ids.at[:, 0].set(0)  # decoder_start_token_id

    logits, pooled = jax.jit(hf_t5_forward, static_argnums=(4,))(
        params, input_ids, attention_mask, decoder_input_ids, cfg)
    jax.block_until_ready((logits, pooled))

    assert logits.shape == (B, Sd, cfg.vocab_size)
    assert pooled.shape == (B, cfg.d_model)
    assert bool(jnp.all(jnp.isfinite(logits))) and bool(jnp.all(jnp.isfinite(pooled)))
    print("KERNEL_OK")
</pallas_src>

<mosaic_0001>
module attributes {stable_mosaic.version = 11 : i64} {
  func.func @_enc_final_kernel(%arg0: i32, %arg1: memref<1x8x32xf32, #tpu.memory_space<vmem>>, %arg2: memref<1x32xf32, #tpu.memory_space<vmem>>, %arg3: memref<1x8x32xf32, #tpu.memory_space<vmem>>, %arg4: memref<1x1x32xf32, #tpu.memory_space<vmem>>) attributes {dimension_semantics = [#tpu.dimension_semantics<parallel>], iteration_bounds = array<i64: 2>, scalar_prefetch = 0 : i64, scratch_operands = 0 : i64, tpu.core_type = #tpu.core_type<tc>, window_params = [{transform_indices = @transform_0, window_bounds = array<i64: 1, 8, 32>}, {pipeline_mode = #tpu.pipeline_mode<synchronous>, transform_indices = @transform_1, window_bounds = array<i64: 1, 32>}, {transform_indices = @transform_2, window_bounds = array<i64: 1, 8, 32>}, {transform_indices = @transform_3, window_bounds = array<i64: 1, 1, 32>}]} {
    %c0 = arith.constant 0 : index
    %c0_0 = arith.constant 0 : index
    %c0_1 = arith.constant 0 : index
    %0 = vector.load %arg1[%c0, %c0_0, %c0_1] : memref<1x8x32xf32, #tpu.memory_space<vmem>>, vector<1x8x32xf32>
    %1 = vector.shape_cast %0 : vector<1x8x32xf32> to vector<8x32xf32>
    %c0_2 = arith.constant 0 : index
    %c0_3 = arith.constant 0 : index
    %2 = vector.load %arg2[%c0_2, %c0_3] : memref<1x32xf32, #tpu.memory_space<vmem>>, vector<1x32xf32>
    %3 = arith.mulf %1, %1 : vector<8x32xf32>
    %cst = arith.constant dense<0.000000e+00> : vector<8xf32>
    %4 = vector.multi_reduction <add>, %3, %cst [1] : vector<8x32xf32> to vector<8xf32>
    %5 = vector.shape_cast %4 : vector<8xf32> to vector<8x1xf32>
    %cst_4 = arith.constant 3.200000e+01 : f32
    %6 = vector.broadcast %cst_4 : f32 to vector<8x1xf32>
    %7 = arith.divf %5, %6 : vector<8x1xf32>
    %cst_5 = arith.constant 9.99999997E-7 : f32
    %8 = vector.broadcast %cst_5 : f32 to vector<8x1xf32>
    %9 = arith.addf %7, %8 : vector<8x1xf32>
    %10 = math.rsqrt %9 : vector<8x1xf32>
    %11 = vector.broadcast %10 : vector<8x1xf32> to vector<8x32xf32>
    %12 = arith.mulf %1, %11 : vector<8x32xf32>
    %13 = vector.broadcast %2 : vector<1x32xf32> to vector<8x32xf32>
    %14 = arith.mulf %12, %13 : vector<8x32xf32>
    %c0_6 = arith.constant 0 : index
    %c0_7 = arith.constant 0 : index
    %c0_8 = arith.constant 0 : index
    %15 = vector.load %arg3[%c0_6, %c0_7, %c0_8] : memref<1x8x32xf32, #tpu.memory_space<vmem>>, vector<1x8x32xf32>
    %16 = vector.shape_cast %15 : vector<1x8x32xf32> to vector<8x32xf32>
    %17 = vector.shape_cast %14 : vector<8x32xf32> to vector<1x8x32xf32>
    tpu.vector_store %arg3[%c0_6, %c0_7, %c0_8], %17 {strides = array<i32>} : memref<1x8x32xf32, #tpu.memory_space<vmem>>, vector<1x8x32xf32>,
    %cst_9 = arith.constant dense<0.000000e+00> : vector<32xf32>
    %18 = vector.multi_reduction <add>, %14, %cst_9 [0] : vector<8x32xf32> to vector<32xf32>
    %19 = vector.shape_cast %18 : vector<32xf32> to vector<1x32xf32>
    %cst_10 = arith.constant 8.000000e+00 : f32
    %20 = vector.broadcast %cst_10 : f32 to vector<1x32xf32>
    %21 = arith.divf %19, %20 : vector<1x32xf32>
    %c0_11 = arith.constant 0 : index
    %c0_12 = arith.constant 0 : index
    %c0_13 = arith.constant 0 : index
    %22 = vector.load %arg4[%c0_11, %c0_12, %c0_13] : memref<1x1x32xf32, #tpu.memory_space<vmem>>, vector<1x1x32xf32>
    %23 = vector.shape_cast %22 : vector<1x1x32xf32> to vector<1x32xf32>
    %24 = vector.shape_cast %21 : vector<1x32xf32> to vector<1x1x32xf32>
    tpu.vector_store %arg4[%c0_11, %c0_12, %c0_13], %24 {strides = array<i32>} : memref<1x1x32xf32, #tpu.memory_space<vmem>>, vector<1x1x32xf32>,
    return
  }
  func.func @transform_0(%arg0: i32) -> (i32, i32, i32) {
    %c0_i32 = arith.constant 0 : i32
    %c0_i32_0 = arith.constant 0 : i32
    %c0_i32_1 = arith.constant 0 : i32
    return %arg0, %c0_i32, %c0_i32_0 : i32, i32, i32
  }
  func.func @transform_1(%arg0: i32) -> (i32, i32) {
    %c0_i32 = arith.constant 0 : i32
    %c0_i32_0 = arith.constant 0 : i32
    %c0_i32_1 = arith.constant 0 : i32
    return %c0_i32, %c0_i32_0 : i32, i32
  }
  func.func @transform_2(%arg0: i32) -> (i32, i32, i32) {
    %c0_i32 = arith.constant 0 : i32
    %c0_i32_0 = arith.constant 0 : i32
    %c0_i32_1 = arith.constant 0 : i32
    return %arg0, %c0_i32, %c0_i32_0 : i32, i32, i32
  }
  func.func @transform_3(%arg0: i32) -> (i32, i32, i32) {
    %c0_i32 = arith.constant 0 : i32
    %c0_i32_0 = arith.constant 0 : i32
    %c0_i32_1 = arith.constant 0 : i32
    return %arg0, %c0_i32, %c0_i32_0 : i32, i32, i32
  }
}

module attributes {stable_mosaic.version = 11 : i64} {
  func.func @kernel(%arg0: i32, %arg1: memref<1x8x32xf32, #tpu.memory_space<vmem>>, %arg2: memref<4x8x8xf32, #tpu.memory_space<vmem>>, %arg3: memref<1x1x8xf32, #tpu.memory_space<vmem>>, %arg4: memref<1x32xf32, #tpu.memory_space<vmem>>, %arg5: memref<32x96xf32, #tpu.memory_space<vmem>>, %arg6: memref<32x32xf32, #tpu.memory_space<vmem>>, %arg7: memref<1x32xf32, #tpu.memory_space<vmem>>, %arg8: memref<32x64xf32, #tpu.memory_space<vmem>>, %arg9: memref<64x32xf32, #tpu.memory_space<vmem>>, %arg10: memref<1x8x32xf32, #tpu.memory_space<vmem>>) attributes {dimension_semantics = [#tpu.dimension_semantics<parallel>], iteration_bounds = array<i64: 2>, scalar_prefetch = 0 : i64, scratch_operands = 0 : i64, tpu.core_type = #tpu.core_type<tc>, window_params = [{transform_indices = @transform_0, window_bounds = array<i64: 1, 8, 32>}, {pipeline_mode = #tpu.pipeline_mode<synchronous>, transform_indices = @transform_1, window_bounds = array<i64: 4, 8, 8>}, {transform_indices = @transform_2, window_bounds = array<i64: 1, 1, 8>}, {pipeline_mode = #tpu.pipeline_mode<synchronous>, transform_indices = @transform_3, window_bounds = array<i64: 1, 32>}, {pipeline_mode = #tpu.pipeline_mode<synchronous>, transform_indices = @transform_4, window_bounds = array<i64: 32, 96>}, {pipeline_mode = #tpu.pipeline_mode<synchronous>, transform_indices = @transform_5, window_bounds = array<i64: 32, 32>}, {pipeline_mode = #tpu.pipeline_mode<synchronous>, transform_indices = @transform_6, window_bounds = array<i64: 1, 32>}, {pipeline_mode = #tpu.pipeline_mode<synchronous>, transform_indices = @transform_7, window_bounds = array<i64: 32, 64>}, {pipeline_mode = #tpu.pipeline_mode<synchronous>, transform_indices = @transform_8, window_bounds = array<i64: 64, 32>}, {transform_indices = @transform_9, window_bounds = array<i64: 1, 8, 32>}]} {
    %c0 = arith.constant 0 : index
    %c0_0 = arith.constant 0 : index
    %c0_1 = arith.constant 0 : index
    %0 = vector.load %arg1[%c0, %c0_0, %c0_1] : memref<1x8x32xf32, #tpu.memory_space<vmem>>, vector<1x8x32xf32>
    %1 = vector.shape_cast %0 : vector<1x8x32xf32> to vector<8x32xf32>
    %c0_2 = arith.constant 0 : index
    %c0_3 = arith.constant 0 : index
    %2 = vector.load %arg4[%c0_2, %c0_3] : memref<1x32xf32, #tpu.memory_space<vmem>>, vector<1x32xf32>
    %3 = arith.mulf %1, %1 : vector<8x32xf32>
    %cst = arith.constant dense<0.000000e+00> : vector<8xf32>
    %4 = vector.multi_reduction <add>, %3, %cst [1] : vector<8x32xf32> to vector<8xf32>
    %5 = vector.shape_cast %4 : vector<8xf32> to vector<8x1xf32>
    %cst_4 = arith.constant 3.200000e+01 : f32
    %6 = vector.broadcast %cst_4 : f32 to vector<8x1xf32>
    %7 = arith.divf %5, %6 : vector<8x1xf32>
    %cst_5 = arith.constant 9.99999997E-7 : f32
    %8 = vector.broadcast %cst_5 : f32 to vector<8x1xf32>
    %9 = arith.addf %7, %8 : vector<8x1xf32>
    %10 = math.rsqrt %9 : vector<8x1xf32>
    %11 = vector.broadcast %10 : vector<8x1xf32> to vector<8x32xf32>
    %12 = arith.mulf %1, %11 : vector<8x32xf32>
    %13 = vector.broadcast %2 : vector<1x32xf32> to vector<8x32xf32>
    %14 = arith.mulf %12, %13 : vector<8x32xf32>
    %c0_6 = arith.constant 0 : index
    %c0_7 = arith.constant 0 : index
    %15 = vector.load %arg5[%c0_6, %c0_7] : memref<32x96xf32, #tpu.memory_space<vmem>>, vector<32x96xf32>
    %cst_8 = arith.constant dense<0.000000e+00> : vector<8x96xf32>
    %16 = tpu.matmul %14, %15, %cst_8 {dimension_numbers = #tpu.dot_dimension_numbers<[1], [0], [0], [1], [0, 0, 1, 1], [], []>} : vector<8x32xf32>, vector<32x96xf32>, vector<8x96xf32> -> vector<8x96xf32>
    %17 = vector.extract_strided_slice %16 {offsets = [0, 0], sizes = [8, 32], strides = [1, 1]} : vector<8x96xf32> to vector<8x32xf32>
    %18 = vector.extract_strided_slice %16 {offsets = [0, 32], sizes = [8, 32], strides = [1, 1]} : vector<8x96xf32> to vector<8x32xf32>
    %19 = vector.extract_strided_slice %16 {offsets = [0, 64], sizes = [8, 32], strides = [1, 1]} : vector<8x96xf32> to vector<8x32xf32>
    %cst_9 = arith.constant 0.000000e+00 : f32
    %20 = vector.broadcast %cst_9 : f32 to vector<8x32xf32>
    %21 = vector.extract_strided_slice %17 {offsets = [0, 0], sizes = [8, 8], strides = [1, 1]} : vector<8x32xf32> to vector<8x8xf32>
    %22 = vector.extract_strided_slice %18 {offsets = [0, 0], sizes = [8, 8], strides = [1, 1]} : vector<8x32xf32> to vector<8x8xf32>
    %23 = vector.extract_strided_slice %19 {offsets = [0, 0], sizes = [8, 8], strides = [1, 1]} : vector<8x32xf32> to vector<8x8xf32>
    %cst_10 = arith.constant dense<0.000000e+00> : vector<8x8xf32>
    %24 = tpu.matmul %21, %22, %cst_10 {dimension_numbers = #tpu.dot_dimension_numbers<[1], [1], [0], [0], [0, 0, 1, 0], [], []>} : vector<8x8xf32>, vector<8x8xf32>, vector<8x8xf32> -> vector<8x8xf32>
    %c0_11 = arith.constant 0 : index
    %c0_12 = arith.constant 0 : index
    %c0_13 = arith.constant 0 : index
    %25 = vector.load %arg2[%c0_11, %c0_12, %c0_13] : memref<4x8x8xf32, #tpu.memory_space<vmem>>, vector<1x8x8xf32>
    %26 = vector.shape_cast %25 : vector<1x8x8xf32> to vector<8x8xf32>
    %c0_14 = arith.constant 0 : index
    %c0_15 = arith.constant 0 : index
    %c0_16 = arith.constant 0 : index
    %27 = vector.load %arg3[%c0_14, %c0_15, %c0_16] : memref<1x1x8xf32, #tpu.memory_space<vmem>>, vector<1x1x8xf32>
    %28 = vector.shape_cast %27 : vector<1x1x8xf32> to vector<1x8xf32>
    %29 = vector.broadcast %28 : vector<1x8xf32> to vector<8x8xf32>
    %30 = arith.addf %26, %29 : vector<8x8xf32>
    %31 = arith.addf %24, %30 : vector<8x8xf32>
    %cst_17 = arith.constant dense<0xFF800000> : vector<8xf32>
    %32 = vector.multi_reduction <maximumf>, %31, %cst_17 [1] : vector<8x8xf32> to vector<8xf32>
    %33 = vector.shape_cast %32 : vector<8xf32> to vector<8x1xf32>
    %34 = vector.broadcast %33 : vector<8x1xf32> to vector<8x8xf32>
    %35 = arith.subf %31, %34 : vector<8x8xf32>
    %36 = math.exp %35 : vector<8x8xf32>
    %cst_18 = arith.constant dense<0.000000e+00> : vector<8xf32>
    %37 = vector.multi_reduction <add>, %36, %cst_18 [1] : vector<8x8xf32> to vector<8xf32>
    %38 = vector.shape_cast %37 : vector<8xf32> to vector<8x1xf32>
    %39 = tpu.reciprocal %38 {approx = true} : vector<8x1xf32> -> vector<8x1xf32>
    %40 = vector.broadcast %39 : vector<8x1xf32> to vector<8x8xf32>
    %41 = arith.mulf %36, %40 : vector<8x8xf32>
    %cst_19 = arith.constant dense<0.000000e+00> : vector<8x8xf32>
    %42 = tpu.matmul %41, %23, %cst_19 {dimension_numbers = #tpu.dot_dimension_numbers<[1], [0], [0], [1], [0, 0, 1, 1], [], []>} : vector<8x8xf32>, vector<8x8xf32>, vector<8x8xf32> -> vector<8x8xf32>
    %c0_20 = arith.constant 0 : index
    %c0_21 = arith.constant 0 : index
    %43 = vector.load %arg6[%c0_20, %c0_21] : memref<32x32xf32, #tpu.memory_space<vmem>>, vector<8x32xf32>
    %cst_22 = arith.constant dense<0.000000e+00> : vector<8x32xf32>
    %44 = tpu.matmul %42, %43, %cst_22 {dimension_numbers = #tpu.dot_dimension_numbers<[1], [0], [0], [1], [0, 0, 1, 1], [], []>} : vector<8x8xf32>, vector<8x32xf32>, vector<8x32xf32> -> vector<8x32xf32>
    %45 = arith.addf %20, %44 : vector<8x32xf32>
    %46 = vector.extract_strided_slice %17 {offsets = [0, 8], sizes = [8, 8], strides = [1, 1]} : vector<8x32xf32> to vector<8x8xf32>
    %47 = vector.extract_strided_slice %18 {offsets = [0, 8], sizes = [8, 8], strides = [1, 1]} : vector<8x32xf32> to vector<8x8xf32>
    %48 = vector.extract_strided_slice %19 {offsets = [0, 8], sizes = [8, 8], strides = [1, 1]} : vector<8x32xf32> to vector<8x8xf32>
    %cst_23 = arith.constant dense<0.000000e+00> : vector<8x8xf32>
    %49 = tpu.matmul %46, %47, %cst_23 {dimension_numbers = #tpu.dot_dimension_numbers<[1], [1], [0], [0], [0, 0, 1, 0], [], []>} : vector<8x8xf32>, vector<8x8xf32>, vector<8x8xf32> -> vector<8x8xf32>
    %c1 = arith.constant 1 : index
    %c0_24 = arith.constant 0 : index
    %c0_25 = arith.constant 0 : index
    %50 = vector.load %arg2[%c1, %c0_24, %c0_25] : memref<4x8x8xf32, #tpu.memory_space<vmem>>, vector<1x8x8xf32>
    %51 = vector.shape_cast %50 : vector<1x8x8xf32> to vector<8x8xf32>
    %c0_26 = arith.constant 0 : index
    %c0_27 = arith.constant 0 : index
    %c0_28 = arith.constant 0 : index
    %52 = vector.load %arg3[%c0_26, %c0_27, %c0_28] : memref<1x1x8xf32, #tpu.memory_space<vmem>>, vector<1x1x8xf32>
    %53 = vector.shape_cast %52 : vector<1x1x8xf32> to vector<1x8xf32>
    %54 = vector.broadcast %53 : vector<1x8xf32> to vector<8x8xf32>
    %55 = arith.addf %51, %54 : vector<8x8xf32>
    %56 = arith.addf %49, %55 : vector<8x8xf32>
    %cst_29 = arith.constant dense<0xFF800000> : vector<8xf32>
    %57 = vector.multi_reduction <maximumf>, %56, %cst_29 [1] : vector<8x8xf32> to vector<8xf32>
    %58 = vector.shape_cast %57 : vector<8xf32> to vector<8x1xf32>
    %59 = vector.broadcast %58 : vector<8x1xf32> to vector<8x8xf32>
    %60 = arith.subf %56, %59 : vector<8x8xf32>
    %61 = math.exp %60 : vector<8x8xf32>
    %cst_30 = arith.constant dense<0.000000e+00> : vector<8xf32>
    %62 = vector.multi_reduction <add>, %61, %cst_30 [1] : vector<8x8xf32> to vector<8xf32>
    %63 = vector.shape_cast %62 : vector<8xf32> to vector<8x1xf32>
    %64 = tpu.reciprocal %63 {approx = true} : vector<8x1xf32> -> vector<8x1xf32>
    %65 = vector.broadcast %64 : vector<8x1xf32> to vector<8x8xf32>
    %66 = arith.mulf %61, %65 : vector<8x8xf32>
    %cst_31 = arith.constant dense<0.000000e+00> : vector<8x8xf32>
    %67 = tpu.matmul %66, %48, %cst_31 {dimension_numbers = #tpu.dot_dimension_numbers<[1], [0], [0], [1], [0, 0, 1, 1], [], []>} : vector<8x8xf32>, vector<8x8xf32>, vector<8x8xf32> -> vector<8x8xf32>
    %c8 = arith.constant 8 : index
    %c0_32 = arith.constant 0 : index
    %68 = vector.load %arg6[%c8, %c0_32] : memref<32x32xf32, #tpu.memory_space<vmem>>, vector<8x32xf32>
    %cst_33 = arith.constant dense<0.000000e+00> : vector<8x32xf32>
    %69 = tpu.matmul %67, %68, %cst_33 {dimension_numbers = #tpu.dot_dimension_numbers<[1], [0], [0], [1], [0, 0, 1, 1], [], []>} : vector<8x8xf32>, vector<8x32xf32>, vector<8x32xf32> -> vector<8x32xf32>
    %70 = arith.addf %45, %69 : vector<8x32xf32>
    %71 = vector.extract_strided_slice %17 {offsets = [0, 16], sizes = [8, 8], strides = [1, 1]} : vector<8x32xf32> to vector<8x8xf32>
    %72 = vector.extract_strided_slice %18 {offsets = [0, 16], sizes = [8, 8], strides = [1, 1]} : vector<8x32xf32> to vector<8x8xf32>
    %73 = vector.extract_strided_slice %19 {offsets = [0, 16], sizes = [8, 8], strides = [1, 1]} : vector<8x32xf32> to vector<8x8xf32>
    %cst_34 = arith.constant dense<0.000000e+00> : vector<8x8xf32>
    %74 = tpu.matmul %71, %72, %cst_34 {dimension_numbers = #tpu.dot_dimension_numbers<[1], [1], [0], [0], [0, 0, 1, 0], [], []>} : vector<8x8xf32>, vector<8x8xf32>, vector<8x8xf32> -> vector<8x8xf32>
    %c2 = arith.constant 2 : index
    %c0_35 = arith.constant 0 : index
    %c0_36 = arith.constant 0 : index
    %75 = vector.load %arg2[%c2, %c0_35, %c0_36] : memref<4x8x8xf32, #tpu.memory_space<vmem>>, vector<1x8x8xf32>
    %76 = vector.shape_cast %75 : vector<1x8x8xf32> to vector<8x8xf32>
    %c0_37 = arith.constant 0 : index
    %c0_38 = arith.constant 0 : index
    %c0_39 = arith.constant 0 : index
    %77 = vector.load %arg3[%c0_37, %c0_38, %c0_39] : memref<1x1x8xf32, #tpu.memory_space<vmem>>, vector<1x1x8xf32>
    %78 = vector.shape_cast %77 : vector<1x1x8xf32> to vector<1x8xf32>
    %79 = vector.broadcast %78 : vector<1x8xf32> to vector<8x8xf32>
    %80 = arith.addf %76, %79 : vector<8x8xf32>
    %81 = arith.addf %74, %80 : vector<8x8xf32>
    %cst_40 = arith.constant dense<0xFF800000> : vector<8xf32>
    %82 = vector.multi_reduction <maximumf>, %81, %cst_40 [1] : vector<8x8xf32> to vector<8xf32>
    %83 = vector.shape_cast %82 : vector<8xf32> to vector<8x1xf32>
    %84 = vector.broadcast %83 : vector<8x1xf32> to vector<8x8xf32>
    %85 = arith.subf %81, %84 : vector<8x8xf32>
    %86 = math.exp %85 : vector<8x8xf32>
    %cst_41 = arith.constant dense<0.000000e+00> : vector<8xf32>
    %87 = vector.multi_reduction <add>, %86, %cst_41 [1] : vector<8x8xf32> to vector<8xf32>
    %88 = vector.shape_cast %87 : vector<8xf32> to vector<8x1xf32>
    %89 = tpu.reciprocal %88 {approx = true} : vector<8x1xf32> -> vector<8x1xf32>
    %90 = vector.broadcast %89 : vector<8x1xf32> to vector<8x8xf32>
    %91 = arith.mulf %86, %90 : vector<8x8xf32>
    %cst_42 = arith.constant dense<0.000000e+00> : vector<8x8xf32>
    %92 = tpu.matmul %91, %73, %cst_42 {dimension_numbers = #tpu.dot_dimension_numbers<[1], [0], [0], [1], [0, 0, 1, 1], [], []>} : vector<8x8xf32>, vector<8x8xf32>, vector<8x8xf32> -> vector<8x8xf32>
    %c16 = arith.constant 16 : index
    %c0_43 = arith.constant 0 : index
    %93 = vector.load %arg6[%c16, %c0_43] : memref<32x32xf32, #tpu.memory_space<vmem>>, vector<8x32xf32>
    %cst_44 = arith.constant dense<0.000000e+00> : vector<8x32xf32>
    %94 = tpu.matmul %92, %93, %cst_44 {dimension_numbers = #tpu.dot_dimension_numbers<[1], [0], [0], [1], [0, 0, 1, 1], [], []>} : vector<8x8xf32>, vector<8x32xf32>, vector<8x32xf32> -> vector<8x32xf32>
    %95 = arith.addf %70, %94 : vector<8x32xf32>
    %96 = vector.extract_strided_slice %17 {offsets = [0, 24], sizes = [8, 8], strides = [1, 1]} : vector<8x32xf32> to vector<8x8xf32>
    %97 = vector.extract_strided_slice %18 {offsets = [0, 24], sizes = [8, 8], strides = [1, 1]} : vector<8x32xf32> to vector<8x8xf32>
    %98 = vector.extract_strided_slice %19 {offsets = [0, 24], sizes = [8, 8], strides = [1, 1]} : vector<8x32xf32> to vector<8x8xf32>
    %cst_45 = arith.constant dense<0.000000e+00> : vector<8x8xf32>
    %99 = tpu.matmul %96, %97, %cst_45 {dimension_numbers = #tpu.dot_dimension_numbers<[1], [1], [0], [0], [0, 0, 1, 0], [], []>} : vector<8x8xf32>, vector<8x8xf32>, vector<8x8xf32> -> vector<8x8xf32>
    %c3 = arith.constant 3 : index
    %c0_46 = arith.constant 0 : index
    %c0_47 = arith.constant 0 : index
    %100 = vector.load %arg2[%c3, %c0_46, %c0_47] : memref<4x8x8xf32, #tpu.memory_space<vmem>>, vector<1x8x8xf32>
    %101 = vector.shape_cast %100 : vector<1x8x8xf32> to vector<8x8xf32>
    %c0_48 = arith.constant 0 : index
    %c0_49 = arith.constant 0 : index
    %c0_50 = arith.constant 0 : index
    %102 = vector.load %arg3[%c0_48, %c0_49, %c0_50] : memref<1x1x8xf32, #tpu.memory_space<vmem>>, vector<1x1x8xf32>
    %103 = vector.shape_cast %102 : vector<1x1x8xf32> to vector<1x8xf32>
    %104 = vector.broadcast %103 : vector<1x8xf32> to vector<8x8xf32>
    %105 = arith.addf %101, %104 : vector<8x8xf32>
    %106 = arith.addf %99, %105 : vector<8x8xf32>
    %cst_51 = arith.constant dense<0xFF800000> : vector<8xf32>
    %107 = vector.multi_reduction <maximumf>, %106, %cst_51 [1] : vector<8x8xf32> to vector<8xf32>
    %108 = vector.shape_cast %107 : vector<8xf32> to vector<8x1xf32>
    %109 = vector.broadcast %108 : vector<8x1xf32> to vector<8x8xf32>
    %110 = arith.subf %106, %109 : vector<8x8xf32>
    %111 = math.exp %110 : vector<8x8xf32>
    %cst_52 = arith.constant dense<0.000000e+00> : vector<8xf32>
    %112 = vector.multi_reduction <add>, %111, %cst_52 [1] : vector<8x8xf32> to vector<8xf32>
    %113 = vector.shape_cast %112 : vector<8xf32> to vector<8x1xf32>
    %114 = tpu.reciprocal %113 {approx = true} : vector<8x1xf32> -> vector<8x1xf32>
    %115 = vector.broadcast %114 : vector<8x1xf32> to vector<8x8xf32>
    %116 = arith.mulf %111, %115 : vector<8x8xf32>
    %cst_53 = arith.constant dense<0.000000e+00> : vector<8x8xf32>
    %117 = tpu.matmul %116, %98, %cst_53 {dimension_numbers = #tpu.dot_dimension_numbers<[1], [0], [0], [1], [0, 0, 1, 1], [], []>} : vector<8x8xf32>, vector<8x8xf32>, vector<8x8xf32> -> vector<8x8xf32>
    %c24 = arith.constant 24 : index
    %c0_54 = arith.constant 0 : index
    %118 = vector.load %arg6[%c24, %c0_54] : memref<32x32xf32, #tpu.memory_space<vmem>>, vector<8x32xf32>
    %cst_55 = arith.constant dense<0.000000e+00> : vector<8x32xf32>
    %119 = tpu.matmul %117, %118, %cst_55 {dimension_numbers = #tpu.dot_dimension_numbers<[1], [0], [0], [1], [0, 0, 1, 1], [], []>} : vector<8x8xf32>, vector<8x32xf32>, vector<8x32xf32> -> vector<8x32xf32>
    %120 = arith.addf %95, %119 : vector<8x32xf32>
    %121 = arith.addf %1, %120 : vector<8x32xf32>
    %c0_56 = arith.constant 0 : index
    %c0_57 = arith.constant 0 : index
    %122 = vector.load %arg7[%c0_56, %c0_57] : memref<1x32xf32, #tpu.memory_space<vmem>>, vector<1x32xf32>
    %123 = arith.mulf %121, %121 : vector<8x32xf32>
    %cst_58 = arith.constant dense<0.000000e+00> : vector<8xf32>
    %124 = vector.multi_reduction <add>, %123, %cst_58 [1] : vector<8x32xf32> to vector<8xf32>
    %125 = vector.shape_cast %124 : vector<8xf32> to vector<8x1xf32>
    %cst_59 = arith.constant 3.200000e+01 : f32
    %126 = vector.broadcast %cst_59 : f32 to vector<8x1xf32>
    %127 = arith.divf %125, %126 : vector<8x1xf32>
    %cst_60 = arith.constant 9.99999997E-7 : f32
    %128 = vector.broadcast %cst_60 : f32 to vector<8x1xf32>
    %129 = arith.addf %127, %128 : vector<8x1xf32>
    %130 = math.rsqrt %129 : vector<8x1xf32>
    %131 = vector.broadcast %130 : vector<8x1xf32> to vector<8x32xf32>
    %132 = arith.mulf %121, %131 : vector<8x32xf32>
    %133 = vector.broadcast %122 : vector<1x32xf32> to vector<8x32xf32>
    %134 = arith.mulf %132, %133 : vector<8x32xf32>
    %c0_61 = arith.constant 0 : index
    %c0_62 = arith.constant 0 : index
    %135 = vector.load %arg8[%c0_61, %c0_62] : memref<32x64xf32, #tpu.memory_space<vmem>>, vector<32x64xf32>
    %cst_63 = arith.constant dense<0.000000e+00> : vector<8x64xf32>
    %136 = tpu.matmul %134, %135, %cst_63 {dimension_numbers = #tpu.dot_dimension_numbers<[1], [0], [0], [1], [0, 0, 1, 1], [], []>} : vector<8x32xf32>, vector<32x64xf32>, vector<8x64xf32> -> vector<8x64xf32>
    %cst_64 = arith.constant 0.000000e+00 : f32
    %137 = vector.broadcast %cst_64 : f32 to vector<8x64xf32>
    %138 = arith.maximumf %136, %137 : vector<8x64xf32>
    %c0_65 = arith.constant 0 : index
    %c0_66 = arith.constant 0 : index
    %139 = vector.load %arg9[%c0_65, %c0_66] : memref<64x32xf32, #tpu.memory_space<vmem>>, vector<64x32xf32>
    %cst_67 = arith.constant dense<0.000000e+00> : vector<8x32xf32>
    %140 = tpu.matmul %138, %139, %cst_67 {dimension_numbers = #tpu.dot_dimension_numbers<[1], [0], [0], [1], [0, 0, 1, 1], [], []>} : vector<8x64xf32>, vector<64x32xf32>, vector<8x32xf32> -> vector<8x32xf32>
    %141 = arith.addf %121, %140 : vector<8x32xf32>
    %c0_68 = arith.constant 0 : index
    %c0_69 = arith.constant 0 : index
    %c0_70 = arith.constant 0 : index
    %142 = vector.load %arg10[%c0_68, %c0_69, %c0_70] : memref<1x8x32xf32, #tpu.memory_space<vmem>>, vector<1x8x32xf32>
    %143 = vector.shape_cast %142 : vector<1x8x32xf32> to vector<8x32xf32>
    %144 = vector.shape_cast %141 : vector<8x32xf32> to vector<1x8x32xf32>
    tpu.vector_store %arg10[%c0_68, %c0_69, %c0_70], %144 {strides = array<i32>} : memref<1x8x32xf32, #tpu.memory_space<vmem>>, vector<1x8x32xf32>,
    return
  }
  func.func @transform_0(%arg0: i32) -> (i32, i32, i32) {
    %c0_i32 = arith.constant 0 : i32
    %c0_i32_0 = arith.constant 0 : i32
    %c0_i32_1 = arith.constant 0 : i32
    return %arg0, %c0_i32, %c0_i32_0 : i32, i32, i32
  }
  func.func @transform_1(%arg0: i32) -> (i32, i32, i32) {
    %c0_i32 = arith.constant 0 : i32
    %c0_i32_0 = arith.constant 0 : i32
    %c0_i32_1 = arith.constant 0 : i32
    %c0_i32_2 = arith.constant 0 : i32
    return %c0_i32, %c0_i32_0, %c0_i32_1 : i32, i32, i32
  }
  func.func @transform_2(%arg0: i32) -> (i32, i32, i32) {
    %c0_i32 = arith.constant 0 : i32
    %c0_i32_0 = arith.constant 0 : i32
    %c0_i32_1 = arith.constant 0 : i32
    return %arg0, %c0_i32, %c0_i32_0 : i32, i32, i32
  }
  func.func @transform_3(%arg0: i32) -> (i32, i32) {
    %c0_i32 = arith.constant 0 : i32
    %c0_i32_0 = arith.constant 0 : i32
    %c0_i32_1 = arith.constant 0 : i32
    return %c0_i32, %c0_i32_0 : i32, i32
  }
  func.func @transform_4(%arg0: i32) -> (i32, i32) {
    %c0_i32 = arith.constant 0 : i32
    %c0_i32_0 = arith.constant 0 : i32
    %c0_i32_1 = arith.constant 0 : i32
    return %c0_i32, %c0_i32_0 : i32, i32
  }
  func.func @transform_5(%arg0: i32) -> (i32, i32) {
    %c0_i32 = arith.constant 0 : i32
    %c0_i32_0 = arith.constant 0 : i32
    %c0_i32_1 = arith.constant 0 : i32
    return %c0_i32, %c0_i32_0 : i32, i32
  }
  func.func @transform_6(%arg0: i32) -> (i32, i32) {
    %c0_i32 = arith.constant 0 : i32
    %c0_i32_0 = arith.constant 0 : i32
    %c0_i32_1 = arith.constant 0 : i32
    return %c0_i32, %c0_i32_0 : i32, i32
  }
  func.func @transform_7(%arg0: i32) -> (i32, i32) {
    %c0_i32 = arith.constant 0 : i32
    %c0_i32_0 = arith.constant 0 : i32
    %c0_i32_1 = arith.constant 0 : i32
    return %c0_i32, %c0_i32_0 : i32, i32
  }
  func.func @transform_8(%arg0: i32) -> (i32, i32) {
    %c0_i32 = arith.constant 0 : i32
    %c0_i32_0 = arith.constant 0 : i32
    %c0_i32_1 = arith.constant 0 : i32
    return %c0_i32, %c0_i32_0 : i32, i32
  }
  func.func @transform_9(%arg0: i32) -> (i32, i32, i32) {
    %c0_i32 = arith.constant 0 : i32
    %c0_i32_0 = arith.constant 0 : i32
    %c0_i32_1 = arith.constant 0 : i32
    return %arg0, %c0_i32, %c0_i32_0 : i32, i32, i32
  }
}

module attributes {stable_mosaic.version = 11 : i64} {
  func.func @kernel(%arg0: i32, %arg1: memref<1x8x32xf32, #tpu.memory_space<vmem>>, %arg2: memref<1x32xf32, #tpu.memory_space<vmem>>, %arg3: memref<32x64xf32, #tpu.memory_space<vmem>>, %arg4: memref<1x8x64xf32, #tpu.memory_space<vmem>>) attributes {dimension_semantics = [#tpu.dimension_semantics<parallel>], iteration_bounds = array<i64: 2>, scalar_prefetch = 0 : i64, scratch_operands = 0 : i64, tpu.core_type = #tpu.core_type<tc>, window_params = [{transform_indices = @transform_0, window_bounds = array<i64: 1, 8, 32>}, {pipeline_mode = #tpu.pipeline_mode<synchronous>, transform_indices = @transform_1, window_bounds = array<i64: 1, 32>}, {pipeline_mode = #tpu.pipeline_mode<synchronous>, transform_indices = @transform_2, window_bounds = array<i64: 32, 64>}, {transform_indices = @transform_3, window_bounds = array<i64: 1, 8, 64>}]} {
    %c0 = arith.constant 0 : index
    %c0_0 = arith.constant 0 : index
    %c0_1 = arith.constant 0 : index
    %0 = vector.load %arg1[%c0, %c0_0, %c0_1] : memref<1x8x32xf32, #tpu.memory_space<vmem>>, vector<1x8x32xf32>
    %1 = vector.shape_cast %0 : vector<1x8x32xf32> to vector<8x32xf32>
    %c0_2 = arith.constant 0 : index
    %c0_3 = arith.constant 0 : index
    %2 = vector.load %arg2[%c0_2, %c0_3] : memref<1x32xf32, #tpu.memory_space<vmem>>, vector<1x32xf32>
    %3 = arith.mulf %1, %1 : vector<8x32xf32>
    %cst = arith.constant dense<0.000000e+00> : vector<8xf32>
    %4 = vector.multi_reduction <add>, %3, %cst [1] : vector<8x32xf32> to vector<8xf32>
    %5 = vector.shape_cast %4 : vector<8xf32> to vector<8x1xf32>
    %cst_4 = arith.constant 3.200000e+01 : f32
    %6 = vector.broadcast %cst_4 : f32 to vector<8x1xf32>
    %7 = arith.divf %5, %6 : vector<8x1xf32>
    %cst_5 = arith.constant 9.99999997E-7 : f32
    %8 = vector.broadcast %cst_5 : f32 to vector<8x1xf32>
    %9 = arith.addf %7, %8 : vector<8x1xf32>
    %10 = math.rsqrt %9 : vector<8x1xf32>
    %11 = vector.broadcast %10 : vector<8x1xf32> to vector<8x32xf32>
    %12 = arith.mulf %1, %11 : vector<8x32xf32>
    %13 = vector.broadcast %2 : vector<1x32xf32> to vector<8x32xf32>
    %14 = arith.mulf %12, %13 : vector<8x32xf32>
    %cst_6 = arith.constant 0.176776692 : f32
    %15 = vector.broadcast %cst_6 : f32 to vector<8x32xf32>
    %16 = arith.mulf %14, %15 : vector<8x32xf32>
    %c0_7 = arith.constant 0 : index
    %c0_8 = arith.constant 0 : index
    %17 = vector.load %arg3[%c0_7, %c0_8] : memref<32x64xf32, #tpu.memory_space<vmem>>, vector<32x64xf32>
    %cst_9 = arith.constant dense<0.000000e+00> : vector<8x64xf32>
    %18 = tpu.matmul %16, %17, %cst_9 {dimension_numbers = #tpu.dot_dimension_numbers<[1], [0], [0], [1], [0, 0, 1, 1], [], []>} : vector<8x32xf32>, vector<32x64xf32>, vector<8x64xf32> -> vector<8x64xf32>
    %c0_10 = arith.constant 0 : index
    %c0_11 = arith.constant 0 : index
    %c0_12 = arith.constant 0 : index
    %19 = vector.load %arg4[%c0_10, %c0_11, %c0_12] : memref<1x8x64xf32, #tpu.memory_space<vmem>>, vector<1x8x64xf32>
    %20 = vector.shape_cast %19 : vector<1x8x64xf32> to vector<8x64xf32>
    %21 = vector.shape_cast %18 : vector<8x64xf32> to vector<1x8x64xf32>
    tpu.vector_store %arg4[%c0_10, %c0_11, %c0_12], %21 {strides = array<i32>} : memref<1x8x64xf32, #tpu.memory_space<vmem>>, vector<1x8x64xf32>,
    return
  }
  func.func @transform_0(%arg0: i32) -> (i32, i32, i32) {
    %c0_i32 = arith.constant 0 : i32
    %c0_i32_0 = arith.constant 0 : i32
    %c0_i32_1 = arith.constant 0 : i32
    return %arg0, %c0_i32, %c0_i32_0 : i32, i32, i32
  }
  func.func @transform_1(%arg0: i32) -> (i32, i32) {
    %c0_i32 = arith.constant 0 : i32
    %c0_i32_0 = arith.constant 0 : i32
    %c0_i32_1 = arith.constant 0 : i32
    return %c0_i32, %c0_i32_0 : i32, i32
  }
  func.func @transform_2(%arg0: i32) -> (i32, i32) {
    %c0_i32 = arith.constant 0 : i32
    %c0_i32_0 = arith.constant 0 : i32
    %c0_i32_1 = arith.constant 0 : i32
    return %c0_i32, %c0_i32_0 : i32, i32
  }
  func.func @transform_3(%arg0: i32) -> (i32, i32, i32) {
    %c0_i32 = arith.constant 0 : i32
    %c0_i32_0 = arith.constant 0 : i32
    %c0_i32_1 = arith.constant 0 : i32
    return %arg0, %c0_i32, %c0_i32_0 : i32, i32, i32
  }
}

module attributes {stable_mosaic.version = 11 : i64} {
  func.func @kernel(%arg0: i32, %arg1: memref<1x8x32xf32, #tpu.memory_space<vmem>>, %arg2: memref<1x8x32xf32, #tpu.memory_space<vmem>>, %arg3: memref<4x8x8xf32, #tpu.memory_space<vmem>>, %arg4: memref<1x1x8xf32, #tpu.memory_space<vmem>>, %arg5: memref<1x32xf32, #tpu.memory_space<vmem>>, %arg6: memref<32x96xf32, #tpu.memory_space<vmem>>, %arg7: memref<32x32xf32, #tpu.memory_space<vmem>>, %arg8: memref<1x32xf32, #tpu.memory_space<vmem>>, %arg9: memref<32x32xf32, #tpu.memory_space<vmem>>, %arg10: memref<32x64xf32, #tpu.memory_space<vmem>>, %arg11: memref<32x32xf32, #tpu.memory_space<vmem>>, %arg12: memref<1x32xf32, #tpu.memory_space<vmem>>, %arg13: memref<32x64xf32, #tpu.memory_space<vmem>>, %arg14: memref<64x32xf32, #tpu.memory_space<vmem>>, %arg15: memref<1x8x32xf32, #tpu.memory_space<vmem>>) attributes {dimension_semantics = [#tpu.dimension_semantics<parallel>], iteration_bounds = array<i64: 2>, scalar_prefetch = 0 : i64, scratch_operands = 0 : i64, tpu.core_type = #tpu.core_type<tc>, window_params = [{transform_indices = @transform_0, window_bounds = array<i64: 1, 8, 32>}, {transform_indices = @transform_1, window_bounds = array<i64: 1, 8, 32>}, {pipeline_mode = #tpu.pipeline_mode<synchronous>, transform_indices = @transform_2, window_bounds = array<i64: 4, 8, 8>}, {transform_indices = @transform_3, window_bounds = array<i64: 1, 1, 8>}, {pipeline_mode = #tpu.pipeline_mode<synchronous>, transform_indices = @transform_4, window_bounds = array<i64: 1, 32>}, {pipeline_mode = #tpu.pipeline_mode<synchronous>, transform_indices = @transform_5, window_bounds = array<i64: 32, 96>}, {pipeline_mode = #tpu.pipeline_mode<synchronous>, transform_indices = @transform_6, window_bounds = array<i64: 32, 32>}, {pipeline_mode = #tpu.pipeline_mode<synchronous>, transform_indices = @transform_7, window_bounds = array<i64: 1, 32>}, {pipeline_mode = #tpu.pipeline_mode<synchronous>, transform_indices = @transform_8, window_bounds = array<i64: 32, 32>}, {pipeline_mode = #tpu.pipeline_mode<synchronous>, transform_indices = @transform_9, window_bounds = array<i64: 32, 64>}, {pipeline_mode = #tpu.pipeline_mode<synchronous>, transform_indices = @transform_10, window_bounds = array<i64: 32, 32>}, {pipeline_mode = #tpu.pipeline_mode<synchronous>, transform_indices = @transform_11, window_bounds = array<i64: 1, 32>}, {pipeline_mode = #tpu.pipeline_mode<synchronous>, transform_indices = @transform_12, window_bounds = array<i64: 32, 64>}, {pipeline_mode = #tpu.pipeline_mode<synchronous>, transform_indices = @transform_13, window_bounds = array<i64: 64, 32>}, {transform_indices = @transform_14, window_bounds = array<i64: 1, 8, 32>}]} {
    %c0 = arith.constant 0 : index
    %c0_0 = arith.constant 0 : index
    %c0_1 = arith.constant 0 : index
    %0 = vector.load %arg1[%c0, %c0_0, %c0_1] : memref<1x8x32xf32, #tpu.memory_space<vmem>>, vector<1x8x32xf32>
    %1 = vector.shape_cast %0 : vector<1x8x32xf32> to vector<8x32xf32>
    %c0_2 = arith.constant 0 : index
    %c0_3 = arith.constant 0 : index
    %c0_4 = arith.constant 0 : index
    %2 = vector.load %arg2[%c0_2, %c0_3, %c0_4] : memref<1x8x32xf32, #tpu.memory_space<vmem>>, vector<1x8x32xf32>
    %3 = vector.shape_cast %2 : vector<1x8x32xf32> to vector<8x32xf32>
    %c0_5 = arith.constant 0 : index
    %c0_6 = arith.constant 0 : index
    %4 = vector.load %arg5[%c0_5, %c0_6] : memref<1x32xf32, #tpu.memory_space<vmem>>, vector<1x32xf32>
    %5 = arith.mulf %1, %1 : vector<8x32xf32>
    %cst = arith.constant dense<0.000000e+00> : vector<8xf32>
    %6 = vector.multi_reduction <add>, %5, %cst [1] : vector<8x32xf32> to vector<8xf32>
    %7 = vector.shape_cast %6 : vector<8xf32> to vector<8x1xf32>
    %cst_7 = arith.constant 3.200000e+01 : f32
    %8 = vector.broadcast %cst_7 : f32 to vector<8x1xf32>
    %9 = arith.divf %7, %8 : vector<8x1xf32>
    %cst_8 = arith.constant 9.99999997E-7 : f32
    %10 = vector.broadcast %cst_8 : f32 to vector<8x1xf32>
    %11 = arith.addf %9, %10 : vector<8x1xf32>
    %12 = math.rsqrt %11 : vector<8x1xf32>
    %13 = vector.broadcast %12 : vector<8x1xf32> to vector<8x32xf32>
    %14 = arith.mulf %1, %13 : vector<8x32xf32>
    %15 = vector.broadcast %4 : vector<1x32xf32> to vector<8x32xf32>
    %16 = arith.mulf %14, %15 : vector<8x32xf32>
    %c0_9 = arith.constant 0 : index
    %c0_10 = arith.constant 0 : index
    %17 = vector.load %arg6[%c0_9, %c0_10] : memref<32x96xf32, #tpu.memory_space<vmem>>, vector<32x96xf32>
    %cst_11 = arith.constant dense<0.000000e+00> : vector<8x96xf32>
    %18 = tpu.matmul %16, %17, %cst_11 {dimension_numbers = #tpu.dot_dimension_numbers<[1], [0], [0], [1], [0, 0, 1, 1], [], []>} : vector<8x32xf32>, vector<32x96xf32>, vector<8x96xf32> -> vector<8x96xf32>
    %19 = vector.extract_strided_slice %18 {offsets = [0, 0], sizes = [8, 32], strides = [1, 1]} : vector<8x96xf32> to vector<8x32xf32>
    %20 = vector.extract_strided_slice %18 {offsets = [0, 32], sizes = [8, 32], strides = [1, 1]} : vector<8x96xf32> to vector<8x32xf32>
    %21 = vector.extract_strided_slice %18 {offsets = [0, 64], sizes = [8, 32], strides = [1, 1]} : vector<8x96xf32> to vector<8x32xf32>
    %cst_12 = arith.constant 0.000000e+00 : f32
    %22 = vector.broadcast %cst_12 : f32 to vector<8x32xf32>
    %23 = vector.extract_strided_slice %19 {offsets = [0, 0], sizes = [8, 8], strides = [1, 1]} : vector<8x32xf32> to vector<8x8xf32>
    %24 = vector.extract_strided_slice %20 {offsets = [0, 0], sizes = [8, 8], strides = [1, 1]} : vector<8x32xf32> to vector<8x8xf32>
    %25 = vector.extract_strided_slice %21 {offsets = [0, 0], sizes = [8, 8], strides = [1, 1]} : vector<8x32xf32> to vector<8x8xf32>
    %cst_13 = arith.constant dense<0.000000e+00> : vector<8x8xf32>
    %26 = tpu.matmul %23, %24, %cst_13 {dimension_numbers = #tpu.dot_dimension_numbers<[1], [1], [0], [0], [0, 0, 1, 0], [], []>} : vector<8x8xf32>, vector<8x8xf32>, vector<8x8xf32> -> vector<8x8xf32>
    %c0_14 = arith.constant 0 : index
    %c0_15 = arith.constant 0 : index
    %c0_16 = arith.constant 0 : index
    %27 = vector.load %arg3[%c0_14, %c0_15, %c0_16] : memref<4x8x8xf32, #tpu.memory_space<vmem>>, vector<1x8x8xf32>
    %28 = vector.shape_cast %27 : vector<1x8x8xf32> to vector<8x8xf32>
    %29 = arith.addf %26, %28 : vector<8x8xf32>
    %cst_17 = arith.constant dense<0xFF800000> : vector<8xf32>
    %30 = vector.multi_reduction <maximumf>, %29, %cst_17 [1] : vector<8x8xf32> to vector<8xf32>
    %31 = vector.shape_cast %30 : vector<8xf32> to vector<8x1xf32>
    %32 = vector.broadcast %31 : vector<8x1xf32> to vector<8x8xf32>
    %33 = arith.subf %29, %32 : vector<8x8xf32>
    %34 = math.exp %33 : vector<8x8xf32>
    %cst_18 = arith.constant dense<0.000000e+00> : vector<8xf32>
    %35 = vector.multi_reduction <add>, %34, %cst_18 [1] : vector<8x8xf32> to vector<8xf32>
    %36 = vector.shape_cast %35 : vector<8xf32> to vector<8x1xf32>
    %37 = tpu.reciprocal %36 {approx = true} : vector<8x1xf32> -> vector<8x1xf32>
    %38 = vector.broadcast %37 : vector<8x1xf32> to vector<8x8xf32>
    %39 = arith.mulf %34, %38 : vector<8x8xf32>
    %cst_19 = arith.constant dense<0.000000e+00> : vector<8x8xf32>
    %40 = tpu.matmul %39, %25, %cst_19 {dimension_numbers = #tpu.dot_dimension_numbers<[1], [0], [0], [1], [0, 0, 1, 1], [], []>} : vector<8x8xf32>, vector<8x8xf32>, vector<8x8xf32> -> vector<8x8xf32>
    %c0_20 = arith.constant 0 : index
    %c0_21 = arith.constant 0 : index
    %41 = vector.load %arg7[%c0_20, %c0_21] : memref<32x32xf32, #tpu.memory_space<vmem>>, vector<8x32xf32>
    %cst_22 = arith.constant dense<0.000000e+00> : vector<8x32xf32>
    %42 = tpu.matmul %40, %41, %cst_22 {dimension_numbers = #tpu.dot_dimension_numbers<[1], [0], [0], [1], [0, 0, 1, 1], [], []>} : vector<8x8xf32>, vector<8x32xf32>, vector<8x32xf32> -> vector<8x32xf32>
    %43 = arith.addf %22, %42 : vector<8x32xf32>
    %44 = vector.extract_strided_slice %19 {offsets = [0, 8], sizes = [8, 8], strides = [1, 1]} : vector<8x32xf32> to vector<8x8xf32>
    %45 = vector.extract_strided_slice %20 {offsets = [0, 8], sizes = [8, 8], strides = [1, 1]} : vector<8x32xf32> to vector<8x8xf32>
    %46 = vector.extract_strided_slice %21 {offsets = [0, 8], sizes = [8, 8], strides = [1, 1]} : vector<8x32xf32> to vector<8x8xf32>
    %cst_23 = arith.constant dense<0.000000e+00> : vector<8x8xf32>
    %47 = tpu.matmul %44, %45, %cst_23 {dimension_numbers = #tpu.dot_dimension_numbers<[1], [1], [0], [0], [0, 0, 1, 0], [], []>} : vector<8x8xf32>, vector<8x8xf32>, vector<8x8xf32> -> vector<8x8xf32>
    %c1 = arith.constant 1 : index
    %c0_24 = arith.constant 0 : index
    %c0_25 = arith.constant 0 : index
    %48 = vector.load %arg3[%c1, %c0_24, %c0_25] : memref<4x8x8xf32, #tpu.memory_space<vmem>>, vector<1x8x8xf32>
    %49 = vector.shape_cast %48 : vector<1x8x8xf32> to vector<8x8xf32>
    %50 = arith.addf %47, %49 : vector<8x8xf32>
    %cst_26 = arith.constant dense<0xFF800000> : vector<8xf32>
    %51 = vector.multi_reduction <maximumf>, %50, %cst_26 [1] : vector<8x8xf32> to vector<8xf32>
    %52 = vector.shape_cast %51 : vector<8xf32> to vector<8x1xf32>
    %53 = vector.broadcast %52 : vector<8x1xf32> to vector<8x8xf32>
    %54 = arith.subf %50, %53 : vector<8x8xf32>
    %55 = math.exp %54 : vector<8x8xf32>
    %cst_27 = arith.constant dense<0.000000e+00> : vector<8xf32>
    %56 = vector.multi_reduction <add>, %55, %cst_27 [1] : vector<8x8xf32> to vector<8xf32>
    %57 = vector.shape_cast %56 : vector<8xf32> to vector<8x1xf32>
    %58 = tpu.reciprocal %57 {approx = true} : vector<8x1xf32> -> vector<8x1xf32>
    %59 = vector.broadcast %58 : vector<8x1xf32> to vector<8x8xf32>
    %60 = arith.mulf %55, %59 : vector<8x8xf32>
    %cst_28 = arith.constant dense<0.000000e+00> : vector<8x8xf32>
    %61 = tpu.matmul %60, %46, %cst_28 {dimension_numbers = #tpu.dot_dimension_numbers<[1], [0], [0], [1], [0, 0, 1, 1], [], []>} : vector<8x8xf32>, vector<8x8xf32>, vector<8x8xf32> -> vector<8x8xf32>
    %c8 = arith.constant 8 : index
    %c0_29 = arith.constant 0 : index
    %62 = vector.load %arg7[%c8, %c0_29] : memref<32x32xf32, #tpu.memory_space<vmem>>, vector<8x32xf32>
    %cst_30 = arith.constant dense<0.000000e+00> : vector<8x32xf32>
    %63 = tpu.matmul %61, %62, %cst_30 {dimension_numbers = #tpu.dot_dimension_numbers<[1], [0], [0], [1], [0, 0, 1, 1], [], []>} : vector<8x8xf32>, vector<8x32xf32>, vector<8x32xf32> -> vector<8x32xf32>
    %64 = arith.addf %43, %63 : vector<8x32xf32>
    %65 = vector.extract_strided_slice %19 {offsets = [0, 16], sizes = [8, 8], strides = [1, 1]} : vector<8x32xf32> to vector<8x8xf32>
    %66 = vector.extract_strided_slice %20 {offsets = [0, 16], sizes = [8, 8], strides = [1, 1]} : vector<8x32xf32> to vector<8x8xf32>
    %67 = vector.extract_strided_slice %21 {offsets = [0, 16], sizes = [8, 8], strides = [1, 1]} : vector<8x32xf32> to vector<8x8xf32>
    %cst_31 = arith.constant dense<0.000000e+00> : vector<8x8xf32>
    %68 = tpu.matmul %65, %66, %cst_31 {dimension_numbers = #tpu.dot_dimension_numbers<[1], [1], [0], [0], [0, 0, 1, 0], [], []>} : vector<8x8xf32>, vector<8x8xf32>, vector<8x8xf32> -> vector<8x8xf32>
    %c2 = arith.constant 2 : index
    %c0_32 = arith.constant 0 : index
    %c0_33 = arith.constant 0 : index
    %69 = vector.load %arg3[%c2, %c0_32, %c0_33] : memref<4x8x8xf32, #tpu.memory_space<vmem>>, vector<1x8x8xf32>
    %70 = vector.shape_cast %69 : vector<1x8x8xf32> to vector<8x8xf32>
    %71 = arith.addf %68, %70 : vector<8x8xf32>
    %cst_34 = arith.constant dense<0xFF800000> : vector<8xf32>
    %72 = vector.multi_reduction <maximumf>, %71, %cst_34 [1] : vector<8x8xf32> to vector<8xf32>
    %73 = vector.shape_cast %72 : vector<8xf32> to vector<8x1xf32>
    %74 = vector.broadcast %73 : vector<8x1xf32> to vector<8x8xf32>
    %75 = arith.subf %71, %74 : vector<8x8xf32>
    %76 = math.exp %75 : vector<8x8xf32>
    %cst_35 = arith.constant dense<0.000000e+00> : vector<8xf32>
    %77 = vector.multi_reduction <add>, %76, %cst_35 [1] : vector<8x8xf32> to vector<8xf32>
    %78 = vector.shape_cast %77 : vector<8xf32> to vector<8x1xf32>
    %79 = tpu.reciprocal %78 {approx = true} : vector<8x1xf32> -> vector<8x1xf32>
    %80 = vector.broadcast %79 : vector<8x1xf32> to vector<8x8xf32>
    %81 = arith.mulf %76, %80 : vector<8x8xf32>
    %cst_36 = arith.constant dense<0.000000e+00> : vector<8x8xf32>
    %82 = tpu.matmul %81, %67, %cst_36 {dimension_numbers = #tpu.dot_dimension_numbers<[1], [0], [0], [1], [0, 0, 1, 1], [], []>} : vector<8x8xf32>, vector<8x8xf32>, vector<8x8xf32> -> vector<8x8xf32>
    %c16 = arith.constant 16 : index
    %c0_37 = arith.constant 0 : index
    %83 = vector.load %arg7[%c16, %c0_37] : memref<32x32xf32, #tpu.memory_space<vmem>>, vector<8x32xf32>
    %cst_38 = arith.constant dense<0.000000e+00> : vector<8x32xf32>
    %84 = tpu.matmul %82, %83, %cst_38 {dimension_numbers = #tpu.dot_dimension_numbers<[1], [0], [0], [1], [0, 0, 1, 1], [], []>} : vector<8x8xf32>, vector<8x32xf32>, vector<8x32xf32> -> vector<8x32xf32>
    %85 = arith.addf %64, %84 : vector<8x32xf32>
    %86 = vector.extract_strided_slice %19 {offsets = [0, 24], sizes = [8, 8], strides = [1, 1]} : vector<8x32xf32> to vector<8x8xf32>
    %87 = vector.extract_strided_slice %20 {offsets = [0, 24], sizes = [8, 8], strides = [1, 1]} : vector<8x32xf32> to vector<8x8xf32>
    %88 = vector.extract_strided_slice %21 {offsets = [0, 24], sizes = [8, 8], strides = [1, 1]} : vector<8x32xf32> to vector<8x8xf32>
    %cst_39 = arith.constant dense<0.000000e+00> : vector<8x8xf32>
    %89 = tpu.matmul %86, %87, %cst_39 {dimension_numbers = #tpu.dot_dimension_numbers<[1], [1], [0], [0], [0, 0, 1, 0], [], []>} : vector<8x8xf32>, vector<8x8xf32>, vector<8x8xf32> -> vector<8x8xf32>
    %c3 = arith.constant 3 : index
    %c0_40 = arith.constant 0 : index
    %c0_41 = arith.constant 0 : index
    %90 = vector.load %arg3[%c3, %c0_40, %c0_41] : memref<4x8x8xf32, #tpu.memory_space<vmem>>, vector<1x8x8xf32>
    %91 = vector.shape_cast %90 : vector<1x8x8xf32> to vector<8x8xf32>
    %92 = arith.addf %89, %91 : vector<8x8xf32>
    %cst_42 = arith.constant dense<0xFF800000> : vector<8xf32>
    %93 = vector.multi_reduction <maximumf>, %92, %cst_42 [1] : vector<8x8xf32> to vector<8xf32>
    %94 = vector.shape_cast %93 : vector<8xf32> to vector<8x1xf32>
    %95 = vector.broadcast %94 : vector<8x1xf32> to vector<8x8xf32>
    %96 = arith.subf %92, %95 : vector<8x8xf32>
    %97 = math.exp %96 : vector<8x8xf32>
    %cst_43 = arith.constant dense<0.000000e+00> : vector<8xf32>
    %98 = vector.multi_reduction <add>, %97, %cst_43 [1] : vector<8x8xf32> to vector<8xf32>
    %99 = vector.shape_cast %98 : vector<8xf32> to vector<8x1xf32>
    %100 = tpu.reciprocal %99 {approx = true} : vector<8x1xf32> -> vector<8x1xf32>
    %101 = vector.broadcast %100 : vector<8x1xf32> to vector<8x8xf32>
    %102 = arith.mulf %97, %101 : vector<8x8xf32>
    %cst_44 = arith.constant dense<0.000000e+00> : vector<8x8xf32>
    %103 = tpu.matmul %102, %88, %cst_44 {dimension_numbers = #tpu.dot_dimension_numbers<[1], [0], [0], [1], [0, 0, 1, 1], [], []>} : vector<8x8xf32>, vector<8x8xf32>, vector<8x8xf32> -> vector<8x8xf32>
    %c24 = arith.constant 24 : index
    %c0_45 = arith.constant 0 : index
    %104 = vector.load %arg7[%c24, %c0_45] : memref<32x32xf32, #tpu.memory_space<vmem>>, vector<8x32xf32>
    %cst_46 = arith.constant dense<0.000000e+00> : vector<8x32xf32>
    %105 = tpu.matmul %103, %104, %cst_46 {dimension_numbers = #tpu.dot_dimension_numbers<[1], [0], [0], [1], [0, 0, 1, 1], [], []>} : vector<8x8xf32>, vector<8x32xf32>, vector<8x32xf32> -> vector<8x32xf32>
    %106 = arith.addf %85, %105 : vector<8x32xf32>
    %107 = arith.addf %1, %106 : vector<8x32xf32>
    %c0_47 = arith.constant 0 : index
    %c0_48 = arith.constant 0 : index
    %108 = vector.load %arg8[%c0_47, %c0_48] : memref<1x32xf32, #tpu.memory_space<vmem>>, vector<1x32xf32>
    %109 = arith.mulf %107, %107 : vector<8x32xf32>
    %cst_49 = arith.constant dense<0.000000e+00> : vector<8xf32>
    %110 = vector.multi_reduction <add>, %109, %cst_49 [1] : vector<8x32xf32> to vector<8xf32>
    %111 = vector.shape_cast %110 : vector<8xf32> to vector<8x1xf32>
    %cst_50 = arith.constant 3.200000e+01 : f32
    %112 = vector.broadcast %cst_50 : f32 to vector<8x1xf32>
    %113 = arith.divf %111, %112 : vector<8x1xf32>
    %cst_51 = arith.constant 9.99999997E-7 : f32
    %114 = vector.broadcast %cst_51 : f32 to vector<8x1xf32>
    %115 = arith.addf %113, %114 : vector<8x1xf32>
    %116 = math.rsqrt %115 : vector<8x1xf32>
    %117 = vector.broadcast %116 : vector<8x1xf32> to vector<8x32xf32>
    %118 = arith.mulf %107, %117 : vector<8x32xf32>
    %119 = vector.broadcast %108 : vector<1x32xf32> to vector<8x32xf32>
    %120 = arith.mulf %118, %119 : vector<8x32xf32>
    %c0_52 = arith.constant 0 : index
    %c0_53 = arith.constant 0 : index
    %121 = vector.load %arg9[%c0_52, %c0_53] : memref<32x32xf32, #tpu.memory_space<vmem>>, vector<32x32xf32>
    %cst_54 = arith.constant dense<0.000000e+00> : vector<8x32xf32>
    %122 = tpu.matmul %120, %121, %cst_54 {dimension_numbers = #tpu.dot_dimension_numbers<[1], [0], [0], [1], [0, 0, 1, 1], [], []>} : vector<8x32xf32>, vector<32x32xf32>, vector<8x32xf32> -> vector<8x32xf32>
    %c0_55 = arith.constant 0 : index
    %c0_56 = arith.constant 0 : index
    %123 = vector.load %arg10[%c0_55, %c0_56] : memref<32x64xf32, #tpu.memory_space<vmem>>, vector<32x64xf32>
    %cst_57 = arith.constant dense<0.000000e+00> : vector<8x64xf32>
    %124 = tpu.matmul %3, %123, %cst_57 {dimension_numbers = #tpu.dot_dimension_numbers<[1], [0], [0], [1], [0, 0, 1, 1], [], []>} : vector<8x32xf32>, vector<32x64xf32>, vector<8x64xf32> -> vector<8x64xf32>
    %125 = vector.extract_strided_slice %124 {offsets = [0, 0], sizes = [8, 32], strides = [1, 1]} : vector<8x64xf32> to vector<8x32xf32>
    %126 = vector.extract_strided_slice %124 {offsets = [0, 32], sizes = [8, 32], strides = [1, 1]} : vector<8x64xf32> to vector<8x32xf32>
    %cst_58 = arith.constant 0.000000e+00 : f32
    %127 = vector.broadcast %cst_58 : f32 to vector<8x32xf32>
    %128 = vector.extract_strided_slice %122 {offsets = [0, 0], sizes = [8, 8], strides = [1, 1]} : vector<8x32xf32> to vector<8x8xf32>
    %129 = vector.extract_strided_slice %125 {offsets = [0, 0], sizes = [8, 8], strides = [1, 1]} : vector<8x32xf32> to vector<8x8xf32>
    %130 = vector.extract_strided_slice %126 {offsets = [0, 0], sizes = [8, 8], strides = [1, 1]} : vector<8x32xf32> to vector<8x8xf32>
    %cst_59 = arith.constant dense<0.000000e+00> : vector<8x8xf32>
    %131 = tpu.matmul %128, %129, %cst_59 {dimension_numbers = #tpu.dot_dimension_numbers<[1], [1], [0], [0], [0, 0, 1, 0], [], []>} : vector<8x8xf32>, vector<8x8xf32>, vector<8x8xf32> -> vector<8x8xf32>
    %c0_60 = arith.constant 0 : index
    %c0_61 = arith.constant 0 : index
    %c0_62 = arith.constant 0 : index
    %132 = vector.load %arg4[%c0_60, %c0_61, %c0_62] : memref<1x1x8xf32, #tpu.memory_space<vmem>>, vector<1x1x8xf32>
    %133 = vector.shape_cast %132 : vector<1x1x8xf32> to vector<1x8xf32>
    %134 = vector.broadcast %133 : vector<1x8xf32> to vector<8x8xf32>
    %135 = arith.addf %131, %134 : vector<8x8xf32>
    %cst_63 = arith.constant dense<0xFF800000> : vector<8xf32>
    %136 = vector.multi_reduction <maximumf>, %135, %cst_63 [1] : vector<8x8xf32> to vector<8xf32>
    %137 = vector.shape_cast %136 : vector<8xf32> to vector<8x1xf32>
    %138 = vector.broadcast %137 : vector<8x1xf32> to vector<8x8xf32>
    %139 = arith.subf %135, %138 : vector<8x8xf32>
    %140 = math.exp %139 : vector<8x8xf32>
    %cst_64 = arith.constant dense<0.000000e+00> : vector<8xf32>
    %141 = vector.multi_reduction <add>, %140, %cst_64 [1] : vector<8x8xf32> to vector<8xf32>
    %142 = vector.shape_cast %141 : vector<8xf32> to vector<8x1xf32>
    %143 = tpu.reciprocal %142 {approx = true} : vector<8x1xf32> -> vector<8x1xf32>
    %144 = vector.broadcast %143 : vector<8x1xf32> to vector<8x8xf32>
    %145 = arith.mulf %140, %144 : vector<8x8xf32>
    %cst_65 = arith.constant dense<0.000000e+00> : vector<8x8xf32>
    %146 = tpu.matmul %145, %130, %cst_65 {dimension_numbers = #tpu.dot_dimension_numbers<[1], [0], [0], [1], [0, 0, 1, 1], [], []>} : vector<8x8xf32>, vector<8x8xf32>, vector<8x8xf32> -> vector<8x8xf32>
    %c0_66 = arith.constant 0 : index
    %c0_67 = arith.constant 0 : index
    %147 = vector.load %arg11[%c0_66, %c0_67] : memref<32x32xf32, #tpu.memory_space<vmem>>, vector<8x32xf32>
    %cst_68 = arith.constant dense<0.000000e+00> : vector<8x32xf32>
    %148 = tpu.matmul %146, %147, %cst_68 {dimension_numbers = #tpu.dot_dimension_numbers<[1], [0], [0], [1], [0, 0, 1, 1], [], []>} : vector<8x8xf32>, vector<8x32xf32>, vector<8x32xf32> -> vector<8x32xf32>
    %149 = arith.addf %127, %148 : vector<8x32xf32>
    %150 = vector.extract_strided_slice %122 {offsets = [0, 8], sizes = [8, 8], strides = [1, 1]} : vector<8x32xf32> to vector<8x8xf32>
    %151 = vector.extract_strided_slice %125 {offsets = [0, 8], sizes = [8, 8], strides = [1, 1]} : vector<8x32xf32> to vector<8x8xf32>
    %152 = vector.extract_strided_slice %126 {offsets = [0, 8], sizes = [8, 8], strides = [1, 1]} : vector<8x32xf32> to vector<8x8xf32>
    %cst_69 = arith.constant dense<0.000000e+00> : vector<8x8xf32>
    %153 = tpu.matmul %150, %151, %cst_69 {dimension_numbers = #tpu.dot_dimension_numbers<[1], [1], [0], [0], [0, 0, 1, 0], [], []>} : vector<8x8xf32>, vector<8x8xf32>, vector<8x8xf32> -> vector<8x8xf32>
    %c0_70 = arith.constant 0 : index
    %c0_71 = arith.constant 0 : index
    %c0_72 = arith.constant 0 : index
    %154 = vector.load %arg4[%c0_70, %c0_71, %c0_72] : memref<1x1x8xf32, #tpu.memory_space<vmem>>, vector<1x1x8xf32>
    %155 = vector.shape_cast %154 : vector<1x1x8xf32> to vector<1x8xf32>
    %156 = vector.broadcast %155 : vector<1x8xf32> to vector<8x8xf32>
    %157 = arith.addf %153, %156 : vector<8x8xf32>
    %cst_73 = arith.constant dense<0xFF800000> : vector<8xf32>
    %158 = vector.multi_reduction <maximumf>, %157, %cst_73 [1] : vector<8x8xf32> to vector<8xf32>
    %159 = vector.shape_cast %158 : vector<8xf32> to vector<8x1xf32>
    %160 = vector.broadcast %159 : vector<8x1xf32> to vector<8x8xf32>
    %161 = arith.subf %157, %160 : vector<8x8xf32>
    %162 = math.exp %161 : vector<8x8xf32>
    %cst_74 = arith.constant dense<0.000000e+00> : vector<8xf32>
    %163 = vector.multi_reduction <add>, %162, %cst_74 [1] : vector<8x8xf32> to vector<8xf32>
    %164 = vector.shape_cast %163 : vector<8xf32> to vector<8x1xf32>
    %165 = tpu.reciprocal %164 {approx = true} : vector<8x1xf32> -> vector<8x1xf32>
    %166 = vector.broadcast %165 : vector<8x1xf32> to vector<8x8xf32>
    %167 = arith.mulf %162, %166 : vector<8x8xf32>
    %cst_75 = arith.constant dense<0.000000e+00> : vector<8x8xf32>
    %168 = tpu.matmul %167, %152, %cst_75 {dimension_numbers = #tpu.dot_dimension_numbers<[1], [0], [0], [1], [0, 0, 1, 1], [], []>} : vector<8x8xf32>, vector<8x8xf32>, vector<8x8xf32> -> vector<8x8xf32>
    %c8_76 = arith.constant 8 : index
    %c0_77 = arith.constant 0 : index
    %169 = vector.load %arg11[%c8_76, %c0_77] : memref<32x32xf32, #tpu.memory_space<vmem>>, vector<8x32xf32>
    %cst_78 = arith.constant dense<0.000000e+00> : vector<8x32xf32>
    %170 = tpu.matmul %168, %169, %cst_78 {dimension_numbers = #tpu.dot_dimension_numbers<[1], [0], [0], [1], [0, 0, 1, 1], [], []>} : vector<8x8xf32>, vector<8x32xf32>, vector<8x32xf32> -> vector<8x32xf32>
    %171 = arith.addf %149, %170 : vector<8x32xf32>
    %172 = vector.extract_strided_slice %122 {offsets = [0, 16], sizes = [8, 8], strides = [1, 1]} : vector<8x32xf32> to vector<8x8xf32>
    %173 = vector.extract_strided_slice %125 {offsets = [0, 16], sizes = [8, 8], strides = [1, 1]} : vector<8x32xf32> to vector<8x8xf32>
    %174 = vector.extract_strided_slice %126 {offsets = [0, 16], sizes = [8, 8], strides = [1, 1]} : vector<8x32xf32> to vector<8x8xf32>
    %cst_79 = arith.constant dense<0.000000e+00> : vector<8x8xf32>
    %175 = tpu.matmul %172, %173, %cst_79 {dimension_numbers = #tpu.dot_dimension_numbers<[1], [1], [0], [0], [0, 0, 1, 0], [], []>} : vector<8x8xf32>, vector<8x8xf32>, vector<8x8xf32> -> vector<8x8xf32>
    %c0_80 = arith.constant 0 : index
    %c0_81 = arith.constant 0 : index
    %c0_82 = arith.constant 0 : index
    %176 = vector.load %arg4[%c0_80, %c0_81, %c0_82] : memref<1x1x8xf32, #tpu.memory_space<vmem>>, vector<1x1x8xf32>
    %177 = vector.shape_cast %176 : vector<1x1x8xf32> to vector<1x8xf32>
    %178 = vector.broadcast %177 : vector<1x8xf32> to vector<8x8xf32>
    %179 = arith.addf %175, %178 : vector<8x8xf32>
    %cst_83 = arith.constant dense<0xFF800000> : vector<8xf32>
    %180 = vector.multi_reduction <maximumf>, %179, %cst_83 [1] : vector<8x8xf32> to vector<8xf32>
    %181 = vector.shape_cast %180 : vector<8xf32> to vector<8x1xf32>
    %182 = vector.broadcast %181 : vector<8x1xf32> to vector<8x8xf32>
    %183 = arith.subf %179, %182 : vector<8x8xf32>
    %184 = math.exp %183 : vector<8x8xf32>
    %cst_84 = arith.constant dense<0.000000e+00> : vector<8xf32>
    %185 = vector.multi_reduction <add>, %184, %cst_84 [1] : vector<8x8xf32> to vector<8xf32>
    %186 = vector.shape_cast %185 : vector<8xf32> to vector<8x1xf32>
    %187 = tpu.reciprocal %186 {approx = true} : vector<8x1xf32> -> vector<8x1xf32>
    %188 = vector.broadcast %187 : vector<8x1xf32> to vector<8x8xf32>
    %189 = arith.mulf %184, %188 : vector<8x8xf32>
    %cst_85 = arith.constant dense<0.000000e+00> : vector<8x8xf32>
    %190 = tpu.matmul %189, %174, %cst_85 {dimension_numbers = #tpu.dot_dimension_numbers<[1], [0], [0], [1], [0, 0, 1, 1], [], []>} : vector<8x8xf32>, vector<8x8xf32>, vector<8x8xf32> -> vector<8x8xf32>
    %c16_86 = arith.constant 16 : index
    %c0_87 = arith.constant 0 : index
    %191 = vector.load %arg11[%c16_86, %c0_87] : memref<32x32xf32, #tpu.memory_space<vmem>>, vector<8x32xf32>
    %cst_88 = arith.constant dense<0.000000e+00> : vector<8x32xf32>
    %192 = tpu.matmul %190, %191, %cst_88 {dimension_numbers = #tpu.dot_dimension_numbers<[1], [0], [0], [1], [0, 0, 1, 1], [], []>} : vector<8x8xf32>, vector<8x32xf32>, vector<8x32xf32> -> vector<8x32xf32>
    %193 = arith.addf %171, %192 : vector<8x32xf32>
    %194 = vector.extract_strided_slice %122 {offsets = [0, 24], sizes = [8, 8], strides = [1, 1]} : vector<8x32xf32> to vector<8x8xf32>
    %195 = vector.extract_strided_slice %125 {offsets = [0, 24], sizes = [8, 8], strides = [1, 1]} : vector<8x32xf32> to vector<8x8xf32>
    %196 = vector.extract_strided_slice %126 {offsets = [0, 24], sizes = [8, 8], strides = [1, 1]} : vector<8x32xf32> to vector<8x8xf32>
    %cst_89 = arith.constant dense<0.000000e+00> : vector<8x8xf32>
    %197 = tpu.matmul %194, %195, %cst_89 {dimension_numbers = #tpu.dot_dimension_numbers<[1], [1], [0], [0], [0, 0, 1, 0], [], []>} : vector<8x8xf32>, vector<8x8xf32>, vector<8x8xf32> -> vector<8x8xf32>
    %c0_90 = arith.constant 0 : index
    %c0_91 = arith.constant 0 : index
    %c0_92 = arith.constant 0 : index
    %198 = vector.load %arg4[%c0_90, %c0_91, %c0_92] : memref<1x1x8xf32, #tpu.memory_space<vmem>>, vector<1x1x8xf32>
    %199 = vector.shape_cast %198 : vector<1x1x8xf32> to vector<1x8xf32>
    %200 = vector.broadcast %199 : vector<1x8xf32> to vector<8x8xf32>
    %201 = arith.addf %197, %200 : vector<8x8xf32>
    %cst_93 = arith.constant dense<0xFF800000> : vector<8xf32>
    %202 = vector.multi_reduction <maximumf>, %201, %cst_93 [1] : vector<8x8xf32> to vector<8xf32>
    %203 = vector.shape_cast %202 : vector<8xf32> to vector<8x1xf32>
    %204 = vector.broadcast %203 : vector<8x1xf32> to vector<8x8xf32>
    %205 = arith.subf %201, %204 : vector<8x8xf32>
    %206 = math.exp %205 : vector<8x8xf32>
    %cst_94 = arith.constant dense<0.000000e+00> : vector<8xf32>
    %207 = vector.multi_reduction <add>, %206, %cst_94 [1] : vector<8x8xf32> to vector<8xf32>
    %208 = vector.shape_cast %207 : vector<8xf32> to vector<8x1xf32>
    %209 = tpu.reciprocal %208 {approx = true} : vector<8x1xf32> -> vector<8x1xf32>
    %210 = vector.broadcast %209 : vector<8x1xf32> to vector<8x8xf32>
    %211 = arith.mulf %206, %210 : vector<8x8xf32>
    %cst_95 = arith.constant dense<0.000000e+00> : vector<8x8xf32>
    %212 = tpu.matmul %211, %196, %cst_95 {dimension_numbers = #tpu.dot_dimension_numbers<[1], [0], [0], [1], [0, 0, 1, 1], [], []>} : vector<8x8xf32>, vector<8x8xf32>, vector<8x8xf32> -> vector<8x8xf32>
    %c24_96 = arith.constant 24 : index
    %c0_97 = arith.constant 0 : index
    %213 = vector.load %arg11[%c24_96, %c0_97] : memref<32x32xf32, #tpu.memory_space<vmem>>, vector<8x32xf32>
    %cst_98 = arith.constant dense<0.000000e+00> : vector<8x32xf32>
    %214 = tpu.matmul %212, %213, %cst_98 {dimension_numbers = #tpu.dot_dimension_numbers<[1], [0], [0], [1], [0, 0, 1, 1], [], []>} : vector<8x8xf32>, vector<8x32xf32>, vector<8x32xf32> -> vector<8x32xf32>
    %215 = arith.addf %193, %214 : vector<8x32xf32>
    %216 = arith.addf %107, %215 : vector<8x32xf32>
    %c0_99 = arith.constant 0 : index
    %c0_100 = arith.constant 0 : index
    %217 = vector.load %arg12[%c0_99, %c0_100] : memref<1x32xf32, #tpu.memory_space<vmem>>, vector<1x32xf32>
    %218 = arith.mulf %216, %216 : vector<8x32xf32>
    %cst_101 = arith.constant dense<0.000000e+00> : vector<8xf32>
    %219 = vector.multi_reduction <add>, %218, %cst_101 [1] : vector<8x32xf32> to vector<8xf32>
    %220 = vector.shape_cast %219 : vector<8xf32> to vector<8x1xf32>
    %cst_102 = arith.constant 3.200000e+01 : f32
    %221 = vector.broadcast %cst_102 : f32 to vector<8x1xf32>
    %222 = arith.divf %220, %221 : vector<8x1xf32>
    %cst_103 = arith.constant 9.99999997E-7 : f32
    %223 = vector.broadcast %cst_103 : f32 to vector<8x1xf32>
    %224 = arith.addf %222, %223 : vector<8x1xf32>
    %225 = math.rsqrt %224 : vector<8x1xf32>
    %226 = vector.broadcast %225 : vector<8x1xf32> to vector<8x32xf32>
    %227 = arith.mulf %216, %226 : vector<8x32xf32>
    %228 = vector.broadcast %217 : vector<1x32xf32> to vector<8x32xf32>
    %229 = arith.mulf %227, %228 : vector<8x32xf32>
    %c0_104 = arith.constant 0 : index
    %c0_105 = arith.constant 0 : index
    %230 = vector.load %arg13[%c0_104, %c0_105] : memref<32x64xf32, #tpu.memory_space<vmem>>, vector<32x64xf32>
    %cst_106 = arith.constant dense<0.000000e+00> : vector<8x64xf32>
    %231 = tpu.matmul %229, %230, %cst_106 {dimension_numbers = #tpu.dot_dimension_numbers<[1], [0], [0], [1], [0, 0, 1, 1], [], []>} : vector<8x32xf32>, vector<32x64xf32>, vector<8x64xf32> -> vector<8x64xf32>
    %cst_107 = arith.constant 0.000000e+00 : f32
    %232 = vector.broadcast %cst_107 : f32 to vector<8x64xf32>
    %233 = arith.maximumf %231, %232 : vector<8x64xf32>
    %c0_108 = arith.constant 0 : index
    %c0_109 = arith.constant 0 : index
    %234 = vector.load %arg14[%c0_108, %c0_109] : memref<64x32xf32, #tpu.memory_space<vmem>>, vector<64x32xf32>
    %cst_110 = arith.constant dense<0.000000e+00> : vector<8x32xf32>
    %235 = tpu.matmul %233, %234, %cst_110 {dimension_numbers = #tpu.dot_dimension_numbers<[1], [0], [0], [1], [0, 0, 1, 1], [], []>} : vector<8x64xf32>, vector<64x32xf32>, vector<8x32xf32> -> vector<8x32xf32>
    %236 = arith.addf %216, %235 : vector<8x32xf32>
    %c0_111 = arith.constant 0 : index
    %c0_112 = arith.constant 0 : index
    %c0_113 = arith.constant 0 : index
    %237 = vector.load %arg15[%c0_111, %c0_112, %c0_113] : memref<1x8x32xf32, #tpu.memory_space<vmem>>, vector<1x8x32xf32>
    %238 = vector.shape_cast %237 : vector<1x8x32xf32> to vector<8x32xf32>
    %239 = vector.shape_cast %236 : vector<8x32xf32> to vector<1x8x32xf32>
    tpu.vector_store %arg15[%c0_111, %c0_112, %c0_113], %239 {strides = array<i32>} : memref<1x8x32xf32, #tpu.memory_space<vmem>>, vector<1x8x32xf32>,
    return
  }
  func.func @transform_0(%arg0: i32) -> (i32, i32, i32) {
    %c0_i32 = arith.constant 0 : i32
    %c0_i32_0 = arith.constant 0 : i32
    %c0_i32_1 = arith.constant 0 : i32
    return %arg0, %c0_i32, %c0_i32_0 : i32, i32, i32
  }
  func.func @transform_1(%arg0: i32) -> (i32, i32, i32) {
    %c0_i32 = arith.constant 0 : i32
    %c0_i32_0 = arith.constant 0 : i32
    %c0_i32_1 = arith.constant 0 : i32
    return %arg0, %c0_i32, %c0_i32_0 : i32, i32, i32
  }
  func.func @transform_2(%arg0: i32) -> (i32, i32, i32) {
    %c0_i32 = arith.constant 0 : i32
    %c0_i32_0 = arith.constant 0 : i32
    %c0_i32_1 = arith.constant 0 : i32
    %c0_i32_2 = arith.constant 0 : i32
    return %c0_i32, %c0_i32_0, %c0_i32_1 : i32, i32, i32
  }
  func.func @transform_3(%arg0: i32) -> (i32, i32, i32) {
    %c0_i32 = arith.constant 0 : i32
    %c0_i32_0 = arith.constant 0 : i32
    %c0_i32_1 = arith.constant 0 : i32
    return %arg0, %c0_i32, %c0_i32_0 : i32, i32, i32
  }
  func.func @transform_4(%arg0: i32) -> (i32, i32) {
    %c0_i32 = arith.constant 0 : i32
    %c0_i32_0 = arith.constant 0 : i32
    %c0_i32_1 = arith.constant 0 : i32
    return %c0_i32, %c0_i32_0 : i32, i32
  }
  func.func @transform_5(%arg0: i32) -> (i32, i32) {
    %c0_i32 = arith.constant 0 : i32
    %c0_i32_0 = arith.constant 0 : i32
    %c0_i32_1 = arith.constant 0 : i32
    return %c0_i32, %c0_i32_0 : i32, i32
  }
  func.func @transform_6(%arg0: i32) -> (i32, i32) {
    %c0_i32 = arith.constant 0 : i32
    %c0_i32_0 = arith.constant 0 : i32
    %c0_i32_1 = arith.constant 0 : i32
    return %c0_i32, %c0_i32_0 : i32, i32
  }
  func.func @transform_7(%arg0: i32) -> (i32, i32) {
    %c0_i32 = arith.constant 0 : i32
    %c0_i32_0 = arith.constant 0 : i32
    %c0_i32_1 = arith.constant 0 : i32
    return %c0_i32, %c0_i32_0 : i32, i32
  }
  func.func @transform_8(%arg0: i32) -> (i32, i32) {
    %c0_i32 = arith.constant 0 : i32
    %c0_i32_0 = arith.constant 0 : i32
    %c0_i32_1 = arith.constant 0 : i32
    return %c0_i32, %c0_i32_0 : i32, i32
  }
  func.func @transform_9(%arg0: i32) -> (i32, i32) {
    %c0_i32 = arith.constant 0 : i32
    %c0_i32_0 = arith.constant 0 : i32
    %c0_i32_1 = arith.constant 0 : i32
    return %c0_i32, %c0_i32_0 : i32, i32
  }
  func.func @transform_10(%arg0: i32) -> (i32, i32) {
    %c0_i32 = arith.constant 0 : i32
    %c0_i32_0 = arith.constant 0 : i32
    %c0_i32_1 = arith.constant 0 : i32
    return %c0_i32, %c0_i32_0 : i32, i32
  }
  func.func @transform_11(%arg0: i32) -> (i32, i32) {
    %c0_i32 = arith.constant 0 : i32
    %c0_i32_0 = arith.constant 0 : i32
    %c0_i32_1 = arith.constant 0 : i32
    return %c0_i32, %c0_i32_0 : i32, i32
  }
  func.func @transform_12(%arg0: i32) -> (i32, i32) {
    %c0_i32 = arith.constant 0 : i32
    %c0_i32_0 = arith.constant 0 : i32
    %c0_i32_1 = arith.constant 0 : i32
    return %c0_i32, %c0_i32_0 : i32, i32
  }
  func.func @transform_13(%arg0: i32) -> (i32, i32) {
    %c0_i32 = arith.constant 0 : i32
    %c0_i32_0 = arith.constant 0 : i32
    %c0_i32_1 = arith.constant 0 : i32
    return %c0_i32, %c0_i32_0 : i32, i32
  }
  func.func @transform_14(%arg0: i32) -> (i32, i32, i32) {
    %c0_i32 = arith.constant 0 : i32
    %c0_i32_0 = arith.constant 0 : i32
    %c0_i32_1 = arith.constant 0 : i32
    return %arg0, %c0_i32, %c0_i32_0 : i32, i32, i32
  }
}

</mosaic_0001>

<llo_original>
// kernel: hf_t5_forward.8
$region0: #{hf_t5_forward.8}
  #allocation0 [shape = 'u32[]', space=smem, size = 0x4, offset = 0x4, fixed_abs, tag = 'smem constant byte address 0x4 - core index']
  #allocation1 [shape = 'u32[144,128]{1,0:T(1,128)}', space=vmem, size = 0x12000, scoped, tag = 'internal scratch']
  %s0 = inlined_call_operand.vmem [shape: f32[2,8,32], index: 0, kind: input, shape index: {}]
  %s1 = inlined_call_operand.vmem [shape: f32[1,32], index: 1, kind: input, shape index: {}]
  %s2 = inlined_call_operand.vmem [shape: f32[2,8,32], index: 2, kind: output, shape index: {0}]
  %s3 = inlined_call_operand.hbm [shape: f32[2,1,32], index: 3, kind: output, shape index: {1}]
  %4 = xla_tuple %s2, %s3
  %s5 = sld [smem:[#allocation0]]
  $region49: #{hf_t5_forward.8} parent=0
    _
  %s7 = ssub.s32 1, %s5
  %s8 = scalar_select 0, %s7, %s5
  $region1: #{hf_t5_forward.8} parent=0
    #allocation2 [shape = 'u8[1024]{0}', space=vmem, size = 0x400, scoped, tag = 'output window, operand 1']
    #allocation3 [shape = 's32[2]{0}', space=sflag, size = 0x8, scoped, tag = 'scoped memory for hf_t5_forward.8']
    %9 = vsyncpa [#allocation3], 0
    %s10 = scalar_lea.sflag [#allocation3], 1
    %11 = vsyncpa %s10, 0
    loop: start=0, step=1, limit=4
    $region2: #{hf_t5_forward.8} parent=1 // loop_pre_header
      _
    $region3: #{hf_t5_forward.8} parent=1 // loop_header
      %s13 = sphi 0, %s17
      %p14 = scmp.ge.s32.totalorder %s13, 4
      %s23 = sphi 0, %s25
      %s26 = sphi 0, %s23
      %s27 = sphi 0, %s26
      %s43 = sphi 0, %s27
      %s47 = sphi 0, %s47
      %s49 = sphi 0, %s47
      %s50 = sphi 0, %s49
      %s64 = sphi 0, %s50
      %s70 = sphi 0, %s72
      %s73 = sphi 0, %s70
      %s74 = sphi 0, %s73
      %s90 = sphi 0, %s74
      %s96 = sphi 0, %s98
      %s99 = sphi 0, %s96
      %s100 = sphi 0, %s99
      %s116 = sphi 0, %s100
    $region4: #{hf_t5_forward.8} parent=1 // loop_header_branch
      %16 = sbr.rel (%p14) target = $region8
    $region5: #{hf_t5_forward.8} parent=1 // loop_body
      %s18 = ssub.s32 %s13, 1
      %s19 = ssub.s32 %s13, 2
      %s20 = sadd.s32 %s13, 1
      %s21 = ssub.s32 %s13, %s20
      %p22 = scmp.eq.s32.totalorder %s21, 0
      %s24 = sadd.s32 %s23, 1
      %s25 = scalar_select %p22, %s23, %s24
      %p28 = pneg %p22
      %p29 = scmp.eq.s32.totalorder %s13, 1
      %p30 = por %p28, %p29
      %p31 = scmp.ne.s32.totalorder %s23, %s26
      %p32 = scmp.eq.s32.totalorder %s13, 0
      %p33 = por %p31, %p32
      %p34 = scmp.ne.s32.totalorder %s23, %s26
      %p35 = scmp.eq.s32.totalorder %s18, 1
      %p36 = por %p34, %p35
      %p37 = scmp.ne.s32.totalorder %s26, %s27
      %p38 = scmp.eq.s32.totalorder %s18, 0
      %p39 = por %p37, %p38
      %p40 = scmp.ne.s32.totalorder %s26, %s27
      %p41 = scmp.eq.s32.totalorder %s19, 1
      %p42 = por %p40, %p41
      %p44 = scmp.ne.s32.totalorder %s27, %s43
      %p45 = scmp.eq.s32.totalorder %s19, 0
      %p46 = por %p44, %p45
      %s48 = sadd.s32 %s47, 1
      %p51 = scmp.eq.s32.totalorder %s13, 1
      %p52 = scmp.ne.s32.totalorder %s47, %s49
      %p53 = scmp.eq.s32.totalorder %s13, 0
      %p54 = por %p52, %p53
      %p55 = scmp.ne.s32.totalorder %s47, %s49
      %p56 = scmp.eq.s32.totalorder %s18, 1
      %p57 = por %p55, %p56
      %p58 = scmp.ne.s32.totalorder %s49, %s50
      %p59 = scmp.eq.s32.totalorder %s18, 0
      %p60 = por %p58, %p59
      %p61 = scmp.ne.s32.totalorder %s49, %s50
      %p62 = scmp.eq.s32.totalorder %s19, 1
      %p63 = por %p61, %p62
      %p65 = scmp.ne.s32.totalorder %s50, %s64
      %p66 = scmp.eq.s32.totalorder %s19, 0
      %p67 = por %p65, %p66
      %s68 = ssub.s32 %s13, %s20
      %p69 = scmp.eq.s32.totalorder %s68, 0
      %s71 = sadd.s32 %s70, 1
      %s72 = scalar_select %p69, %s70, %s71
      %p75 = pneg %p69
      %p76 = scmp.eq.s32.totalorder %s13, 1
      %p77 = por %p75, %p76
      %p78 = scmp.ne.s32.totalorder %s70, %s73
      %p79 = scmp.eq.s32.totalorder %s13, 0
      %p80 = por %p78, %p79
      %p81 = scmp.ne.s32.totalorder %s70, %s73
      %p82 = scmp.eq.s32.totalorder %s18, 1
      %p83 = por %p81, %p82
      %p84 = scmp.ne.s32.totalorder %s73, %s74
      %p85 = scmp.eq.s32.totalorder %s18, 0
      %p86 = por %p84, %p85
      %p87 = scmp.ne.s32.totalorder %s73, %s74
      %p88 = scmp.eq.s32.totalorder %s19, 1
      %p89 = por %p87, %p88
      %p91 = scmp.ne.s32.totalorder %s74, %s90
      %p92 = scmp.eq.s32.totalorder %s19, 0
      %p93 = por %p91, %p92
      %s94 = ssub.s32 %s13, %s20
      %p95 = scmp.eq.s32.totalorder %s94, 0
      %s97 = sadd.s32 %s96, 1
      %s98 = scalar_select %p95, %s96, %s97
      %p101 = pneg %p95
      %p102 = scmp.eq.s32.totalorder %s13, 1
      %p103 = por %p101, %p102
      %p104 = scmp.ne.s32.totalorder %s96, %s99
      %p105 = scmp.eq.s32.totalorder %s13, 0
      %p106 = por %p104, %p105
      %p107 = scmp.ne.s32.totalorder %s96, %s99
      %p108 = scmp.eq.s32.totalorder %s18, 1
      %p109 = por %p107, %p108
      %p110 = scmp.ne.s32.totalorder %s99, %s100
      %p111 = scmp.eq.s32.totalorder %s18, 0
      %p112 = por %p110, %p111
      %p113 = scmp.ne.s32.totalorder %s99, %s100
      %p114 = scmp.eq.s32.totalorder %s19, 1
      %p115 = por %p113, %p114
      %p117 = scmp.ne.s32.totalorder %s100, %s116
      %p118 = scmp.eq.s32.totalorder %s19, 0
      %p119 = por %p117, %p118
      %p120 = scmp.le.s32.totalorder 1, %s13
      %p121 = scmp.lt.s32.totalorder %s13, 3
      %p122 = pnand %p120, %p121
      %p123 = pneg %p122
      // Predicated region
      $region9: #{hf_t5_forward.8} parent=5 // pred_check
        _
      $region10: #{hf_t5_forward.8} parent=5 // pred_check_branch
        %125 = sbr.rel (%p122) target = $region12
      $region11: #{hf_t5_forward.8} parent=5 // pred_region
        %s126 = ssub.s32 %s13, 1
        // Predicated region
        $region13: #{hf_t5_forward.8} parent=11 // pred_check
          %p127 = pneg %p60
        $region14: #{hf_t5_forward.8} parent=11 // pred_check_branch
          %129 = sbr.rel (%p127) target = $region16
        $region15: #{hf_t5_forward.8} parent=11 // pred_region
          _
        $region16: #{hf_t5_forward.8} parent=11 // pred_fallthru
          _
      $region12: #{hf_t5_forward.8} parent=5 // pred_fallthru
        _
      %p130 = scmp.lt.s32.totalorder %s13, 2
      // Predicated region
      $region17: #{hf_t5_forward.8} parent=5 // pred_check
        %p131 = pneg %p130
      $region18: #{hf_t5_forward.8} parent=5 // pred_check_branch
        %133 = sbr.rel (%p131) target = $region20
      $region19: #{hf_t5_forward.8} parent=5 // pred_region
        // Predicated region
        $region21: #{hf_t5_forward.8} parent=19 // pred_check
          %p134 = pneg %p33
        $region22: #{hf_t5_forward.8} parent=19 // pred_check_branch
          %136 = sbr.rel (%p134) target = $region24
        $region23: #{hf_t5_forward.8} parent=19 // pred_region
          %p137 = scmp.lt.s32.totalorder %s13, 1
          %s138 = scalar_select %p137, %s13, 1
          %s139 = smul.addr %s138, 8
          %s140 = scalar_lea.vmem %s0, %s139
        $region24: #{hf_t5_forward.8} parent=19 // pred_fallthru
          _
      $region20: #{hf_t5_forward.8} parent=5 // pred_fallthru
        _
      %p141 = scmp.le.s32.totalorder 1, %s13
      %p142 = scmp.lt.s32.totalorder %s13, 3
      %p143 = pnand %p141, %p142
      %p144 = pneg %p143
      // Predicated region
      $region25: #{hf_t5_forward.8} parent=5 // pred_check
        _
      $region26: #{hf_t5_forward.8} parent=5 // pred_check_branch
        %146 = sbr.rel (%p143) target = $region28
      $region27: #{hf_t5_forward.8} parent=5 // pred_region
        %s147 = ssub.s32 %s13, 1
        %p148 = scmp.lt.s32.totalorder %s18, 1
        %s149 = scalar_select %p148, %s18, 1
        %s150 = smul.addr %s149, 8
        %s151 = scalar_lea.vmem %s0, %s150
        %p152 = pneg %p39
        %p153 = pneg %p36
        %p154 = pneg %p60
        %p155 = pneg %p57
        %p156 = pneg %p86
        %p157 = pneg %p83
        %p158 = scmp.lt.s32.totalorder %s18, 1
        %s159 = scalar_select %p158, %s18, 1
        %s160 = smul.addr %s159, 8
        %s161 = scalar_lea.vmem %s2, %s160
        %p162 = pneg %p112
        %p163 = pneg %p109
        %s164 = sand.u32 %s99, 1
        %s165 = scalar_lea.sflag [#allocation3], %s164
        %s166 = sand.u32 %s99, 1
        %s167 = scalar_lea.vmem [#allocation2], %s166
        %p168 = scmp.lt.s32.totalorder %s18, 1
        %s169 = scalar_select %p168, %s18, 1
        %s170 = smul.addr %s169, 8
        %s171 = scalar_lea.vmem %s0, %s170
        %p172 = scmp.lt.s32.totalorder %s18, 1
        %s173 = scalar_select %p172, %s18, 1
        %s174 = smul.addr %s173, 8
        %s175 = scalar_lea.vmem %s2, %s174
        %v176 = vld [vmem:[%s171] sm:$0xff]
        %v177 = vld [vmem:[%s1] sm:$0x1]
        %v178 = vmul.f32 %v176, %v176
        %vm179 = vcmask 261120
        %v180 = vsel %vm179, %v178, 0.0
        %181 = vadd.xlane.f32.xlu0 %v180
        %v182 = vpop.xlane.xlu0 %181
        %v183 = vrcp.pop 32.0
        %v184 = vmul.f32 %v182, %v183
        %v185 = vadd.f32 %v184, 1e-06
        %v186 = vrsqrt.pop %v185
        %v187 = vmul.f32 %v176, %v186
        %v189 = vlaneseq
        %v190 = vshrl.u32 %v189, 7
        %v191 = vsub.s32 0, %v190
        %v192 = vrot.slane %v177, %v191
        %v194 = vmul.f32 %v187, %v192
        %195 = vst.msk [vmem:[%s175] sm:$0xff] %vm179, %v194
        %v196 = vsel %vm179, %v194, 0.0
        %v197 = vrot.slane %v196, 4
        %v198 = vadd.f32 %v196, %v197
        %v199 = vrot.slane %v198, 2
        %v200 = vadd.f32 %v198, %v199
        %v201 = vrot.slane %v200, 1
        %v202 = vadd.f32 %v200, %v201
        %v203 = vrcp.pop 8.0
        %v204 = vmul.f32 %v202, %v203
        %vm205 = vcmask 253952
        %206 = vst.msk [vmem:[%s167] sm:$0x1] %vm205, %v204
        %p207 = scmp.lt.s32.totalorder %s18, 1
        %s208 = scalar_select %p207, %s18, 1
        %s209 = smul.addr %s208, 8
        %s210 = scalar_lea.vmem %s2, %s209
        %s211 = sand.u32 %s99, 1
        %s212 = scalar_lea.sflag [#allocation3], %s211
        %s213 = sand.u32 %s99, 1
        %s214 = scalar_lea.vmem [#allocation2], %s213
        // Predicated region
        $region29: #{hf_t5_forward.8} parent=27 // pred_check
          %p215 = pneg %p83
        $region30: #{hf_t5_forward.8} parent=27 // pred_check_branch
          %217 = sbr.rel (%p215) target = $region32
        $region31: #{hf_t5_forward.8} parent=27 // pred_region
          _
        $region32: #{hf_t5_forward.8} parent=27 // pred_fallthru
          _
        // Predicated region
        $region33: #{hf_t5_forward.8} parent=27 // pred_check
          %p218 = pneg %p109
        $region34: #{hf_t5_forward.8} parent=27 // pred_check_branch
          %220 = sbr.rel (%p218) target = $region36
        $region35: #{hf_t5_forward.8} parent=27 // pred_region
          %s222 = ssub.s32 16, 16
          %223 = vsyncadd %s212, %s222
          %s224 = smul.addr %s18, 16
          %s225 = scalar_lea.hbm %s3, %s224
          %s227 = sshll.u32 %s214, 4
          %s228 = int_to_ptr.vmem [resolvable:$true] %s227
          %230 = dma.vmem_to_hbm [thread:$0]  %s228, 16, %s225, %s212
        $region36: #{hf_t5_forward.8} parent=27 // pred_fallthru
          _
      $region28: #{hf_t5_forward.8} parent=5 // pred_fallthru
        _
      %p231 = scmp.le.s32.totalorder 2, %s13
      // Predicated region
      $region37: #{hf_t5_forward.8} parent=5 // pred_check
        %p232 = pneg %p231
      $region38: #{hf_t5_forward.8} parent=5 // pred_check_branch
        %234 = sbr.rel (%p232) target = $region40
      $region39: #{hf_t5_forward.8} parent=5 // pred_region
        %s235 = ssub.s32 %s13, 2
        // Predicated region
        $region41: #{hf_t5_forward.8} parent=39 // pred_check
          %p236 = pneg %p89
        $region42: #{hf_t5_forward.8} parent=39 // pred_check_branch
          %238 = sbr.rel (%p236) target = $region44
        $region43: #{hf_t5_forward.8} parent=39 // pred_region
          %p239 = scmp.lt.s32.totalorder %s19, 1
          %s240 = scalar_select %p239, %s19, 1
          %s241 = smul.addr %s240, 8
          %s242 = scalar_lea.vmem %s2, %s241
        $region44: #{hf_t5_forward.8} parent=39 // pred_fallthru
          _
        // Predicated region
        $region45: #{hf_t5_forward.8} parent=39 // pred_check
          %p243 = pneg %p115
        $region46: #{hf_t5_forward.8} parent=39 // pred_check_branch
          %245 = sbr.rel (%p243) target = $region48
        $region47: #{hf_t5_forward.8} parent=39 // pred_region
          %s246 = sand.u32 %s100, 1
          %s247 = scalar_lea.sflag [#allocation3], %s246
          %s248 = sand.u32 %s100, 1
          %s249 = scalar_lea.vmem [#allocation2], %s248
          %250 = dma.done %s247, 16
        $region48: #{hf_t5_forward.8} parent=39 // pred_fallthru
          _
      $region40: #{hf_t5_forward.8} parent=5 // pred_fallthru
        _
    $region6: #{hf_t5_forward.8} parent=1 // loop_footer
      %s17 = sadd.s32 1, %s13
    $region7: #{hf_t5_forward.8} parent=1 // loop_footer_branch
      %12 = sbr.rel target = $region3
    $region8: #{hf_t5_forward.8} parent=1 // loop_exit
      _
    %251 = vsyncpa [#allocation3], 1
    %s252 = scalar_lea.sflag [#allocation3], 1
    %253 = vsyncpa %s252, 1

// kernel: hf_t5_forward.11
$region0: #{hf_t5_forward.11}
  #allocation0 [shape = 'u32[]', space=smem, size = 0x4, offset = 0x4, fixed_abs, tag = 'smem constant byte address 0x4 - core index']
  #allocation1 [shape = 'u32[144,128]{1,0:T(1,128)}', space=vmem, size = 0x12000, scoped, tag = 'internal scratch']
  %s0 = inlined_call_operand.vmem [shape: f32[2,8,32], index: 0, kind: input, shape index: {}]
  %s1 = inlined_call_operand.vmem [shape: f32[1,32], index: 1, kind: input, shape index: {}]
  %s2 = inlined_call_operand.vmem [shape: f32[32,64], index: 2, kind: input, shape index: {}]
  %s3 = inlined_call_operand.hbm [shape: f32[2,8,64], index: 3, kind: output, shape index: {}]
  %s4 = sld [smem:[#allocation0]]
  $region45: #{hf_t5_forward.11} parent=0
    _
  %s6 = ssub.s32 1, %s4
  %s7 = scalar_select 0, %s6, %s4
  $region1: #{hf_t5_forward.11} parent=0
    #allocation2 [shape = 'u8[8192]{0}', space=vmem, size = 0x2000, scoped, tag = 'output window, operand 0']
    #allocation3 [shape = 's32[2]{0}', space=sflag, size = 0x8, scoped, tag = 'scoped memory for hf_t5_forward.11']
    %8 = vsyncpa [#allocation3], 0
    %s9 = scalar_lea.sflag [#allocation3], 1
    %10 = vsyncpa %s9, 0
    loop: start=0, step=1, limit=4
    $region2: #{hf_t5_forward.11} parent=1 // loop_pre_header
      _
    $region3: #{hf_t5_forward.11} parent=1 // loop_header
      %s12 = sphi 0, %s16
      %p13 = scmp.ge.s32.totalorder %s12, 4
      %s22 = sphi 0, %s24
      %s25 = sphi 0, %s22
      %s26 = sphi 0, %s25
      %s42 = sphi 0, %s26
      %s46 = sphi 0, %s46
      %s48 = sphi 0, %s46
      %s49 = sphi 0, %s48
      %s63 = sphi 0, %s49
      %s67 = sphi 0, %s67
      %s69 = sphi 0, %s67
      %s70 = sphi 0, %s69
      %s84 = sphi 0, %s70
      %s90 = sphi 0, %s92
      %s93 = sphi 0, %s90
      %s94 = sphi 0, %s93
      %s110 = sphi 0, %s94
    $region4: #{hf_t5_forward.11} parent=1 // loop_header_branch
      %15 = sbr.rel (%p13) target = $region8
    $region5: #{hf_t5_forward.11} parent=1 // loop_body
      %s17 = ssub.s32 %s12, 1
      %s18 = ssub.s32 %s12, 2
      %s19 = sadd.s32 %s12, 1
      %s20 = ssub.s32 %s12, %s19
      %p21 = scmp.eq.s32.totalorder %s20, 0
      %s23 = sadd.s32 %s22, 1
      %s24 = scalar_select %p21, %s22, %s23
      %p27 = pneg %p21
      %p28 = scmp.eq.s32.totalorder %s12, 1
      %p29 = por %p27, %p28
      %p30 = scmp.ne.s32.totalorder %s22, %s25
      %p31 = scmp.eq.s32.totalorder %s12, 0
      %p32 = por %p30, %p31
      %p33 = scmp.ne.s32.totalorder %s22, %s25
      %p34 = scmp.eq.s32.totalorder %s17, 1
      %p35 = por %p33, %p34
      %p36 = scmp.ne.s32.totalorder %s25, %s26
      %p37 = scmp.eq.s32.totalorder %s17, 0
      %p38 = por %p36, %p37
      %p39 = scmp.ne.s32.totalorder %s25, %s26
      %p40 = scmp.eq.s32.totalorder %s18, 1
      %p41 = por %p39, %p40
      %p43 = scmp.ne.s32.totalorder %s26, %s42
      %p44 = scmp.eq.s32.totalorder %s18, 0
      %p45 = por %p43, %p44
      %s47 = sadd.s32 %s46, 1
      %p50 = scmp.eq.s32.totalorder %s12, 1
      %p51 = scmp.ne.s32.totalorder %s46, %s48
      %p52 = scmp.eq.s32.totalorder %s12, 0
      %p53 = por %p51, %p52
      %p54 = scmp.ne.s32.totalorder %s46, %s48
      %p55 = scmp.eq.s32.totalorder %s17, 1
      %p56 = por %p54, %p55
      %p57 = scmp.ne.s32.totalorder %s48, %s49
      %p58 = scmp.eq.s32.totalorder %s17, 0
      %p59 = por %p57, %p58
      %p60 = scmp.ne.s32.totalorder %s48, %s49
      %p61 = scmp.eq.s32.totalorder %s18, 1
      %p62 = por %p60, %p61
      %p64 = scmp.ne.s32.totalorder %s49, %s63
      %p65 = scmp.eq.s32.totalorder %s18, 0
      %p66 = por %p64, %p65
      %s68 = sadd.s32 %s67, 1
      %p71 = scmp.eq.s32.totalorder %s12, 1
      %p72 = scmp.ne.s32.totalorder %s67, %s69
      %p73 = scmp.eq.s32.totalorder %s12, 0
      %p74 = por %p72, %p73
      %p75 = scmp.ne.s32.totalorder %s67, %s69
      %p76 = scmp.eq.s32.totalorder %s17, 1
      %p77 = por %p75, %p76
      %p78 = scmp.ne.s32.totalorder %s69, %s70
      %p79 = scmp.eq.s32.totalorder %s17, 0
      %p80 = por %p78, %p79
      %p81 = scmp.ne.s32.totalorder %s69, %s70
      %p82 = scmp.eq.s32.totalorder %s18, 1
      %p83 = por %p81, %p82
      %p85 = scmp.ne.s32.totalorder %s70, %s84
      %p86 = scmp.eq.s32.totalorder %s18, 0
      %p87 = por %p85, %p86
      %s88 = ssub.s32 %s12, %s19
      %p89 = scmp.eq.s32.totalorder %s88, 0
      %s91 = sadd.s32 %s90, 1
      %s92 = scalar_select %p89, %s90, %s91
      %p95 = pneg %p89
      %p96 = scmp.eq.s32.totalorder %s12, 1
      %p97 = por %p95, %p96
      %p98 = scmp.ne.s32.totalorder %s90, %s93
      %p99 = scmp.eq.s32.totalorder %s12, 0
      %p100 = por %p98, %p99
      %p101 = scmp.ne.s32.totalorder %s90, %s93
      %p102 = scmp.eq.s32.totalorder %s17, 1
      %p103 = por %p101, %p102
      %p104 = scmp.ne.s32.totalorder %s93, %s94
      %p105 = scmp.eq.s32.totalorder %s17, 0
      %p106 = por %p104, %p105
      %p107 = scmp.ne.s32.totalorder %s93, %s94
      %p108 = scmp.eq.s32.totalorder %s18, 1
      %p109 = por %p107, %p108
      %p111 = scmp.ne.s32.totalorder %s94, %s110
      %p112 = scmp.eq.s32.totalorder %s18, 0
      %p113 = por %p111, %p112
      %p114 = scmp.le.s32.totalorder 1, %s12
      %p115 = scmp.lt.s32.totalorder %s12, 3
      %p116 = pnand %p114, %p115
      %p117 = pneg %p116
      // Predicated region
      $region9: #{hf_t5_forward.11} parent=5 // pred_check
        _
      $region10: #{hf_t5_forward.11} parent=5 // pred_check_branch
        %119 = sbr.rel (%p116) target = $region12
      $region11: #{hf_t5_forward.11} parent=5 // pred_region
        %s120 = ssub.s32 %s12, 1
        // Predicated region
        $region13: #{hf_t5_forward.11} parent=11 // pred_check
          %p121 = pneg %p59
        $region14: #{hf_t5_forward.11} parent=11 // pred_check_branch
          %123 = sbr.rel (%p121) target = $region16
        $region15: #{hf_t5_forward.11} parent=11 // pred_region
          _
        $region16: #{hf_t5_forward.11} parent=11 // pred_fallthru
          _
        // Predicated region
        $region17: #{hf_t5_forward.11} parent=11 // pred_check
          %p124 = pneg %p80
        $region18: #{hf_t5_forward.11} parent=11 // pred_check_branch
          %126 = sbr.rel (%p124) target = $region20
        $region19: #{hf_t5_forward.11} parent=11 // pred_region
          _
        $region20: #{hf_t5_forward.11} parent=11 // pred_fallthru
          _
      $region12: #{hf_t5_forward.11} parent=5 // pred_fallthru
        _
      %p127 = scmp.lt.s32.totalorder %s12, 2
      // Predicated region
      $region21: #{hf_t5_forward.11} parent=5 // pred_check
        %p128 = pneg %p127
      $region22: #{hf_t5_forward.11} parent=5 // pred_check_branch
        %130 = sbr.rel (%p128) target = $region24
      $region23: #{hf_t5_forward.11} parent=5 // pred_region
        // Predicated region
        $region25: #{hf_t5_forward.11} parent=23 // pred_check
          %p131 = pneg %p32
        $region26: #{hf_t5_forward.11} parent=23 // pred_check_branch
          %133 = sbr.rel (%p131) target = $region28
        $region27: #{hf_t5_forward.11} parent=23 // pred_region
          %p134 = scmp.lt.s32.totalorder %s12, 1
          %s135 = scalar_select %p134, %s12, 1
          %s136 = smul.addr %s135, 8
          %s137 = scalar_lea.vmem %s0, %s136
        $region28: #{hf_t5_forward.11} parent=23 // pred_fallthru
          _
      $region24: #{hf_t5_forward.11} parent=5 // pred_fallthru
        _
      %p138 = scmp.le.s32.totalorder 1, %s12
      %p139 = scmp.lt.s32.totalorder %s12, 3
      %p140 = pnand %p138, %p139
      %p141 = pneg %p140
      // Predicated region
      $region29: #{hf_t5_forward.11} parent=5 // pred_check
        _
      $region30: #{hf_t5_forward.11} parent=5 // pred_check_branch
        %143 = sbr.rel (%p140) target = $region32
      $region31: #{hf_t5_forward.11} parent=5 // pred_region
        %s144 = ssub.s32 %s12, 1
        %p145 = scmp.lt.s32.totalorder %s17, 1
        %s146 = scalar_select %p145, %s17, 1
        %s147 = smul.addr %s146, 8
        %s148 = scalar_lea.vmem %s0, %s147
        %p149 = pneg %p38
        %p150 = pneg %p35
        %p151 = pneg %p59
        %p152 = pneg %p56
        %p153 = pneg %p80
        %p154 = pneg %p77
        %p155 = pneg %p106
        %p156 = pneg %p103
        %s157 = sand.u32 %s93, 1
        %s158 = scalar_lea.sflag [#allocation3], %s157
        %s159 = sand.u32 %s93, 1
        %s160 = smul.addr %s159, 8
        %s161 = scalar_lea.vmem [#allocation2], %s160
        %p162 = scmp.lt.s32.totalorder %s17, 1
        %s163 = scalar_select %p162, %s17, 1
        %s164 = smul.addr %s163, 8
        %s165 = scalar_lea.vmem %s0, %s164
        %v166 = vld [vmem:[%s165] sm:$0xff]
        %v167 = vld [vmem:[%s1] sm:$0x1]
        %v168 = vmul.f32 %v166, %v166
        %vm169 = vcmask 261120
        %v170 = vsel %vm169, %v168, 0.0
        %171 = vadd.xlane.f32.xlu0 %v170
        %v172 = vpop.xlane.xlu0 %171
        %v173 = vrcp.pop 32.0
        %v174 = vmul.f32 %v172, %v173
        %v175 = vadd.f32 %v174, 1e-06
        %v176 = vrsqrt.pop %v175
        %v177 = vmul.f32 %v166, %v176
        %v179 = vlaneseq
        %v180 = vshrl.u32 %v179, 7
        %v181 = vsub.s32 0, %v180
        %v182 = vrot.slane %v167, %v181
        %v184 = vmul.f32 %v177, %v182
        %v185 = vmul.f32 %v184, 0.17677669
        %v186 = vld [vmem:[%s2] sm:$0xff]
        %v187 = vld [vmem:[%s2 + $0x8] sm:$0xff]
        %v188 = vld [vmem:[%s2 + $0x10] sm:$0xff]
        %v189 = vld [vmem:[%s2 + $0x18] sm:$0xff]
        %v191 = vsel %vm169, %v185, 0
        %193 = vmatprep.subr.mxu0 0.0
        %194 = vmatpush1.msra.mxu0 %v186
        %195 = vmatprep.subr.mxu0 0.0
        %196 = vmatpush1.msra.mxu0 %v187
        %197 = vmatprep.subr.mxu0 0.0
        %198 = vmatpush1.msra.mxu0 %v188
        %199 = vmatprep.subr.mxu0 0.0
        %200 = vmatpush1.msra.mxu0 %v189
        %201 = vmatprep.subr.mxu0 0.0
        %202 = vmatpush1.msra.mxu0 0.0
        %203 = vmatprep.subr.mxu0 0.0
        %204 = vmatpush1.msra.mxu0 0.0
        %205 = vmatprep.subr.mxu0 0.0
        %206 = vmatpush1.msra.mxu0 0.0
        %207 = vmatprep.subr.mxu0 0.0
        %208 = vmatpush1.msra.mxu0 0.0
        %209 = vmatprep.subr.mxu0 0.0
        %210 = vmatpush1.msra.mxu0 0.0
        %211 = vmatprep.subr.mxu0 0.0
        %212 = vmatpush1.msra.mxu0 0.0
        %213 = vmatprep.subr.mxu0 0.0
        %214 = vmatpush1.msra.mxu0 0.0
        %215 = vmatprep.subr.mxu0 0.0
        %216 = vmatpush1.msra.mxu0 0.0
        %217 = vmatprep.subr.mxu0 0.0
        %218 = vmatpush1.msra.mxu0 0.0
        %219 = vmatprep.subr.mxu0 0.0
        %220 = vmatpush1.msra.mxu0 0.0
        %221 = vmatprep.subr.mxu0 0.0
        %222 = vmatpush1.msra.mxu0 0.0
        %223 = vmatprep.subr.mxu0 0.0
        %224 = vmatpush1.msra.mxu0 0.0
        %225 = vmatprep.subr.mxu0 0.0
        %226 = vmatpush1.msra.mxu0 0.0
        %227 = vmatprep.subr.mxu0 0.0
        %228 = vmatpush1.msra.mxu0 0.0
        %229 = vmatprep.subr.mxu0 0.0
        %230 = vmatpush1.msra.mxu0 0.0
        %231 = vmatprep.subr.mxu0 0.0
        %232 = vmatpush1.msra.mxu0 0.0
        %233 = vmatprep.subr.mxu0 0.0
        %234 = vmatpush1.msra.mxu0 0.0
        %235 = vmatprep.subr.mxu0 0.0
        %236 = vmatpush1.msra.mxu0 0.0
        %237 = vmatprep.subr.mxu0 0.0
        %238 = vmatpush1.msra.mxu0 0.0
        %239 = vmatprep.subr.mxu0 0.0
        %240 = vmatpush1.msra.mxu0 0.0
        %241 = vmatprep.subr.mxu0 0.0
        %242 = vmatpush1.msra.mxu0 0.0
        %243 = vmatprep.subr.mxu0 0.0
        %244 = vmatpush1.msra.mxu0 0.0
        %245 = vmatprep.subr.mxu0 0.0
        %246 = vmatpush1.msra.mxu0 0.0
        %247 = vmatprep.subr.mxu0 0.0
        %248 = vmatpush1.msra.mxu0 0.0
        %249 = vmatprep.subr.mxu0 0.0
        %250 = vmatpush1.msra.mxu0 0.0
        %251 = vmatprep.subr.mxu0 0.0
        %252 = vmatpush1.msra.mxu0 0.0
        %253 = vmatprep.subr.mxu0 0.0
        %254 = vmatpush1.msra.mxu0 0.0
        %255 = vmatprep.subr.mxu0 0.0
        %256 = vmatpush1.msra.mxu0 0.0
        %257 = vmatprep.mubr.f32.mxu0 0.0
        %258 = vmatmul.mubr.f32.gmra.mrb[0].mxu0 %v191
        %v259 = vpop.f32.mrb[0].mxu0
        %v260 = vadd.f32 0.0, %v259
        %v261 = vpop.f32.mrb[0].mxu0
        %262 = vdwg.mxu0
        %vm263 = vcmask 523264
        %264 = vst.msk [vmem:[%s161] sm:$0xff] %vm263, %v260
        %s265 = sand.u32 %s93, 1
        %s266 = scalar_lea.sflag [#allocation3], %s265
        %s267 = sand.u32 %s93, 1
        %s268 = smul.addr %s267, 8
        %s269 = scalar_lea.vmem [#allocation2], %s268
        // Predicated region
        $region33: #{hf_t5_forward.11} parent=31 // pred_check
          %p270 = pneg %p103
        $region34: #{hf_t5_forward.11} parent=31 // pred_check_branch
          %272 = sbr.rel (%p270) target = $region36
        $region35: #{hf_t5_forward.11} parent=31 // pred_region
          %s274 = ssub.s32 128, 128
          %275 = vsyncadd %s266, %s274
          %s276 = smul.addr %s17, 128
          %s277 = scalar_lea.hbm %s3, %s276
          %s279 = sshll.u32 %s269, 4
          %s280 = int_to_ptr.vmem [resolvable:$true] %s279
          %282 = dma.vmem_to_hbm [thread:$0]  %s280, 128, %s277, %s266
        $region36: #{hf_t5_forward.11} parent=31 // pred_fallthru
          _
      $region32: #{hf_t5_forward.11} parent=5 // pred_fallthru
        _
      %p283 = scmp.le.s32.totalorder 2, %s12
      // Predicated region
      $region37: #{hf_t5_forward.11} parent=5 // pred_check
        %p284 = pneg %p283
      $region38: #{hf_t5_forward.11} parent=5 // pred_check_branch
        %286 = sbr.rel (%p284) target = $region40
      $region39: #{hf_t5_forward.11} parent=5 // pred_region
        %s287 = ssub.s32 %s12, 2
        // Predicated region
        $region41: #{hf_t5_forward.11} parent=39 // pred_check
          %p288 = pneg %p109
        $region42: #{hf_t5_forward.11} parent=39 // pred_check_branch
          %290 = sbr.rel (%p288) target = $region44
        $region43: #{hf_t5_forward.11} parent=39 // pred_region
          %s291 = sand.u32 %s94, 1
          %s292 = scalar_lea.sflag [#allocation3], %s291
          %s293 = sand.u32 %s94, 1
          %s294 = smul.addr %s293, 8
          %s295 = scalar_lea.vmem [#allocation2], %s294
          %296 = dma.done %s292, 128
        $region44: #{hf_t5_forward.11} parent=39 // pred_fallthru
          _
      $region40: #{hf_t5_forward.11} parent=5 // pred_fallthru
        _
    $region6: #{hf_t5_forward.11} parent=1 // loop_footer
      %s16 = sadd.s32 1, %s12
    $region7: #{hf_t5_forward.11} parent=1 // loop_footer_branch
      %11 = sbr.rel target = $region3
    $region8: #{hf_t5_forward.11} parent=1 // loop_exit
      _
    %297 = vsyncpa [#allocation3], 1
    %s298 = scalar_lea.sflag [#allocation3], 1
    %299 = vsyncpa %s298, 1

// kernel: hf_t5_forward.6
$region0: #{hf_t5_forward.6}
  #allocation0 [shape = 'u32[]', space=smem, size = 0x4, offset = 0x4, fixed_abs, tag = 'smem constant byte address 0x4 - core index']
  #allocation1 [shape = 'u32[144,128]{1,0:T(1,128)}', space=vmem, size = 0x12000, scoped, tag = 'internal scratch']
  %s0 = inlined_call_operand.vmem [shape: f32[2,8,32], index: 0, kind: input, shape index: {}]
  %s1 = inlined_call_operand.vmem [shape: f32[4,8,8], index: 1, kind: input, shape index: {}]
  %s2 = inlined_call_operand.vmem [shape: f32[2,1,8], index: 2, kind: input, shape index: {}]
  %s3 = inlined_call_operand.vmem [shape: f32[1,32], index: 3, kind: input, shape index: {}]
  %s4 = inlined_call_operand.vmem [shape: f32[32,96], index: 4, kind: input, shape index: {}]
  %s5 = inlined_call_operand.vmem [shape: f32[32,32], index: 5, kind: input, shape index: {}]
  %s6 = inlined_call_operand.vmem [shape: f32[1,32], index: 6, kind: input, shape index: {}]
  %s7 = inlined_call_operand.vmem [shape: f32[32,64], index: 7, kind: input, shape index: {}]
  %s8 = inlined_call_operand.vmem [shape: f32[64,32], index: 8, kind: input, shape index: {}]
  %s9 = inlined_call_operand.vmem [shape: f32[2,8,32], index: 9, kind: output, shape index: {}]
  %s10 = sld [smem:[#allocation0]]
  $region69: #{hf_t5_forward.6} parent=0
    _
  %s12 = ssub.s32 1, %s10
  %s13 = scalar_select 0, %s12, %s10
  loop: start=0, step=1, limit=4
  $region2: #{hf_t5_forward.6} parent=0 // loop_pre_header
    _
  $region3: #{hf_t5_forward.6} parent=0 // loop_header
    %s15 = sphi 0, %s19
    %p16 = scmp.ge.s32.totalorder %s15, 4
    %s25 = sphi 0, %s27
    %s28 = sphi 0, %s25
    %s29 = sphi 0, %s28
    %s45 = sphi 0, %s29
    %s49 = sphi 0, %s49
    %s51 = sphi 0, %s49
    %s52 = sphi 0, %s51
    %s66 = sphi 0, %s52
    %s72 = sphi 0, %s74
    %s75 = sphi 0, %s72
    %s76 = sphi 0, %s75
    %s92 = sphi 0, %s76
    %s96 = sphi 0, %s96
    %s98 = sphi 0, %s96
    %s99 = sphi 0, %s98
    %s113 = sphi 0, %s99
    %s117 = sphi 0, %s117
    %s119 = sphi 0, %s117
    %s120 = sphi 0, %s119
    %s134 = sphi 0, %s120
    %s138 = sphi 0, %s138
    %s140 = sphi 0, %s138
    %s141 = sphi 0, %s140
    %s155 = sphi 0, %s141
    %s159 = sphi 0, %s159
    %s161 = sphi 0, %s159
    %s162 = sphi 0, %s161
    %s176 = sphi 0, %s162
    %s180 = sphi 0, %s180
    %s182 = sphi 0, %s180
    %s183 = sphi 0, %s182
    %s197 = sphi 0, %s183
    %s201 = sphi 0, %s201
    %s203 = sphi 0, %s201
    %s204 = sphi 0, %s203
    %s218 = sphi 0, %s204
    %s224 = sphi 0, %s226
    %s227 = sphi 0, %s224
    %s228 = sphi 0, %s227
    %s244 = sphi 0, %s228
  $region4: #{hf_t5_forward.6} parent=0 // loop_header_branch
    %18 = sbr.rel (%p16) target = $region8
  $region5: #{hf_t5_forward.6} parent=0 // loop_body
    %s20 = ssub.s32 %s15, 1
    %s21 = ssub.s32 %s15, 2
    %s22 = sadd.s32 %s15, 1
    %s23 = ssub.s32 %s15, %s22
    %p24 = scmp.eq.s32.totalorder %s23, 0
    %s26 = sadd.s32 %s25, 1
    %s27 = scalar_select %p24, %s25, %s26
    %p30 = pneg %p24
    %p31 = scmp.eq.s32.totalorder %s15, 1
    %p32 = por %p30, %p31
    %p33 = scmp.ne.s32.totalorder %s25, %s28
    %p34 = scmp.eq.s32.totalorder %s15, 0
    %p35 = por %p33, %p34
    %p36 = scmp.ne.s32.totalorder %s25, %s28
    %p37 = scmp.eq.s32.totalorder %s20, 1
    %p38 = por %p36, %p37
    %p39 = scmp.ne.s32.totalorder %s28, %s29
    %p40 = scmp.eq.s32.totalorder %s20, 0
    %p41 = por %p39, %p40
    %p42 = scmp.ne.s32.totalorder %s28, %s29
    %p43 = scmp.eq.s32.totalorder %s21, 1
    %p44 = por %p42, %p43
    %p46 = scmp.ne.s32.totalorder %s29, %s45
    %p47 = scmp.eq.s32.totalorder %s21, 0
    %p48 = por %p46, %p47
    %s50 = sadd.s32 %s49, 1
    %p53 = scmp.eq.s32.totalorder %s15, 1
    %p54 = scmp.ne.s32.totalorder %s49, %s51
    %p55 = scmp.eq.s32.totalorder %s15, 0
    %p56 = por %p54, %p55
    %p57 = scmp.ne.s32.totalorder %s49, %s51
    %p58 = scmp.eq.s32.totalorder %s20, 1
    %p59 = por %p57, %p58
    %p60 = scmp.ne.s32.totalorder %s51, %s52
    %p61 = scmp.eq.s32.totalorder %s20, 0
    %p62 = por %p60, %p61
    %p63 = scmp.ne.s32.totalorder %s51, %s52
    %p64 = scmp.eq.s32.totalorder %s21, 1
    %p65 = por %p63, %p64
    %p67 = scmp.ne.s32.totalorder %s52, %s66
    %p68 = scmp.eq.s32.totalorder %s21, 0
    %p69 = por %p67, %p68
    %s70 = ssub.s32 %s15, %s22
    %p71 = scmp.eq.s32.totalorder %s70, 0
    %s73 = sadd.s32 %s72, 1
    %s74 = scalar_select %p71, %s72, %s73
    %p77 = pneg %p71
    %p78 = scmp.eq.s32.totalorder %s15, 1
    %p79 = por %p77, %p78
    %p80 = scmp.ne.s32.totalorder %s72, %s75
    %p81 = scmp.eq.s32.totalorder %s15, 0
    %p82 = por %p80, %p81
    %p83 = scmp.ne.s32.totalorder %s72, %s75
    %p84 = scmp.eq.s32.totalorder %s20, 1
    %p85 = por %p83, %p84
    %p86 = scmp.ne.s32.totalorder %s75, %s76
    %p87 = scmp.eq.s32.totalorder %s20, 0
    %p88 = por %p86, %p87
    %p89 = scmp.ne.s32.totalorder %s75, %s76
    %p90 = scmp.eq.s32.totalorder %s21, 1
    %p91 = por %p89, %p90
    %p93 = scmp.ne.s32.totalorder %s76, %s92
    %p94 = scmp.eq.s32.totalorder %s21, 0
    %p95 = por %p93, %p94
    %s97 = sadd.s32 %s96, 1
    %p100 = scmp.eq.s32.totalorder %s15, 1
    %p101 = scmp.ne.s32.totalorder %s96, %s98
    %p102 = scmp.eq.s32.totalorder %s15, 0
    %p103 = por %p101, %p102
    %p104 = scmp.ne.s32.totalorder %s96, %s98
    %p105 = scmp.eq.s32.totalorder %s20, 1
    %p106 = por %p104, %p105
    %p107 = scmp.ne.s32.totalorder %s98, %s99
    %p108 = scmp.eq.s32.totalorder %s20, 0
    %p109 = por %p107, %p108
    %p110 = scmp.ne.s32.totalorder %s98, %s99
    %p111 = scmp.eq.s32.totalorder %s21, 1
    %p112 = por %p110, %p111
    %p114 = scmp.ne.s32.totalorder %s99, %s113
    %p115 = scmp.eq.s32.totalorder %s21, 0
    %p116 = por %p114, %p115
    %s118 = sadd.s32 %s117, 1
    %p121 = scmp.eq.s32.totalorder %s15, 1
    %p122 = scmp.ne.s32.totalorder %s117, %s119
    %p123 = scmp.eq.s32.totalorder %s15, 0
    %p124 = por %p122, %p123
    %p125 = scmp.ne.s32.totalorder %s117, %s119
    %p126 = scmp.eq.s32.totalorder %s20, 1
    %p127 = por %p125, %p126
    %p128 = scmp.ne.s32.totalorder %s119, %s120
    %p129 = scmp.eq.s32.totalorder %s20, 0
    %p130 = por %p128, %p129
    %p131 = scmp.ne.s32.totalorder %s119, %s120
    %p132 = scmp.eq.s32.totalorder %s21, 1
    %p133 = por %p131, %p132
    %p135 = scmp.ne.s32.totalorder %s120, %s134
    %p136 = scmp.eq.s32.totalorder %s21, 0
    %p137 = por %p135, %p136
    %s139 = sadd.s32 %s138, 1
    %p142 = scmp.eq.s32.totalorder %s15, 1
    %p143 = scmp.ne.s32.totalorder %s138, %s140
    %p144 = scmp.eq.s32.totalorder %s15, 0
    %p145 = por %p143, %p144
    %p146 = scmp.ne.s32.totalorder %s138, %s140
    %p147 = scmp.eq.s32.totalorder %s20, 1
    %p148 = por %p146, %p147
    %p149 = scmp.ne.s32.totalorder %s140, %s141
    %p150 = scmp.eq.s32.totalorder %s20, 0
    %p151 = por %p149, %p150
    %p152 = scmp.ne.s32.totalorder %s140, %s141
    %p153 = scmp.eq.s32.totalorder %s21, 1
    %p154 = por %p152, %p153
    %p156 = scmp.ne.s32.totalorder %s141, %s155
    %p157 = scmp.eq.s32.totalorder %s21, 0
    %p158 = por %p156, %p157
    %s160 = sadd.s32 %s159, 1
    %p163 = scmp.eq.s32.totalorder %s15, 1
    %p164 = scmp.ne.s32.totalorder %s159, %s161
    %p165 = scmp.eq.s32.totalorder %s15, 0
    %p166 = por %p164, %p165
    %p167 = scmp.ne.s32.totalorder %s159, %s161
    %p168 = scmp.eq.s32.totalorder %s20, 1
    %p169 = por %p167, %p168
    %p170 = scmp.ne.s32.totalorder %s161, %s162
    %p171 = scmp.eq.s32.totalorder %s20, 0
    %p172 = por %p170, %p171
    %p173 = scmp.ne.s32.totalorder %s161, %s162
    %p174 = scmp.eq.s32.totalorder %s21, 1
    %p175 = por %p173, %p174
    %p177 = scmp.ne.s32.totalorder %s162, %s176
    %p178 = scmp.eq.s32.totalorder %s21, 0
    %p179 = por %p177, %p178
    %s181 = sadd.s32 %s180, 1
    %p184 = scmp.eq.s32.totalorder %s15, 1
    %p185 = scmp.ne.s32.totalorder %s180, %s182
    %p186 = scmp.eq.s32.totalorder %s15, 0
    %p187 = por %p185, %p186
    %p188 = scmp.ne.s32.totalorder %s180, %s182
    %p189 = scmp.eq.s32.totalorder %s20, 1
    %p190 = por %p188, %p189
    %p191 = scmp.ne.s32.totalorder %s182, %s183
    %p192 = scmp.eq.s32.totalorder %s20, 0
    %p193 = por %p191, %p192
    %p194 = scmp.ne.s32.totalorder %s182, %s183
    %p195 = scmp.eq.s32.totalorder %s21, 1
    %p196 = por %p194, %p195
    %p198 = scmp.ne.s32.totalorder %s183, %s197
    %p199 = scmp.eq.s32.totalorder %s21, 0
    %p200 = por %p198, %p199
    %s202 = sadd.s32 %s201, 1
    %p205 = scmp.eq.s32.totalorder %s15, 1
    %p206 = scmp.ne.s32.totalorder %s201, %s203
    %p207 = scmp.eq.s32.totalorder %s15, 0
    %p208 = por %p206, %p207
    %p209 = scmp.ne.s32.totalorder %s201, %s203
    %p210 = scmp.eq.s32.totalorder %s20, 1
    %p211 = por %p209, %p210
    %p212 = scmp.ne.s32.totalorder %s203, %s204
    %p213 = scmp.eq.s32.totalorder %s20, 0
    %p214 = por %p212, %p213
    %p215 = scmp.ne.s32.totalorder %s203, %s204
    %p216 = scmp.eq.s32.totalorder %s21, 1
    %p217 = por %p215, %p216
    %p219 = scmp.ne.s32.totalorder %s204, %s218
    %p220 = scmp.eq.s32.totalorder %s21, 0
    %p221 = por %p219, %p220
    %s222 = ssub.s32 %s15, %s22
    %p223 = scmp.eq.s32.totalorder %s222, 0
    %s225 = sadd.s32 %s224, 1
    %s226 = scalar_select %p223, %s224, %s225
    %p229 = pneg %p223
    %p230 = scmp.eq.s32.totalorder %s15, 1
    %p231 = por %p229, %p230
    %p232 = scmp.ne.s32.totalorder %s224, %s227
    %p233 = scmp.eq.s32.totalorder %s15, 0
    %p234 = por %p232, %p233
    %p235 = scmp.ne.s32.totalorder %s224, %s227
    %p236 = scmp.eq.s32.totalorder %s20, 1
    %p237 = por %p235, %p236
    %p238 = scmp.ne.s32.totalorder %s227, %s228
    %p239 = scmp.eq.s32.totalorder %s20, 0
    %p240 = por %p238, %p239
    %p241 = scmp.ne.s32.totalorder %s227, %s228
    %p242 = scmp.eq.s32.totalorder %s21, 1
    %p243 = por %p241, %p242
    %p245 = scmp.ne.s32.totalorder %s228, %s244
    %p246 = scmp.eq.s32.totalorder %s21, 0
    %p247 = por %p245, %p246
    %p248 = scmp.le.s32.totalorder 1, %s15
    %p249 = scmp.lt.s32.totalorder %s15, 3
    %p250 = pnand %p248, %p249
    %p251 = pneg %p250
    // Predicated region
    $region9: #{hf_t5_forward.6} parent=5 // pred_check
      _
    $region10: #{hf_t5_forward.6} parent=5 // pred_check_branch
      %253 = sbr.rel (%p250) target = $region12
    $region11: #{hf_t5_forward.6} parent=5 // pred_region
      %s254 = ssub.s32 %s15, 1
      // Predicated region
      $region13: #{hf_t5_forward.6} parent=11 // pred_check
        %p255 = pneg %p62
      $region14: #{hf_t5_forward.6} parent=11 // pred_check_branch
        %257 = sbr.rel (%p255) target = $region16
      $region15: #{hf_t5_forward.6} parent=11 // pred_region
        _
      $region16: #{hf_t5_forward.6} parent=11 // pred_fallthru
        _
      // Predicated region
      $region17: #{hf_t5_forward.6} parent=11 // pred_check
        %p258 = pneg %p109
      $region18: #{hf_t5_forward.6} parent=11 // pred_check_branch
        %260 = sbr.rel (%p258) target = $region20
      $region19: #{hf_t5_forward.6} parent=11 // pred_region
        _
      $region20: #{hf_t5_forward.6} parent=11 // pred_fallthru
        _
      // Predicated region
      $region21: #{hf_t5_forward.6} parent=11 // pred_check
        %p261 = pneg %p130
      $region22: #{hf_t5_forward.6} parent=11 // pred_check_branch
        %263 = sbr.rel (%p261) target = $region24
      $region23: #{hf_t5_forward.6} parent=11 // pred_region
        _
      $region24: #{hf_t5_forward.6} parent=11 // pred_fallthru
        _
      // Predicated region
      $region25: #{hf_t5_forward.6} parent=11 // pred_check
        %p264 = pneg %p151
      $region26: #{hf_t5_forward.6} parent=11 // pred_check_branch
        %266 = sbr.rel (%p264) target = $region28
      $region27: #{hf_t5_forward.6} parent=11 // pred_region
        _
      $region28: #{hf_t5_forward.6} parent=11 // pred_fallthru
        _
      // Predicated region
      $region29: #{hf_t5_forward.6} parent=11 // pred_check
        %p267 = pneg %p172
      $region30: #{hf_t5_forward.6} parent=11 // pred_check_branch
        %269 = sbr.rel (%p267) target = $region32
      $region31: #{hf_t5_forward.6} parent=11 // pred_region
        _
      $region32: #{hf_t5_forward.6} parent=11 // pred_fallthru
        _
      // Predicated region
      $region33: #{hf_t5_forward.6} parent=11 // pred_check
        %p270 = pneg %p193
      $region34: #{hf_t5_forward.6} parent=11 // pred_check_branch
        %272 = sbr.rel (%p270) target = $region36
      $region35: #{hf_t5_forward.6} parent=11 // pred_region
        _
      $region36: #{hf_t5_forward.6} parent=11 // pred_fallthru
        _
      // Predicated region
      $region37: #{hf_t5_forward.6} parent=11 // pred_check
        %p273 = pneg %p214
      $region38: #{hf_t5_forward.6} parent=11 // pred_check_branch
        %275 = sbr.rel (%p273) target = $region40
      $region39: #{hf_t5_forward.6} parent=11 // pred_region
        _
      $region40: #{hf_t5_forward.6} parent=11 // pred_fallthru
        _
    $region12: #{hf_t5_forward.6} parent=5 // pred_fallthru
      _
    %p276 = scmp.lt.s32.totalorder %s15, 2
    // Predicated region
    $region41: #{hf_t5_forward.6} parent=5 // pred_check
      %p277 = pneg %p276
    $region42: #{hf_t5_forward.6} parent=5 // pred_check_branch
      %279 = sbr.rel (%p277) target = $region44
    $region43: #{hf_t5_forward.6} parent=5 // pred_region
      // Predicated region
      $region45: #{hf_t5_forward.6} parent=43 // pred_check
        %p280 = pneg %p35
      $region46: #{hf_t5_forward.6} parent=43 // pred_check_branch
        %282 = sbr.rel (%p280) target = $region48
      $region47: #{hf_t5_forward.6} parent=43 // pred_region
        %p283 = scmp.lt.s32.totalorder %s15, 1
        %s284 = scalar_select %p283, %s15, 1
        %s285 = smul.addr %s284, 8
        %s286 = scalar_lea.vmem %s0, %s285
      $region48: #{hf_t5_forward.6} parent=43 // pred_fallthru
        _
      // Predicated region
      $region49: #{hf_t5_forward.6} parent=43 // pred_check
        %p287 = pneg %p82
      $region50: #{hf_t5_forward.6} parent=43 // pred_check_branch
        %289 = sbr.rel (%p287) target = $region52
      $region51: #{hf_t5_forward.6} parent=43 // pred_region
        %p290 = scmp.lt.s32.totalorder %s15, 1
        %s291 = scalar_select %p290, %s15, 1
        %s292 = scalar_lea.vmem %s2, %s291
      $region52: #{hf_t5_forward.6} parent=43 // pred_fallthru
        _
    $region44: #{hf_t5_forward.6} parent=5 // pred_fallthru
      _
    %p293 = scmp.le.s32.totalorder 1, %s15
    %p294 = scmp.lt.s32.totalorder %s15, 3
    %p295 = pnand %p293, %p294
    %p296 = pneg %p295
    // Predicated region
    $region53: #{hf_t5_forward.6} parent=5 // pred_check
      _
    $region54: #{hf_t5_forward.6} parent=5 // pred_check_branch
      %298 = sbr.rel (%p295) target = $region56
    $region55: #{hf_t5_forward.6} parent=5 // pred_region
      %s299 = ssub.s32 %s15, 1
      %p300 = scmp.lt.s32.totalorder %s20, 1
      %s301 = scalar_select %p300, %s20, 1
      %s302 = smul.addr %s301, 8
      %s303 = scalar_lea.vmem %s0, %s302
      %p304 = pneg %p41
      %p305 = pneg %p38
      %p306 = pneg %p62
      %p307 = pneg %p59
      %p308 = scmp.lt.s32.totalorder %s20, 1
      %s309 = scalar_select %p308, %s20, 1
      %s310 = scalar_lea.vmem %s2, %s309
      %p311 = pneg %p88
      %p312 = pneg %p85
      %p313 = pneg %p109
      %p314 = pneg %p106
      %p315 = pneg %p130
      %p316 = pneg %p127
      %p317 = pneg %p151
      %p318 = pneg %p148
      %p319 = pneg %p172
      %p320 = pneg %p169
      %p321 = pneg %p193
      %p322 = pneg %p190
      %p323 = pneg %p214
      %p324 = pneg %p211
      %p325 = pneg %p240
      %p326 = pneg %p237
      %p327 = scmp.lt.s32.totalorder %s20, 1
      %s328 = scalar_select %p327, %s20, 1
      %s329 = smul.addr %s328, 8
      %s330 = scalar_lea.vmem %s9, %s329
      %p331 = scmp.lt.s32.totalorder %s20, 1
      %s332 = scalar_select %p331, %s20, 1
      %s333 = smul.addr %s332, 8
      %s334 = scalar_lea.vmem %s0, %s333
      %p335 = scmp.lt.s32.totalorder %s20, 1
      %s336 = scalar_select %p335, %s20, 1
      %s337 = scalar_lea.vmem %s2, %s336
      %p338 = scmp.lt.s32.totalorder %s20, 1
      %s339 = scalar_select %p338, %s20, 1
      %s340 = smul.addr %s339, 8
      %s341 = scalar_lea.vmem %s9, %s340
      %v342 = vld [vmem:[%s334] sm:$0xff]
      %v343 = vld [vmem:[%s3] sm:$0x1]
      %v344 = vmul.f32 %v342, %v342
      %vm345 = vcmask 261120
      %v346 = vsel %vm345, %v344, 0.0
      %347 = vadd.xlane.f32.xlu0 %v346
      %v348 = vpop.xlane.xlu0 %347
      %v349 = vrcp.pop 32.0
      %v350 = vmul.f32 %v348, %v349
      %v351 = vadd.f32 %v350, 1e-06
      %v352 = vrsqrt.pop %v351
      %v353 = vmul.f32 %v342, %v352
      %v355 = vlaneseq
      %v356 = vshrl.u32 %v355, 7
      %v357 = vsub.s32 0, %v356
      %v358 = vrot.slane %v343, %v357
      %v360 = vmul.f32 %v353, %v358
      %v361 = vld [vmem:[%s4] sm:$0xff]
      %v362 = vld [vmem:[%s4 + $0x8] sm:$0xff]
      %v363 = vld [vmem:[%s4 + $0x10] sm:$0xff]
      %v364 = vld [vmem:[%s4 + $0x18] sm:$0xff]
      %v366 = vsel %vm345, %v360, 0
      %368 = vmatprep.subr.mxu0 0.0
      %369 = vmatpush1.msra.mxu0 %v361
      %370 = vmatprep.subr.mxu0 0.0
      %371 = vmatpush1.msra.mxu0 %v362
      %372 = vmatprep.subr.mxu0 0.0
      %373 = vmatpush1.msra.mxu0 %v363
      %374 = vmatprep.subr.mxu0 0.0
      %375 = vmatpush1.msra.mxu0 %v364
      %376 = vmatprep.subr.mxu0 0.0
      %377 = vmatpush1.msra.mxu0 0.0
      %378 = vmatprep.subr.mxu0 0.0
      %379 = vmatpush1.msra.mxu0 0.0
      %380 = vmatprep.subr.mxu0 0.0
      %381 = vmatpush1.msra.mxu0 0.0
      %382 = vmatprep.subr.mxu0 0.0
      %383 = vmatpush1.msra.mxu0 0.0
      %384 = vmatprep.subr.mxu0 0.0
      %385 = vmatpush1.msra.mxu0 0.0
      %386 = vmatprep.subr.mxu0 0.0
      %387 = vmatpush1.msra.mxu0 0.0
      %388 = vmatprep.subr.mxu0 0.0
      %389 = vmatpush1.msra.mxu0 0.0
      %390 = vmatprep.subr.mxu0 0.0
      %391 = vmatpush1.msra.mxu0 0.0
      %392 = vmatprep.subr.mxu0 0.0
      %393 = vmatpush1.msra.mxu0 0.0
      %394 = vmatprep.subr.mxu0 0.0
      %395 = vmatpush1.msra.mxu0 0.0
      %396 = vmatprep.subr.mxu0 0.0
      %397 = vmatpush1.msra.mxu0 0.0
      %398 = vmatprep.subr.mxu0 0.0
      %399 = vmatpush1.msra.mxu0 0.0
      %400 = vmatprep.subr.mxu0 0.0
      %401 = vmatpush1.msra.mxu0 0.0
      %402 = vmatprep.subr.mxu0 0.0
      %403 = vmatpush1.msra.mxu0 0.0
      %404 = vmatprep.subr.mxu0 0.0
      %405 = vmatpush1.msra.mxu0 0.0
      %406 = vmatprep.subr.mxu0 0.0
      %407 = vmatpush1.msra.mxu0 0.0
      %408 = vmatprep.subr.mxu0 0.0
      %409 = vmatpush1.msra.mxu0 0.0
      %410 = vmatprep.subr.mxu0 0.0
      %411 = vmatpush1.msra.mxu0 0.0
      %412 = vmatprep.subr.mxu0 0.0
      %413 = vmatpush1.msra.mxu0 0.0
      %414 = vmatprep.subr.mxu0 0.0
      %415 = vmatpush1.msra.mxu0 0.0
      %416 = vmatprep.subr.mxu0 0.0
      %417 = vmatpush1.msra.mxu0 0.0
      %418 = vmatprep.subr.mxu0 0.0
      %419 = vmatpush1.msra.mxu0 0.0
      %420 = vmatprep.subr.mxu0 0.0
      %421 = vmatpush1.msra.mxu0 0.0
      %422 = vmatprep.subr.mxu0 0.0
      %423 = vmatpush1.msra.mxu0 0.0
      %424 = vmatprep.subr.mxu0 0.0
      %425 = vmatpush1.msra.mxu0 0.0
      %426 = vmatprep.subr.mxu0 0.0
      %427 = vmatpush1.msra.mxu0 0.0
      %428 = vmatprep.subr.mxu0 0.0
      %429 = vmatpush1.msra.mxu0 0.0
      %430 = vmatprep.subr.mxu0 0.0
      %431 = vmatpush1.msra.mxu0 0.0
      %432 = vmatprep.mubr.f32.mxu0 0.0
      %433 = vmatmul.mubr.f32.gmra.mrb[0].mxu0 %v366
      %v434 = vpop.f32.mrb[0].mxu0
      %v435 = vadd.f32 0.0, %v434
      %v436 = vpop.f32.mrb[0].mxu0
      %437 = vdwg.mxu0
      %v438 = vld [vmem:[%s1] sm:$0xff]
      %v439 = vld [vmem:[%s337] sm:$0x1]
      %v441 = vlaneseq
      %v442 = vshrl.u32 %v441, 7
      %v443 = vsub.s32 0, %v442
      %v444 = vrot.slane %v439, %v443
      %v446 = vadd.f32 %v438, %v444
      %448 = vrot.lane.b32.xlu0 %v435, 96
      %v449 = vpop.permute.xlu0 %448
      %vm450 = vcmask 64512
      %v451 = vsel %vm450, %v435, 0
      %v453 = vsel %vm450, %v449, 0
      %455 = vmatprep.subr.mxu0 0.0
      %456 = vmatpush1.xpose.msra.mxu0 %v453
      %457 = vmatprep.subr.mxu0 0.0
      %458 = vmatpush1.xpose.msra.mxu0 0.0
      %459 = vmatprep.subr.mxu0 0.0
      %460 = vmatpush1.xpose.msra.mxu0 0.0
      %461 = vmatprep.subr.mxu0 0.0
      %462 = vmatpush1.xpose.msra.mxu0 0.0
      %463 = vmatprep.subr.mxu0 0.0
      %464 = vmatpush1.xpose.msra.mxu0 0.0
      %465 = vmatprep.subr.mxu0 0.0
      %466 = vmatpush1.xpose.msra.mxu0 0.0
      %467 = vmatprep.subr.mxu0 0.0
      %468 = vmatpush1.xpose.msra.mxu0 0.0
      %469 = vmatprep.subr.mxu0 0.0
      %470 = vmatpush1.xpose.msra.mxu0 0.0
      %471 = vmatprep.subr.mxu0 0.0
      %472 = vmatpush1.xpose.msra.mxu0 0.0
      %473 = vmatprep.subr.mxu0 0.0
      %474 = vmatpush1.xpose.msra.mxu0 0.0
      %475 = vmatprep.subr.mxu0 0.0
      %476 = vmatpush1.xpose.msra.mxu0 0.0
      %477 = vmatprep.subr.mxu0 0.0
      %478 = vmatpush1.xpose.msra.mxu0 0.0
      %479 = vmatprep.subr.mxu0 0.0
      %480 = vmatpush1.xpose.msra.mxu0 0.0
      %481 = vmatprep.subr.mxu0 0.0
      %482 = vmatpush1.xpose.msra.mxu0 0.0
      %483 = vmatprep.subr.mxu0 0.0
      %484 = vmatpush1.xpose.msra.mxu0 0.0
      %485 = vmatprep.subr.mxu0 0.0
      %486 = vmatpush1.xpose.msra.mxu0 0.0
      %487 = vmatprep.subr.mxu0 0.0
      %488 = vmatpush1.xpose.msra.mxu0 0.0
      %489 = vmatprep.subr.mxu0 0.0
      %490 = vmatpush1.xpose.msra.mxu0 0.0
      %491 = vmatprep.subr.mxu0 0.0
      %492 = vmatpush1.xpose.msra.mxu0 0.0
      %493 = vmatprep.subr.mxu0 0.0
      %494 = vmatpush1.xpose.msra.mxu0 0.0
      %495 = vmatprep.subr.mxu0 0.0
      %496 = vmatpush1.xpose.msra.mxu0 0.0
      %497 = vmatprep.subr.mxu0 0.0
      %498 = vmatpush1.xpose.msra.mxu0 0.0
      %499 = vmatprep.subr.mxu0 0.0
      %500 = vmatpush1.xpose.msra.mxu0 0.0
      %501 = vmatprep.subr.mxu0 0.0
      %502 = vmatpush1.xpose.msra.mxu0 0.0
      %503 = vmatprep.subr.mxu0 0.0
      %504 = vmatpush1.xpose.msra.mxu0 0.0
      %505 = vmatprep.subr.mxu0 0.0
      %506 = vmatpush1.xpose.msra.mxu0 0.0
      %507 = vmatprep.subr.mxu0 0.0
      %508 = vmatpush1.xpose.msra.mxu0 0.0
      %509 = vmatprep.subr.mxu0 0.0
      %510 = vmatpush1.xpose.msra.mxu0 0.0
      %511 = vmatprep.subr.mxu0 0.0
      %512 = vmatpush1.xpose.msra.mxu0 0.0
      %513 = vmatprep.subr.mxu0 0.0
      %514 = vmatpush1.xpose.msra.mxu0 0.0
      %515 = vmatprep.subr.mxu0 0.0
      %516 = vmatpush1.xpose.msra.mxu0 0.0
      %517 = vmatprep.subr.mxu0 0.0
      %518 = vmatpush1.xpose.msra.mxu0 0.0
      %519 = vmatprep.mubr.f32.mxu0 0.0
      %520 = vmatmul.mubr.f32.gmra.mrb[0].mxu0 %v451
      %v521 = vpop.f32.mrb[0].mxu0
      %v522 = vadd.f32 %v446, %v521
      %v523 = vpop.f32.mrb[0].mxu0
      %524 = vdwg.mxu0
      %v525 = vsel %vm450, %v522, -inf
      %526 = vmax.xlane.f32.xlu0 %v525
      %v527 = vpop.xlane.xlu0 %526
      %v528 = vsub.f32 %v522, %v527
      %v529 = vmul.f32 %v528, 1.442695
      %v530 = vpow.pop %v529
      %v531 = vsel %vm450, %v530, 0.0
      %532 = vadd.xlane.f32.xlu0 %v531
      %v533 = vpop.xlane.xlu0 %532
      %v534 = vrcp.pop %v533
      %v535 = vmul.f32 %v530, %v534
      %536 = vrot.lane.b32.xlu0 %v435, 64
      %v537 = vpop.permute.xlu0 %536
      %v540 = vsel %vm450, %v535, 0
      %542 = vmatprep.subr.mxu0 0.0
      %543 = vmatpush1.msra.mxu0 %v537
      %544 = vmatprep.subr.mxu0 0.0
      %545 = vmatpush1.msra.mxu0 0.0
      %546 = vmatprep.subr.mxu0 0.0
      %547 = vmatpush1.msra.mxu0 0.0
      %548 = vmatprep.subr.mxu0 0.0
      %549 = vmatpush1.msra.mxu0 0.0
      %550 = vmatprep.subr.mxu0 0.0
      %551 = vmatpush1.msra.mxu0 0.0
      %552 = vmatprep.subr.mxu0 0.0
      %553 = vmatpush1.msra.mxu0 0.0
      %554 = vmatprep.subr.mxu0 0.0
      %555 = vmatpush1.msra.mxu0 0.0
      %556 = vmatprep.subr.mxu0 0.0
      %557 = vmatpush1.msra.mxu0 0.0
      %558 = vmatprep.subr.mxu0 0.0
      %559 = vmatpush1.msra.mxu0 0.0
      %560 = vmatprep.subr.mxu0 0.0
      %561 = vmatpush1.msra.mxu0 0.0
      %562 = vmatprep.subr.mxu0 0.0
      %563 = vmatpush1.msra.mxu0 0.0
      %564 = vmatprep.subr.mxu0 0.0
      %565 = vmatpush1.msra.mxu0 0.0
      %566 = vmatprep.subr.mxu0 0.0
      %567 = vmatpush1.msra.mxu0 0.0
      %568 = vmatprep.subr.mxu0 0.0
      %569 = vmatpush1.msra.mxu0 0.0
      %570 = vmatprep.subr.mxu0 0.0
      %571 = vmatpush1.msra.mxu0 0.0
      %572 = vmatprep.subr.mxu0 0.0
      %573 = vmatpush1.msra.mxu0 0.0
      %574 = vmatprep.subr.mxu0 0.0
      %575 = vmatpush1.msra.mxu0 0.0
      %576 = vmatprep.subr.mxu0 0.0
      %577 = vmatpush1.msra.mxu0 0.0
      %578 = vmatprep.subr.mxu0 0.0
      %579 = vmatpush1.msra.mxu0 0.0
      %580 = vmatprep.subr.mxu0 0.0
      %581 = vmatpush1.msra.mxu0 0.0
      %582 = vmatprep.subr.mxu0 0.0
      %583 = vmatpush1.msra.mxu0 0.0
      %584 = vmatprep.subr.mxu0 0.0
      %585 = vmatpush1.msra.mxu0 0.0
      %586 = vmatprep.subr.mxu0 0.0
      %587 = vmatpush1.msra.mxu0 0.0
      %588 = vmatprep.subr.mxu0 0.0
      %589 = vmatpush1.msra.mxu0 0.0
      %590 = vmatprep.subr.mxu0 0.0
      %591 = vmatpush1.msra.mxu0 0.0
      %592 = vmatprep.subr.mxu0 0.0
      %593 = vmatpush1.msra.mxu0 0.0
      %594 = vmatprep.subr.mxu0 0.0
      %595 = vmatpush1.msra.mxu0 0.0
      %596 = vmatprep.subr.mxu0 0.0
      %597 = vmatpush1.msra.mxu0 0.0
      %598 = vmatprep.subr.mxu0 0.0
      %599 = vmatpush1.msra.mxu0 0.0
      %600 = vmatprep.subr.mxu0 0.0
      %601 = vmatpush1.msra.mxu0 0.0
      %602 = vmatprep.subr.mxu0 0.0
      %603 = vmatpush1.msra.mxu0 0.0
      %604 = vmatprep.subr.mxu0 0.0
      %605 = vmatpush1.msra.mxu0 0.0
      %606 = vmatprep.mubr.f32.mxu0 0.0
      %607 = vmatmul.mubr.f32.gmra.mrb[0].mxu0 %v540
      %v608 = vpop.f32.mrb[0].mxu0
      %v609 = vadd.f32 0.0, %v608
      %v610 = vpop.f32.mrb[0].mxu0
      %611 = vdwg.mxu0
      %v612 = vld [vmem:[%s5] sm:$0xff]
      %s613 = scalar_lea.vmem %s1, 8
      %v614 = vld [vmem:[%s613] sm:$0xff]
      %v615 = vadd.f32 %v614, %v444
      %616 = vrot.lane.b32.xlu0 %v435, 120
      %v617 = vpop.permute.xlu0 %616
      %618 = vrot.lane.b32.xlu0 %v435, 88
      %v619 = vpop.permute.xlu0 %618
      %v620 = vsel %vm450, %v617, 0
      %v622 = vsel %vm450, %v619, 0
      %624 = vmatprep.subr.mxu0 0.0
      %625 = vmatpush1.xpose.msra.mxu0 %v622
      %626 = vmatprep.subr.mxu0 0.0
      %627 = vmatpush1.xpose.msra.mxu0 0.0
      %628 = vmatprep.subr.mxu0 0.0
      %629 = vmatpush1.xpose.msra.mxu0 0.0
      %630 = vmatprep.subr.mxu0 0.0
      %631 = vmatpush1.xpose.msra.mxu0 0.0
      %632 = vmatprep.subr.mxu0 0.0
      %633 = vmatpush1.xpose.msra.mxu0 0.0
      %634 = vmatprep.subr.mxu0 0.0
      %635 = vmatpush1.xpose.msra.mxu0 0.0
      %636 = vmatprep.subr.mxu0 0.0
      %637 = vmatpush1.xpose.msra.mxu0 0.0
      %638 = vmatprep.subr.mxu0 0.0
      %639 = vmatpush1.xpose.msra.mxu0 0.0
      %640 = vmatprep.subr.mxu0 0.0
      %641 = vmatpush1.xpose.msra.mxu0 0.0
      %642 = vmatprep.subr.mxu0 0.0
      %643 = vmatpush1.xpose.msra.mxu0 0.0
      %644 = vmatprep.subr.mxu0 0.0
      %645 = vmatpush1.xpose.msra.mxu0 0.0
      %646 = vmatprep.subr.mxu0 0.0
      %647 = vmatpush1.xpose.msra.mxu0 0.0
      %648 = vmatprep.subr.mxu0 0.0
      %649 = vmatpush1.xpose.msra.mxu0 0.0
      %650 = vmatprep.subr.mxu0 0.0
      %651 = vmatpush1.xpose.msra.mxu0 0.0
      %652 = vmatprep.subr.mxu0 0.0
      %653 = vmatpush1.xpose.msra.mxu0 0.0
      %654 = vmatprep.subr.mxu0 0.0
      %655 = vmatpush1.xpose.msra.mxu0 0.0
      %656 = vmatprep.subr.mxu0 0.0
      %657 = vmatpush1.xpose.msra.mxu0 0.0
      %658 = vmatprep.subr.mxu0 0.0
      %659 = vmatpush1.xpose.msra.mxu0 0.0
      %660 = vmatprep.subr.mxu0 0.0
      %661 = vmatpush1.xpose.msra.mxu0 0.0
      %662 = vmatprep.subr.mxu0 0.0
      %663 = vmatpush1.xpose.msra.mxu0 0.0
      %664 = vmatprep.subr.mxu0 0.0
      %665 = vmatpush1.xpose.msra.mxu0 0.0
      %666 = vmatprep.subr.mxu0 0.0
      %667 = vmatpush1.xpose.msra.mxu0 0.0
      %668 = vmatprep.subr.mxu0 0.0
      %669 = vmatpush1.xpose.msra.mxu0 0.0
      %670 = vmatprep.subr.mxu0 0.0
      %671 = vmatpush1.xpose.msra.mxu0 0.0
      %672 = vmatprep.subr.mxu0 0.0
      %673 = vmatpush1.xpose.msra.mxu0 0.0
      %674 = vmatprep.subr.mxu0 0.0
      %675 = vmatpush1.xpose.msra.mxu0 0.0
      %676 = vmatprep.subr.mxu0 0.0
      %677 = vmatpush1.xpose.msra.mxu0 0.0
      %678 = vmatprep.subr.mxu0 0.0
      %679 = vmatpush1.xpose.msra.mxu0 0.0
      %680 = vmatprep.subr.mxu0 0.0
      %681 = vmatpush1.xpose.msra.mxu0 0.0
      %682 = vmatprep.subr.mxu0 0.0
      %683 = vmatpush1.xpose.msra.mxu0 0.0
      %684 = vmatprep.subr.mxu0 0.0
      %685 = vmatpush1.xpose.msra.mxu0 0.0
      %686 = vmatprep.subr.mxu0 0.0
      %687 = vmatpush1.xpose.msra.mxu0 0.0
      %688 = vmatprep.mubr.f32.mxu0 0.0
      %689 = vmatmul.mubr.f32.gmra.mrb[0].mxu0 %v620
      %v690 = vpop.f32.mrb[0].mxu0
      %v691 = vadd.f32 %v615, %v690
      %v692 = vpop.f32.mrb[0].mxu0
      %693 = vdwg.mxu0
      %v694 = vsel %vm450, %v691, -inf
      %695 = vmax.xlane.f32.xlu0 %v694
      %v696 = vpop.xlane.xlu0 %695
      %v697 = vsub.f32 %v691, %v696
      %v698 = vmul.f32 %v697, 1.442695
      %v699 = vpow.pop %v698
      %v700 = vsel %vm450, %v699, 0.0
      %701 = vadd.xlane.f32.xlu0 %v700
      %v702 = vpop.xlane.xlu0 %701
      %v703 = vrcp.pop %v702
      %v704 = vmul.f32 %v699, %v703
      %705 = vrot.lane.b32.xlu0 %v435, 56
      %v706 = vpop.permute.xlu0 %705
      %v709 = vsel %vm450, %v704, 0
      %711 = vmatprep.subr.mxu0 0.0
      %712 = vmatpush1.msra.mxu0 %v706
      %713 = vmatprep.subr.mxu0 0.0
      %714 = vmatpush1.msra.mxu0 0.0
      %715 = vmatprep.subr.mxu0 0.0
      %716 = vmatpush1.msra.mxu0 0.0
      %717 = vmatprep.subr.mxu0 0.0
      %718 = vmatpush1.msra.mxu0 0.0
      %719 = vmatprep.subr.mxu0 0.0
      %720 = vmatpush1.msra.mxu0 0.0
      %721 = vmatprep.subr.mxu0 0.0
      %722 = vmatpush1.msra.mxu0 0.0
      %723 = vmatprep.subr.mxu0 0.0
      %724 = vmatpush1.msra.mxu0 0.0
      %725 = vmatprep.subr.mxu0 0.0
      %726 = vmatpush1.msra.mxu0 0.0
      %727 = vmatprep.subr.mxu0 0.0
      %728 = vmatpush1.msra.mxu0 0.0
      %729 = vmatprep.subr.mxu0 0.0
      %730 = vmatpush1.msra.mxu0 0.0
      %731 = vmatprep.subr.mxu0 0.0
      %732 = vmatpush1.msra.mxu0 0.0
      %733 = vmatprep.subr.mxu0 0.0
      %734 = vmatpush1.msra.mxu0 0.0
      %735 = vmatprep.subr.mxu0 0.0
      %736 = vmatpush1.msra.mxu0 0.0
      %737 = vmatprep.subr.mxu0 0.0
      %738 = vmatpush1.msra.mxu0 0.0
      %739 = vmatprep.subr.mxu0 0.0
      %740 = vmatpush1.msra.mxu0 0.0
      %741 = vmatprep.subr.mxu0 0.0
      %742 = vmatpush1.msra.mxu0 0.0
      %743 = vmatprep.subr.mxu0 0.0
      %744 = vmatpush1.msra.mxu0 0.0
      %745 = vmatprep.subr.mxu0 0.0
      %746 = vmatpush1.msra.mxu0 0.0
      %747 = vmatprep.subr.mxu0 0.0
      %748 = vmatpush1.msra.mxu0 0.0
      %749 = vmatprep.subr.mxu0 0.0
      %750 = vmatpush1.msra.mxu0 0.0
      %751 = vmatprep.subr.mxu0 0.0
      %752 = vmatpush1.msra.mxu0 0.0
      %753 = vmatprep.subr.mxu0 0.0
      %754 = vmatpush1.msra.mxu0 0.0
      %755 = vmatprep.subr.mxu0 0.0
      %756 = vmatpush1.msra.mxu0 0.0
      %757 = vmatprep.subr.mxu0 0.0
      %758 = vmatpush1.msra.mxu0 0.0
      %759 = vmatprep.subr.mxu0 0.0
      %760 = vmatpush1.msra.mxu0 0.0
      %761 = vmatprep.subr.mxu0 0.0
      %762 = vmatpush1.msra.mxu0 0.0
      %763 = vmatprep.subr.mxu0 0.0
      %764 = vmatpush1.msra.mxu0 0.0
      %765 = vmatprep.subr.mxu0 0.0
      %766 = vmatpush1.msra.mxu0 0.0
      %767 = vmatprep.subr.mxu0 0.0
      %768 = vmatpush1.msra.mxu0 0.0
      %769 = vmatprep.subr.mxu0 0.0
      %770 = vmatpush1.msra.mxu0 0.0
      %771 = vmatprep.subr.mxu0 0.0
      %772 = vmatpush1.msra.mxu0 0.0
      %773 = vmatprep.subr.mxu0 0.0
      %774 = vmatpush1.msra.mxu0 0.0
      %775 = vmatprep.mubr.f32.mxu0 0.0
      %776 = vmatmul.mubr.f32.gmra.mrb[0].mxu0 %v709
      %v777 = vpop.f32.mrb[0].mxu0
      %v778 = vadd.f32 0.0, %v777
      %v779 = vpop.f32.mrb[0].mxu0
      %780 = vdwg.mxu0
      %v781 = vld [vmem:[%s5 + $0x8] sm:$0xff]
      %v783 = vsel %vm450, %v778, 0
      %785 = vmatprep.subr.mxu0 0.0
      %786 = vmatpush1.msra.mxu0 %v781
      %787 = vmatprep.subr.mxu0 0.0
      %788 = vmatpush1.msra.mxu0 0.0
      %789 = vmatprep.subr.mxu0 0.0
      %790 = vmatpush1.msra.mxu0 0.0
      %791 = vmatprep.subr.mxu0 0.0
      %792 = vmatpush1.msra.mxu0 0.0
      %793 = vmatprep.subr.mxu0 0.0
      %794 = vmatpush1.msra.mxu0 0.0
      %795 = vmatprep.subr.mxu0 0.0
      %796 = vmatpush1.msra.mxu0 0.0
      %797 = vmatprep.subr.mxu0 0.0
      %798 = vmatpush1.msra.mxu0 0.0
      %799 = vmatprep.subr.mxu0 0.0
      %800 = vmatpush1.msra.mxu0 0.0
      %801 = vmatprep.subr.mxu0 0.0
      %802 = vmatpush1.msra.mxu0 0.0
      %803 = vmatprep.subr.mxu0 0.0
      %804 = vmatpush1.msra.mxu0 0.0
      %805 = vmatprep.subr.mxu0 0.0
      %806 = vmatpush1.msra.mxu0 0.0
      %807 = vmatprep.subr.mxu0 0.0
      %808 = vmatpush1.msra.mxu0 0.0
      %809 = vmatprep.subr.mxu0 0.0
      %810 = vmatpush1.msra.mxu0 0.0
      %811 = vmatprep.subr.mxu0 0.0
      %812 = vmatpush1.msra.mxu0 0.0
      %813 = vmatprep.subr.mxu0 0.0
      %814 = vmatpush1.msra.mxu0 0.0
      %815 = vmatprep.subr.mxu0 0.0
      %816 = vmatpush1.msra.mxu0 0.0
      %817 = vmatprep.subr.mxu0 0.0
      %818 = vmatpush1.msra.mxu0 0.0
      %819 = vmatprep.subr.mxu0 0.0
      %820 = vmatpush1.msra.mxu0 0.0
      %821 = vmatprep.subr.mxu0 0.0
      %822 = vmatpush1.msra.mxu0 0.0
      %823 = vmatprep.subr.mxu0 0.0
      %824 = vmatpush1.msra.mxu0 0.0
      %825 = vmatprep.subr.mxu0 0.0
      %826 = vmatpush1.msra.mxu0 0.0
      %827 = vmatprep.subr.mxu0 0.0
      %828 = vmatpush1.msra.mxu0 0.0
      %829 = vmatprep.subr.mxu0 0.0
      %830 = vmatpush1.msra.mxu0 0.0
      %831 = vmatprep.subr.mxu0 0.0
      %832 = vmatpush1.msra.mxu0 0.0
      %833 = vmatprep.subr.mxu0 0.0
      %834 = vmatpush1.msra.mxu0 0.0
      %835 = vmatprep.subr.mxu0 0.0
      %836 = vmatpush1.msra.mxu0 0.0
      %837 = vmatprep.subr.mxu0 0.0
      %838 = vmatpush1.msra.mxu0 0.0
      %839 = vmatprep.subr.mxu0 0.0
      %840 = vmatpush1.msra.mxu0 0.0
      %841 = vmatprep.subr.mxu0 0.0
      %842 = vmatpush1.msra.mxu0 0.0
      %843 = vmatprep.subr.mxu0 0.0
      %844 = vmatpush1.msra.mxu0 0.0
      %845 = vmatprep.subr.mxu0 0.0
      %846 = vmatpush1.msra.mxu0 0.0
      %847 = vmatprep.subr.mxu0 0.0
      %848 = vmatpush1.msra.mxu0 0.0
      %849 = vmatprep.mubr.f32.mxu0 0.0
      %850 = vmatmul.mubr.f32.gmra.mrb[0].mxu0 %v783
      %v851 = vpop.f32.mrb[0].mxu0
      %v852 = vadd.f32 0.0, %v851
      %v853 = vpop.f32.mrb[0].mxu0
      %854 = vdwg.mxu0
      %v856 = vsel %vm450, %v609, 0
      %858 = vmatprep.subr.mxu0 0.0
      %859 = vmatpush1.msra.mxu0 %v612
      %860 = vmatprep.subr.mxu0 0.0
      %861 = vmatpush1.msra.mxu0 0.0
      %862 = vmatprep.subr.mxu0 0.0
      %863 = vmatpush1.msra.mxu0 0.0
      %864 = vmatprep.subr.mxu0 0.0
      %865 = vmatpush1.msra.mxu0 0.0
      %866 = vmatprep.subr.mxu0 0.0
      %867 = vmatpush1.msra.mxu0 0.0
      %868 = vmatprep.subr.mxu0 0.0
      %869 = vmatpush1.msra.mxu0 0.0
      %870 = vmatprep.subr.mxu0 0.0
      %871 = vmatpush1.msra.mxu0 0.0
      %872 = vmatprep.subr.mxu0 0.0
      %873 = vmatpush1.msra.mxu0 0.0
      %874 = vmatprep.subr.mxu0 0.0
      %875 = vmatpush1.msra.mxu0 0.0
      %876 = vmatprep.subr.mxu0 0.0
      %877 = vmatpush1.msra.mxu0 0.0
      %878 = vmatprep.subr.mxu0 0.0
      %879 = vmatpush1.msra.mxu0 0.0
      %880 = vmatprep.subr.mxu0 0.0
      %881 = vmatpush1.msra.mxu0 0.0
      %882 = vmatprep.subr.mxu0 0.0
      %883 = vmatpush1.msra.mxu0 0.0
      %884 = vmatprep.subr.mxu0 0.0
      %885 = vmatpush1.msra.mxu0 0.0
      %886 = vmatprep.subr.mxu0 0.0
      %887 = vmatpush1.msra.mxu0 0.0
      %888 = vmatprep.subr.mxu0 0.0
      %889 = vmatpush1.msra.mxu0 0.0
      %890 = vmatprep.subr.mxu0 0.0
      %891 = vmatpush1.msra.mxu0 0.0
      %892 = vmatprep.subr.mxu0 0.0
      %893 = vmatpush1.msra.mxu0 0.0
      %894 = vmatprep.subr.mxu0 0.0
      %895 = vmatpush1.msra.mxu0 0.0
      %896 = vmatprep.subr.mxu0 0.0
      %897 = vmatpush1.msra.mxu0 0.0
      %898 = vmatprep.subr.mxu0 0.0
      %899 = vmatpush1.msra.mxu0 0.0
      %900 = vmatprep.subr.mxu0 0.0
      %901 = vmatpush1.msra.mxu0 0.0
      %902 = vmatprep.subr.mxu0 0.0
      %903 = vmatpush1.msra.mxu0 0.0
      %904 = vmatprep.subr.mxu0 0.0
      %905 = vmatpush1.msra.mxu0 0.0
      %906 = vmatprep.subr.mxu0 0.0
      %907 = vmatpush1.msra.mxu0 0.0
      %908 = vmatprep.subr.mxu0 0.0
      %909 = vmatpush1.msra.mxu0 0.0
      %910 = vmatprep.subr.mxu0 0.0
      %911 = vmatpush1.msra.mxu0 0.0
      %912 = vmatprep.subr.mxu0 0.0
      %913 = vmatpush1.msra.mxu0 0.0
      %914 = vmatprep.subr.mxu0 0.0
      %915 = vmatpush1.msra.mxu0 0.0
      %916 = vmatprep.subr.mxu0 0.0
      %917 = vmatpush1.msra.mxu0 0.0
      %918 = vmatprep.subr.mxu0 0.0
      %919 = vmatpush1.msra.mxu0 0.0
      %920 = vmatprep.subr.mxu0 0.0
      %921 = vmatpush1.msra.mxu0 0.0
      %922 = vmatprep.mubr.f32.mxu0 0.0
      %923 = vmatmul.mubr.f32.gmra.mrb[0].mxu0 %v856
      %v924 = vpop.f32.mrb[0].mxu0
      %v925 = vadd.f32 %v852, %v924
      %v926 = vpop.f32.mrb[0].mxu0
      %927 = vdwg.mxu0
      %s928 = scalar_lea.vmem %s1, 16
      %v929 = vld [vmem:[%s928] sm:$0xff]
      %v930 = vadd.f32 %v929, %v444
      %931 = vrot.lane.b32.xlu0 %v435, 112
      %v932 = vpop.permute.xlu0 %931
      %933 = vrot.lane.b32.xlu0 %v435, 80
      %v934 = vpop.permute.xlu0 %933
      %v935 = vsel %vm450, %v932, 0
      %v937 = vsel %vm450, %v934, 0
      %939 = vmatprep.subr.mxu0 0.0
      %940 = vmatpush1.xpose.msra.mxu0 %v937
      %941 = vmatprep.subr.mxu0 0.0
      %942 = vmatpush1.xpose.msra.mxu0 0.0
      %943 = vmatprep.subr.mxu0 0.0
      %944 = vmatpush1.xpose.msra.mxu0 0.0
      %945 = vmatprep.subr.mxu0 0.0
      %946 = vmatpush1.xpose.msra.mxu0 0.0
      %947 = vmatprep.subr.mxu0 0.0
      %948 = vmatpush1.xpose.msra.mxu0 0.0
      %949 = vmatprep.subr.mxu0 0.0
      %950 = vmatpush1.xpose.msra.mxu0 0.0
      %951 = vmatprep.subr.mxu0 0.0
      %952 = vmatpush1.xpose.msra.mxu0 0.0
      %953 = vmatprep.subr.mxu0 0.0
      %954 = vmatpush1.xpose.msra.mxu0 0.0
      %955 = vmatprep.subr.mxu0 0.0
      %956 = vmatpush1.xpose.msra.mxu0 0.0
      %957 = vmatprep.subr.mxu0 0.0
      %958 = vmatpush1.xpose.msra.mxu0 0.0
      %959 = vmatprep.subr.mxu0 0.0
      %960 = vmatpush1.xpose.msra.mxu0 0.0
      %961 = vmatprep.subr.mxu0 0.0
      %962 = vmatpush1.xpose.msra.mxu0 0.0
      %963 = vmatprep.subr.mxu0 0.0
      %964 = vmatpush1.xpose.msra.mxu0 0.0
      %965 = vmatprep.subr.mxu0 0.0
      %966 = vmatpush1.xpose.msra.mxu0 0.0
      %967 = vmatprep.subr.mxu0 0.0
      %968 = vmatpush1.xpose.msra.mxu0 0.0
      %969 = vmatprep.subr.mxu0 0.0
      %970 = vmatpush1.xpose.msra.mxu0 0.0
      %971 = vmatprep.subr.mxu0 0.0
      %972 = vmatpush1.xpose.msra.mxu0 0.0
      %973 = vmatprep.subr.mxu0 0.0
      %974 = vmatpush1.xpose.msra.mxu0 0.0
      %975 = vmatprep.subr.mxu0 0.0
      %976 = vmatpush1.xpose.msra.mxu0 0.0
      %977 = vmatprep.subr.mxu0 0.0
      %978 = vmatpush1.xpose.msra.mxu0 0.0
      %979 = vmatprep.subr.mxu0 0.0
      %980 = vmatpush1.xpose.msra.mxu0 0.0
      %981 = vmatprep.subr.mxu0 0.0
      %982 = vmatpush1.xpose.msra.mxu0 0.0
      %983 = vmatprep.subr.mxu0 0.0
      %984 = vmatpush1.xpose.msra.mxu0 0.0
      %985 = vmatprep.subr.mxu0 0.0
      %986 = vmatpush1.xpose.msra.mxu0 0.0
      %987 = vmatprep.subr.mxu0 0.0
      %988 = vmatpush1.xpose.msra.mxu0 0.0
      %989 = vmatprep.subr.mxu0 0.0
      %990 = vmatpush1.xpose.msra.mxu0 0.0
      %991 = vmatprep.subr.mxu0 0.0
      %992 = vmatpush1.xpose.msra.mxu0 0.0
      %993 = vmatprep.subr.mxu0 0.0
      %994 = vmatpush1.xpose.msra.mxu0 0.0
      %995 = vmatprep.subr.mxu0 0.0
      %996 = vmatpush1.xpose.msra.mxu0 0.0
      %997 = vmatprep.subr.mxu0 0.0
      %998 = vmatpush1.xpose.msra.mxu0 0.0
      %999 = vmatprep.subr.mxu0 0.0
      %1000 = vmatpush1.xpose.msra.mxu0 0.0
      %1001 = vmatprep.subr.mxu0 0.0
      %1002 = vmatpush1.xpose.msra.mxu0 0.0
      %1003 = vmatprep.mubr.f32.mxu0 0.0
      %1004 = vmatmul.mubr.f32.gmra.mrb[0].mxu0 %v935
      %v1005 = vpop.f32.mrb[0].mxu0
      %v1006 = vadd.f32 %v930, %v1005
      %v1007 = vpop.f32.mrb[0].mxu0
      %1008 = vdwg.mxu0
      %v1009 = vsel %vm450, %v1006, -inf
      %1010 = vmax.xlane.f32.xlu0 %v1009
      %v1011 = vpop.xlane.xlu0 %1010
      %v1012 = vsub.f32 %v1006, %v1011
      %v1013 = vmul.f32 %v1012, 1.442695
      %v1014 = vpow.pop %v1013
      %v1015 = vsel %vm450, %v1014, 0.0
      %1016 = vadd.xlane.f32.xlu0 %v1015
      %v1017 = vpop.xlane.xlu0 %1016
      %v1018 = vrcp.pop %v1017
      %v1019 = vmul.f32 %v1014, %v1018
      %1020 = vrot.lane.b32.xlu0 %v435, 48
      %v1021 = vpop.permute.xlu0 %1020
      %v1024 = vsel %vm450, %v1019, 0
      %1026 = vmatprep.subr.mxu0 0.0
      %1027 = vmatpush1.msra.mxu0 %v1021
      %1028 = vmatprep.subr.mxu0 0.0
      %1029 = vmatpush1.msra.mxu0 0.0
      %1030 = vmatprep.subr.mxu0 0.0
      %1031 = vmatpush1.msra.mxu0 0.0
      %1032 = vmatprep.subr.mxu0 0.0
      %1033 = vmatpush1.msra.mxu0 0.0
      %1034 = vmatprep.subr.mxu0 0.0
      %1035 = vmatpush1.msra.mxu0 0.0
      %1036 = vmatprep.subr.mxu0 0.0
      %1037 = vmatpush1.msra.mxu0 0.0
      %1038 = vmatprep.subr.mxu0 0.0
      %1039 = vmatpush1.msra.mxu0 0.0
      %1040 = vmatprep.subr.mxu0 0.0
      %1041 = vmatpush1.msra.mxu0 0.0
      %1042 = vmatprep.subr.mxu0 0.0
      %1043 = vmatpush1.msra.mxu0 0.0
      %1044 = vmatprep.subr.mxu0 0.0
      %1045 = vmatpush1.msra.mxu0 0.0
      %1046 = vmatprep.subr.mxu0 0.0
      %1047 = vmatpush1.msra.mxu0 0.0
      %1048 = vmatprep.subr.mxu0 0.0
      %1049 = vmatpush1.msra.mxu0 0.0
      %1050 = vmatprep.subr.mxu0 0.0
      %1051 = vmatpush1.msra.mxu0 0.0
      %1052 = vmatprep.subr.mxu0 0.0
      %1053 = vmatpush1.msra.mxu0 0.0
      %1054 = vmatprep.subr.mxu0 0.0
      %1055 = vmatpush1.msra.mxu0 0.0
      %1056 = vmatprep.subr.mxu0 0.0
      %1057 = vmatpush1.msra.mxu0 0.0
      %1058 = vmatprep.subr.mxu0 0.0
      %1059 = vmatpush1.msra.mxu0 0.0
      %1060 = vmatprep.subr.mxu0 0.0
      %1061 = vmatpush1.msra.mxu0 0.0
      %1062 = vmatprep.subr.mxu0 0.0
      %1063 = vmatpush1.msra.mxu0 0.0
      %1064 = vmatprep.subr.mxu0 0.0
      %1065 = vmatpush1.msra.mxu0 0.0
      %1066 = vmatprep.subr.mxu0 0.0
      %1067 = vmatpush1.msra.mxu0 0.0
      %1068 = vmatprep.subr.mxu0 0.0
      %1069 = vmatpush1.msra.mxu0 0.0
      %1070 = vmatprep.subr.mxu0 0.0
      %1071 = vmatpush1.msra.mxu0 0.0
      %1072 = vmatprep.subr.mxu0 0.0
      %1073 = vmatpush1.msra.mxu0 0.0
      %1074 = vmatprep.subr.mxu0 0.0
      %1075 = vmatpush1.msra.mxu0 0.0
      %1076 = vmatprep.subr.mxu0 0.0
      %1077 = vmatpush1.msra.mxu0 0.0
      %1078 = vmatprep.subr.mxu0 0.0
      %1079 = vmatpush1.msra.mxu0 0.0
      %1080 = vmatprep.subr.mxu0 0.0
      %1081 = vmatpush1.msra.mxu0 0.0
      %1082 = vmatprep.subr.mxu0 0.0
      %1083 = vmatpush1.msra.mxu0 0.0
      %1084 = vmatprep.subr.mxu0 0.0
      %1085 = vmatpush1.msra.mxu0 0.0
      %1086 = vmatprep.subr.mxu0 0.0
      %1087 = vmatpush1.msra.mxu0 0.0
      %1088 = vmatprep.subr.mxu0 0.0
      %1089 = vmatpush1.msra.mxu0 0.0
      %1090 = vmatprep.mubr.f32.mxu0 0.0
      %1091 = vmatmul.mubr.f32.gmra.mrb[0].mxu0 %v1024
      %v1092 = vpop.f32.mrb[0].mxu0
      %v1093 = vadd.f32 0.0, %v1092
      %v1094 = vpop.f32.mrb[0].mxu0
      %1095 = vdwg.mxu0
      %v1096 = vld [vmem:[%s5 + $0x10] sm:$0xff]
      %v1098 = vsel %vm450, %v1093, 0
      %1100 = vmatprep.subr.mxu0 0.0
      %1101 = vmatpush1.msra.mxu0 %v1096
      %1102 = vmatprep.subr.mxu0 0.0
      %1103 = vmatpush1.msra.mxu0 0.0
      %1104 = vmatprep.subr.mxu0 0.0
      %1105 = vmatpush1.msra.mxu0 0.0
      %1106 = vmatprep.subr.mxu0 0.0
      %1107 = vmatpush1.msra.mxu0 0.0
      %1108 = vmatprep.subr.mxu0 0.0
      %1109 = vmatpush1.msra.mxu0 0.0
      %1110 = vmatprep.subr.mxu0 0.0
      %1111 = vmatpush1.msra.mxu0 0.0
      %1112 = vmatprep.subr.mxu0 0.0
      %1113 = vmatpush1.msra.mxu0 0.0
      %1114 = vmatprep.subr.mxu0 0.0
      %1115 = vmatpush1.msra.mxu0 0.0
      %1116 = vmatprep.subr.mxu0 0.0
      %1117 = vmatpush1.msra.mxu0 0.0
      %1118 = vmatprep.subr.mxu0 0.0
      %1119 = vmatpush1.msra.mxu0 0.0
      %1120 = vmatprep.subr.mxu0 0.0
      %1121 = vmatpush1.msra.mxu0 0.0
      %1122 = vmatprep.subr.mxu0 0.0
      %1123 = vmatpush1.msra.mxu0 0.0
      %1124 = vmatprep.subr.mxu0 0.0
      %1125 = vmatpush1.msra.mxu0 0.0
      %1126 = vmatprep.subr.mxu0 0.0
      %1127 = vmatpush1.msra.mxu0 0.0
      %1128 = vmatprep.subr.mxu0 0.0
      %1129 = vmatpush1.msra.mxu0 0.0
      %1130 = vmatprep.subr.mxu0 0.0
      %1131 = vmatpush1.msra.mxu0 0.0
      %1132 = vmatprep.subr.mxu0 0.0
      %1133 = vmatpush1.msra.mxu0 0.0
      %1134 = vmatprep.subr.mxu0 0.0
      %1135 = vmatpush1.msra.mxu0 0.0
      %1136 = vmatprep.subr.mxu0 0.0
      %1137 = vmatpush1.msra.mxu0 0.0
      %1138 = vmatprep.subr.mxu0 0.0
      %1139 = vmatpush1.msra.mxu0 0.0
      %1140 = vmatprep.subr.mxu0 0.0
      %1141 = vmatpush1.msra.mxu0 0.0
      %1142 = vmatprep.subr.mxu0 0.0
      %1143 = vmatpush1.msra.mxu0 0.0
      %1144 = vmatprep.subr.mxu0 0.0
      %1145 = vmatpush1.msra.mxu0 0.0
      %1146 = vmatprep.subr.mxu0 0.0
      %1147 = vmatpush1.msra.mxu0 0.0
      %1148 = vmatprep.subr.mxu0 0.0
      %1149 = vmatpush1.msra.mxu0 0.0
      %1150 = vmatprep.subr.mxu0 0.0
      %1151 = vmatpush1.msra.mxu0 0.0
      %1152 = vmatprep.subr.mxu0 0.0
      %1153 = vmatpush1.msra.mxu0 0.0
      %1154 = vmatprep.subr.mxu0 0.0
      %1155 = vmatpush1.msra.mxu0 0.0
      %1156 = vmatprep.subr.mxu0 0.0
      %1157 = vmatpush1.msra.mxu0 0.0
      %1158 = vmatprep.subr.mxu0 0.0
      %1159 = vmatpush1.msra.mxu0 0.0
      %1160 = vmatprep.subr.mxu0 0.0
      %1161 = vmatpush1.msra.mxu0 0.0
      %1162 = vmatprep.subr.mxu0 0.0
      %1163 = vmatpush1.msra.mxu0 0.0
      %1164 = vmatprep.mubr.f32.mxu0 0.0
      %1165 = vmatmul.mubr.f32.gmra.mrb[0].mxu0 %v1098
      %v1166 = vpop.f32.mrb[0].mxu0
      %v1167 = vadd.f32 0.0, %v1166
      %v1168 = vpop.f32.mrb[0].mxu0
      %1169 = vdwg.mxu0
      %v1170 = vadd.f32 %v925, %v1167
      %s1171 = scalar_lea.vmem %s1, 24
      %v1172 = vld [vmem:[%s1171] sm:$0xff]
      %v1173 = vadd.f32 %v1172, %v444
      %1174 = vrot.lane.b32.xlu0 %v435, 104
      %v1175 = vpop.permute.xlu0 %1174
      %1176 = vrot.lane.b32.xlu0 %v435, 72
      %v1177 = vpop.permute.xlu0 %1176
      %v1178 = vsel %vm450, %v1175, 0
      %v1180 = vsel %vm450, %v1177, 0
      %1182 = vmatprep.subr.mxu0 0.0
      %1183 = vmatpush1.xpose.msra.mxu0 %v1180
      %1184 = vmatprep.subr.mxu0 0.0
      %1185 = vmatpush1.xpose.msra.mxu0 0.0
      %1186 = vmatprep.subr.mxu0 0.0
      %1187 = vmatpush1.xpose.msra.mxu0 0.0
      %1188 = vmatprep.subr.mxu0 0.0
      %1189 = vmatpush1.xpose.msra.mxu0 0.0
      %1190 = vmatprep.subr.mxu0 0.0
      %1191 = vmatpush1.xpose.msra.mxu0 0.0
      %1192 = vmatprep.subr.mxu0 0.0
      %1193 = vmatpush1.xpose.msra.mxu0 0.0
      %1194 = vmatprep.subr.mxu0 0.0
      %1195 = vmatpush1.xpose.msra.mxu0 0.0
      %1196 = vmatprep.subr.mxu0 0.0
      %1197 = vmatpush1.xpose.msra.mxu0 0.0
      %1198 = vmatprep.subr.mxu0 0.0
      %1199 = vmatpush1.xpose.msra.mxu0 0.0
      %1200 = vmatprep.subr.mxu0 0.0
      %1201 = vmatpush1.xpose.msra.mxu0 0.0
      %1202 = vmatprep.subr.mxu0 0.0
      %1203 = vmatpush1.xpose.msra.mxu0 0.0
      %1204 = vmatprep.subr.mxu0 0.0
      %1205 = vmatpush1.xpose.msra.mxu0 0.0
      %1206 = vmatprep.subr.mxu0 0.0
      %1207 = vmatpush1.xpose.msra.mxu0 0.0
      %1208 = vmatprep.subr.mxu0 0.0
      %1209 = vmatpush1.xpose.msra.mxu0 0.0
      %1210 = vmatprep.subr.mxu0 0.0
      %1211 = vmatpush1.xpose.msra.mxu0 0.0
      %1212 = vmatprep.subr.mxu0 0.0
      %1213 = vmatpush1.xpose.msra.mxu0 0.0
      %1214 = vmatprep.subr.mxu0 0.0
      %1215 = vmatpush1.xpose.msra.mxu0 0.0
      %1216 = vmatprep.subr.mxu0 0.0
      %1217 = vmatpush1.xpose.msra.mxu0 0.0
      %1218 = vmatprep.subr.mxu0 0.0
      %1219 = vmatpush1.xpose.msra.mxu0 0.0
      %1220 = vmatprep.subr.mxu0 0.0
      %1221 = vmatpush1.xpose.msra.mxu0 0.0
      %1222 = vmatprep.subr.mxu0 0.0
      %1223 = vmatpush1.xpose.msra.mxu0 0.0
      %1224 = vmatprep.subr.mxu0 0.0
      %1225 = vmatpush1.xpose.msra.mxu0 0.0
      %1226 = vmatprep.subr.mxu0 0.0
      %1227 = vmatpush1.xpose.msra.mxu0 0.0
      %1228 = vmatprep.subr.mxu0 0.0
      %1229 = vmatpush1.xpose.msra.mxu0 0.0
      %1230 = vmatprep.subr.mxu0 0.0
      %1231 = vmatpush1.xpose.msra.mxu0 0.0
      %1232 = vmatprep.subr.mxu0 0.0
      %1233 = vmatpush1.xpose.msra.mxu0 0.0
      %1234 = vmatprep.subr.mxu0 0.0
      %1235 = vmatpush1.xpose.msra.mxu0 0.0
      %1236 = vmatprep.subr.mxu0 0.0
      %1237 = vmatpush1.xpose.msra.mxu0 0.0
      %1238 = vmatprep.subr.mxu0 0.0
      %1239 = vmatpush1.xpose.msra.mxu0 0.0
      %1240 = vmatprep.subr.mxu0 0.0
      %1241 = vmatpush1.xpose.msra.mxu0 0.0
      %1242 = vmatprep.subr.mxu0 0.0
      %1243 = vmatpush1.xpose.msra.mxu0 0.0
      %1244 = vmatprep.subr.mxu0 0.0
      %1245 = vmatpush1.xpose.msra.mxu0 0.0
      %1246 = vmatprep.mubr.f32.mxu0 0.0
      %1247 = vmatmul.mubr.f32.gmra.mrb[0].mxu0 %v1178
      %v1248 = vpop.f32.mrb[0].mxu0
      %v1249 = vadd.f32 %v1173, %v1248
      %v1250 = vpop.f32.mrb[0].mxu0
      %1251 = vdwg.mxu0
      %v1252 = vsel %vm450, %v1249, -inf
      %1253 = vmax.xlane.f32.xlu0 %v1252
      %v1254 = vpop.xlane.xlu0 %1253
      %v1255 = vsub.f32 %v1249, %v1254
      %v1256 = vmul.f32 %v1255, 1.442695
      %v1257 = vpow.pop %v1256
      %v1258 = vsel %vm450, %v1257, 0.0
      %1259 = vadd.xlane.f32.xlu0 %v1258
      %v1260 = vpop.xlane.xlu0 %1259
      %v1261 = vrcp.pop %v1260
      %v1262 = vmul.f32 %v1257, %v1261
      %1263 = vrot.lane.b32.xlu0 %v435, 40
      %v1264 = vpop.permute.xlu0 %1263
      %v1267 = vsel %vm450, %v1262, 0
      %1269 = vmatprep.subr.mxu0 0.0
      %1270 = vmatpush1.msra.mxu0 %v1264
      %1271 = vmatprep.subr.mxu0 0.0
      %1272 = vmatpush1.msra.mxu0 0.0
      %1273 = vmatprep.subr.mxu0 0.0
      %1274 = vmatpush1.msra.mxu0 0.0
      %1275 = vmatprep.subr.mxu0 0.0
      %1276 = vmatpush1.msra.mxu0 0.0
      %1277 = vmatprep.subr.mxu0 0.0
      %1278 = vmatpush1.msra.mxu0 0.0
      %1279 = vmatprep.subr.mxu0 0.0
      %1280 = vmatpush1.msra.mxu0 0.0
      %1281 = vmatprep.subr.mxu0 0.0
      %1282 = vmatpush1.msra.mxu0 0.0
      %1283 = vmatprep.subr.mxu0 0.0
      %1284 = vmatpush1.msra.mxu0 0.0
      %1285 = vmatprep.subr.mxu0 0.0
      %1286 = vmatpush1.msra.mxu0 0.0
      %1287 = vmatprep.subr.mxu0 0.0
      %1288 = vmatpush1.msra.mxu0 0.0
      %1289 = vmatprep.subr.mxu0 0.0
      %1290 = vmatpush1.msra.mxu0 0.0
      %1291 = vmatprep.subr.mxu0 0.0
      %1292 = vmatpush1.msra.mxu0 0.0
      %1293 = vmatprep.subr.mxu0 0.0
      %1294 = vmatpush1.msra.mxu0 0.0
      %1295 = vmatprep.subr.mxu0 0.0
      %1296 = vmatpush1.msra.mxu0 0.0
      %1297 = vmatprep.subr.mxu0 0.0
      %1298 = vmatpush1.msra.mxu0 0.0
      %1299 = vmatprep.subr.mxu0 0.0
      %1300 = vmatpush1.msra.mxu0 0.0
      %1301 = vmatprep.subr.mxu0 0.0
      %1302 = vmatpush1.msra.mxu0 0.0
      %1303 = vmatprep.subr.mxu0 0.0
      %1304 = vmatpush1.msra.mxu0 0.0
      %1305 = vmatprep.subr.mxu0 0.0
      %1306 = vmatpush1.msra.mxu0 0.0
      %1307 = vmatprep.subr.mxu0 0.0
      %1308 = vmatpush1.msra.mxu0 0.0
      %1309 = vmatprep.subr.mxu0 0.0
      %1310 = vmatpush1.msra.mxu0 0.0
      %1311 = vmatprep.subr.mxu0 0.0
      %1312 = vmatpush1.msra.mxu0 0.0
      %1313 = vmatprep.subr.mxu0 0.0
      %1314 = vmatpush1.msra.mxu0 0.0
      %1315 = vmatprep.subr.mxu0 0.0
      %1316 = vmatpush1.msra.mxu0 0.0
      %1317 = vmatprep.subr.mxu0 0.0
      %1318 = vmatpush1.msra.mxu0 0.0
      %1319 = vmatprep.subr.mxu0 0.0
      %1320 = vmatpush1.msra.mxu0 0.0
      %1321 = vmatprep.subr.mxu0 0.0
      %1322 = vmatpush1.msra.mxu0 0.0
      %1323 = vmatprep.subr.mxu0 0.0
      %1324 = vmatpush1.msra.mxu0 0.0
      %1325 = vmatprep.subr.mxu0 0.0
      %1326 = vmatpush1.msra.mxu0 0.0
      %1327 = vmatprep.subr.mxu0 0.0
      %1328 = vmatpush1.msra.mxu0 0.0
      %1329 = vmatprep.subr.mxu0 0.0
      %1330 = vmatpush1.msra.mxu0 0.0
      %1331 = vmatprep.subr.mxu0 0.0
      %1332 = vmatpush1.msra.mxu0 0.0
      %1333 = vmatprep.mubr.f32.mxu0 0.0
      %1334 = vmatmul.mubr.f32.gmra.mrb[0].mxu0 %v1267
      %v1335 = vpop.f32.mrb[0].mxu0
      %v1336 = vadd.f32 0.0, %v1335
      %v1337 = vpop.f32.mrb[0].mxu0
      %1338 = vdwg.mxu0
      %v1339 = vld [vmem:[%s5 + $0x18] sm:$0xff]
      %v1341 = vsel %vm450, %v1336, 0
      %1343 = vmatprep.subr.mxu0 0.0
      %1344 = vmatpush1.msra.mxu0 %v1339
      %1345 = vmatprep.subr.mxu0 0.0
      %1346 = vmatpush1.msra.mxu0 0.0
      %1347 = vmatprep.subr.mxu0 0.0
      %1348 = vmatpush1.msra.mxu0 0.0
      %1349 = vmatprep.subr.mxu0 0.0
      %1350 = vmatpush1.msra.mxu0 0.0
      %1351 = vmatprep.subr.mxu0 0.0
      %1352 = vmatpush1.msra.mxu0 0.0
      %1353 = vmatprep.subr.mxu0 0.0
      %1354 = vmatpush1.msra.mxu0 0.0
      %1355 = vmatprep.subr.mxu0 0.0
      %1356 = vmatpush1.msra.mxu0 0.0
      %1357 = vmatprep.subr.mxu0 0.0
      %1358 = vmatpush1.msra.mxu0 0.0
      %1359 = vmatprep.subr.mxu0 0.0
      %1360 = vmatpush1.msra.mxu0 0.0
      %1361 = vmatprep.subr.mxu0 0.0
      %1362 = vmatpush1.msra.mxu0 0.0
      %1363 = vmatprep.subr.mxu0 0.0
      %1364 = vmatpush1.msra.mxu0 0.0
      %1365 = vmatprep.subr.mxu0 0.0
      %1366 = vmatpush1.msra.mxu0 0.0
      %1367 = vmatprep.subr.mxu0 0.0
      %1368 = vmatpush1.msra.mxu0 0.0
      %1369 = vmatprep.subr.mxu0 0.0
      %1370 = vmatpush1.msra.mxu0 0.0
      %1371 = vmatprep.subr.mxu0 0.0
      %1372 = vmatpush1.msra.mxu0 0.0
      %1373 = vmatprep.subr.mxu0 0.0
      %1374 = vmatpush1.msra.mxu0 0.0
      %1375 = vmatprep.subr.mxu0 0.0
      %1376 = vmatpush1.msra.mxu0 0.0
      %1377 = vmatprep.subr.mxu0 0.0
      %1378 = vmatpush1.msra.mxu0 0.0
      %1379 = vmatprep.subr.mxu0 0.0
      %1380 = vmatpush1.msra.mxu0 0.0
      %1381 = vmatprep.subr.mxu0 0.0
      %1382 = vmatpush1.msra.mxu0 0.0
      %1383 = vmatprep.subr.mxu0 0.0
      %1384 = vmatpush1.msra.mxu0 0.0
      %1385 = vmatprep.subr.mxu0 0.0
      %1386 = vmatpush1.msra.mxu0 0.0
      %1387 = vmatprep.subr.mxu0 0.0
      %1388 = vmatpush1.msra.mxu0 0.0
      %1389 = vmatprep.subr.mxu0 0.0
      %1390 = vmatpush1.msra.mxu0 0.0
      %1391 = vmatprep.subr.mxu0 0.0
      %1392 = vmatpush1.msra.mxu0 0.0
      %1393 = vmatprep.subr.mxu0 0.0
      %1394 = vmatpush1.msra.mxu0 0.0
      %1395 = vmatprep.subr.mxu0 0.0
      %1396 = vmatpush1.msra.mxu0 0.0
      %1397 = vmatprep.subr.mxu0 0.0
      %1398 = vmatpush1.msra.mxu0 0.0
      %1399 = vmatprep.subr.mxu0 0.0
      %1400 = vmatpush1.msra.mxu0 0.0
      %1401 = vmatprep.subr.mxu0 0.0
      %1402 = vmatpush1.msra.mxu0 0.0
      %1403 = vmatprep.subr.mxu0 0.0
      %1404 = vmatpush1.msra.mxu0 0.0
      %1405 = vmatprep.subr.mxu0 0.0
      %1406 = vmatpush1.msra.mxu0 0.0
      %1407 = vmatprep.mubr.f32.mxu0 0.0
      %1408 = vmatmul.mubr.f32.gmra.mrb[0].mxu0 %v1341
      %v1409 = vpop.f32.mrb[0].mxu0
      %v1410 = vadd.f32 0.0, %v1409
      %v1411 = vpop.f32.mrb[0].mxu0
      %1412 = vdwg.mxu0
      %v1413 = vadd.f32 %v1170, %v1410
      %v1414 = vadd.f32 %v342, %v1413
      %v1415 = vld [vmem:[%s6] sm:$0x1]
      %v1416 = vmul.f32 %v1414, %v1414
      %v1417 = vsel %vm345, %v1416, 0.0
      %1418 = vadd.xlane.f32.xlu0 %v1417
      %v1419 = vpop.xlane.xlu0 %1418
      %v1420 = vmul.f32 %v1419, %v349
      %v1421 = vadd.f32 %v1420, 1e-06
      %v1422 = vrsqrt.pop %v1421
      %v1423 = vmul.f32 %v1414, %v1422
      %v1425 = vlaneseq
      %v1426 = vshrl.u32 %v1425, 7
      %v1427 = vsub.s32 0, %v1426
      %v1428 = vrot.slane %v1415, %v1427
      %v1430 = vmul.f32 %v1423, %v1428
      %v1431 = vld [vmem:[%s7] sm:$0xff]
      %v1432 = vld [vmem:[%s7 + $0x8] sm:$0xff]
      %v1433 = vld [vmem:[%s7 + $0x10] sm:$0xff]
      %v1434 = vld [vmem:[%s7 + $0x18] sm:$0xff]
      %v1436 = vsel %vm345, %v1430, 0
      %1438 = vmatprep.subr.mxu0 0.0
      %1439 = vmatpush1.msra.mxu0 %v1431
      %1440 = vmatprep.subr.mxu0 0.0
      %1441 = vmatpush1.msra.mxu0 %v1432
      %1442 = vmatprep.subr.mxu0 0.0
      %1443 = vmatpush1.msra.mxu0 %v1433
      %1444 = vmatprep.subr.mxu0 0.0
      %1445 = vmatpush1.msra.mxu0 %v1434
      %1446 = vmatprep.subr.mxu0 0.0
      %1447 = vmatpush1.msra.mxu0 0.0
      %1448 = vmatprep.subr.mxu0 0.0
      %1449 = vmatpush1.msra.mxu0 0.0
      %1450 = vmatprep.subr.mxu0 0.0
      %1451 = vmatpush1.msra.mxu0 0.0
      %1452 = vmatprep.subr.mxu0 0.0
      %1453 = vmatpush1.msra.mxu0 0.0
      %1454 = vmatprep.subr.mxu0 0.0
      %1455 = vmatpush1.msra.mxu0 0.0
      %1456 = vmatprep.subr.mxu0 0.0
      %1457 = vmatpush1.msra.mxu0 0.0
      %1458 = vmatprep.subr.mxu0 0.0
      %1459 = vmatpush1.msra.mxu0 0.0
      %1460 = vmatprep.subr.mxu0 0.0
      %1461 = vmatpush1.msra.mxu0 0.0
      %1462 = vmatprep.subr.mxu0 0.0
      %1463 = vmatpush1.msra.mxu0 0.0
      %1464 = vmatprep.subr.mxu0 0.0
      %1465 = vmatpush1.msra.mxu0 0.0
      %1466 = vmatprep.subr.mxu0 0.0
      %1467 = vmatpush1.msra.mxu0 0.0
      %1468 = vmatprep.subr.mxu0 0.0
      %1469 = vmatpush1.msra.mxu0 0.0
      %1470 = vmatprep.subr.mxu0 0.0
      %1471 = vmatpush1.msra.mxu0 0.0
      %1472 = vmatprep.subr.mxu0 0.0
      %1473 = vmatpush1.msra.mxu0 0.0
      %1474 = vmatprep.subr.mxu0 0.0
      %1475 = vmatpush1.msra.mxu0 0.0
      %1476 = vmatprep.subr.mxu0 0.0
      %1477 = vmatpush1.msra.mxu0 0.0
      %1478 = vmatprep.subr.mxu0 0.0
      %1479 = vmatpush1.msra.mxu0 0.0
      %1480 = vmatprep.subr.mxu0 0.0
      %1481 = vmatpush1.msra.mxu0 0.0
      %1482 = vmatprep.subr.mxu0 0.0
      %1483 = vmatpush1.msra.mxu0 0.0
      %1484 = vmatprep.subr.mxu0 0.0
      %1485 = vmatpush1.msra.mxu0 0.0
      %1486 = vmatprep.subr.mxu0 0.0
      %1487 = vmatpush1.msra.mxu0 0.0
      %1488 = vmatprep.subr.mxu0 0.0
      %1489 = vmatpush1.msra.mxu0 0.0
      %1490 = vmatprep.subr.mxu0 0.0
      %1491 = vmatpush1.msra.mxu0 0.0
      %1492 = vmatprep.subr.mxu0 0.0
      %1493 = vmatpush1.msra.mxu0 0.0
      %1494 = vmatprep.subr.mxu0 0.0
      %1495 = vmatpush1.msra.mxu0 0.0
      %1496 = vmatprep.subr.mxu0 0.0
      %1497 = vmatpush1.msra.mxu0 0.0
      %1498 = vmatprep.subr.mxu0 0.0
      %1499 = vmatpush1.msra.mxu0 0.0
      %1500 = vmatprep.subr.mxu0 0.0
      %1501 = vmatpush1.msra.mxu0 0.0
      %1502 = vmatprep.mubr.f32.mxu0 0.0
      %1503 = vmatmul.mubr.f32.gmra.mrb[0].mxu0 %v1436
      %v1504 = vpop.f32.mrb[0].mxu0
      %v1505 = vadd.f32 0.0, %v1504
      %v1506 = vpop.f32.mrb[0].mxu0
      %1507 = vdwg.mxu0
      %v1508 = vmax.f32 %v1505, 0.0
      %v1509 = vld [vmem:[%s8] sm:$0xff]
      %v1510 = vld [vmem:[%s8 + $0x8] sm:$0xff]
      %v1511 = vld [vmem:[%s8 + $0x10] sm:$0xff]
      %v1512 = vld [vmem:[%s8 + $0x18] sm:$0xff]
      %v1513 = vld [vmem:[%s8 + $0x20] sm:$0xff]
      %v1514 = vld [vmem:[%s8 + $0x28] sm:$0xff]
      %v1515 = vld [vmem:[%s8 + $0x30] sm:$0xff]
      %v1516 = vld [vmem:[%s8 + $0x38] sm:$0xff]
      %vm1517 = vcmask 523264
      %v1519 = vsel %vm1517, %v1508, 0
      %1521 = vmatprep.subr.mxu0 0.0
      %1522 = vmatpush1.msra.mxu0 %v1509
      %1523 = vmatprep.subr.mxu0 0.0
      %1524 = vmatpush1.msra.mxu0 %v1510
      %1525 = vmatprep.subr.mxu0 0.0
      %1526 = vmatpush1.msra.mxu0 %v1511
      %1527 = vmatprep.subr.mxu0 0.0
      %1528 = vmatpush1.msra.mxu0 %v1512
      %1529 = vmatprep.subr.mxu0 0.0
      %1530 = vmatpush1.msra.mxu0 %v1513
      %1531 = vmatprep.subr.mxu0 0.0
      %1532 = vmatpush1.msra.mxu0 %v1514
      %1533 = vmatprep.subr.mxu0 0.0
      %1534 = vmatpush1.msra.mxu0 %v1515
      %1535 = vmatprep.subr.mxu0 0.0
      %1536 = vmatpush1.msra.mxu0 %v1516
      %1537 = vmatprep.subr.mxu0 0.0
      %1538 = vmatpush1.msra.mxu0 0.0
      %1539 = vmatprep.subr.mxu0 0.0
      %1540 = vmatpush1.msra.mxu0 0.0
      %1541 = vmatprep.subr.mxu0 0.0
      %1542 = vmatpush1.msra.mxu0 0.0
      %1543 = vmatprep.subr.mxu0 0.0
      %1544 = vmatpush1.msra.mxu0 0.0
      %1545 = vmatprep.subr.mxu0 0.0
      %1546 = vmatpush1.msra.mxu0 0.0
      %1547 = vmatprep.subr.mxu0 0.0
      %1548 = vmatpush1.msra.mxu0 0.0
      %1549 = vmatprep.subr.mxu0 0.0
      %1550 = vmatpush1.msra.mxu0 0.0
      %1551 = vmatprep.subr.mxu0 0.0
      %1552 = vmatpush1.msra.mxu0 0.0
      %1553 = vmatprep.subr.mxu0 0.0
      %1554 = vmatpush1.msra.mxu0 0.0
      %1555 = vmatprep.subr.mxu0 0.0
      %1556 = vmatpush1.msra.mxu0 0.0
      %1557 = vmatprep.subr.mxu0 0.0
      %1558 = vmatpush1.msra.mxu0 0.0
      %1559 = vmatprep.subr.mxu0 0.0
      %1560 = vmatpush1.msra.mxu0 0.0
      %1561 = vmatprep.subr.mxu0 0.0
      %1562 = vmatpush1.msra.mxu0 0.0
      %1563 = vmatprep.subr.mxu0 0.0
      %1564 = vmatpush1.msra.mxu0 0.0
      %1565 = vmatprep.subr.mxu0 0.0
      %1566 = vmatpush1.msra.mxu0 0.0
      %1567 = vmatprep.subr.mxu0 0.0
      %1568 = vmatpush1.msra.mxu0 0.0
      %1569 = vmatprep.subr.mxu0 0.0
      %1570 = vmatpush1.msra.mxu0 0.0
      %1571 = vmatprep.subr.mxu0 0.0
      %1572 = vmatpush1.msra.mxu0 0.0
      %1573 = vmatprep.subr.mxu0 0.0
      %1574 = vmatpush1.msra.mxu0 0.0
      %1575 = vmatprep.subr.mxu0 0.0
      %1576 = vmatpush1.msra.mxu0 0.0
      %1577 = vmatprep.subr.mxu0 0.0
      %1578 = vmatpush1.msra.mxu0 0.0
      %1579 = vmatprep.subr.mxu0 0.0
      %1580 = vmatpush1.msra.mxu0 0.0
      %1581 = vmatprep.subr.mxu0 0.0
      %1582 = vmatpush1.msra.mxu0 0.0
      %1583 = vmatprep.subr.mxu0 0.0
      %1584 = vmatpush1.msra.mxu0 0.0
      %1585 = vmatprep.mubr.f32.mxu0 0.0
      %1586 = vmatmul.mubr.f32.gmra.mrb[0].mxu0 %v1519
      %v1587 = vpop.f32.mrb[0].mxu0
      %v1588 = vadd.f32 0.0, %v1587
      %v1589 = vpop.f32.mrb[0].mxu0
      %1590 = vdwg.mxu0
      %v1591 = vadd.f32 %v1414, %v1588
      %1592 = vst.msk [vmem:[%s341] sm:$0xff] %vm345, %v1591
      %p1593 = scmp.lt.s32.totalorder %s20, 1
      %s1594 = scalar_select %p1593, %s20, 1
      %s1595 = smul.addr %s1594, 8
      %s1596 = scalar_lea.vmem %s9, %s1595
      // Predicated region
      $region57: #{hf_t5_forward.6} parent=55 // pred_check
        %p1597 = pneg %p237
      $region58: #{hf_t5_forward.6} parent=55 // pred_check_branch
        %1599 = sbr.rel (%p1597) target = $region60
      $region59: #{hf_t5_forward.6} parent=55 // pred_region
        _
      $region60: #{hf_t5_forward.6} parent=55 // pred_fallthru
        _
    $region56: #{hf_t5_forward.6} parent=5 // pred_fallthru
      _
    %p1600 = scmp.le.s32.totalorder 2, %s15
    // Predicated region
    $region61: #{hf_t5_forward.6} parent=5 // pred_check
      %p1601 = pneg %p1600
    $region62: #{hf_t5_forward.6} parent=5 // pred_check_branch
      %1603 = sbr.rel (%p1601) target = $region64
    $region63: #{hf_t5_forward.6} parent=5 // pred_region
      %s1604 = ssub.s32 %s15, 2
      // Predicated region
      $region65: #{hf_t5_forward.6} parent=63 // pred_check
        %p1605 = pneg %p243
      $region66: #{hf_t5_forward.6} parent=63 // pred_check_branch
        %1607 = sbr.rel (%p1605) target = $region68
      $region67: #{hf_t5_forward.6} parent=63 // pred_region
        %p1608 = scmp.lt.s32.totalorder %s21, 1
        %s1609 = scalar_select %p1608, %s21, 1
        %s1610 = smul.addr %s1609, 8
        %s1611 = scalar_lea.vmem %s9, %s1610
      $region68: #{hf_t5_forward.6} parent=63 // pred_fallthru
        _
    $region64: #{hf_t5_forward.6} parent=5 // pred_fallthru
      _
  $region6: #{hf_t5_forward.6} parent=0 // loop_footer
    %s19 = sadd.s32 1, %s15
  $region7: #{hf_t5_forward.6} parent=0 // loop_footer_branch
    %14 = sbr.rel target = $region3
  $region8: #{hf_t5_forward.6} parent=0 // loop_exit
    _

// kernel: hf_t5_forward.9
$region0: #{hf_t5_forward.9}
  #allocation0 [shape = 'u32[]', space=smem, size = 0x4, offset = 0x4, fixed_abs, tag = 'smem constant byte address 0x4 - core index']
  #allocation1 [shape = 'u32[144,128]{1,0:T(1,128)}', space=vmem, size = 0x12000, scoped, tag = 'internal scratch']
  %s0 = inlined_call_operand.vmem [shape: f32[2,8,32], index: 0, kind: input, shape index: {}]
  %s1 = inlined_call_operand.vmem [shape: f32[2,8,32], index: 1, kind: input, shape index: {}]
  %s2 = inlined_call_operand.vmem [shape: f32[4,8,8], index: 2, kind: input, shape index: {}]
  %s3 = inlined_call_operand.vmem [shape: f32[2,1,8], index: 3, kind: input, shape index: {}]
  %s4 = inlined_call_operand.vmem [shape: f32[1,32], index: 4, kind: input, shape index: {}]
  %s5 = inlined_call_operand.vmem [shape: f32[32,96], index: 5, kind: input, shape index: {}]
  %s6 = inlined_call_operand.vmem [shape: f32[32,32], index: 6, kind: input, shape index: {}]
  %s7 = inlined_call_operand.vmem [shape: f32[1,32], index: 7, kind: input, shape index: {}]
  %s8 = inlined_call_operand.vmem [shape: f32[32,32], index: 8, kind: input, shape index: {}]
  %s9 = inlined_call_operand.vmem [shape: f32[32,64], index: 9, kind: input, shape index: {}]
  %s10 = inlined_call_operand.vmem [shape: f32[32,32], index: 10, kind: input, shape index: {}]
  %s11 = inlined_call_operand.vmem [shape: f32[1,32], index: 11, kind: input, shape index: {}]
  %s12 = inlined_call_operand.vmem [shape: f32[32,64], index: 12, kind: input, shape index: {}]
  %s13 = inlined_call_operand.vmem [shape: f32[64,32], index: 13, kind: input, shape index: {}]
  %s14 = inlined_call_operand.vmem [shape: f32[2,8,32], index: 14, kind: output, shape index: {}]
  %s15 = sld [smem:[#allocation0]]
  $region89: #{hf_t5_forward.9} parent=0
    _
  %s17 = ssub.s32 1, %s15
  %s18 = scalar_select 0, %s17, %s15
  loop: start=0, step=1, limit=4
  $region2: #{hf_t5_forward.9} parent=0 // loop_pre_header
    _
  $region3: #{hf_t5_forward.9} parent=0 // loop_header
    %s20 = sphi 0, %s24
    %p21 = scmp.ge.s32.totalorder %s20, 4
    %s30 = sphi 0, %s32
    %s33 = sphi 0, %s30
    %s34 = sphi 0, %s33
    %s50 = sphi 0, %s34
    %s56 = sphi 0, %s58
    %s59 = sphi 0, %s56
    %s60 = sphi 0, %s59
    %s76 = sphi 0, %s60
    %s80 = sphi 0, %s80
    %s82 = sphi 0, %s80
    %s83 = sphi 0, %s82
    %s97 = sphi 0, %s83
    %s103 = sphi 0, %s105
    %s106 = sphi 0, %s103
    %s107 = sphi 0, %s106
    %s123 = sphi 0, %s107
    %s127 = sphi 0, %s127
    %s129 = sphi 0, %s127
    %s130 = sphi 0, %s129
    %s144 = sphi 0, %s130
    %s148 = sphi 0, %s148
    %s150 = sphi 0, %s148
    %s151 = sphi 0, %s150
    %s165 = sphi 0, %s151
    %s169 = sphi 0, %s169
    %s171 = sphi 0, %s169
    %s172 = sphi 0, %s171
    %s186 = sphi 0, %s172
    %s190 = sphi 0, %s190
    %s192 = sphi 0, %s190
    %s193 = sphi 0, %s192
    %s207 = sphi 0, %s193
    %s211 = sphi 0, %s211
    %s213 = sphi 0, %s211
    %s214 = sphi 0, %s213
    %s228 = sphi 0, %s214
    %s232 = sphi 0, %s232
    %s234 = sphi 0, %s232
    %s235 = sphi 0, %s234
    %s249 = sphi 0, %s235
    %s253 = sphi 0, %s253
    %s255 = sphi 0, %s253
    %s256 = sphi 0, %s255
    %s270 = sphi 0, %s256
    %s274 = sphi 0, %s274
    %s276 = sphi 0, %s274
    %s277 = sphi 0, %s276
    %s291 = sphi 0, %s277
    %s295 = sphi 0, %s295
    %s297 = sphi 0, %s295
    %s298 = sphi 0, %s297
    %s312 = sphi 0, %s298
    %s316 = sphi 0, %s316
    %s318 = sphi 0, %s316
    %s319 = sphi 0, %s318
    %s333 = sphi 0, %s319
    %s339 = sphi 0, %s341
    %s342 = sphi 0, %s339
    %s343 = sphi 0, %s342
    %s359 = sphi 0, %s343
  $region4: #{hf_t5_forward.9} parent=0 // loop_header_branch
    %23 = sbr.rel (%p21) target = $region8
  $region5: #{hf_t5_forward.9} parent=0 // loop_body
    %s25 = ssub.s32 %s20, 1
    %s26 = ssub.s32 %s20, 2
    %s27 = sadd.s32 %s20, 1
    %s28 = ssub.s32 %s20, %s27
    %p29 = scmp.eq.s32.totalorder %s28, 0
    %s31 = sadd.s32 %s30, 1
    %s32 = scalar_select %p29, %s30, %s31
    %p35 = pneg %p29
    %p36 = scmp.eq.s32.totalorder %s20, 1
    %p37 = por %p35, %p36
    %p38 = scmp.ne.s32.totalorder %s30, %s33
    %p39 = scmp.eq.s32.totalorder %s20, 0
    %p40 = por %p38, %p39
    %p41 = scmp.ne.s32.totalorder %s30, %s33
    %p42 = scmp.eq.s32.totalorder %s25, 1
    %p43 = por %p41, %p42
    %p44 = scmp.ne.s32.totalorder %s33, %s34
    %p45 = scmp.eq.s32.totalorder %s25, 0
    %p46 = por %p44, %p45
    %p47 = scmp.ne.s32.totalorder %s33, %s34
    %p48 = scmp.eq.s32.totalorder %s26, 1
    %p49 = por %p47, %p48
    %p51 = scmp.ne.s32.totalorder %s34, %s50
    %p52 = scmp.eq.s32.totalorder %s26, 0
    %p53 = por %p51, %p52
    %s54 = ssub.s32 %s20, %s27
    %p55 = scmp.eq.s32.totalorder %s54, 0
    %s57 = sadd.s32 %s56, 1
    %s58 = scalar_select %p55, %s56, %s57
    %p61 = pneg %p55
    %p62 = scmp.eq.s32.totalorder %s20, 1
    %p63 = por %p61, %p62
    %p64 = scmp.ne.s32.totalorder %s56, %s59
    %p65 = scmp.eq.s32.totalorder %s20, 0
    %p66 = por %p64, %p65
    %p67 = scmp.ne.s32.totalorder %s56, %s59
    %p68 = scmp.eq.s32.totalorder %s25, 1
    %p69 = por %p67, %p68
    %p70 = scmp.ne.s32.totalorder %s59, %s60
    %p71 = scmp.eq.s32.totalorder %s25, 0
    %p72 = por %p70, %p71
    %p73 = scmp.ne.s32.totalorder %s59, %s60
    %p74 = scmp.eq.s32.totalorder %s26, 1
    %p75 = por %p73, %p74
    %p77 = scmp.ne.s32.totalorder %s60, %s76
    %p78 = scmp.eq.s32.totalorder %s26, 0
    %p79 = por %p77, %p78
    %s81 = sadd.s32 %s80, 1
    %p84 = scmp.eq.s32.totalorder %s20, 1
    %p85 = scmp.ne.s32.totalorder %s80, %s82
    %p86 = scmp.eq.s32.totalorder %s20, 0
    %p87 = por %p85, %p86
    %p88 = scmp.ne.s32.totalorder %s80, %s82
    %p89 = scmp.eq.s32.totalorder %s25, 1
    %p90 = por %p88, %p89
    %p91 = scmp.ne.s32.totalorder %s82, %s83
    %p92 = scmp.eq.s32.totalorder %s25, 0
    %p93 = por %p91, %p92
    %p94 = scmp.ne.s32.totalorder %s82, %s83
    %p95 = scmp.eq.s32.totalorder %s26, 1
    %p96 = por %p94, %p95
    %p98 = scmp.ne.s32.totalorder %s83, %s97
    %p99 = scmp.eq.s32.totalorder %s26, 0
    %p100 = por %p98, %p99
    %s101 = ssub.s32 %s20, %s27
    %p102 = scmp.eq.s32.totalorder %s101, 0
    %s104 = sadd.s32 %s103, 1
    %s105 = scalar_select %p102, %s103, %s104
    %p108 = pneg %p102
    %p109 = scmp.eq.s32.totalorder %s20, 1
    %p110 = por %p108, %p109
    %p111 = scmp.ne.s32.totalorder %s103, %s106
    %p112 = scmp.eq.s32.totalorder %s20, 0
    %p113 = por %p111, %p112
    %p114 = scmp.ne.s32.totalorder %s103, %s106
    %p115 = scmp.eq.s32.totalorder %s25, 1
    %p116 = por %p114, %p115
    %p117 = scmp.ne.s32.totalorder %s106, %s107
    %p118 = scmp.eq.s32.totalorder %s25, 0
    %p119 = por %p117, %p118
    %p120 = scmp.ne.s32.totalorder %s106, %s107
    %p121 = scmp.eq.s32.totalorder %s26, 1
    %p122 = por %p120, %p121
    %p124 = scmp.ne.s32.totalorder %s107, %s123
    %p125 = scmp.eq.s32.totalorder %s26, 0
    %p126 = por %p124, %p125
    %s128 = sadd.s32 %s127, 1
    %p131 = scmp.eq.s32.totalorder %s20, 1
    %p132 = scmp.ne.s32.totalorder %s127, %s129
    %p133 = scmp.eq.s32.totalorder %s20, 0
    %p134 = por %p132, %p133
    %p135 = scmp.ne.s32.totalorder %s127, %s129
    %p136 = scmp.eq.s32.totalorder %s25, 1
    %p137 = por %p135, %p136
    %p138 = scmp.ne.s32.totalorder %s129, %s130
    %p139 = scmp.eq.s32.totalorder %s25, 0
    %p140 = por %p138, %p139
    %p141 = scmp.ne.s32.totalorder %s129, %s130
    %p142 = scmp.eq.s32.totalorder %s26, 1
    %p143 = por %p141, %p142
    %p145 = scmp.ne.s32.totalorder %s130, %s144
    %p146 = scmp.eq.s32.totalorder %s26, 0
    %p147 = por %p145, %p146
    %s149 = sadd.s32 %s148, 1
    %p152 = scmp.eq.s32.totalorder %s20, 1
    %p153 = scmp.ne.s32.totalorder %s148, %s150
    %p154 = scmp.eq.s32.totalorder %s20, 0
    %p155 = por %p153, %p154
    %p156 = scmp.ne.s32.totalorder %s148, %s150
    %p157 = scmp.eq.s32.totalorder %s25, 1
    %p158 = por %p156, %p157
    %p159 = scmp.ne.s32.totalorder %s150, %s151
    %p160 = scmp.eq.s32.totalorder %s25, 0
    %p161 = por %p159, %p160
    %p162 = scmp.ne.s32.totalorder %s150, %s151
    %p163 = scmp.eq.s32.totalorder %s26, 1
    %p164 = por %p162, %p163
    %p166 = scmp.ne.s32.totalorder %s151, %s165
    %p167 = scmp.eq.s32.totalorder %s26, 0
    %p168 = por %p166, %p167
    %s170 = sadd.s32 %s169, 1
    %p173 = scmp.eq.s32.totalorder %s20, 1
    %p174 = scmp.ne.s32.totalorder %s169, %s171
    %p175 = scmp.eq.s32.totalorder %s20, 0
    %p176 = por %p174, %p175
    %p177 = scmp.ne.s32.totalorder %s169, %s171
    %p178 = scmp.eq.s32.totalorder %s25, 1
    %p179 = por %p177, %p178
    %p180 = scmp.ne.s32.totalorder %s171, %s172
    %p181 = scmp.eq.s32.totalorder %s25, 0
    %p182 = por %p180, %p181
    %p183 = scmp.ne.s32.totalorder %s171, %s172
    %p184 = scmp.eq.s32.totalorder %s26, 1
    %p185 = por %p183, %p184
    %p187 = scmp.ne.s32.totalorder %s172, %s186
    %p188 = scmp.eq.s32.totalorder %s26, 0
    %p189 = por %p187, %p188
    %s191 = sadd.s32 %s190, 1
    %p194 = scmp.eq.s32.totalorder %s20, 1
    %p195 = scmp.ne.s32.totalorder %s190, %s192
    %p196 = scmp.eq.s32.totalorder %s20, 0
    %p197 = por %p195, %p196
    %p198 = scmp.ne.s32.totalorder %s190, %s192
    %p199 = scmp.eq.s32.totalorder %s25, 1
    %p200 = por %p198, %p199
    %p201 = scmp.ne.s32.totalorder %s192, %s193
    %p202 = scmp.eq.s32.totalorder %s25, 0
    %p203 = por %p201, %p202
    %p204 = scmp.ne.s32.totalorder %s192, %s193
    %p205 = scmp.eq.s32.totalorder %s26, 1
    %p206 = por %p204, %p205
    %p208 = scmp.ne.s32.totalorder %s193, %s207
    %p209 = scmp.eq.s32.totalorder %s26, 0
    %p210 = por %p208, %p209
    %s212 = sadd.s32 %s211, 1
    %p215 = scmp.eq.s32.totalorder %s20, 1
    %p216 = scmp.ne.s32.totalorder %s211, %s213
    %p217 = scmp.eq.s32.totalorder %s20, 0
    %p218 = por %p216, %p217
    %p219 = scmp.ne.s32.totalorder %s211, %s213
    %p220 = scmp.eq.s32.totalorder %s25, 1
    %p221 = por %p219, %p220
    %p222 = scmp.ne.s32.totalorder %s213, %s214
    %p223 = scmp.eq.s32.totalorder %s25, 0
    %p224 = por %p222, %p223
    %p225 = scmp.ne.s32.totalorder %s213, %s214
    %p226 = scmp.eq.s32.totalorder %s26, 1
    %p227 = por %p225, %p226
    %p229 = scmp.ne.s32.totalorder %s214, %s228
    %p230 = scmp.eq.s32.totalorder %s26, 0
    %p231 = por %p229, %p230
    %s233 = sadd.s32 %s232, 1
    %p236 = scmp.eq.s32.totalorder %s20, 1
    %p237 = scmp.ne.s32.totalorder %s232, %s234
    %p238 = scmp.eq.s32.totalorder %s20, 0
    %p239 = por %p237, %p238
    %p240 = scmp.ne.s32.totalorder %s232, %s234
    %p241 = scmp.eq.s32.totalorder %s25, 1
    %p242 = por %p240, %p241
    %p243 = scmp.ne.s32.totalorder %s234, %s235
    %p244 = scmp.eq.s32.totalorder %s25, 0
    %p245 = por %p243, %p244
    %p246 = scmp.ne.s32.totalorder %s234, %s235
    %p247 = scmp.eq.s32.totalorder %s26, 1
    %p248 = por %p246, %p247
    %p250 = scmp.ne.s32.totalorder %s235, %s249
    %p251 = scmp.eq.s32.totalorder %s26, 0
    %p252 = por %p250, %p251
    %s254 = sadd.s32 %s253, 1
    %p257 = scmp.eq.s32.totalorder %s20, 1
    %p258 = scmp.ne.s32.totalorder %s253, %s255
    %p259 = scmp.eq.s32.totalorder %s20, 0
    %p260 = por %p258, %p259
    %p261 = scmp.ne.s32.totalorder %s253, %s255
    %p262 = scmp.eq.s32.totalorder %s25, 1
    %p263 = por %p261, %p262
    %p264 = scmp.ne.s32.totalorder %s255, %s256
    %p265 = scmp.eq.s32.totalorder %s25, 0
    %p266 = por %p264, %p265
    %p267 = scmp.ne.s32.totalorder %s255, %s256
    %p268 = scmp.eq.s32.totalorder %s26, 1
    %p269 = por %p267, %p268
    %p271 = scmp.ne.s32.totalorder %s256, %s270
    %p272 = scmp.eq.s32.totalorder %s26, 0
    %p273 = por %p271, %p272
    %s275 = sadd.s32 %s274, 1
    %p278 = scmp.eq.s32.totalorder %s20, 1
    %p279 = scmp.ne.s32.totalorder %s274, %s276
    %p280 = scmp.eq.s32.totalorder %s20, 0
    %p281 = por %p279, %p280
    %p282 = scmp.ne.s32.totalorder %s274, %s276
    %p283 = scmp.eq.s32.totalorder %s25, 1
    %p284 = por %p282, %p283
    %p285 = scmp.ne.s32.totalorder %s276, %s277
    %p286 = scmp.eq.s32.totalorder %s25, 0
    %p287 = por %p285, %p286
    %p288 = scmp.ne.s32.totalorder %s276, %s277
    %p289 = scmp.eq.s32.totalorder %s26, 1
    %p290 = por %p288, %p289
    %p292 = scmp.ne.s32.totalorder %s277, %s291
    %p293 = scmp.eq.s32.totalorder %s26, 0
    %p294 = por %p292, %p293
    %s296 = sadd.s32 %s295, 1
    %p299 = scmp.eq.s32.totalorder %s20, 1
    %p300 = scmp.ne.s32.totalorder %s295, %s297
    %p301 = scmp.eq.s32.totalorder %s20, 0
    %p302 = por %p300, %p301
    %p303 = scmp.ne.s32.totalorder %s295, %s297
    %p304 = scmp.eq.s32.totalorder %s25, 1
    %p305 = por %p303, %p304
    %p306 = scmp.ne.s32.totalorder %s297, %s298
    %p307 = scmp.eq.s32.totalorder %s25, 0
    %p308 = por %p306, %p307
    %p309 = scmp.ne.s32.totalorder %s297, %s298
    %p310 = scmp.eq.s32.totalorder %s26, 1
    %p311 = por %p309, %p310
    %p313 = scmp.ne.s32.totalorder %s298, %s312
    %p314 = scmp.eq.s32.totalorder %s26, 0
    %p315 = por %p313, %p314
    %s317 = sadd.s32 %s316, 1
    %p320 = scmp.eq.s32.totalorder %s20, 1
    %p321 = scmp.ne.s32.totalorder %s316, %s318
    %p322 = scmp.eq.s32.totalorder %s20, 0
    %p323 = por %p321, %p322
    %p324 = scmp.ne.s32.totalorder %s316, %s318
    %p325 = scmp.eq.s32.totalorder %s25, 1
    %p326 = por %p324, %p325
    %p327 = scmp.ne.s32.totalorder %s318, %s319
    %p328 = scmp.eq.s32.totalorder %s25, 0
    %p329 = por %p327, %p328
    %p330 = scmp.ne.s32.totalorder %s318, %s319
    %p331 = scmp.eq.s32.totalorder %s26, 1
    %p332 = por %p330, %p331
    %p334 = scmp.ne.s32.totalorder %s319, %s333
    %p335 = scmp.eq.s32.totalorder %s26, 0
    %p336 = por %p334, %p335
    %s337 = ssub.s32 %s20, %s27
    %p338 = scmp.eq.s32.totalorder %s337, 0
    %s340 = sadd.s32 %s339, 1
    %s341 = scalar_select %p338, %s339, %s340
    %p344 = pneg %p338
    %p345 = scmp.eq.s32.totalorder %s20, 1
    %p346 = por %p344, %p345
    %p347 = scmp.ne.s32.totalorder %s339, %s342
    %p348 = scmp.eq.s32.totalorder %s20, 0
    %p349 = por %p347, %p348
    %p350 = scmp.ne.s32.totalorder %s339, %s342
    %p351 = scmp.eq.s32.totalorder %s25, 1
    %p352 = por %p350, %p351
    %p353 = scmp.ne.s32.totalorder %s342, %s343
    %p354 = scmp.eq.s32.totalorder %s25, 0
    %p355 = por %p353, %p354
    %p356 = scmp.ne.s32.totalorder %s342, %s343
    %p357 = scmp.eq.s32.totalorder %s26, 1
    %p358 = por %p356, %p357
    %p360 = scmp.ne.s32.totalorder %s343, %s359
    %p361 = scmp.eq.s32.totalorder %s26, 0
    %p362 = por %p360, %p361
    %p363 = scmp.le.s32.totalorder 1, %s20
    %p364 = scmp.lt.s32.totalorder %s20, 3
    %p365 = pnand %p363, %p364
    %p366 = pneg %p365
    // Predicated region
    $region9: #{hf_t5_forward.9} parent=5 // pred_check
      _
    $region10: #{hf_t5_forward.9} parent=5 // pred_check_branch
      %368 = sbr.rel (%p365) target = $region12
    $region11: #{hf_t5_forward.9} parent=5 // pred_region
      %s369 = ssub.s32 %s20, 1
      // Predicated region
      $region13: #{hf_t5_forward.9} parent=11 // pred_check
        %p370 = pneg %p93
      $region14: #{hf_t5_forward.9} parent=11 // pred_check_branch
        %372 = sbr.rel (%p370) target = $region16
      $region15: #{hf_t5_forward.9} parent=11 // pred_region
        _
      $region16: #{hf_t5_forward.9} parent=11 // pred_fallthru
        _
      // Predicated region
      $region17: #{hf_t5_forward.9} parent=11 // pred_check
        %p373 = pneg %p140
      $region18: #{hf_t5_forward.9} parent=11 // pred_check_branch
        %375 = sbr.rel (%p373) target = $region20
      $region19: #{hf_t5_forward.9} parent=11 // pred_region
        _
      $region20: #{hf_t5_forward.9} parent=11 // pred_fallthru
        _
      // Predicated region
      $region21: #{hf_t5_forward.9} parent=11 // pred_check
        %p376 = pneg %p161
      $region22: #{hf_t5_forward.9} parent=11 // pred_check_branch
        %378 = sbr.rel (%p376) target = $region24
      $region23: #{hf_t5_forward.9} parent=11 // pred_region
        _
      $region24: #{hf_t5_forward.9} parent=11 // pred_fallthru
        _
      // Predicated region
      $region25: #{hf_t5_forward.9} parent=11 // pred_check
        %p379 = pneg %p182
      $region26: #{hf_t5_forward.9} parent=11 // pred_check_branch
        %381 = sbr.rel (%p379) target = $region28
      $region27: #{hf_t5_forward.9} parent=11 // pred_region
        _
      $region28: #{hf_t5_forward.9} parent=11 // pred_fallthru
        _
      // Predicated region
      $region29: #{hf_t5_forward.9} parent=11 // pred_check
        %p382 = pneg %p203
      $region30: #{hf_t5_forward.9} parent=11 // pred_check_branch
        %384 = sbr.rel (%p382) target = $region32
      $region31: #{hf_t5_forward.9} parent=11 // pred_region
        _
      $region32: #{hf_t5_forward.9} parent=11 // pred_fallthru
        _
      // Predicated region
      $region33: #{hf_t5_forward.9} parent=11 // pred_check
        %p385 = pneg %p224
      $region34: #{hf_t5_forward.9} parent=11 // pred_check_branch
        %387 = sbr.rel (%p385) target = $region36
      $region35: #{hf_t5_forward.9} parent=11 // pred_region
        _
      $region36: #{hf_t5_forward.9} parent=11 // pred_fallthru
        _
      // Predicated region
      $region37: #{hf_t5_forward.9} parent=11 // pred_check
        %p388 = pneg %p245
      $region38: #{hf_t5_forward.9} parent=11 // pred_check_branch
        %390 = sbr.rel (%p388) target = $region40
      $region39: #{hf_t5_forward.9} parent=11 // pred_region
        _
      $region40: #{hf_t5_forward.9} parent=11 // pred_fallthru
        _
      // Predicated region
      $region41: #{hf_t5_forward.9} parent=11 // pred_check
        %p391 = pneg %p266
      $region42: #{hf_t5_forward.9} parent=11 // pred_check_branch
        %393 = sbr.rel (%p391) target = $region44
      $region43: #{hf_t5_forward.9} parent=11 // pred_region
        _
      $region44: #{hf_t5_forward.9} parent=11 // pred_fallthru
        _
      // Predicated region
      $region45: #{hf_t5_forward.9} parent=11 // pred_check
        %p394 = pneg %p287
      $region46: #{hf_t5_forward.9} parent=11 // pred_check_branch
        %396 = sbr.rel (%p394) target = $region48
      $region47: #{hf_t5_forward.9} parent=11 // pred_region
        _
      $region48: #{hf_t5_forward.9} parent=11 // pred_fallthru
        _
      // Predicated region
      $region49: #{hf_t5_forward.9} parent=11 // pred_check
        %p397 = pneg %p308
      $region50: #{hf_t5_forward.9} parent=11 // pred_check_branch
        %399 = sbr.rel (%p397) target = $region52
      $region51: #{hf_t5_forward.9} parent=11 // pred_region
        _
      $region52: #{hf_t5_forward.9} parent=11 // pred_fallthru
        _
      // Predicated region
      $region53: #{hf_t5_forward.9} parent=11 // pred_check
        %p400 = pneg %p329
      $region54: #{hf_t5_forward.9} parent=11 // pred_check_branch
        %402 = sbr.rel (%p400) target = $region56
      $region55: #{hf_t5_forward.9} parent=11 // pred_region
        _
      $region56: #{hf_t5_forward.9} parent=11 // pred_fallthru
        _
    $region12: #{hf_t5_forward.9} parent=5 // pred_fallthru
      _
    %p403 = scmp.lt.s32.totalorder %s20, 2
    // Predicated region
    $region57: #{hf_t5_forward.9} parent=5 // pred_check
      %p404 = pneg %p403
    $region58: #{hf_t5_forward.9} parent=5 // pred_check_branch
      %406 = sbr.rel (%p404) target = $region60
    $region59: #{hf_t5_forward.9} parent=5 // pred_region
      // Predicated region
      $region61: #{hf_t5_forward.9} parent=59 // pred_check
        %p407 = pneg %p40
      $region62: #{hf_t5_forward.9} parent=59 // pred_check_branch
        %409 = sbr.rel (%p407) target = $region64
      $region63: #{hf_t5_forward.9} parent=59 // pred_region
        %p410 = scmp.lt.s32.totalorder %s20, 1
        %s411 = scalar_select %p410, %s20, 1
        %s412 = smul.addr %s411, 8
        %s413 = scalar_lea.vmem %s0, %s412
      $region64: #{hf_t5_forward.9} parent=59 // pred_fallthru
        _
      // Predicated region
      $region65: #{hf_t5_forward.9} parent=59 // pred_check
        %p414 = pneg %p66
      $region66: #{hf_t5_forward.9} parent=59 // pred_check_branch
        %416 = sbr.rel (%p414) target = $region68
      $region67: #{hf_t5_forward.9} parent=59 // pred_region
        %p417 = scmp.lt.s32.totalorder %s20, 1
        %s418 = scalar_select %p417, %s20, 1
        %s419 = smul.addr %s418, 8
        %s420 = scalar_lea.vmem %s1, %s419
      $region68: #{hf_t5_forward.9} parent=59 // pred_fallthru
        _
      // Predicated region
      $region69: #{hf_t5_forward.9} parent=59 // pred_check
        %p421 = pneg %p113
      $region70: #{hf_t5_forward.9} parent=59 // pred_check_branch
        %423 = sbr.rel (%p421) target = $region72
      $region71: #{hf_t5_forward.9} parent=59 // pred_region
        %p424 = scmp.lt.s32.totalorder %s20, 1
        %s425 = scalar_select %p424, %s20, 1
        %s426 = scalar_lea.vmem %s3, %s425
      $region72: #{hf_t5_forward.9} parent=59 // pred_fallthru
        _
    $region60: #{hf_t5_forward.9} parent=5 // pred_fallthru
      _
    %p427 = scmp.le.s32.totalorder 1, %s20
    %p428 = scmp.lt.s32.totalorder %s20, 3
    %p429 = pnand %p427, %p428
    %p430 = pneg %p429
    // Predicated region
    $region73: #{hf_t5_forward.9} parent=5 // pred_check
      _
    $region74: #{hf_t5_forward.9} parent=5 // pred_check_branch
      %432 = sbr.rel (%p429) target = $region76
    $region75: #{hf_t5_forward.9} parent=5 // pred_region
      %s433 = ssub.s32 %s20, 1
      %p434 = scmp.lt.s32.totalorder %s25, 1
      %s435 = scalar_select %p434, %s25, 1
      %s436 = smul.addr %s435, 8
      %s437 = scalar_lea.vmem %s0, %s436
      %p438 = pneg %p46
      %p439 = pneg %p43
      %p440 = scmp.lt.s32.totalorder %s25, 1
      %s441 = scalar_select %p440, %s25, 1
      %s442 = smul.addr %s441, 8
      %s443 = scalar_lea.vmem %s1, %s442
      %p444 = pneg %p72
      %p445 = pneg %p69
      %p446 = pneg %p93
      %p447 = pneg %p90
      %p448 = scmp.lt.s32.totalorder %s25, 1
      %s449 = scalar_select %p448, %s25, 1
      %s450 = scalar_lea.vmem %s3, %s449
      %p451 = pneg %p119
      %p452 = pneg %p116
      %p453 = pneg %p140
      %p454 = pneg %p137
      %p455 = pneg %p161
      %p456 = pneg %p158
      %p457 = pneg %p182
      %p458 = pneg %p179
      %p459 = pneg %p203
      %p460 = pneg %p200
      %p461 = pneg %p224
      %p462 = pneg %p221
      %p463 = pneg %p245
      %p464 = pneg %p242
      %p465 = pneg %p266
      %p466 = pneg %p263
      %p467 = pneg %p287
      %p468 = pneg %p284
      %p469 = pneg %p308
      %p470 = pneg %p305
      %p471 = pneg %p329
      %p472 = pneg %p326
      %p473 = pneg %p355
      %p474 = pneg %p352
      %p475 = scmp.lt.s32.totalorder %s25, 1
      %s476 = scalar_select %p475, %s25, 1
      %s477 = smul.addr %s476, 8
      %s478 = scalar_lea.vmem %s14, %s477
      %p479 = scmp.lt.s32.totalorder %s25, 1
      %s480 = scalar_select %p479, %s25, 1
      %s481 = smul.addr %s480, 8
      %s482 = scalar_lea.vmem %s0, %s481
      %p483 = scmp.lt.s32.totalorder %s25, 1
      %s484 = scalar_select %p483, %s25, 1
      %s485 = smul.addr %s484, 8
      %s486 = scalar_lea.vmem %s1, %s485
      %p487 = scmp.lt.s32.totalorder %s25, 1
      %s488 = scalar_select %p487, %s25, 1
      %s489 = scalar_lea.vmem %s3, %s488
      %p490 = scmp.lt.s32.totalorder %s25, 1
      %s491 = scalar_select %p490, %s25, 1
      %s492 = smul.addr %s491, 8
      %s493 = scalar_lea.vmem %s14, %s492
      %v494 = vld [vmem:[%s482] sm:$0xff]
      %v495 = vld [vmem:[%s486] sm:$0xff]
      %v496 = vld [vmem:[%s4] sm:$0x1]
      %v497 = vmul.f32 %v494, %v494
      %vm498 = vcmask 261120
      %v499 = vsel %vm498, %v497, 0.0
      %500 = vadd.xlane.f32.xlu0 %v499
      %v501 = vpop.xlane.xlu0 %500
      %v502 = vrcp.pop 32.0
      %v503 = vmul.f32 %v501, %v502
      %v504 = vadd.f32 %v503, 1e-06
      %v505 = vrsqrt.pop %v504
      %v506 = vmul.f32 %v494, %v505
      %v508 = vlaneseq
      %v509 = vshrl.u32 %v508, 7
      %v510 = vsub.s32 0, %v509
      %v511 = vrot.slane %v496, %v510
      %v513 = vmul.f32 %v506, %v511
      %v514 = vld [vmem:[%s5] sm:$0xff]
      %v515 = vld [vmem:[%s5 + $0x8] sm:$0xff]
      %v516 = vld [vmem:[%s5 + $0x10] sm:$0xff]
      %v517 = vld [vmem:[%s5 + $0x18] sm:$0xff]
      %v519 = vsel %vm498, %v513, 0
      %521 = vmatprep.subr.mxu0 0.0
      %522 = vmatpush1.msra.mxu0 %v514
      %523 = vmatprep.subr.mxu0 0.0
      %524 = vmatpush1.msra.mxu0 %v515
      %525 = vmatprep.subr.mxu0 0.0
      %526 = vmatpush1.msra.mxu0 %v516
      %527 = vmatprep.subr.mxu0 0.0
      %528 = vmatpush1.msra.mxu0 %v517
      %529 = vmatprep.subr.mxu0 0.0
      %530 = vmatpush1.msra.mxu0 0.0
      %531 = vmatprep.subr.mxu0 0.0
      %532 = vmatpush1.msra.mxu0 0.0
      %533 = vmatprep.subr.mxu0 0.0
      %534 = vmatpush1.msra.mxu0 0.0
      %535 = vmatprep.subr.mxu0 0.0
      %536 = vmatpush1.msra.mxu0 0.0
      %537 = vmatprep.subr.mxu0 0.0
      %538 = vmatpush1.msra.mxu0 0.0
      %539 = vmatprep.subr.mxu0 0.0
      %540 = vmatpush1.msra.mxu0 0.0
      %541 = vmatprep.subr.mxu0 0.0
      %542 = vmatpush1.msra.mxu0 0.0
      %543 = vmatprep.subr.mxu0 0.0
      %544 = vmatpush1.msra.mxu0 0.0
      %545 = vmatprep.subr.mxu0 0.0
      %546 = vmatpush1.msra.mxu0 0.0
      %547 = vmatprep.subr.mxu0 0.0
      %548 = vmatpush1.msra.mxu0 0.0
      %549 = vmatprep.subr.mxu0 0.0
      %550 = vmatpush1.msra.mxu0 0.0
      %551 = vmatprep.subr.mxu0 0.0
      %552 = vmatpush1.msra.mxu0 0.0
      %553 = vmatprep.subr.mxu0 0.0
      %554 = vmatpush1.msra.mxu0 0.0
      %555 = vmatprep.subr.mxu0 0.0
      %556 = vmatpush1.msra.mxu0 0.0
      %557 = vmatprep.subr.mxu0 0.0
      %558 = vmatpush1.msra.mxu0 0.0
      %559 = vmatprep.subr.mxu0 0.0
      %560 = vmatpush1.msra.mxu0 0.0
      %561 = vmatprep.subr.mxu0 0.0
      %562 = vmatpush1.msra.mxu0 0.0
      %563 = vmatprep.subr.mxu0 0.0
      %564 = vmatpush1.msra.mxu0 0.0
      %565 = vmatprep.subr.mxu0 0.0
      %566 = vmatpush1.msra.mxu0 0.0
      %567 = vmatprep.subr.mxu0 0.0
      %568 = vmatpush1.msra.mxu0 0.0
      %569 = vmatprep.subr.mxu0 0.0
      %570 = vmatpush1.msra.mxu0 0.0
      %571 = vmatprep.subr.mxu0 0.0
      %572 = vmatpush1.msra.mxu0 0.0
      %573 = vmatprep.subr.mxu0 0.0
      %574 = vmatpush1.msra.mxu0 0.0
      %575 = vmatprep.subr.mxu0 0.0
      %576 = vmatpush1.msra.mxu0 0.0
      %577 = vmatprep.subr.mxu0 0.0
      %578 = vmatpush1.msra.mxu0 0.0
      %579 = vmatprep.subr.mxu0 0.0
      %580 = vmatpush1.msra.mxu0 0.0
      %581 = vmatprep.subr.mxu0 0.0
      %582 = vmatpush1.msra.mxu0 0.0
      %583 = vmatprep.subr.mxu0 0.0
      %584 = vmatpush1.msra.mxu0 0.0
      %585 = vmatprep.mubr.f32.mxu0 0.0
      %586 = vmatmul.mubr.f32.gmra.mrb[0].mxu0 %v519
      %v587 = vpop.f32.mrb[0].mxu0
      %v588 = vadd.f32 0.0, %v587
      %v589 = vpop.f32.mrb[0].mxu0
      %590 = vdwg.mxu0
      %v591 = vld [vmem:[%s2] sm:$0xff]
      %593 = vrot.lane.b32.xlu0 %v588, 96
      %v594 = vpop.permute.xlu0 %593
      %vm595 = vcmask 64512
      %v596 = vsel %vm595, %v588, 0
      %v598 = vsel %vm595, %v594, 0
      %600 = vmatprep.subr.mxu0 0.0
      %601 = vmatpush1.xpose.msra.mxu0 %v598
      %602 = vmatprep.subr.mxu0 0.0
      %603 = vmatpush1.xpose.msra.mxu0 0.0
      %604 = vmatprep.subr.mxu0 0.0
      %605 = vmatpush1.xpose.msra.mxu0 0.0
      %606 = vmatprep.subr.mxu0 0.0
      %607 = vmatpush1.xpose.msra.mxu0 0.0
      %608 = vmatprep.subr.mxu0 0.0
      %609 = vmatpush1.xpose.msra.mxu0 0.0
      %610 = vmatprep.subr.mxu0 0.0
      %611 = vmatpush1.xpose.msra.mxu0 0.0
      %612 = vmatprep.subr.mxu0 0.0
      %613 = vmatpush1.xpose.msra.mxu0 0.0
      %614 = vmatprep.subr.mxu0 0.0
      %615 = vmatpush1.xpose.msra.mxu0 0.0
      %616 = vmatprep.subr.mxu0 0.0
      %617 = vmatpush1.xpose.msra.mxu0 0.0
      %618 = vmatprep.subr.mxu0 0.0
      %619 = vmatpush1.xpose.msra.mxu0 0.0
      %620 = vmatprep.subr.mxu0 0.0
      %621 = vmatpush1.xpose.msra.mxu0 0.0
      %622 = vmatprep.subr.mxu0 0.0
      %623 = vmatpush1.xpose.msra.mxu0 0.0
      %624 = vmatprep.subr.mxu0 0.0
      %625 = vmatpush1.xpose.msra.mxu0 0.0
      %626 = vmatprep.subr.mxu0 0.0
      %627 = vmatpush1.xpose.msra.mxu0 0.0
      %628 = vmatprep.subr.mxu0 0.0
      %629 = vmatpush1.xpose.msra.mxu0 0.0
      %630 = vmatprep.subr.mxu0 0.0
      %631 = vmatpush1.xpose.msra.mxu0 0.0
      %632 = vmatprep.subr.mxu0 0.0
      %633 = vmatpush1.xpose.msra.mxu0 0.0
      %634 = vmatprep.subr.mxu0 0.0
      %635 = vmatpush1.xpose.msra.mxu0 0.0
      %636 = vmatprep.subr.mxu0 0.0
      %637 = vmatpush1.xpose.msra.mxu0 0.0
      %638 = vmatprep.subr.mxu0 0.0
      %639 = vmatpush1.xpose.msra.mxu0 0.0
      %640 = vmatprep.subr.mxu0 0.0
      %641 = vmatpush1.xpose.msra.mxu0 0.0
      %642 = vmatprep.subr.mxu0 0.0
      %643 = vmatpush1.xpose.msra.mxu0 0.0
      %644 = vmatprep.subr.mxu0 0.0
      %645 = vmatpush1.xpose.msra.mxu0 0.0
      %646 = vmatprep.subr.mxu0 0.0
      %647 = vmatpush1.xpose.msra.mxu0 0.0
      %648 = vmatprep.subr.mxu0 0.0
      %649 = vmatpush1.xpose.msra.mxu0 0.0
      %650 = vmatprep.subr.mxu0 0.0
      %651 = vmatpush1.xpose.msra.mxu0 0.0
      %652 = vmatprep.subr.mxu0 0.0
      %653 = vmatpush1.xpose.msra.mxu0 0.0
      %654 = vmatprep.subr.mxu0 0.0
      %655 = vmatpush1.xpose.msra.mxu0 0.0
      %656 = vmatprep.subr.mxu0 0.0
      %657 = vmatpush1.xpose.msra.mxu0 0.0
      %658 = vmatprep.subr.mxu0 0.0
      %659 = vmatpush1.xpose.msra.mxu0 0.0
      %660 = vmatprep.subr.mxu0 0.0
      %661 = vmatpush1.xpose.msra.mxu0 0.0
      %662 = vmatprep.subr.mxu0 0.0
      %663 = vmatpush1.xpose.msra.mxu0 0.0
      %664 = vmatprep.mubr.f32.mxu0 0.0
      %665 = vmatmul.mubr.f32.gmra.mrb[0].mxu0 %v596
      %v666 = vpop.f32.mrb[0].mxu0
      %v667 = vadd.f32 %v591, %v666
      %v668 = vpop.f32.mrb[0].mxu0
      %669 = vdwg.mxu0
      %v670 = vsel %vm595, %v667, -inf
      %671 = vmax.xlane.f32.xlu0 %v670
      %v672 = vpop.xlane.xlu0 %671
      %v673 = vsub.f32 %v667, %v672
      %v674 = vmul.f32 %v673, 1.442695
      %v675 = vpow.pop %v674
      %v676 = vsel %vm595, %v675, 0.0
      %677 = vadd.xlane.f32.xlu0 %v676
      %v678 = vpop.xlane.xlu0 %677
      %v679 = vrcp.pop %v678
      %v680 = vmul.f32 %v675, %v679
      %681 = vrot.lane.b32.xlu0 %v588, 64
      %v682 = vpop.permute.xlu0 %681
      %v685 = vsel %vm595, %v680, 0
      %687 = vmatprep.subr.mxu0 0.0
      %688 = vmatpush1.msra.mxu0 %v682
      %689 = vmatprep.subr.mxu0 0.0
      %690 = vmatpush1.msra.mxu0 0.0
      %691 = vmatprep.subr.mxu0 0.0
      %692 = vmatpush1.msra.mxu0 0.0
      %693 = vmatprep.subr.mxu0 0.0
      %694 = vmatpush1.msra.mxu0 0.0
      %695 = vmatprep.subr.mxu0 0.0
      %696 = vmatpush1.msra.mxu0 0.0
      %697 = vmatprep.subr.mxu0 0.0
      %698 = vmatpush1.msra.mxu0 0.0
      %699 = vmatprep.subr.mxu0 0.0
      %700 = vmatpush1.msra.mxu0 0.0
      %701 = vmatprep.subr.mxu0 0.0
      %702 = vmatpush1.msra.mxu0 0.0
      %703 = vmatprep.subr.mxu0 0.0
      %704 = vmatpush1.msra.mxu0 0.0
      %705 = vmatprep.subr.mxu0 0.0
      %706 = vmatpush1.msra.mxu0 0.0
      %707 = vmatprep.subr.mxu0 0.0
      %708 = vmatpush1.msra.mxu0 0.0
      %709 = vmatprep.subr.mxu0 0.0
      %710 = vmatpush1.msra.mxu0 0.0
      %711 = vmatprep.subr.mxu0 0.0
      %712 = vmatpush1.msra.mxu0 0.0
      %713 = vmatprep.subr.mxu0 0.0
      %714 = vmatpush1.msra.mxu0 0.0
      %715 = vmatprep.subr.mxu0 0.0
      %716 = vmatpush1.msra.mxu0 0.0
      %717 = vmatprep.subr.mxu0 0.0
      %718 = vmatpush1.msra.mxu0 0.0
      %719 = vmatprep.subr.mxu0 0.0
      %720 = vmatpush1.msra.mxu0 0.0
      %721 = vmatprep.subr.mxu0 0.0
      %722 = vmatpush1.msra.mxu0 0.0
      %723 = vmatprep.subr.mxu0 0.0
      %724 = vmatpush1.msra.mxu0 0.0
      %725 = vmatprep.subr.mxu0 0.0
      %726 = vmatpush1.msra.mxu0 0.0
      %727 = vmatprep.subr.mxu0 0.0
      %728 = vmatpush1.msra.mxu0 0.0
      %729 = vmatprep.subr.mxu0 0.0
      %730 = vmatpush1.msra.mxu0 0.0
      %731 = vmatprep.subr.mxu0 0.0
      %732 = vmatpush1.msra.mxu0 0.0
      %733 = vmatprep.subr.mxu0 0.0
      %734 = vmatpush1.msra.mxu0 0.0
      %735 = vmatprep.subr.mxu0 0.0
      %736 = vmatpush1.msra.mxu0 0.0
      %737 = vmatprep.subr.mxu0 0.0
      %738 = vmatpush1.msra.mxu0 0.0
      %739 = vmatprep.subr.mxu0 0.0
      %740 = vmatpush1.msra.mxu0 0.0
      %741 = vmatprep.subr.mxu0 0.0
      %742 = vmatpush1.msra.mxu0 0.0
      %743 = vmatprep.subr.mxu0 0.0
      %744 = vmatpush1.msra.mxu0 0.0
      %745 = vmatprep.subr.mxu0 0.0
      %746 = vmatpush1.msra.mxu0 0.0
      %747 = vmatprep.subr.mxu0 0.0
      %748 = vmatpush1.msra.mxu0 0.0
      %749 = vmatprep.subr.mxu0 0.0
      %750 = vmatpush1.msra.mxu0 0.0
      %751 = vmatprep.mubr.f32.mxu0 0.0
      %752 = vmatmul.mubr.f32.gmra.mrb[0].mxu0 %v685
      %v753 = vpop.f32.mrb[0].mxu0
      %v754 = vadd.f32 0.0, %v753
      %v755 = vpop.f32.mrb[0].mxu0
      %756 = vdwg.mxu0
      %v757 = vld [vmem:[%s6] sm:$0xff]
      %s758 = scalar_lea.vmem %s2, 8
      %v759 = vld [vmem:[%s758] sm:$0xff]
      %760 = vrot.lane.b32.xlu0 %v588, 120
      %v761 = vpop.permute.xlu0 %760
      %762 = vrot.lane.b32.xlu0 %v588, 88
      %v763 = vpop.permute.xlu0 %762
      %v764 = vsel %vm595, %v761, 0
      %v766 = vsel %vm595, %v763, 0
      %768 = vmatprep.subr.mxu0 0.0
      %769 = vmatpush1.xpose.msra.mxu0 %v766
      %770 = vmatprep.subr.mxu0 0.0
      %771 = vmatpush1.xpose.msra.mxu0 0.0
      %772 = vmatprep.subr.mxu0 0.0
      %773 = vmatpush1.xpose.msra.mxu0 0.0
      %774 = vmatprep.subr.mxu0 0.0
      %775 = vmatpush1.xpose.msra.mxu0 0.0
      %776 = vmatprep.subr.mxu0 0.0
      %777 = vmatpush1.xpose.msra.mxu0 0.0
      %778 = vmatprep.subr.mxu0 0.0
      %779 = vmatpush1.xpose.msra.mxu0 0.0
      %780 = vmatprep.subr.mxu0 0.0
      %781 = vmatpush1.xpose.msra.mxu0 0.0
      %782 = vmatprep.subr.mxu0 0.0
      %783 = vmatpush1.xpose.msra.mxu0 0.0
      %784 = vmatprep.subr.mxu0 0.0
      %785 = vmatpush1.xpose.msra.mxu0 0.0
      %786 = vmatprep.subr.mxu0 0.0
      %787 = vmatpush1.xpose.msra.mxu0 0.0
      %788 = vmatprep.subr.mxu0 0.0
      %789 = vmatpush1.xpose.msra.mxu0 0.0
      %790 = vmatprep.subr.mxu0 0.0
      %791 = vmatpush1.xpose.msra.mxu0 0.0
      %792 = vmatprep.subr.mxu0 0.0
      %793 = vmatpush1.xpose.msra.mxu0 0.0
      %794 = vmatprep.subr.mxu0 0.0
      %795 = vmatpush1.xpose.msra.mxu0 0.0
      %796 = vmatprep.subr.mxu0 0.0
      %797 = vmatpush1.xpose.msra.mxu0 0.0
      %798 = vmatprep.subr.mxu0 0.0
      %799 = vmatpush1.xpose.msra.mxu0 0.0
      %800 = vmatprep.subr.mxu0 0.0
      %801 = vmatpush1.xpose.msra.mxu0 0.0
      %802 = vmatprep.subr.mxu0 0.0
      %803 = vmatpush1.xpose.msra.mxu0 0.0
      %804 = vmatprep.subr.mxu0 0.0
      %805 = vmatpush1.xpose.msra.mxu0 0.0
      %806 = vmatprep.subr.mxu0 0.0
      %807 = vmatpush1.xpose.msra.mxu0 0.0
      %808 = vmatprep.subr.mxu0 0.0
      %809 = vmatpush1.xpose.msra.mxu0 0.0
      %810 = vmatprep.subr.mxu0 0.0
      %811 = vmatpush1.xpose.msra.mxu0 0.0
      %812 = vmatprep.subr.mxu0 0.0
      %813 = vmatpush1.xpose.msra.mxu0 0.0
      %814 = vmatprep.subr.mxu0 0.0
      %815 = vmatpush1.xpose.msra.mxu0 0.0
      %816 = vmatprep.subr.mxu0 0.0
      %817 = vmatpush1.xpose.msra.mxu0 0.0
      %818 = vmatprep.subr.mxu0 0.0
      %819 = vmatpush1.xpose.msra.mxu0 0.0
      %820 = vmatprep.subr.mxu0 0.0
      %821 = vmatpush1.xpose.msra.mxu0 0.0
      %822 = vmatprep.subr.mxu0 0.0
      %823 = vmatpush1.xpose.msra.mxu0 0.0
      %824 = vmatprep.subr.mxu0 0.0
      %825 = vmatpush1.xpose.msra.mxu0 0.0
      %826 = vmatprep.subr.mxu0 0.0
      %827 = vmatpush1.xpose.msra.mxu0 0.0
      %828 = vmatprep.subr.mxu0 0.0
      %829 = vmatpush1.xpose.msra.mxu0 0.0
      %830 = vmatprep.subr.mxu0 0.0
      %831 = vmatpush1.xpose.msra.mxu0 0.0
      %832 = vmatprep.mubr.f32.mxu0 0.0
      %833 = vmatmul.mubr.f32.gmra.mrb[0].mxu0 %v764
      %v834 = vpop.f32.mrb[0].mxu0
      %v835 = vadd.f32 %v759, %v834
      %v836 = vpop.f32.mrb[0].mxu0
      %837 = vdwg.mxu0
      %v838 = vsel %vm595, %v835, -inf
      %839 = vmax.xlane.f32.xlu0 %v838
      %v840 = vpop.xlane.xlu0 %839
      %v841 = vsub.f32 %v835, %v840
      %v842 = vmul.f32 %v841, 1.442695
      %v843 = vpow.pop %v842
      %v844 = vsel %vm595, %v843, 0.0
      %845 = vadd.xlane.f32.xlu0 %v844
      %v846 = vpop.xlane.xlu0 %845
      %v847 = vrcp.pop %v846
      %v848 = vmul.f32 %v843, %v847
      %849 = vrot.lane.b32.xlu0 %v588, 56
      %v850 = vpop.permute.xlu0 %849
      %v853 = vsel %vm595, %v848, 0
      %855 = vmatprep.subr.mxu0 0.0
      %856 = vmatpush1.msra.mxu0 %v850
      %857 = vmatprep.subr.mxu0 0.0
      %858 = vmatpush1.msra.mxu0 0.0
      %859 = vmatprep.subr.mxu0 0.0
      %860 = vmatpush1.msra.mxu0 0.0
      %861 = vmatprep.subr.mxu0 0.0
      %862 = vmatpush1.msra.mxu0 0.0
      %863 = vmatprep.subr.mxu0 0.0
      %864 = vmatpush1.msra.mxu0 0.0
      %865 = vmatprep.subr.mxu0 0.0
      %866 = vmatpush1.msra.mxu0 0.0
      %867 = vmatprep.subr.mxu0 0.0
      %868 = vmatpush1.msra.mxu0 0.0
      %869 = vmatprep.subr.mxu0 0.0
      %870 = vmatpush1.msra.mxu0 0.0
      %871 = vmatprep.subr.mxu0 0.0
      %872 = vmatpush1.msra.mxu0 0.0
      %873 = vmatprep.subr.mxu0 0.0
      %874 = vmatpush1.msra.mxu0 0.0
      %875 = vmatprep.subr.mxu0 0.0
      %876 = vmatpush1.msra.mxu0 0.0
      %877 = vmatprep.subr.mxu0 0.0
      %878 = vmatpush1.msra.mxu0 0.0
      %879 = vmatprep.subr.mxu0 0.0
      %880 = vmatpush1.msra.mxu0 0.0
      %881 = vmatprep.subr.mxu0 0.0
      %882 = vmatpush1.msra.mxu0 0.0
      %883 = vmatprep.subr.mxu0 0.0
      %884 = vmatpush1.msra.mxu0 0.0
      %885 = vmatprep.subr.mxu0 0.0
      %886 = vmatpush1.msra.mxu0 0.0
      %887 = vmatprep.subr.mxu0 0.0
      %888 = vmatpush1.msra.mxu0 0.0
      %889 = vmatprep.subr.mxu0 0.0
      %890 = vmatpush1.msra.mxu0 0.0
      %891 = vmatprep.subr.mxu0 0.0
      %892 = vmatpush1.msra.mxu0 0.0
      %893 = vmatprep.subr.mxu0 0.0
      %894 = vmatpush1.msra.mxu0 0.0
      %895 = vmatprep.subr.mxu0 0.0
      %896 = vmatpush1.msra.mxu0 0.0
      %897 = vmatprep.subr.mxu0 0.0
      %898 = vmatpush1.msra.mxu0 0.0
      %899 = vmatprep.subr.mxu0 0.0
      %900 = vmatpush1.msra.mxu0 0.0
      %901 = vmatprep.subr.mxu0 0.0
      %902 = vmatpush1.msra.mxu0 0.0
      %903 = vmatprep.subr.mxu0 0.0
      %904 = vmatpush1.msra.mxu0 0.0
      %905 = vmatprep.subr.mxu0 0.0
      %906 = vmatpush1.msra.mxu0 0.0
      %907 = vmatprep.subr.mxu0 0.0
      %908 = vmatpush1.msra.mxu0 0.0
      %909 = vmatprep.subr.mxu0 0.0
      %910 = vmatpush1.msra.mxu0 0.0
      %911 = vmatprep.subr.mxu0 0.0
      %912 = vmatpush1.msra.mxu0 0.0
      %913 = vmatprep.subr.mxu0 0.0
      %914 = vmatpush1.msra.mxu0 0.0
      %915 = vmatprep.subr.mxu0 0.0
      %916 = vmatpush1.msra.mxu0 0.0
      %917 = vmatprep.subr.mxu0 0.0
      %918 = vmatpush1.msra.mxu0 0.0
      %919 = vmatprep.mubr.f32.mxu0 0.0
      %920 = vmatmul.mubr.f32.gmra.mrb[0].mxu0 %v853
      %v921 = vpop.f32.mrb[0].mxu0
      %v922 = vadd.f32 0.0, %v921
      %v923 = vpop.f32.mrb[0].mxu0
      %924 = vdwg.mxu0
      %v925 = vld [vmem:[%s6 + $0x8] sm:$0xff]
      %v927 = vsel %vm595, %v922, 0
      %929 = vmatprep.subr.mxu0 0.0
      %930 = vmatpush1.msra.mxu0 %v925
      %931 = vmatprep.subr.mxu0 0.0
      %932 = vmatpush1.msra.mxu0 0.0
      %933 = vmatprep.subr.mxu0 0.0
      %934 = vmatpush1.msra.mxu0 0.0
      %935 = vmatprep.subr.mxu0 0.0
      %936 = vmatpush1.msra.mxu0 0.0
      %937 = vmatprep.subr.mxu0 0.0
      %938 = vmatpush1.msra.mxu0 0.0
      %939 = vmatprep.subr.mxu0 0.0
      %940 = vmatpush1.msra.mxu0 0.0
      %941 = vmatprep.subr.mxu0 0.0
      %942 = vmatpush1.msra.mxu0 0.0
      %943 = vmatprep.subr.mxu0 0.0
      %944 = vmatpush1.msra.mxu0 0.0
      %945 = vmatprep.subr.mxu0 0.0
      %946 = vmatpush1.msra.mxu0 0.0
      %947 = vmatprep.subr.mxu0 0.0
      %948 = vmatpush1.msra.mxu0 0.0
      %949 = vmatprep.subr.mxu0 0.0
      %950 = vmatpush1.msra.mxu0 0.0
      %951 = vmatprep.subr.mxu0 0.0
      %952 = vmatpush1.msra.mxu0 0.0
      %953 = vmatprep.subr.mxu0 0.0
      %954 = vmatpush1.msra.mxu0 0.0
      %955 = vmatprep.subr.mxu0 0.0
      %956 = vmatpush1.msra.mxu0 0.0
      %957 = vmatprep.subr.mxu0 0.0
      %958 = vmatpush1.msra.mxu0 0.0
      %959 = vmatprep.subr.mxu0 0.0
      %960 = vmatpush1.msra.mxu0 0.0
      %961 = vmatprep.subr.mxu0 0.0
      %962 = vmatpush1.msra.mxu0 0.0
      %963 = vmatprep.subr.mxu0 0.0
      %964 = vmatpush1.msra.mxu0 0.0
      %965 = vmatprep.subr.mxu0 0.0
      %966 = vmatpush1.msra.mxu0 0.0
      %967 = vmatprep.subr.mxu0 0.0
      %968 = vmatpush1.msra.mxu0 0.0
      %969 = vmatprep.subr.mxu0 0.0
      %970 = vmatpush1.msra.mxu0 0.0
      %971 = vmatprep.subr.mxu0 0.0
      %972 = vmatpush1.msra.mxu0 0.0
      %973 = vmatprep.subr.mxu0 0.0
      %974 = vmatpush1.msra.mxu0 0.0
      %975 = vmatprep.subr.mxu0 0.0
      %976 = vmatpush1.msra.mxu0 0.0
      %977 = vmatprep.subr.mxu0 0.0
      %978 = vmatpush1.msra.mxu0 0.0
      %979 = vmatprep.subr.mxu0 0.0
      %980 = vmatpush1.msra.mxu0 0.0
      %981 = vmatprep.subr.mxu0 0.0
      %982 = vmatpush1.msra.mxu0 0.0
      %983 = vmatprep.subr.mxu0 0.0
      %984 = vmatpush1.msra.mxu0 0.0
      %985 = vmatprep.subr.mxu0 0.0
      %986 = vmatpush1.msra.mxu0 0.0
      %987 = vmatprep.subr.mxu0 0.0
      %988 = vmatpush1.msra.mxu0 0.0
      %989 = vmatprep.subr.mxu0 0.0
      %990 = vmatpush1.msra.mxu0 0.0
      %991 = vmatprep.subr.mxu0 0.0
      %992 = vmatpush1.msra.mxu0 0.0
      %993 = vmatprep.mubr.f32.mxu0 0.0
      %994 = vmatmul.mubr.f32.gmra.mrb[0].mxu0 %v927
      %v995 = vpop.f32.mrb[0].mxu0
      %v996 = vadd.f32 0.0, %v995
      %v997 = vpop.f32.mrb[0].mxu0
      %998 = vdwg.mxu0
      %v1000 = vsel %vm595, %v754, 0
      %1002 = vmatprep.subr.mxu0 0.0
      %1003 = vmatpush1.msra.mxu0 %v757
      %1004 = vmatprep.subr.mxu0 0.0
      %1005 = vmatpush1.msra.mxu0 0.0
      %1006 = vmatprep.subr.mxu0 0.0
      %1007 = vmatpush1.msra.mxu0 0.0
      %1008 = vmatprep.subr.mxu0 0.0
      %1009 = vmatpush1.msra.mxu0 0.0
      %1010 = vmatprep.subr.mxu0 0.0
      %1011 = vmatpush1.msra.mxu0 0.0
      %1012 = vmatprep.subr.mxu0 0.0
      %1013 = vmatpush1.msra.mxu0 0.0
      %1014 = vmatprep.subr.mxu0 0.0
      %1015 = vmatpush1.msra.mxu0 0.0
      %1016 = vmatprep.subr.mxu0 0.0
      %1017 = vmatpush1.msra.mxu0 0.0
      %1018 = vmatprep.subr.mxu0 0.0
      %1019 = vmatpush1.msra.mxu0 0.0
      %1020 = vmatprep.subr.mxu0 0.0
      %1021 = vmatpush1.msra.mxu0 0.0
      %1022 = vmatprep.subr.mxu0 0.0
      %1023 = vmatpush1.msra.mxu0 0.0
      %1024 = vmatprep.subr.mxu0 0.0
      %1025 = vmatpush1.msra.mxu0 0.0
      %1026 = vmatprep.subr.mxu0 0.0
      %1027 = vmatpush1.msra.mxu0 0.0
      %1028 = vmatprep.subr.mxu0 0.0
      %1029 = vmatpush1.msra.mxu0 0.0
      %1030 = vmatprep.subr.mxu0 0.0
      %1031 = vmatpush1.msra.mxu0 0.0
      %1032 = vmatprep.subr.mxu0 0.0
      %1033 = vmatpush1.msra.mxu0 0.0
      %1034 = vmatprep.subr.mxu0 0.0
      %1035 = vmatpush1.msra.mxu0 0.0
      %1036 = vmatprep.subr.mxu0 0.0
      %1037 = vmatpush1.msra.mxu0 0.0
      %1038 = vmatprep.subr.mxu0 0.0
      %1039 = vmatpush1.msra.mxu0 0.0
      %1040 = vmatprep.subr.mxu0 0.0
      %1041 = vmatpush1.msra.mxu0 0.0
      %1042 = vmatprep.subr.mxu0 0.0
      %1043 = vmatpush1.msra.mxu0 0.0
      %1044 = vmatprep.subr.mxu0 0.0
      %1045 = vmatpush1.msra.mxu0 0.0
      %1046 = vmatprep.subr.mxu0 0.0
      %1047 = vmatpush1.msra.mxu0 0.0
      %1048 = vmatprep.subr.mxu0 0.0
      %1049 = vmatpush1.msra.mxu0 0.0
      %1050 = vmatprep.subr.mxu0 0.0
      %1051 = vmatpush1.msra.mxu0 0.0
      %1052 = vmatprep.subr.mxu0 0.0
      %1053 = vmatpush1.msra.mxu0 0.0
      %1054 = vmatprep.subr.mxu0 0.0
      %1055 = vmatpush1.msra.mxu0 0.0
      %1056 = vmatprep.subr.mxu0 0.0
      %1057 = vmatpush1.msra.mxu0 0.0
      %1058 = vmatprep.subr.mxu0 0.0
      %1059 = vmatpush1.msra.mxu0 0.0
      %1060 = vmatprep.subr.mxu0 0.0
      %1061 = vmatpush1.msra.mxu0 0.0
      %1062 = vmatprep.subr.mxu0 0.0
      %1063 = vmatpush1.msra.mxu0 0.0
      %1064 = vmatprep.subr.mxu0 0.0
      %1065 = vmatpush1.msra.mxu0 0.0
      %1066 = vmatprep.mubr.f32.mxu0 0.0
      %1067 = vmatmul.mubr.f32.gmra.mrb[0].mxu0 %v1000
      %v1068 = vpop.f32.mrb[0].mxu0
      %v1069 = vadd.f32 %v996, %v1068
      %v1070 = vpop.f32.mrb[0].mxu0
      %1071 = vdwg.mxu0
      %s1072 = scalar_lea.vmem %s2, 16
      %v1073 = vld [vmem:[%s1072] sm:$0xff]
      %1074 = vrot.lane.b32.xlu0 %v588, 112
      %v1075 = vpop.permute.xlu0 %1074
      %1076 = vrot.lane.b32.xlu0 %v588, 80
      %v1077 = vpop.permute.xlu0 %1076
      %v1078 = vsel %vm595, %v1075, 0
      %v1080 = vsel %vm595, %v1077, 0
      %1082 = vmatprep.subr.mxu0 0.0
      %1083 = vmatpush1.xpose.msra.mxu0 %v1080
      %1084 = vmatprep.subr.mxu0 0.0
      %1085 = vmatpush1.xpose.msra.mxu0 0.0
      %1086 = vmatprep.subr.mxu0 0.0
      %1087 = vmatpush1.xpose.msra.mxu0 0.0
      %1088 = vmatprep.subr.mxu0 0.0
      %1089 = vmatpush1.xpose.msra.mxu0 0.0
      %1090 = vmatprep.subr.mxu0 0.0
      %1091 = vmatpush1.xpose.msra.mxu0 0.0
      %1092 = vmatprep.subr.mxu0 0.0
      %1093 = vmatpush1.xpose.msra.mxu0 0.0
      %1094 = vmatprep.subr.mxu0 0.0
      %1095 = vmatpush1.xpose.msra.mxu0 0.0
      %1096 = vmatprep.subr.mxu0 0.0
      %1097 = vmatpush1.xpose.msra.mxu0 0.0
      %1098 = vmatprep.subr.mxu0 0.0
      %1099 = vmatpush1.xpose.msra.mxu0 0.0
      %1100 = vmatprep.subr.mxu0 0.0
      %1101 = vmatpush1.xpose.msra.mxu0 0.0
      %1102 = vmatprep.subr.mxu0 0.0
      %1103 = vmatpush1.xpose.msra.mxu0 0.0
      %1104 = vmatprep.subr.mxu0 0.0
      %1105 = vmatpush1.xpose.msra.mxu0 0.0
      %1106 = vmatprep.subr.mxu0 0.0
      %1107 = vmatpush1.xpose.msra.mxu0 0.0
      %1108 = vmatprep.subr.mxu0 0.0
      %1109 = vmatpush1.xpose.msra.mxu0 0.0
      %1110 = vmatprep.subr.mxu0 0.0
      %1111 = vmatpush1.xpose.msra.mxu0 0.0
      %1112 = vmatprep.subr.mxu0 0.0
      %1113 = vmatpush1.xpose.msra.mxu0 0.0
      %1114 = vmatprep.subr.mxu0 0.0
      %1115 = vmatpush1.xpose.msra.mxu0 0.0
      %1116 = vmatprep.subr.mxu0 0.0
      %1117 = vmatpush1.xpose.msra.mxu0 0.0
      %1118 = vmatprep.subr.mxu0 0.0
      %1119 = vmatpush1.xpose.msra.mxu0 0.0
      %1120 = vmatprep.subr.mxu0 0.0
      %1121 = vmatpush1.xpose.msra.mxu0 0.0
      %1122 = vmatprep.subr.mxu0 0.0
      %1123 = vmatpush1.xpose.msra.mxu0 0.0
      %1124 = vmatprep.subr.mxu0 0.0
      %1125 = vmatpush1.xpose.msra.mxu0 0.0
      %1126 = vmatprep.subr.mxu0 0.0
      %1127 = vmatpush1.xpose.msra.mxu0 0.0
      %1128 = vmatprep.subr.mxu0 0.0
      %1129 = vmatpush1.xpose.msra.mxu0 0.0
      %1130 = vmatprep.subr.mxu0 0.0
      %1131 = vmatpush1.xpose.msra.mxu0 0.0
      %1132 = vmatprep.subr.mxu0 0.0
      %1133 = vmatpush1.xpose.msra.mxu0 0.0
      %1134 = vmatprep.subr.mxu0 0.0
      %1135 = vmatpush1.xpose.msra.mxu0 0.0
      %1136 = vmatprep.subr.mxu0 0.0
      %1137 = vmatpush1.xpose.msra.mxu0 0.0
      %1138 = vmatprep.subr.mxu0 0.0
      %1139 = vmatpush1.xpose.msra.mxu0 0.0
      %1140 = vmatprep.subr.mxu0 0.0
      %1141 = vmatpush1.xpose.msra.mxu0 0.0
      %1142 = vmatprep.subr.mxu0 0.0
      %1143 = vmatpush1.xpose.msra.mxu0 0.0
      %1144 = vmatprep.subr.mxu0 0.0
      %1145 = vmatpush1.xpose.msra.mxu0 0.0
      %1146 = vmatprep.mubr.f32.mxu0 0.0
      %1147 = vmatmul.mubr.f32.gmra.mrb[0].mxu0 %v1078
      %v1148 = vpop.f32.mrb[0].mxu0
      %v1149 = vadd.f32 %v1073, %v1148
      %v1150 = vpop.f32.mrb[0].mxu0
      %1151 = vdwg.mxu0
      %v1152 = vsel %vm595, %v1149, -inf
      %1153 = vmax.xlane.f32.xlu0 %v1152
      %v1154 = vpop.xlane.xlu0 %1153
      %v1155 = vsub.f32 %v1149, %v1154
      %v1156 = vmul.f32 %v1155, 1.442695
      %v1157 = vpow.pop %v1156
      %v1158 = vsel %vm595, %v1157, 0.0
      %1159 = vadd.xlane.f32.xlu0 %v1158
      %v1160 = vpop.xlane.xlu0 %1159
      %v1161 = vrcp.pop %v1160
      %v1162 = vmul.f32 %v1157, %v1161
      %1163 = vrot.lane.b32.xlu0 %v588, 48
      %v1164 = vpop.permute.xlu0 %1163
      %v1167 = vsel %vm595, %v1162, 0
      %1169 = vmatprep.subr.mxu0 0.0
      %1170 = vmatpush1.msra.mxu0 %v1164
      %1171 = vmatprep.subr.mxu0 0.0
      %1172 = vmatpush1.msra.mxu0 0.0
      %1173 = vmatprep.subr.mxu0 0.0
      %1174 = vmatpush1.msra.mxu0 0.0
      %1175 = vmatprep.subr.mxu0 0.0
      %1176 = vmatpush1.msra.mxu0 0.0
      %1177 = vmatprep.subr.mxu0 0.0
      %1178 = vmatpush1.msra.mxu0 0.0
      %1179 = vmatprep.subr.mxu0 0.0
      %1180 = vmatpush1.msra.mxu0 0.0
      %1181 = vmatprep.subr.mxu0 0.0
      %1182 = vmatpush1.msra.mxu0 0.0
      %1183 = vmatprep.subr.mxu0 0.0
      %1184 = vmatpush1.msra.mxu0 0.0
      %1185 = vmatprep.subr.mxu0 0.0
      %1186 = vmatpush1.msra.mxu0 0.0
      %1187 = vmatprep.subr.mxu0 0.0
      %1188 = vmatpush1.msra.mxu0 0.0
      %1189 = vmatprep.subr.mxu0 0.0
      %1190 = vmatpush1.msra.mxu0 0.0
      %1191 = vmatprep.subr.mxu0 0.0
      %1192 = vmatpush1.msra.mxu0 0.0
      %1193 = vmatprep.subr.mxu0 0.0
      %1194 = vmatpush1.msra.mxu0 0.0
      %1195 = vmatprep.subr.mxu0 0.0
      %1196 = vmatpush1.msra.mxu0 0.0
      %1197 = vmatprep.subr.mxu0 0.0
      %1198 = vmatpush1.msra.mxu0 0.0
      %1199 = vmatprep.subr.mxu0 0.0
      %1200 = vmatpush1.msra.mxu0 0.0
      %1201 = vmatprep.subr.mxu0 0.0
      %1202 = vmatpush1.msra.mxu0 0.0
      %1203 = vmatprep.subr.mxu0 0.0
      %1204 = vmatpush1.msra.mxu0 0.0
      %1205 = vmatprep.subr.mxu0 0.0
      %1206 = vmatpush1.msra.mxu0 0.0
      %1207 = vmatprep.subr.mxu0 0.0
      %1208 = vmatpush1.msra.mxu0 0.0
      %1209 = vmatprep.subr.mxu0 0.0
      %1210 = vmatpush1.msra.mxu0 0.0
      %1211 = vmatprep.subr.mxu0 0.0
      %1212 = vmatpush1.msra.mxu0 0.0
      %1213 = vmatprep.subr.mxu0 0.0
      %1214 = vmatpush1.msra.mxu0 0.0
      %1215 = vmatprep.subr.mxu0 0.0
      %1216 = vmatpush1.msra.mxu0 0.0
      %1217 = vmatprep.subr.mxu0 0.0
      %1218 = vmatpush1.msra.mxu0 0.0
      %1219 = vmatprep.subr.mxu0 0.0
      %1220 = vmatpush1.msra.mxu0 0.0
      %1221 = vmatprep.subr.mxu0 0.0
      %1222 = vmatpush1.msra.mxu0 0.0
      %1223 = vmatprep.subr.mxu0 0.0
      %1224 = vmatpush1.msra.mxu0 0.0
      %1225 = vmatprep.subr.mxu0 0.0
      %1226 = vmatpush1.msra.mxu0 0.0
      %1227 = vmatprep.subr.mxu0 0.0
      %1228 = vmatpush1.msra.mxu0 0.0
      %1229 = vmatprep.subr.mxu0 0.0
      %1230 = vmatpush1.msra.mxu0 0.0
      %1231 = vmatprep.subr.mxu0 0.0
      %1232 = vmatpush1.msra.mxu0 0.0
      %1233 = vmatprep.mubr.f32.mxu0 0.0
      %1234 = vmatmul.mubr.f32.gmra.mrb[0].mxu0 %v1167
      %v1235 = vpop.f32.mrb[0].mxu0
      %v1236 = vadd.f32 0.0, %v1235
      %v1237 = vpop.f32.mrb[0].mxu0
      %1238 = vdwg.mxu0
      %v1239 = vld [vmem:[%s6 + $0x10] sm:$0xff]
      %v1241 = vsel %vm595, %v1236, 0
      %1243 = vmatprep.subr.mxu0 0.0
      %1244 = vmatpush1.msra.mxu0 %v1239
      %1245 = vmatprep.subr.mxu0 0.0
      %1246 = vmatpush1.msra.mxu0 0.0
      %1247 = vmatprep.subr.mxu0 0.0
      %1248 = vmatpush1.msra.mxu0 0.0
      %1249 = vmatprep.subr.mxu0 0.0
      %1250 = vmatpush1.msra.mxu0 0.0
      %1251 = vmatprep.subr.mxu0 0.0
      %1252 = vmatpush1.msra.mxu0 0.0
      %1253 = vmatprep.subr.mxu0 0.0
      %1254 = vmatpush1.msra.mxu0 0.0
      %1255 = vmatprep.subr.mxu0 0.0
      %1256 = vmatpush1.msra.mxu0 0.0
      %1257 = vmatprep.subr.mxu0 0.0
      %1258 = vmatpush1.msra.mxu0 0.0
      %1259 = vmatprep.subr.mxu0 0.0
      %1260 = vmatpush1.msra.mxu0 0.0
      %1261 = vmatprep.subr.mxu0 0.0
      %1262 = vmatpush1.msra.mxu0 0.0
      %1263 = vmatprep.subr.mxu0 0.0
      %1264 = vmatpush1.msra.mxu0 0.0
      %1265 = vmatprep.subr.mxu0 0.0
      %1266 = vmatpush1.msra.mxu0 0.0
      %1267 = vmatprep.subr.mxu0 0.0
      %1268 = vmatpush1.msra.mxu0 0.0
      %1269 = vmatprep.subr.mxu0 0.0
      %1270 = vmatpush1.msra.mxu0 0.0
      %1271 = vmatprep.subr.mxu0 0.0
      %1272 = vmatpush1.msra.mxu0 0.0
      %1273 = vmatprep.subr.mxu0 0.0
      %1274 = vmatpush1.msra.mxu0 0.0
      %1275 = vmatprep.subr.mxu0 0.0
      %1276 = vmatpush1.msra.mxu0 0.0
      %1277 = vmatprep.subr.mxu0 0.0
      %1278 = vmatpush1.msra.mxu0 0.0
      %1279 = vmatprep.subr.mxu0 0.0
      %1280 = vmatpush1.msra.mxu0 0.0
      %1281 = vmatprep.subr.mxu0 0.0
      %1282 = vmatpush1.msra.mxu0 0.0
      %1283 = vmatprep.subr.mxu0 0.0
      %1284 = vmatpush1.msra.mxu0 0.0
      %1285 = vmatprep.subr.mxu0 0.0
      %1286 = vmatpush1.msra.mxu0 0.0
      %1287 = vmatprep.subr.mxu0 0.0
      %1288 = vmatpush1.msra.mxu0 0.0
      %1289 = vmatprep.subr.mxu0 0.0
      %1290 = vmatpush1.msra.mxu0 0.0
      %1291 = vmatprep.subr.mxu0 0.0
      %1292 = vmatpush1.msra.mxu0 0.0
      %1293 = vmatprep.subr.mxu0 0.0
      %1294 = vmatpush1.msra.mxu0 0.0
      %1295 = vmatprep.subr.mxu0 0.0
      %1296 = vmatpush1.msra.mxu0 0.0
      %1297 = vmatprep.subr.mxu0 0.0
      %1298 = vmatpush1.msra.mxu0 0.0
      %1299 = vmatprep.subr.mxu0 0.0
      %1300 = vmatpush1.msra.mxu0 0.0
      %1301 = vmatprep.subr.mxu0 0.0
      %1302 = vmatpush1.msra.mxu0 0.0
      %1303 = vmatprep.subr.mxu0 0.0
      %1304 = vmatpush1.msra.mxu0 0.0
      %1305 = vmatprep.subr.mxu0 0.0
      %1306 = vmatpush1.msra.mxu0 0.0
      %1307 = vmatprep.mubr.f32.mxu0 0.0
      %1308 = vmatmul.mubr.f32.gmra.mrb[0].mxu0 %v1241
      %v1309 = vpop.f32.mrb[0].mxu0
      %v1310 = vadd.f32 0.0, %v1309
      %v1311 = vpop.f32.mrb[0].mxu0
      %1312 = vdwg.mxu0
      %v1313 = vadd.f32 %v1069, %v1310
      %s1314 = scalar_lea.vmem %s2, 24
      %v1315 = vld [vmem:[%s1314] sm:$0xff]
      %1316 = vrot.lane.b32.xlu0 %v588, 104
      %v1317 = vpop.permute.xlu0 %1316
      %1318 = vrot.lane.b32.xlu0 %v588, 72
      %v1319 = vpop.permute.xlu0 %1318
      %v1320 = vsel %vm595, %v1317, 0
      %v1322 = vsel %vm595, %v1319, 0
      %1324 = vmatprep.subr.mxu0 0.0
      %1325 = vmatpush1.xpose.msra.mxu0 %v1322
      %1326 = vmatprep.subr.mxu0 0.0
      %1327 = vmatpush1.xpose.msra.mxu0 0.0
      %1328 = vmatprep.subr.mxu0 0.0
      %1329 = vmatpush1.xpose.msra.mxu0 0.0
      %1330 = vmatprep.subr.mxu0 0.0
      %1331 = vmatpush1.xpose.msra.mxu0 0.0
      %1332 = vmatprep.subr.mxu0 0.0
      %1333 = vmatpush1.xpose.msra.mxu0 0.0
      %1334 = vmatprep.subr.mxu0 0.0
      %1335 = vmatpush1.xpose.msra.mxu0 0.0
      %1336 = vmatprep.subr.mxu0 0.0
      %1337 = vmatpush1.xpose.msra.mxu0 0.0
      %1338 = vmatprep.subr.mxu0 0.0
      %1339 = vmatpush1.xpose.msra.mxu0 0.0
      %1340 = vmatprep.subr.mxu0 0.0
      %1341 = vmatpush1.xpose.msra.mxu0 0.0
      %1342 = vmatprep.subr.mxu0 0.0
      %1343 = vmatpush1.xpose.msra.mxu0 0.0
      %1344 = vmatprep.subr.mxu0 0.0
      %1345 = vmatpush1.xpose.msra.mxu0 0.0
      %1346 = vmatprep.subr.mxu0 0.0
      %1347 = vmatpush1.xpose.msra.mxu0 0.0
      %1348 = vmatprep.subr.mxu0 0.0
      %1349 = vmatpush1.xpose.msra.mxu0 0.0
      %1350 = vmatprep.subr.mxu0 0.0
      %1351 = vmatpush1.xpose.msra.mxu0 0.0
      %1352 = vmatprep.subr.mxu0 0.0
      %1353 = vmatpush1.xpose.msra.mxu0 0.0
      %1354 = vmatprep.subr.mxu0 0.0
      %1355 = vmatpush1.xpose.msra.mxu0 0.0
      %1356 = vmatprep.subr.mxu0 0.0
      %1357 = vmatpush1.xpose.msra.mxu0 0.0
      %1358 = vmatprep.subr.mxu0 0.0
      %1359 = vmatpush1.xpose.msra.mxu0 0.0
      %1360 = vmatprep.subr.mxu0 0.0
      %1361 = vmatpush1.xpose.msra.mxu0 0.0
      %1362 = vmatprep.subr.mxu0 0.0
      %1363 = vmatpush1.xpose.msra.mxu0 0.0
      %1364 = vmatprep.subr.mxu0 0.0
      %1365 = vmatpush1.xpose.msra.mxu0 0.0
      %1366 = vmatprep.subr.mxu0 0.0
      %1367 = vmatpush1.xpose.msra.mxu0 0.0
      %1368 = vmatprep.subr.mxu0 0.0
      %1369 = vmatpush1.xpose.msra.mxu0 0.0
      %1370 = vmatprep.subr.mxu0 0.0
      %1371 = vmatpush1.xpose.msra.mxu0 0.0
      %1372 = vmatprep.subr.mxu0 0.0
      %1373 = vmatpush1.xpose.msra.mxu0 0.0
      %1374 = vmatprep.subr.mxu0 0.0
      %1375 = vmatpush1.xpose.msra.mxu0 0.0
      %1376 = vmatprep.subr.mxu0 0.0
      %1377 = vmatpush1.xpose.msra.mxu0 0.0
      %1378 = vmatprep.subr.mxu0 0.0
      %1379 = vmatpush1.xpose.msra.mxu0 0.0
      %1380 = vmatprep.subr.mxu0 0.0
      %1381 = vmatpush1.xpose.msra.mxu0 0.0
      %1382 = vmatprep.subr.mxu0 0.0
      %1383 = vmatpush1.xpose.msra.mxu0 0.0
      %1384 = vmatprep.subr.mxu0 0.0
      %1385 = vmatpush1.xpose.msra.mxu0 0.0
      %1386 = vmatprep.subr.mxu0 0.0
      %1387 = vmatpush1.xpose.msra.mxu0 0.0
      %1388 = vmatprep.mubr.f32.mxu0 0.0
      %1389 = vmatmul.mubr.f32.gmra.mrb[0].mxu0 %v1320
      %v1390 = vpop.f32.mrb[0].mxu0
      %v1391 = vadd.f32 %v1315, %v1390
      %v1392 = vpop.f32.mrb[0].mxu0
      %1393 = vdwg.mxu0
      %v1394 = vsel %vm595, %v1391, -inf
      %1395 = vmax.xlane.f32.xlu0 %v1394
      %v1396 = vpop.xlane.xlu0 %1395
      %v1397 = vsub.f32 %v1391, %v1396
      %v1398 = vmul.f32 %v1397, 1.442695
      %v1399 = vpow.pop %v1398
      %v1400 = vsel %vm595, %v1399, 0.0
      %1401 = vadd.xlane.f32.xlu0 %v1400
      %v1402 = vpop.xlane.xlu0 %1401
      %v1403 = vrcp.pop %v1402
      %v1404 = vmul.f32 %v1399, %v1403
      %1405 = vrot.lane.b32.xlu0 %v588, 40
      %v1406 = vpop.permute.xlu0 %1405
      %v1409 = vsel %vm595, %v1404, 0
      %1411 = vmatprep.subr.mxu0 0.0
      %1412 = vmatpush1.msra.mxu0 %v1406
      %1413 = vmatprep.subr.mxu0 0.0
      %1414 = vmatpush1.msra.mxu0 0.0
      %1415 = vmatprep.subr.mxu0 0.0
      %1416 = vmatpush1.msra.mxu0 0.0
      %1417 = vmatprep.subr.mxu0 0.0
      %1418 = vmatpush1.msra.mxu0 0.0
      %1419 = vmatprep.subr.mxu0 0.0
      %1420 = vmatpush1.msra.mxu0 0.0
      %1421 = vmatprep.subr.mxu0 0.0
      %1422 = vmatpush1.msra.mxu0 0.0
      %1423 = vmatprep.subr.mxu0 0.0
      %1424 = vmatpush1.msra.mxu0 0.0
      %1425 = vmatprep.subr.mxu0 0.0
      %1426 = vmatpush1.msra.mxu0 0.0
      %1427 = vmatprep.subr.mxu0 0.0
      %1428 = vmatpush1.msra.mxu0 0.0
      %1429 = vmatprep.subr.mxu0 0.0
      %1430 = vmatpush1.msra.mxu0 0.0
      %1431 = vmatprep.subr.mxu0 0.0
      %1432 = vmatpush1.msra.mxu0 0.0
      %1433 = vmatprep.subr.mxu0 0.0
      %1434 = vmatpush1.msra.mxu0 0.0
      %1435 = vmatprep.subr.mxu0 0.0
      %1436 = vmatpush1.msra.mxu0 0.0
      %1437 = vmatprep.subr.mxu0 0.0
      %1438 = vmatpush1.msra.mxu0 0.0
      %1439 = vmatprep.subr.mxu0 0.0
      %1440 = vmatpush1.msra.mxu0 0.0
      %1441 = vmatprep.subr.mxu0 0.0
      %1442 = vmatpush1.msra.mxu0 0.0
      %1443 = vmatprep.subr.mxu0 0.0
      %1444 = vmatpush1.msra.mxu0 0.0
      %1445 = vmatprep.subr.mxu0 0.0
      %1446 = vmatpush1.msra.mxu0 0.0
      %1447 = vmatprep.subr.mxu0 0.0
      %1448 = vmatpush1.msra.mxu0 0.0
      %1449 = vmatprep.subr.mxu0 0.0
      %1450 = vmatpush1.msra.mxu0 0.0
      %1451 = vmatprep.subr.mxu0 0.0
      %1452 = vmatpush1.msra.mxu0 0.0
      %1453 = vmatprep.subr.mxu0 0.0
      %1454 = vmatpush1.msra.mxu0 0.0
      %1455 = vmatprep.subr.mxu0 0.0
      %1456 = vmatpush1.msra.mxu0 0.0
      %1457 = vmatprep.subr.mxu0 0.0
      %1458 = vmatpush1.msra.mxu0 0.0
      %1459 = vmatprep.subr.mxu0 0.0
      %1460 = vmatpush1.msra.mxu0 0.0
      %1461 = vmatprep.subr.mxu0 0.0
      %1462 = vmatpush1.msra.mxu0 0.0
      %1463 = vmatprep.subr.mxu0 0.0
      %1464 = vmatpush1.msra.mxu0 0.0
      %1465 = vmatprep.subr.mxu0 0.0
      %1466 = vmatpush1.msra.mxu0 0.0
      %1467 = vmatprep.subr.mxu0 0.0
      %1468 = vmatpush1.msra.mxu0 0.0
      %1469 = vmatprep.subr.mxu0 0.0
      %1470 = vmatpush1.msra.mxu0 0.0
      %1471 = vmatprep.subr.mxu0 0.0
      %1472 = vmatpush1.msra.mxu0 0.0
      %1473 = vmatprep.subr.mxu0 0.0
      %1474 = vmatpush1.msra.mxu0 0.0
      %1475 = vmatprep.mubr.f32.mxu0 0.0
      %1476 = vmatmul.mubr.f32.gmra.mrb[0].mxu0 %v1409
      %v1477 = vpop.f32.mrb[0].mxu0
      %v1478 = vadd.f32 0.0, %v1477
      %v1479 = vpop.f32.mrb[0].mxu0
      %1480 = vdwg.mxu0
      %v1481 = vld [vmem:[%s6 + $0x18] sm:$0xff]
      %v1483 = vsel %vm595, %v1478, 0
      %1485 = vmatprep.subr.mxu0 0.0
      %1486 = vmatpush1.msra.mxu0 %v1481
      %1487 = vmatprep.subr.mxu0 0.0
      %1488 = vmatpush1.msra.mxu0 0.0
      %1489 = vmatprep.subr.mxu0 0.0
      %1490 = vmatpush1.msra.mxu0 0.0
      %1491 = vmatprep.subr.mxu0 0.0
      %1492 = vmatpush1.msra.mxu0 0.0
      %1493 = vmatprep.subr.mxu0 0.0
      %1494 = vmatpush1.msra.mxu0 0.0
      %1495 = vmatprep.subr.mxu0 0.0
      %1496 = vmatpush1.msra.mxu0 0.0
      %1497 = vmatprep.subr.mxu0 0.0
      %1498 = vmatpush1.msra.mxu0 0.0
      %1499 = vmatprep.subr.mxu0 0.0
      %1500 = vmatpush1.msra.mxu0 0.0
      %1501 = vmatprep.subr.mxu0 0.0
      %1502 = vmatpush1.msra.mxu0 0.0
      %1503 = vmatprep.subr.mxu0 0.0
      %1504 = vmatpush1.msra.mxu0 0.0
      %1505 = vmatprep.subr.mxu0 0.0
      %1506 = vmatpush1.msra.mxu0 0.0
      %1507 = vmatprep.subr.mxu0 0.0
      %1508 = vmatpush1.msra.mxu0 0.0
      %1509 = vmatprep.subr.mxu0 0.0
      %1510 = vmatpush1.msra.mxu0 0.0
      %1511 = vmatprep.subr.mxu0 0.0
      %1512 = vmatpush1.msra.mxu0 0.0
      %1513 = vmatprep.subr.mxu0 0.0
      %1514 = vmatpush1.msra.mxu0 0.0
      %1515 = vmatprep.subr.mxu0 0.0
      %1516 = vmatpush1.msra.mxu0 0.0
      %1517 = vmatprep.subr.mxu0 0.0
      %1518 = vmatpush1.msra.mxu0 0.0
      %1519 = vmatprep.subr.mxu0 0.0
      %1520 = vmatpush1.msra.mxu0 0.0
      %1521 = vmatprep.subr.mxu0 0.0
      %1522 = vmatpush1.msra.mxu0 0.0
      %1523 = vmatprep.subr.mxu0 0.0
      %1524 = vmatpush1.msra.mxu0 0.0
      %1525 = vmatprep.subr.mxu0 0.0
      %1526 = vmatpush1.msra.mxu0 0.0
      %1527 = vmatprep.subr.mxu0 0.0
      %1528 = vmatpush1.msra.mxu0 0.0
      %1529 = vmatprep.subr.mxu0 0.0
      %1530 = vmatpush1.msra.mxu0 0.0
      %1531 = vmatprep.subr.mxu0 0.0
      %1532 = vmatpush1.msra.mxu0 0.0
      %1533 = vmatprep.subr.mxu0 0.0
      %1534 = vmatpush1.msra.mxu0 0.0
      %1535 = vmatprep.subr.mxu0 0.0
      %1536 = vmatpush1.msra.mxu0 0.0
      %1537 = vmatprep.subr.mxu0 0.0
      %1538 = vmatpush1.msra.mxu0 0.0
      %1539 = vmatprep.subr.mxu0 0.0
      %1540 = vmatpush1.msra.mxu0 0.0
      %1541 = vmatprep.subr.mxu0 0.0
      %1542 = vmatpush1.msra.mxu0 0.0
      %1543 = vmatprep.subr.mxu0 0.0
      %1544 = vmatpush1.msra.mxu0 0.0
      %1545 = vmatprep.subr.mxu0 0.0
      %1546 = vmatpush1.msra.mxu0 0.0
      %1547 = vmatprep.subr.mxu0 0.0
      %1548 = vmatpush1.msra.mxu0 0.0
      %1549 = vmatprep.mubr.f32.mxu0 0.0
      %1550 = vmatmul.mubr.f32.gmra.mrb[0].mxu0 %v1483
      %v1551 = vpop.f32.mrb[0].mxu0
      %v1552 = vadd.f32 0.0, %v1551
      %v1553 = vpop.f32.mrb[0].mxu0
      %1554 = vdwg.mxu0
      %v1555 = vadd.f32 %v1313, %v1552
      %v1556 = vadd.f32 %v494, %v1555
      %v1557 = vld [vmem:[%s7] sm:$0x1]
      %v1558 = vmul.f32 %v1556, %v1556
      %v1559 = vsel %vm498, %v1558, 0.0
      %1560 = vadd.xlane.f32.xlu0 %v1559
      %v1561 = vpop.xlane.xlu0 %1560
      %v1562 = vmul.f32 %v1561, %v502
      %v1563 = vadd.f32 %v1562, 1e-06
      %v1564 = vrsqrt.pop %v1563
      %v1565 = vmul.f32 %v1556, %v1564
      %v1567 = vlaneseq
      %v1568 = vshrl.u32 %v1567, 7
      %v1569 = vsub.s32 0, %v1568
      %v1570 = vrot.slane %v1557, %v1569
      %v1572 = vmul.f32 %v1565, %v1570
      %v1573 = vld [vmem:[%s8] sm:$0xff]
      %v1574 = vld [vmem:[%s8 + $0x8] sm:$0xff]
      %v1575 = vld [vmem:[%s8 + $0x10] sm:$0xff]
      %v1576 = vld [vmem:[%s8 + $0x18] sm:$0xff]
      %v1578 = vsel %vm498, %v1572, 0
      %1580 = vmatprep.subr.mxu0 0.0
      %1581 = vmatpush1.msra.mxu0 %v1573
      %1582 = vmatprep.subr.mxu0 0.0
      %1583 = vmatpush1.msra.mxu0 %v1574
      %1584 = vmatprep.subr.mxu0 0.0
      %1585 = vmatpush1.msra.mxu0 %v1575
      %1586 = vmatprep.subr.mxu0 0.0
      %1587 = vmatpush1.msra.mxu0 %v1576
      %1588 = vmatprep.subr.mxu0 0.0
      %1589 = vmatpush1.msra.mxu0 0.0
      %1590 = vmatprep.subr.mxu0 0.0
      %1591 = vmatpush1.msra.mxu0 0.0
      %1592 = vmatprep.subr.mxu0 0.0
      %1593 = vmatpush1.msra.mxu0 0.0
      %1594 = vmatprep.subr.mxu0 0.0
      %1595 = vmatpush1.msra.mxu0 0.0
      %1596 = vmatprep.subr.mxu0 0.0
      %1597 = vmatpush1.msra.mxu0 0.0
      %1598 = vmatprep.subr.mxu0 0.0
      %1599 = vmatpush1.msra.mxu0 0.0
      %1600 = vmatprep.subr.mxu0 0.0
      %1601 = vmatpush1.msra.mxu0 0.0
      %1602 = vmatprep.subr.mxu0 0.0
      %1603 = vmatpush1.msra.mxu0 0.0
      %1604 = vmatprep.subr.mxu0 0.0
      %1605 = vmatpush1.msra.mxu0 0.0
      %1606 = vmatprep.subr.mxu0 0.0
      %1607 = vmatpush1.msra.mxu0 0.0
      %1608 = vmatprep.subr.mxu0 0.0
      %1609 = vmatpush1.msra.mxu0 0.0
      %1610 = vmatprep.subr.mxu0 0.0
      %1611 = vmatpush1.msra.mxu0 0.0
      %1612 = vmatprep.subr.mxu0 0.0
      %1613 = vmatpush1.msra.mxu0 0.0
      %1614 = vmatprep.subr.mxu0 0.0
      %1615 = vmatpush1.msra.mxu0 0.0
      %1616 = vmatprep.subr.mxu0 0.0
      %1617 = vmatpush1.msra.mxu0 0.0
      %1618 = vmatprep.subr.mxu0 0.0
      %1619 = vmatpush1.msra.mxu0 0.0
      %1620 = vmatprep.subr.mxu0 0.0
      %1621 = vmatpush1.msra.mxu0 0.0
      %1622 = vmatprep.subr.mxu0 0.0
      %1623 = vmatpush1.msra.mxu0 0.0
      %1624 = vmatprep.subr.mxu0 0.0
      %1625 = vmatpush1.msra.mxu0 0.0
      %1626 = vmatprep.subr.mxu0 0.0
      %1627 = vmatpush1.msra.mxu0 0.0
      %1628 = vmatprep.subr.mxu0 0.0
      %1629 = vmatpush1.msra.mxu0 0.0
      %1630 = vmatprep.subr.mxu0 0.0
      %1631 = vmatpush1.msra.mxu0 0.0
      %1632 = vmatprep.subr.mxu0 0.0
      %1633 = vmatpush1.msra.mxu0 0.0
      %1634 = vmatprep.subr.mxu0 0.0
      %1635 = vmatpush1.msra.mxu0 0.0
      %1636 = vmatprep.subr.mxu0 0.0
      %1637 = vmatpush1.msra.mxu0 0.0
      %1638 = vmatprep.subr.mxu0 0.0
      %1639 = vmatpush1.msra.mxu0 0.0
      %1640 = vmatprep.subr.mxu0 0.0
      %1641 = vmatpush1.msra.mxu0 0.0
      %1642 = vmatprep.subr.mxu0 0.0
      %1643 = vmatpush1.msra.mxu0 0.0
      %1644 = vmatprep.mubr.f32.mxu0 0.0
      %1645 = vmatmul.mubr.f32.gmra.mrb[0].mxu0 %v1578
      %v1646 = vpop.f32.mrb[0].mxu0
      %v1647 = vadd.f32 0.0, %v1646
      %v1648 = vpop.f32.mrb[0].mxu0
      %1649 = vdwg.mxu0
      %v1650 = vld [vmem:[%s9] sm:$0xff]
      %v1651 = vld [vmem:[%s9 + $0x8] sm:$0xff]
      %v1652 = vld [vmem:[%s9 + $0x10] sm:$0xff]
      %v1653 = vld [vmem:[%s9 + $0x18] sm:$0xff]
      %v1655 = vsel %vm498, %v495, 0
      %1657 = vmatprep.subr.mxu0 0.0
      %1658 = vmatpush1.msra.mxu0 %v1650
      %1659 = vmatprep.subr.mxu0 0.0
      %1660 = vmatpush1.msra.mxu0 %v1651
      %1661 = vmatprep.subr.mxu0 0.0
      %1662 = vmatpush1.msra.mxu0 %v1652
      %1663 = vmatprep.subr.mxu0 0.0
      %1664 = vmatpush1.msra.mxu0 %v1653
      %1665 = vmatprep.subr.mxu0 0.0
      %1666 = vmatpush1.msra.mxu0 0.0
      %1667 = vmatprep.subr.mxu0 0.0
      %1668 = vmatpush1.msra.mxu0 0.0
      %1669 = vmatprep.subr.mxu0 0.0
      %1670 = vmatpush1.msra.mxu0 0.0
      %1671 = vmatprep.subr.mxu0 0.0
      %1672 = vmatpush1.msra.mxu0 0.0
      %1673 = vmatprep.subr.mxu0 0.0
      %1674 = vmatpush1.msra.mxu0 0.0
      %1675 = vmatprep.subr.mxu0 0.0
      %1676 = vmatpush1.msra.mxu0 0.0
      %1677 = vmatprep.subr.mxu0 0.0
      %1678 = vmatpush1.msra.mxu0 0.0
      %1679 = vmatprep.subr.mxu0 0.0
      %1680 = vmatpush1.msra.mxu0 0.0
      %1681 = vmatprep.subr.mxu0 0.0
      %1682 = vmatpush1.msra.mxu0 0.0
      %1683 = vmatprep.subr.mxu0 0.0
      %1684 = vmatpush1.msra.mxu0 0.0
      %1685 = vmatprep.subr.mxu0 0.0
      %1686 = vmatpush1.msra.mxu0 0.0
      %1687 = vmatprep.subr.mxu0 0.0
      %1688 = vmatpush1.msra.mxu0 0.0
      %1689 = vmatprep.subr.mxu0 0.0
      %1690 = vmatpush1.msra.mxu0 0.0
      %1691 = vmatprep.subr.mxu0 0.0
      %1692 = vmatpush1.msra.mxu0 0.0
      %1693 = vmatprep.subr.mxu0 0.0
      %1694 = vmatpush1.msra.mxu0 0.0
      %1695 = vmatprep.subr.mxu0 0.0
      %1696 = vmatpush1.msra.mxu0 0.0
      %1697 = vmatprep.subr.mxu0 0.0
      %1698 = vmatpush1.msra.mxu0 0.0
      %1699 = vmatprep.subr.mxu0 0.0
      %1700 = vmatpush1.msra.mxu0 0.0
      %1701 = vmatprep.subr.mxu0 0.0
      %1702 = vmatpush1.msra.mxu0 0.0
      %1703 = vmatprep.subr.mxu0 0.0
      %1704 = vmatpush1.msra.mxu0 0.0
      %1705 = vmatprep.subr.mxu0 0.0
      %1706 = vmatpush1.msra.mxu0 0.0
      %1707 = vmatprep.subr.mxu0 0.0
      %1708 = vmatpush1.msra.mxu0 0.0
      %1709 = vmatprep.subr.mxu0 0.0
      %1710 = vmatpush1.msra.mxu0 0.0
      %1711 = vmatprep.subr.mxu0 0.0
      %1712 = vmatpush1.msra.mxu0 0.0
      %1713 = vmatprep.subr.mxu0 0.0
      %1714 = vmatpush1.msra.mxu0 0.0
      %1715 = vmatprep.subr.mxu0 0.0
      %1716 = vmatpush1.msra.mxu0 0.0
      %1717 = vmatprep.subr.mxu0 0.0
      %1718 = vmatpush1.msra.mxu0 0.0
      %1719 = vmatprep.subr.mxu0 0.0
      %1720 = vmatpush1.msra.mxu0 0.0
      %1721 = vmatprep.mubr.f32.mxu0 0.0
      %1722 = vmatmul.mubr.f32.gmra.mrb[0].mxu0 %v1655
      %v1723 = vpop.f32.mrb[0].mxu0
      %v1724 = vadd.f32 0.0, %v1723
      %v1725 = vpop.f32.mrb[0].mxu0
      %1726 = vdwg.mxu0
      %v1727 = vld [vmem:[%s489] sm:$0x1]
      %v1729 = vlaneseq
      %v1730 = vshrl.u32 %v1729, 7
      %v1731 = vsub.s32 0, %v1730
      %v1732 = vrot.slane %v1727, %v1731
      %v1735 = vsel %vm595, %v1647, 0
      %v1738 = vsel %vm595, %v1724, 0
      %1740 = vmatprep.subr.mxu0 0.0
      %1741 = vmatpush1.xpose.msra.mxu0 %v1738
      %1742 = vmatprep.subr.mxu0 0.0
      %1743 = vmatpush1.xpose.msra.mxu0 0.0
      %1744 = vmatprep.subr.mxu0 0.0
      %1745 = vmatpush1.xpose.msra.mxu0 0.0
      %1746 = vmatprep.subr.mxu0 0.0
      %1747 = vmatpush1.xpose.msra.mxu0 0.0
      %1748 = vmatprep.subr.mxu0 0.0
      %1749 = vmatpush1.xpose.msra.mxu0 0.0
      %1750 = vmatprep.subr.mxu0 0.0
      %1751 = vmatpush1.xpose.msra.mxu0 0.0
      %1752 = vmatprep.subr.mxu0 0.0
      %1753 = vmatpush1.xpose.msra.mxu0 0.0
      %1754 = vmatprep.subr.mxu0 0.0
      %1755 = vmatpush1.xpose.msra.mxu0 0.0
      %1756 = vmatprep.subr.mxu0 0.0
      %1757 = vmatpush1.xpose.msra.mxu0 0.0
      %1758 = vmatprep.subr.mxu0 0.0
      %1759 = vmatpush1.xpose.msra.mxu0 0.0
      %1760 = vmatprep.subr.mxu0 0.0
      %1761 = vmatpush1.xpose.msra.mxu0 0.0
      %1762 = vmatprep.subr.mxu0 0.0
      %1763 = vmatpush1.xpose.msra.mxu0 0.0
      %1764 = vmatprep.subr.mxu0 0.0
      %1765 = vmatpush1.xpose.msra.mxu0 0.0
      %1766 = vmatprep.subr.mxu0 0.0
      %1767 = vmatpush1.xpose.msra.mxu0 0.0
      %1768 = vmatprep.subr.mxu0 0.0
      %1769 = vmatpush1.xpose.msra.mxu0 0.0
      %1770 = vmatprep.subr.mxu0 0.0
      %1771 = vmatpush1.xpose.msra.mxu0 0.0
      %1772 = vmatprep.subr.mxu0 0.0
      %1773 = vmatpush1.xpose.msra.mxu0 0.0
      %1774 = vmatprep.subr.mxu0 0.0
      %1775 = vmatpush1.xpose.msra.mxu0 0.0
      %1776 = vmatprep.subr.mxu0 0.0
      %1777 = vmatpush1.xpose.msra.mxu0 0.0
      %1778 = vmatprep.subr.mxu0 0.0
      %1779 = vmatpush1.xpose.msra.mxu0 0.0
      %1780 = vmatprep.subr.mxu0 0.0
      %1781 = vmatpush1.xpose.msra.mxu0 0.0
      %1782 = vmatprep.subr.mxu0 0.0
      %1783 = vmatpush1.xpose.msra.mxu0 0.0
      %1784 = vmatprep.subr.mxu0 0.0
      %1785 = vmatpush1.xpose.msra.mxu0 0.0
      %1786 = vmatprep.subr.mxu0 0.0
      %1787 = vmatpush1.xpose.msra.mxu0 0.0
      %1788 = vmatprep.subr.mxu0 0.0
      %1789 = vmatpush1.xpose.msra.mxu0 0.0
      %1790 = vmatprep.subr.mxu0 0.0
      %1791 = vmatpush1.xpose.msra.mxu0 0.0
      %1792 = vmatprep.subr.mxu0 0.0
      %1793 = vmatpush1.xpose.msra.mxu0 0.0
      %1794 = vmatprep.subr.mxu0 0.0
      %1795 = vmatpush1.xpose.msra.mxu0 0.0
      %1796 = vmatprep.subr.mxu0 0.0
      %1797 = vmatpush1.xpose.msra.mxu0 0.0
      %1798 = vmatprep.subr.mxu0 0.0
      %1799 = vmatpush1.xpose.msra.mxu0 0.0
      %1800 = vmatprep.subr.mxu0 0.0
      %1801 = vmatpush1.xpose.msra.mxu0 0.0
      %1802 = vmatprep.subr.mxu0 0.0
      %1803 = vmatpush1.xpose.msra.mxu0 0.0
      %1804 = vmatprep.mubr.f32.mxu0 0.0
      %1805 = vmatmul.mubr.f32.gmra.mrb[0].mxu0 %v1735
      %v1806 = vpop.f32.mrb[0].mxu0
      %v1807 = vadd.f32 %v1732, %v1806
      %v1808 = vpop.f32.mrb[0].mxu0
      %1809 = vdwg.mxu0
      %v1810 = vsel %vm595, %v1807, -inf
      %1811 = vmax.xlane.f32.xlu0 %v1810
      %v1812 = vpop.xlane.xlu0 %1811
      %v1813 = vsub.f32 %v1807, %v1812
      %v1814 = vmul.f32 %v1813, 1.442695
      %v1815 = vpow.pop %v1814
      %v1816 = vsel %vm595, %v1815, 0.0
      %1817 = vadd.xlane.f32.xlu0 %v1816
      %v1818 = vpop.xlane.xlu0 %1817
      %v1819 = vrcp.pop %v1818
      %v1820 = vmul.f32 %v1815, %v1819
      %1821 = vrot.lane.b32.xlu0 %v1724, 96
      %v1822 = vpop.permute.xlu0 %1821
      %v1825 = vsel %vm595, %v1820, 0
      %1827 = vmatprep.subr.mxu0 0.0
      %1828 = vmatpush1.msra.mxu0 %v1822
      %1829 = vmatprep.subr.mxu0 0.0
      %1830 = vmatpush1.msra.mxu0 0.0
      %1831 = vmatprep.subr.mxu0 0.0
      %1832 = vmatpush1.msra.mxu0 0.0
      %1833 = vmatprep.subr.mxu0 0.0
      %1834 = vmatpush1.msra.mxu0 0.0
      %1835 = vmatprep.subr.mxu0 0.0
      %1836 = vmatpush1.msra.mxu0 0.0
      %1837 = vmatprep.subr.mxu0 0.0
      %1838 = vmatpush1.msra.mxu0 0.0
      %1839 = vmatprep.subr.mxu0 0.0
      %1840 = vmatpush1.msra.mxu0 0.0
      %1841 = vmatprep.subr.mxu0 0.0
      %1842 = vmatpush1.msra.mxu0 0.0
      %1843 = vmatprep.subr.mxu0 0.0
      %1844 = vmatpush1.msra.mxu0 0.0
      %1845 = vmatprep.subr.mxu0 0.0
      %1846 = vmatpush1.msra.mxu0 0.0
      %1847 = vmatprep.subr.mxu0 0.0
      %1848 = vmatpush1.msra.mxu0 0.0
      %1849 = vmatprep.subr.mxu0 0.0
      %1850 = vmatpush1.msra.mxu0 0.0
      %1851 = vmatprep.subr.mxu0 0.0
      %1852 = vmatpush1.msra.mxu0 0.0
      %1853 = vmatprep.subr.mxu0 0.0
      %1854 = vmatpush1.msra.mxu0 0.0
      %1855 = vmatprep.subr.mxu0 0.0
      %1856 = vmatpush1.msra.mxu0 0.0
      %1857 = vmatprep.subr.mxu0 0.0
      %1858 = vmatpush1.msra.mxu0 0.0
      %1859 = vmatprep.subr.mxu0 0.0
      %1860 = vmatpush1.msra.mxu0 0.0
      %1861 = vmatprep.subr.mxu0 0.0
      %1862 = vmatpush1.msra.mxu0 0.0
      %1863 = vmatprep.subr.mxu0 0.0
      %1864 = vmatpush1.msra.mxu0 0.0
      %1865 = vmatprep.subr.mxu0 0.0
      %1866 = vmatpush1.msra.mxu0 0.0
      %1867 = vmatprep.subr.mxu0 0.0
      %1868 = vmatpush1.msra.mxu0 0.0
      %1869 = vmatprep.subr.mxu0 0.0
      %1870 = vmatpush1.msra.mxu0 0.0
      %1871 = vmatprep.subr.mxu0 0.0
      %1872 = vmatpush1.msra.mxu0 0.0
      %1873 = vmatprep.subr.mxu0 0.0
      %1874 = vmatpush1.msra.mxu0 0.0
      %1875 = vmatprep.subr.mxu0 0.0
      %1876 = vmatpush1.msra.mxu0 0.0
      %1877 = vmatprep.subr.mxu0 0.0
      %1878 = vmatpush1.msra.mxu0 0.0
      %1879 = vmatprep.subr.mxu0 0.0
      %1880 = vmatpush1.msra.mxu0 0.0
      %1881 = vmatprep.subr.mxu0 0.0
      %1882 = vmatpush1.msra.mxu0 0.0
      %1883 = vmatprep.subr.mxu0 0.0
      %1884 = vmatpush1.msra.mxu0 0.0
      %1885 = vmatprep.subr.mxu0 0.0
      %1886 = vmatpush1.msra.mxu0 0.0
      %1887 = vmatprep.subr.mxu0 0.0
      %1888 = vmatpush1.msra.mxu0 0.0
      %1889 = vmatprep.subr.mxu0 0.0
      %1890 = vmatpush1.msra.mxu0 0.0
      %1891 = vmatprep.mubr.f32.mxu0 0.0
      %1892 = vmatmul.mubr.f32.gmra.mrb[0].mxu0 %v1825
      %v1893 = vpop.f32.mrb[0].mxu0
      %v1894 = vadd.f32 0.0, %v1893
      %v1895 = vpop.f32.mrb[0].mxu0
      %1896 = vdwg.mxu0
      %v1897 = vld [vmem:[%s10] sm:$0xff]
      %1898 = vrot.lane.b32.xlu0 %v1647, 120
      %v1899 = vpop.permute.xlu0 %1898
      %1900 = vrot.lane.b32.xlu0 %v1724, 120
      %v1901 = vpop.permute.xlu0 %1900
      %v1902 = vsel %vm595, %v1899, 0
      %v1904 = vsel %vm595, %v1901, 0
      %1906 = vmatprep.subr.mxu0 0.0
      %1907 = vmatpush1.xpose.msra.mxu0 %v1904
      %1908 = vmatprep.subr.mxu0 0.0
      %1909 = vmatpush1.xpose.msra.mxu0 0.0
      %1910 = vmatprep.subr.mxu0 0.0
      %1911 = vmatpush1.xpose.msra.mxu0 0.0
      %1912 = vmatprep.subr.mxu0 0.0
      %1913 = vmatpush1.xpose.msra.mxu0 0.0
      %1914 = vmatprep.subr.mxu0 0.0
      %1915 = vmatpush1.xpose.msra.mxu0 0.0
      %1916 = vmatprep.subr.mxu0 0.0
      %1917 = vmatpush1.xpose.msra.mxu0 0.0
      %1918 = vmatprep.subr.mxu0 0.0
      %1919 = vmatpush1.xpose.msra.mxu0 0.0
      %1920 = vmatprep.subr.mxu0 0.0
      %1921 = vmatpush1.xpose.msra.mxu0 0.0
      %1922 = vmatprep.subr.mxu0 0.0
      %1923 = vmatpush1.xpose.msra.mxu0 0.0
      %1924 = vmatprep.subr.mxu0 0.0
      %1925 = vmatpush1.xpose.msra.mxu0 0.0
      %1926 = vmatprep.subr.mxu0 0.0
      %1927 = vmatpush1.xpose.msra.mxu0 0.0
      %1928 = vmatprep.subr.mxu0 0.0
      %1929 = vmatpush1.xpose.msra.mxu0 0.0
      %1930 = vmatprep.subr.mxu0 0.0
      %1931 = vmatpush1.xpose.msra.mxu0 0.0
      %1932 = vmatprep.subr.mxu0 0.0
      %1933 = vmatpush1.xpose.msra.mxu0 0.0
      %1934 = vmatprep.subr.mxu0 0.0
      %1935 = vmatpush1.xpose.msra.mxu0 0.0
      %1936 = vmatprep.subr.mxu0 0.0
      %1937 = vmatpush1.xpose.msra.mxu0 0.0
      %1938 = vmatprep.subr.mxu0 0.0
      %1939 = vmatpush1.xpose.msra.mxu0 0.0
      %1940 = vmatprep.subr.mxu0 0.0
      %1941 = vmatpush1.xpose.msra.mxu0 0.0
      %1942 = vmatprep.subr.mxu0 0.0
      %1943 = vmatpush1.xpose.msra.mxu0 0.0
      %1944 = vmatprep.subr.mxu0 0.0
      %1945 = vmatpush1.xpose.msra.mxu0 0.0
      %1946 = vmatprep.subr.mxu0 0.0
      %1947 = vmatpush1.xpose.msra.mxu0 0.0
      %1948 = vmatprep.subr.mxu0 0.0
      %1949 = vmatpush1.xpose.msra.mxu0 0.0
      %1950 = vmatprep.subr.mxu0 0.0
      %1951 = vmatpush1.xpose.msra.mxu0 0.0
      %1952 = vmatprep.subr.mxu0 0.0
      %1953 = vmatpush1.xpose.msra.mxu0 0.0
      %1954 = vmatprep.subr.mxu0 0.0
      %1955 = vmatpush1.xpose.msra.mxu0 0.0
      %1956 = vmatprep.subr.mxu0 0.0
      %1957 = vmatpush1.xpose.msra.mxu0 0.0
      %1958 = vmatprep.subr.mxu0 0.0
      %1959 = vmatpush1.xpose.msra.mxu0 0.0
      %1960 = vmatprep.subr.mxu0 0.0
      %1961 = vmatpush1.xpose.msra.mxu0 0.0
      %1962 = vmatprep.subr.mxu0 0.0
      %1963 = vmatpush1.xpose.msra.mxu0 0.0
      %1964 = vmatprep.subr.mxu0 0.0
      %1965 = vmatpush1.xpose.msra.mxu0 0.0
      %1966 = vmatprep.subr.mxu0 0.0
      %1967 = vmatpush1.xpose.msra.mxu0 0.0
      %1968 = vmatprep.subr.mxu0 0.0
      %1969 = vmatpush1.xpose.msra.mxu0 0.0
      %1970 = vmatprep.mubr.f32.mxu0 0.0
      %1971 = vmatmul.mubr.f32.gmra.mrb[0].mxu0 %v1902
      %v1972 = vpop.f32.mrb[0].mxu0
      %v1973 = vadd.f32 %v1732, %v1972
      %v1974 = vpop.f32.mrb[0].mxu0
      %1975 = vdwg.mxu0
      %v1976 = vsel %vm595, %v1973, -inf
      %1977 = vmax.xlane.f32.xlu0 %v1976
      %v1978 = vpop.xlane.xlu0 %1977
      %v1979 = vsub.f32 %v1973, %v1978
      %v1980 = vmul.f32 %v1979, 1.442695
      %v1981 = vpow.pop %v1980
      %v1982 = vsel %vm595, %v1981, 0.0
      %1983 = vadd.xlane.f32.xlu0 %v1982
      %v1984 = vpop.xlane.xlu0 %1983
      %v1985 = vrcp.pop %v1984
      %v1986 = vmul.f32 %v1981, %v1985
      %1987 = vrot.lane.b32.xlu0 %v1724, 88
      %v1988 = vpop.permute.xlu0 %1987
      %v1991 = vsel %vm595, %v1986, 0
      %1993 = vmatprep.subr.mxu0 0.0
      %1994 = vmatpush1.msra.mxu0 %v1988
      %1995 = vmatprep.subr.mxu0 0.0
      %1996 = vmatpush1.msra.mxu0 0.0
      %1997 = vmatprep.subr.mxu0 0.0
      %1998 = vmatpush1.msra.mxu0 0.0
      %1999 = vmatprep.subr.mxu0 0.0
      %2000 = vmatpush1.msra.mxu0 0.0
      %2001 = vmatprep.subr.mxu0 0.0
      %2002 = vmatpush1.msra.mxu0 0.0
      %2003 = vmatprep.subr.mxu0 0.0
      %2004 = vmatpush1.msra.mxu0 0.0
      %2005 = vmatprep.subr.mxu0 0.0
      %2006 = vmatpush1.msra.mxu0 0.0
      %2007 = vmatprep.subr.mxu0 0.0
      %2008 = vmatpush1.msra.mxu0 0.0
      %2009 = vmatprep.subr.mxu0 0.0
      %2010 = vmatpush1.msra.mxu0 0.0
      %2011 = vmatprep.subr.mxu0 0.0
      %2012 = vmatpush1.msra.mxu0 0.0
      %2013 = vmatprep.subr.mxu0 0.0
      %2014 = vmatpush1.msra.mxu0 0.0
      %2015 = vmatprep.subr.mxu0 0.0
      %2016 = vmatpush1.msra.mxu0 0.0
      %2017 = vmatprep.subr.mxu0 0.0
      %2018 = vmatpush1.msra.mxu0 0.0
      %2019 = vmatprep.subr.mxu0 0.0
      %2020 = vmatpush1.msra.mxu0 0.0
      %2021 = vmatprep.subr.mxu0 0.0
      %2022 = vmatpush1.msra.mxu0 0.0
      %2023 = vmatprep.subr.mxu0 0.0
      %2024 = vmatpush1.msra.mxu0 0.0
      %2025 = vmatprep.subr.mxu0 0.0
      %2026 = vmatpush1.msra.mxu0 0.0
      %2027 = vmatprep.subr.mxu0 0.0
      %2028 = vmatpush1.msra.mxu0 0.0
      %2029 = vmatprep.subr.mxu0 0.0
      %2030 = vmatpush1.msra.mxu0 0.0
      %2031 = vmatprep.subr.mxu0 0.0
      %2032 = vmatpush1.msra.mxu0 0.0
      %2033 = vmatprep.subr.mxu0 0.0
      %2034 = vmatpush1.msra.mxu0 0.0
      %2035 = vmatprep.subr.mxu0 0.0
      %2036 = vmatpush1.msra.mxu0 0.0
      %2037 = vmatprep.subr.mxu0 0.0
      %2038 = vmatpush1.msra.mxu0 0.0
      %2039 = vmatprep.subr.mxu0 0.0
      %2040 = vmatpush1.msra.mxu0 0.0
      %2041 = vmatprep.subr.mxu0 0.0
      %2042 = vmatpush1.msra.mxu0 0.0
      %2043 = vmatprep.subr.mxu0 0.0
      %2044 = vmatpush1.msra.mxu0 0.0
      %2045 = vmatprep.subr.mxu0 0.0
      %2046 = vmatpush1.msra.mxu0 0.0
      %2047 = vmatprep.subr.mxu0 0.0
      %2048 = vmatpush1.msra.mxu0 0.0
      %2049 = vmatprep.subr.mxu0 0.0
      %2050 = vmatpush1.msra.mxu0 0.0
      %2051 = vmatprep.subr.mxu0 0.0
      %2052 = vmatpush1.msra.mxu0 0.0
      %2053 = vmatprep.subr.mxu0 0.0
      %2054 = vmatpush1.msra.mxu0 0.0
      %2055 = vmatprep.subr.mxu0 0.0
      %2056 = vmatpush1.msra.mxu0 0.0
      %2057 = vmatprep.mubr.f32.mxu0 0.0
      %2058 = vmatmul.mubr.f32.gmra.mrb[0].mxu0 %v1991
      %v2059 = vpop.f32.mrb[0].mxu0
      %v2060 = vadd.f32 0.0, %v2059
      %v2061 = vpop.f32.mrb[0].mxu0
      %2062 = vdwg.mxu0
      %v2063 = vld [vmem:[%s10 + $0x8] sm:$0xff]
      %v2065 = vsel %vm595, %v2060, 0
      %2067 = vmatprep.subr.mxu0 0.0
      %2068 = vmatpush1.msra.mxu0 %v2063
      %2069 = vmatprep.subr.mxu0 0.0
      %2070 = vmatpush1.msra.mxu0 0.0
      %2071 = vmatprep.subr.mxu0 0.0
      %2072 = vmatpush1.msra.mxu0 0.0
      %2073 = vmatprep.subr.mxu0 0.0
      %2074 = vmatpush1.msra.mxu0 0.0
      %2075 = vmatprep.subr.mxu0 0.0
      %2076 = vmatpush1.msra.mxu0 0.0
      %2077 = vmatprep.subr.mxu0 0.0
      %2078 = vmatpush1.msra.mxu0 0.0
      %2079 = vmatprep.subr.mxu0 0.0
      %2080 = vmatpush1.msra.mxu0 0.0
      %2081 = vmatprep.subr.mxu0 0.0
      %2082 = vmatpush1.msra.mxu0 0.0
      %2083 = vmatprep.subr.mxu0 0.0
      %2084 = vmatpush1.msra.mxu0 0.0
      %2085 = vmatprep.subr.mxu0 0.0
      %2086 = vmatpush1.msra.mxu0 0.0
      %2087 = vmatprep.subr.mxu0 0.0
      %2088 = vmatpush1.msra.mxu0 0.0
      %2089 = vmatprep.subr.mxu0 0.0
      %2090 = vmatpush1.msra.mxu0 0.0
      %2091 = vmatprep.subr.mxu0 0.0
      %2092 = vmatpush1.msra.mxu0 0.0
      %2093 = vmatprep.subr.mxu0 0.0
      %2094 = vmatpush1.msra.mxu0 0.0
      %2095 = vmatprep.subr.mxu0 0.0
      %2096 = vmatpush1.msra.mxu0 0.0
      %2097 = vmatprep.subr.mxu0 0.0
      %2098 = vmatpush1.msra.mxu0 0.0
      %2099 = vmatprep.subr.mxu0 0.0
      %2100 = vmatpush1.msra.mxu0 0.0
      %2101 = vmatprep.subr.mxu0 0.0
      %2102 = vmatpush1.msra.mxu0 0.0
      %2103 = vmatprep.subr.mxu0 0.0
      %2104 = vmatpush1.msra.mxu0 0.0
      %2105 = vmatprep.subr.mxu0 0.0
      %2106 = vmatpush1.msra.mxu0 0.0
      %2107 = vmatprep.subr.mxu0 0.0
      %2108 = vmatpush1.msra.mxu0 0.0
      %2109 = vmatprep.subr.mxu0 0.0
      %2110 = vmatpush1.msra.mxu0 0.0
      %2111 = vmatprep.subr.mxu0 0.0
      %2112 = vmatpush1.msra.mxu0 0.0
      %2113 = vmatprep.subr.mxu0 0.0
      %2114 = vmatpush1.msra.mxu0 0.0
      %2115 = vmatprep.subr.mxu0 0.0
      %2116 = vmatpush1.msra.mxu0 0.0
      %2117 = vmatprep.subr.mxu0 0.0
      %2118 = vmatpush1.msra.mxu0 0.0
      %2119 = vmatprep.subr.mxu0 0.0
      %2120 = vmatpush1.msra.mxu0 0.0
      %2121 = vmatprep.subr.mxu0 0.0
      %2122 = vmatpush1.msra.mxu0 0.0
      %2123 = vmatprep.subr.mxu0 0.0
      %2124 = vmatpush1.msra.mxu0 0.0
      %2125 = vmatprep.subr.mxu0 0.0
      %2126 = vmatpush1.msra.mxu0 0.0
      %2127 = vmatprep.subr.mxu0 0.0
      %2128 = vmatpush1.msra.mxu0 0.0
      %2129 = vmatprep.subr.mxu0 0.0
      %2130 = vmatpush1.msra.mxu0 0.0
      %2131 = vmatprep.mubr.f32.mxu0 0.0
      %2132 = vmatmul.mubr.f32.gmra.mrb[0].mxu0 %v2065
      %v2133 = vpop.f32.mrb[0].mxu0
      %v2134 = vadd.f32 0.0, %v2133
      %v2135 = vpop.f32.mrb[0].mxu0
      %2136 = vdwg.mxu0
      %v2138 = vsel %vm595, %v1894, 0
      %2140 = vmatprep.subr.mxu0 0.0
      %2141 = vmatpush1.msra.mxu0 %v1897
      %2142 = vmatprep.subr.mxu0 0.0
      %2143 = vmatpush1.msra.mxu0 0.0
      %2144 = vmatprep.subr.mxu0 0.0
      %2145 = vmatpush1.msra.mxu0 0.0
      %2146 = vmatprep.subr.mxu0 0.0
      %2147 = vmatpush1.msra.mxu0 0.0
      %2148 = vmatprep.subr.mxu0 0.0
      %2149 = vmatpush1.msra.mxu0 0.0
      %2150 = vmatprep.subr.mxu0 0.0
      %2151 = vmatpush1.msra.mxu0 0.0
      %2152 = vmatprep.subr.mxu0 0.0
      %2153 = vmatpush1.msra.mxu0 0.0
      %2154 = vmatprep.subr.mxu0 0.0
      %2155 = vmatpush1.msra.mxu0 0.0
      %2156 = vmatprep.subr.mxu0 0.0
      %2157 = vmatpush1.msra.mxu0 0.0
      %2158 = vmatprep.subr.mxu0 0.0
      %2159 = vmatpush1.msra.mxu0 0.0
      %2160 = vmatprep.subr.mxu0 0.0
      %2161 = vmatpush1.msra.mxu0 0.0
      %2162 = vmatprep.subr.mxu0 0.0
      %2163 = vmatpush1.msra.mxu0 0.0
      %2164 = vmatprep.subr.mxu0 0.0
      %2165 = vmatpush1.msra.mxu0 0.0
      %2166 = vmatprep.subr.mxu0 0.0
      %2167 = vmatpush1.msra.mxu0 0.0
      %2168 = vmatprep.subr.mxu0 0.0
      %2169 = vmatpush1.msra.mxu0 0.0
      %2170 = vmatprep.subr.mxu0 0.0
      %2171 = vmatpush1.msra.mxu0 0.0
      %2172 = vmatprep.subr.mxu0 0.0
      %2173 = vmatpush1.msra.mxu0 0.0
      %2174 = vmatprep.subr.mxu0 0.0
      %2175 = vmatpush1.msra.mxu0 0.0
      %2176 = vmatprep.subr.mxu0 0.0
      %2177 = vmatpush1.msra.mxu0 0.0
      %2178 = vmatprep.subr.mxu0 0.0
      %2179 = vmatpush1.msra.mxu0 0.0
      %2180 = vmatprep.subr.mxu0 0.0
      %2181 = vmatpush1.msra.mxu0 0.0
      %2182 = vmatprep.subr.mxu0 0.0
      %2183 = vmatpush1.msra.mxu0 0.0
      %2184 = vmatprep.subr.mxu0 0.0
      %2185 = vmatpush1.msra.mxu0 0.0
      %2186 = vmatprep.subr.mxu0 0.0
      %2187 = vmatpush1.msra.mxu0 0.0
      %2188 = vmatprep.subr.mxu0 0.0
      %2189 = vmatpush1.msra.mxu0 0.0
      %2190 = vmatprep.subr.mxu0 0.0
      %2191 = vmatpush1.msra.mxu0 0.0
      %2192 = vmatprep.subr.mxu0 0.0
      %2193 = vmatpush1.msra.mxu0 0.0
      %2194 = vmatprep.subr.mxu0 0.0
      %2195 = vmatpush1.msra.mxu0 0.0
      %2196 = vmatprep.subr.mxu0 0.0
      %2197 = vmatpush1.msra.mxu0 0.0
      %2198 = vmatprep.subr.mxu0 0.0
      %2199 = vmatpush1.msra.mxu0 0.0
      %2200 = vmatprep.subr.mxu0 0.0
      %2201 = vmatpush1.msra.mxu0 0.0
      %2202 = vmatprep.subr.mxu0 0.0
      %2203 = vmatpush1.msra.mxu0 0.0
      %2204 = vmatprep.mubr.f32.mxu0 0.0
      %2205 = vmatmul.mubr.f32.gmra.mrb[0].mxu0 %v2138
      %v2206 = vpop.f32.mrb[0].mxu0
      %v2207 = vadd.f32 %v2134, %v2206
      %v2208 = vpop.f32.mrb[0].mxu0
      %2209 = vdwg.mxu0
      %2210 = vrot.lane.b32.xlu0 %v1647, 112
      %v2211 = vpop.permute.xlu0 %2210
      %2212 = vrot.lane.b32.xlu0 %v1724, 112
      %v2213 = vpop.permute.xlu0 %2212
      %v2214 = vsel %vm595, %v2211, 0
      %v2216 = vsel %vm595, %v2213, 0
      %2218 = vmatprep.subr.mxu0 0.0
      %2219 = vmatpush1.xpose.msra.mxu0 %v2216
      %2220 = vmatprep.subr.mxu0 0.0
      %2221 = vmatpush1.xpose.msra.mxu0 0.0
      %2222 = vmatprep.subr.mxu0 0.0
      %2223 = vmatpush1.xpose.msra.mxu0 0.0
      %2224 = vmatprep.subr.mxu0 0.0
      %2225 = vmatpush1.xpose.msra.mxu0 0.0
      %2226 = vmatprep.subr.mxu0 0.0
      %2227 = vmatpush1.xpose.msra.mxu0 0.0
      %2228 = vmatprep.subr.mxu0 0.0
      %2229 = vmatpush1.xpose.msra.mxu0 0.0
      %2230 = vmatprep.subr.mxu0 0.0
      %2231 = vmatpush1.xpose.msra.mxu0 0.0
      %2232 = vmatprep.subr.mxu0 0.0
      %2233 = vmatpush1.xpose.msra.mxu0 0.0
      %2234 = vmatprep.subr.mxu0 0.0
      %2235 = vmatpush1.xpose.msra.mxu0 0.0
      %2236 = vmatprep.subr.mxu0 0.0
      %2237 = vmatpush1.xpose.msra.mxu0 0.0
      %2238 = vmatprep.subr.mxu0 0.0
      %2239 = vmatpush1.xpose.msra.mxu0 0.0
      %2240 = vmatprep.subr.mxu0 0.0
      %2241 = vmatpush1.xpose.msra.mxu0 0.0
      %2242 = vmatprep.subr.mxu0 0.0
      %2243 = vmatpush1.xpose.msra.mxu0 0.0
      %2244 = vmatprep.subr.mxu0 0.0
      %2245 = vmatpush1.xpose.msra.mxu0 0.0
      %2246 = vmatprep.subr.mxu0 0.0
      %2247 = vmatpush1.xpose.msra.mxu0 0.0
      %2248 = vmatprep.subr.mxu0 0.0
      %2249 = vmatpush1.xpose.msra.mxu0 0.0
      %2250 = vmatprep.subr.mxu0 0.0
      %2251 = vmatpush1.xpose.msra.mxu0 0.0
      %2252 = vmatprep.subr.mxu0 0.0
      %2253 = vmatpush1.xpose.msra.mxu0 0.0
      %2254 = vmatprep.subr.mxu0 0.0
      %2255 = vmatpush1.xpose.msra.mxu0 0.0
      %2256 = vmatprep.subr.mxu0 0.0
      %2257 = vmatpush1.xpose.msra.mxu0 0.0
      %2258 = vmatprep.subr.mxu0 0.0
      %2259 = vmatpush1.xpose.msra.mxu0 0.0
      %2260 = vmatprep.subr.mxu0 0.0
      %2261 = vmatpush1.xpose.msra.mxu0 0.0
      %2262 = vmatprep.subr.mxu0 0.0
      %2263 = vmatpush1.xpose.msra.mxu0 0.0
      %2264 = vmatprep.subr.mxu0 0.0
      %2265 = vmatpush1.xpose.msra.mxu0 0.0
      %2266 = vmatprep.subr.mxu0 0.0
      %2267 = vmatpush1.xpose.msra.mxu0 0.0
      %2268 = vmatprep.subr.mxu0 0.0
      %2269 = vmatpush1.xpose.msra.mxu0 0.0
      %2270 = vmatprep.subr.mxu0 0.0
      %2271 = vmatpush1.xpose.msra.mxu0 0.0
      %2272 = vmatprep.subr.mxu0 0.0
      %2273 = vmatpush1.xpose.msra.mxu0 0.0
      %2274 = vmatprep.subr.mxu0 0.0
      %2275 = vmatpush1.xpose.msra.mxu0 0.0
      %2276 = vmatprep.subr.mxu0 0.0
      %2277 = vmatpush1.xpose.msra.mxu0 0.0
      %2278 = vmatprep.subr.mxu0 0.0
      %2279 = vmatpush1.xpose.msra.mxu0 0.0
      %2280 = vmatprep.subr.mxu0 0.0
      %2281 = vmatpush1.xpose.msra.mxu0 0.0
      %2282 = vmatprep.mubr.f32.mxu0 0.0
      %2283 = vmatmul.mubr.f32.gmra.mrb[0].mxu0 %v2214
      %v2284 = vpop.f32.mrb[0].mxu0
      %v2285 = vadd.f32 %v1732, %v2284
      %v2286 = vpop.f32.mrb[0].mxu0
      %2287 = vdwg.mxu0
      %v2288 = vsel %vm595, %v2285, -inf
      %2289 = vmax.xlane.f32.xlu0 %v2288
      %v2290 = vpop.xlane.xlu0 %2289
      %v2291 = vsub.f32 %v2285, %v2290
      %v2292 = vmul.f32 %v2291, 1.442695
      %v2293 = vpow.pop %v2292
      %v2294 = vsel %vm595, %v2293, 0.0
      %2295 = vadd.xlane.f32.xlu0 %v2294
      %v2296 = vpop.xlane.xlu0 %2295
      %v2297 = vrcp.pop %v2296
      %v2298 = vmul.f32 %v2293, %v2297
      %2299 = vrot.lane.b32.xlu0 %v1724, 80
      %v2300 = vpop.permute.xlu0 %2299
      %v2303 = vsel %vm595, %v2298, 0
      %2305 = vmatprep.subr.mxu0 0.0
      %2306 = vmatpush1.msra.mxu0 %v2300
      %2307 = vmatprep.subr.mxu0 0.0
      %2308 = vmatpush1.msra.mxu0 0.0
      %2309 = vmatprep.subr.mxu0 0.0
      %2310 = vmatpush1.msra.mxu0 0.0
      %2311 = vmatprep.subr.mxu0 0.0
      %2312 = vmatpush1.msra.mxu0 0.0
      %2313 = vmatprep.subr.mxu0 0.0
      %2314 = vmatpush1.msra.mxu0 0.0
      %2315 = vmatprep.subr.mxu0 0.0
      %2316 = vmatpush1.msra.mxu0 0.0
      %2317 = vmatprep.subr.mxu0 0.0
      %2318 = vmatpush1.msra.mxu0 0.0
      %2319 = vmatprep.subr.mxu0 0.0
      %2320 = vmatpush1.msra.mxu0 0.0
      %2321 = vmatprep.subr.mxu0 0.0
      %2322 = vmatpush1.msra.mxu0 0.0
      %2323 = vmatprep.subr.mxu0 0.0
      %2324 = vmatpush1.msra.mxu0 0.0
      %2325 = vmatprep.subr.mxu0 0.0
      %2326 = vmatpush1.msra.mxu0 0.0
      %2327 = vmatprep.subr.mxu0 0.0
      %2328 = vmatpush1.msra.mxu0 0.0
      %2329 = vmatprep.subr.mxu0 0.0
      %2330 = vmatpush1.msra.mxu0 0.0
      %2331 = vmatprep.subr.mxu0 0.0
      %2332 = vmatpush1.msra.mxu0 0.0
      %2333 = vmatprep.subr.mxu0 0.0
      %2334 = vmatpush1.msra.mxu0 0.0
      %2335 = vmatprep.subr.mxu0 0.0
      %2336 = vmatpush1.msra.mxu0 0.0
      %2337 = vmatprep.subr.mxu0 0.0
      %2338 = vmatpush1.msra.mxu0 0.0
      %2339 = vmatprep.subr.mxu0 0.0
      %2340 = vmatpush1.msra.mxu0 0.0
      %2341 = vmatprep.subr.mxu0 0.0
      %2342 = vmatpush1.msra.mxu0 0.0
      %2343 = vmatprep.subr.mxu0 0.0
      %2344 = vmatpush1.msra.mxu0 0.0
      %2345 = vmatprep.subr.mxu0 0.0
      %2346 = vmatpush1.msra.mxu0 0.0
      %2347 = vmatprep.subr.mxu0 0.0
      %2348 = vmatpush1.msra.mxu0 0.0
      %2349 = vmatprep.subr.mxu0 0.0
      %2350 = vmatpush1.msra.mxu0 0.0
      %2351 = vmatprep.subr.mxu0 0.0
      %2352 = vmatpush1.msra.mxu0 0.0
      %2353 = vmatprep.subr.mxu0 0.0
      %2354 = vmatpush1.msra.mxu0 0.0
      %2355 = vmatprep.subr.mxu0 0.0
      %2356 = vmatpush1.msra.mxu0 0.0
      %2357 = vmatprep.subr.mxu0 0.0
      %2358 = vmatpush1.msra.mxu0 0.0
      %2359 = vmatprep.subr.mxu0 0.0
      %2360 = vmatpush1.msra.mxu0 0.0
      %2361 = vmatprep.subr.mxu0 0.0
      %2362 = vmatpush1.msra.mxu0 0.0
      %2363 = vmatprep.subr.mxu0 0.0
      %2364 = vmatpush1.msra.mxu0 0.0
      %2365 = vmatprep.subr.mxu0 0.0
      %2366 = vmatpush1.msra.mxu0 0.0
      %2367 = vmatprep.subr.mxu0 0.0
      %2368 = vmatpush1.msra.mxu0 0.0
      %2369 = vmatprep.mubr.f32.mxu0 0.0
      %2370 = vmatmul.mubr.f32.gmra.mrb[0].mxu0 %v2303
      %v2371 = vpop.f32.mrb[0].mxu0
      %v2372 = vadd.f32 0.0, %v2371
      %v2373 = vpop.f32.mrb[0].mxu0
      %2374 = vdwg.mxu0
      %v2375 = vld [vmem:[%s10 + $0x10] sm:$0xff]
      %v2377 = vsel %vm595, %v2372, 0
      %2379 = vmatprep.subr.mxu0 0.0
      %2380 = vmatpush1.msra.mxu0 %v2375
      %2381 = vmatprep.subr.mxu0 0.0
      %2382 = vmatpush1.msra.mxu0 0.0
      %2383 = vmatprep.subr.mxu0 0.0
      %2384 = vmatpush1.msra.mxu0 0.0
      %2385 = vmatprep.subr.mxu0 0.0
      %2386 = vmatpush1.msra.mxu0 0.0
      %2387 = vmatprep.subr.mxu0 0.0
      %2388 = vmatpush1.msra.mxu0 0.0
      %2389 = vmatprep.subr.mxu0 0.0
      %2390 = vmatpush1.msra.mxu0 0.0
      %2391 = vmatprep.subr.mxu0 0.0
      %2392 = vmatpush1.msra.mxu0 0.0
      %2393 = vmatprep.subr.mxu0 0.0
      %2394 = vmatpush1.msra.mxu0 0.0
      %2395 = vmatprep.subr.mxu0 0.0
      %2396 = vmatpush1.msra.mxu0 0.0
      %2397 = vmatprep.subr.mxu0 0.0
      %2398 = vmatpush1.msra.mxu0 0.0
      %2399 = vmatprep.subr.mxu0 0.0
      %2400 = vmatpush1.msra.mxu0 0.0
      %2401 = vmatprep.subr.mxu0 0.0
      %2402 = vmatpush1.msra.mxu0 0.0
      %2403 = vmatprep.subr.mxu0 0.0
      %2404 = vmatpush1.msra.mxu0 0.0
      %2405 = vmatprep.subr.mxu0 0.0
      %2406 = vmatpush1.msra.mxu0 0.0
      %2407 = vmatprep.subr.mxu0 0.0
      %2408 = vmatpush1.msra.mxu0 0.0
      %2409 = vmatprep.subr.mxu0 0.0
      %2410 = vmatpush1.msra.mxu0 0.0
      %2411 = vmatprep.subr.mxu0 0.0
      %2412 = vmatpush1.msra.mxu0 0.0
      %2413 = vmatprep.subr.mxu0 0.0
      %2414 = vmatpush1.msra.mxu0 0.0
      %2415 = vmatprep.subr.mxu0 0.0
      %2416 = vmatpush1.msra.mxu0 0.0
      %2417 = vmatprep.subr.mxu0 0.0
      %2418 = vmatpush1.msra.mxu0 0.0
      %2419 = vmatprep.subr.mxu0 0.0
      %2420 = vmatpush1.msra.mxu0 0.0
      %2421 = vmatprep.subr.mxu0 0.0
      %2422 = vmatpush1.msra.mxu0 0.0
      %2423 = vmatprep.subr.mxu0 0.0
      %2424 = vmatpush1.msra.mxu0 0.0
      %2425 = vmatprep.subr.mxu0 0.0
      %2426 = vmatpush1.msra.mxu0 0.0
      %2427 = vmatprep.subr.mxu0 0.0
      %2428 = vmatpush1.msra.mxu0 0.0
      %2429 = vmatprep.subr.mxu0 0.0
      %2430 = vmatpush1.msra.mxu0 0.0
      %2431 = vmatprep.subr.mxu0 0.0
      %2432 = vmatpush1.msra.mxu0 0.0
      %2433 = vmatprep.subr.mxu0 0.0
      %2434 = vmatpush1.msra.mxu0 0.0
      %2435 = vmatprep.subr.mxu0 0.0
      %2436 = vmatpush1.msra.mxu0 0.0
      %2437 = vmatprep.subr.mxu0 0.0
      %2438 = vmatpush1.msra.mxu0 0.0
      %2439 = vmatprep.subr.mxu0 0.0
      %2440 = vmatpush1.msra.mxu0 0.0
      %2441 = vmatprep.subr.mxu0 0.0
      %2442 = vmatpush1.msra.mxu0 0.0
      %2443 = vmatprep.mubr.f32.mxu0 0.0
      %2444 = vmatmul.mubr.f32.gmra.mrb[0].mxu0 %v2377
      %v2445 = vpop.f32.mrb[0].mxu0
      %v2446 = vadd.f32 0.0, %v2445
      %v2447 = vpop.f32.mrb[0].mxu0
      %2448 = vdwg.mxu0
      %v2449 = vadd.f32 %v2207, %v2446
      %2450 = vrot.lane.b32.xlu0 %v1647, 104
      %v2451 = vpop.permute.xlu0 %2450
      %2452 = vrot.lane.b32.xlu0 %v1724, 104
      %v2453 = vpop.permute.xlu0 %2452
      %v2454 = vsel %vm595, %v2451, 0
      %v2456 = vsel %vm595, %v2453, 0
      %2458 = vmatprep.subr.mxu0 0.0
      %2459 = vmatpush1.xpose.msra.mxu0 %v2456
      %2460 = vmatprep.subr.mxu0 0.0
      %2461 = vmatpush1.xpose.msra.mxu0 0.0
      %2462 = vmatprep.subr.mxu0 0.0
      %2463 = vmatpush1.xpose.msra.mxu0 0.0
      %2464 = vmatprep.subr.mxu0 0.0
      %2465 = vmatpush1.xpose.msra.mxu0 0.0
      %2466 = vmatprep.subr.mxu0 0.0
      %2467 = vmatpush1.xpose.msra.mxu0 0.0
      %2468 = vmatprep.subr.mxu0 0.0
      %2469 = vmatpush1.xpose.msra.mxu0 0.0
      %2470 = vmatprep.subr.mxu0 0.0
      %2471 = vmatpush1.xpose.msra.mxu0 0.0
      %2472 = vmatprep.subr.mxu0 0.0
      %2473 = vmatpush1.xpose.msra.mxu0 0.0
      %2474 = vmatprep.subr.mxu0 0.0
      %2475 = vmatpush1.xpose.msra.mxu0 0.0
      %2476 = vmatprep.subr.mxu0 0.0
      %2477 = vmatpush1.xpose.msra.mxu0 0.0
      %2478 = vmatprep.subr.mxu0 0.0
      %2479 = vmatpush1.xpose.msra.mxu0 0.0
      %2480 = vmatprep.subr.mxu0 0.0
      %2481 = vmatpush1.xpose.msra.mxu0 0.0
      %2482 = vmatprep.subr.mxu0 0.0
      %2483 = vmatpush1.xpose.msra.mxu0 0.0
      %2484 = vmatprep.subr.mxu0 0.0
      %2485 = vmatpush1.xpose.msra.mxu0 0.0
      %2486 = vmatprep.subr.mxu0 0.0
      %2487 = vmatpush1.xpose.msra.mxu0 0.0
      %2488 = vmatprep.subr.mxu0 0.0
      %2489 = vmatpush1.xpose.msra.mxu0 0.0
      %2490 = vmatprep.subr.mxu0 0.0
      %2491 = vmatpush1.xpose.msra.mxu0 0.0
      %2492 = vmatprep.subr.mxu0 0.0
      %2493 = vmatpush1.xpose.msra.mxu0 0.0
      %2494 = vmatprep.subr.mxu0 0.0
      %2495 = vmatpush1.xpose.msra.mxu0 0.0
      %2496 = vmatprep.subr.mxu0 0.0
      %2497 = vmatpush1.xpose.msra.mxu0 0.0
      %2498 = vmatprep.subr.mxu0 0.0
      %2499 = vmatpush1.xpose.msra.mxu0 0.0
      %2500 = vmatprep.subr.mxu0 0.0
      %2501 = vmatpush1.xpose.msra.mxu0 0.0
      %2502 = vmatprep.subr.mxu0 0.0
      %2503 = vmatpush1.xpose.msra.mxu0 0.0
      %2504 = vmatprep.subr.mxu0 0.0
      %2505 = vmatpush1.xpose.msra.mxu0 0.0
      %2506 = vmatprep.subr.mxu0 0.0
      %2507 = vmatpush1.xpose.msra.mxu0 0.0
      %2508 = vmatprep.subr.mxu0 0.0
      %2509 = vmatpush1.xpose.msra.mxu0 0.0
      %2510 = vmatprep.subr.mxu0 0.0
      %2511 = vmatpush1.xpose.msra.mxu0 0.0
      %2512 = vmatprep.subr.mxu0 0.0
      %2513 = vmatpush1.xpose.msra.mxu0 0.0
      %2514 = vmatprep.subr.mxu0 0.0
      %2515 = vmatpush1.xpose.msra.mxu0 0.0
      %2516 = vmatprep.subr.mxu0 0.0
      %2517 = vmatpush1.xpose.msra.mxu0 0.0
      %2518 = vmatprep.subr.mxu0 0.0
      %2519 = vmatpush1.xpose.msra.mxu0 0.0
      %2520 = vmatprep.subr.mxu0 0.0
      %2521 = vmatpush1.xpose.msra.mxu0 0.0
      %2522 = vmatprep.mubr.f32.mxu0 0.0
      %2523 = vmatmul.mubr.f32.gmra.mrb[0].mxu0 %v2454
      %v2524 = vpop.f32.mrb[0].mxu0
      %v2525 = vadd.f32 %v1732, %v2524
      %v2526 = vpop.f32.mrb[0].mxu0
      %2527 = vdwg.mxu0
      %v2528 = vsel %vm595, %v2525, -inf
      %2529 = vmax.xlane.f32.xlu0 %v2528
      %v2530 = vpop.xlane.xlu0 %2529
      %v2531 = vsub.f32 %v2525, %v2530
      %v2532 = vmul.f32 %v2531, 1.442695
      %v2533 = vpow.pop %v2532
      %v2534 = vsel %vm595, %v2533, 0.0
      %2535 = vadd.xlane.f32.xlu0 %v2534
      %v2536 = vpop.xlane.xlu0 %2535
      %v2537 = vrcp.pop %v2536
      %v2538 = vmul.f32 %v2533, %v2537
      %2539 = vrot.lane.b32.xlu0 %v1724, 72
      %v2540 = vpop.permute.xlu0 %2539
      %v2543 = vsel %vm595, %v2538, 0
      %2545 = vmatprep.subr.mxu0 0.0
      %2546 = vmatpush1.msra.mxu0 %v2540
      %2547 = vmatprep.subr.mxu0 0.0
      %2548 = vmatpush1.msra.mxu0 0.0
      %2549 = vmatprep.subr.mxu0 0.0
      %2550 = vmatpush1.msra.mxu0 0.0
      %2551 = vmatprep.subr.mxu0 0.0
      %2552 = vmatpush1.msra.mxu0 0.0
      %2553 = vmatprep.subr.mxu0 0.0
      %2554 = vmatpush1.msra.mxu0 0.0
      %2555 = vmatprep.subr.mxu0 0.0
      %2556 = vmatpush1.msra.mxu0 0.0
      %2557 = vmatprep.subr.mxu0 0.0
      %2558 = vmatpush1.msra.mxu0 0.0
      %2559 = vmatprep.subr.mxu0 0.0
      %2560 = vmatpush1.msra.mxu0 0.0
      %2561 = vmatprep.subr.mxu0 0.0
      %2562 = vmatpush1.msra.mxu0 0.0
      %2563 = vmatprep.subr.mxu0 0.0
      %2564 = vmatpush1.msra.mxu0 0.0
      %2565 = vmatprep.subr.mxu0 0.0
      %2566 = vmatpush1.msra.mxu0 0.0
      %2567 = vmatprep.subr.mxu0 0.0
      %2568 = vmatpush1.msra.mxu0 0.0
      %2569 = vmatprep.subr.mxu0 0.0
      %2570 = vmatpush1.msra.mxu0 0.0
      %2571 = vmatprep.subr.mxu0 0.0
      %2572 = vmatpush1.msra.mxu0 0.0
      %2573 = vmatprep.subr.mxu0 0.0
      %2574 = vmatpush1.msra.mxu0 0.0
      %2575 = vmatprep.subr.mxu0 0.0
      %2576 = vmatpush1.msra.mxu0 0.0
      %2577 = vmatprep.subr.mxu0 0.0
      %2578 = vmatpush1.msra.mxu0 0.0
      %2579 = vmatprep.subr.mxu0 0.0
      %2580 = vmatpush1.msra.mxu0 0.0
      %2581 = vmatprep.subr.mxu0 0.0
      %2582 = vmatpush1.msra.mxu0 0.0
      %2583 = vmatprep.subr.mxu0 0.0
      %2584 = vmatpush1.msra.mxu0 0.0
      %2585 = vmatprep.subr.mxu0 0.0
      %2586 = vmatpush1.msra.mxu0 0.0
      %2587 = vmatprep.subr.mxu0 0.0
      %2588 = vmatpush1.msra.mxu0 0.0
      %2589 = vmatprep.subr.mxu0 0.0
      %2590 = vmatpush1.msra.mxu0 0.0
      %2591 = vmatprep.subr.mxu0 0.0
      %2592 = vmatpush1.msra.mxu0 0.0
      %2593 = vmatprep.subr.mxu0 0.0
      %2594 = vmatpush1.msra.mxu0 0.0
      %2595 = vmatprep.subr.mxu0 0.0
      %2596 = vmatpush1.msra.mxu0 0.0
      %2597 = vmatprep.subr.mxu0 0.0
      %2598 = vmatpush1.msra.mxu0 0.0
      %2599 = vmatprep.subr.mxu0 0.0
      %2600 = vmatpush1.msra.mxu0 0.0
      %2601 = vmatprep.subr.mxu0 0.0
      %2602 = vmatpush1.msra.mxu0 0.0
      %2603 = vmatprep.subr.mxu0 0.0
      %2604 = vmatpush1.msra.mxu0 0.0
      %2605 = vmatprep.subr.mxu0 0.0
      %2606 = vmatpush1.msra.mxu0 0.0
      %2607 = vmatprep.subr.mxu0 0.0
      %2608 = vmatpush1.msra.mxu0 0.0
      %2609 = vmatprep.mubr.f32.mxu0 0.0
      %2610 = vmatmul.mubr.f32.gmra.mrb[0].mxu0 %v2543
      %v2611 = vpop.f32.mrb[0].mxu0
      %v2612 = vadd.f32 0.0, %v2611
      %v2613 = vpop.f32.mrb[0].mxu0
      %2614 = vdwg.mxu0
      %v2615 = vld [vmem:[%s10 + $0x18] sm:$0xff]
      %v2617 = vsel %vm595, %v2612, 0
      %2619 = vmatprep.subr.mxu0 0.0
      %2620 = vmatpush1.msra.mxu0 %v2615
      %2621 = vmatprep.subr.mxu0 0.0
      %2622 = vmatpush1.msra.mxu0 0.0
      %2623 = vmatprep.subr.mxu0 0.0
      %2624 = vmatpush1.msra.mxu0 0.0
      %2625 = vmatprep.subr.mxu0 0.0
      %2626 = vmatpush1.msra.mxu0 0.0
      %2627 = vmatprep.subr.mxu0 0.0
      %2628 = vmatpush1.msra.mxu0 0.0
      %2629 = vmatprep.subr.mxu0 0.0
      %2630 = vmatpush1.msra.mxu0 0.0
      %2631 = vmatprep.subr.mxu0 0.0
      %2632 = vmatpush1.msra.mxu0 0.0
      %2633 = vmatprep.subr.mxu0 0.0
      %2634 = vmatpush1.msra.mxu0 0.0
      %2635 = vmatprep.subr.mxu0 0.0
      %2636 = vmatpush1.msra.mxu0 0.0
      %2637 = vmatprep.subr.mxu0 0.0
      %2638 = vmatpush1.msra.mxu0 0.0
      %2639 = vmatprep.subr.mxu0 0.0
      %2640 = vmatpush1.msra.mxu0 0.0
      %2641 = vmatprep.subr.mxu0 0.0
      %2642 = vmatpush1.msra.mxu0 0.0
      %2643 = vmatprep.subr.mxu0 0.0
      %2644 = vmatpush1.msra.mxu0 0.0
      %2645 = vmatprep.subr.mxu0 0.0
      %2646 = vmatpush1.msra.mxu0 0.0
      %2647 = vmatprep.subr.mxu0 0.0
      %2648 = vmatpush1.msra.mxu0 0.0
      %2649 = vmatprep.subr.mxu0 0.0
      %2650 = vmatpush1.msra.mxu0 0.0
      %2651 = vmatprep.subr.mxu0 0.0
      %2652 = vmatpush1.msra.mxu0 0.0
      %2653 = vmatprep.subr.mxu0 0.0
      %2654 = vmatpush1.msra.mxu0 0.0
      %2655 = vmatprep.subr.mxu0 0.0
      %2656 = vmatpush1.msra.mxu0 0.0
      %2657 = vmatprep.subr.mxu0 0.0
      %2658 = vmatpush1.msra.mxu0 0.0
      %2659 = vmatprep.subr.mxu0 0.0
      %2660 = vmatpush1.msra.mxu0 0.0
      %2661 = vmatprep.subr.mxu0 0.0
      %2662 = vmatpush1.msra.mxu0 0.0
      %2663 = vmatprep.subr.mxu0 0.0
      %2664 = vmatpush1.msra.mxu0 0.0
      %2665 = vmatprep.subr.mxu0 0.0
      %2666 = vmatpush1.msra.mxu0 0.0
      %2667 = vmatprep.subr.mxu0 0.0
      %2668 = vmatpush1.msra.mxu0 0.0
      %2669 = vmatprep.subr.mxu0 0.0
      %2670 = vmatpush1.msra.mxu0 0.0
      %2671 = vmatprep.subr.mxu0 0.0
      %2672 = vmatpush1.msra.mxu0 0.0
      %2673 = vmatprep.subr.mxu0 0.0
      %2674 = vmatpush1.msra.mxu0 0.0
      %2675 = vmatprep.subr.mxu0 0.0
      %2676 = vmatpush1.msra.mxu0 0.0
      %2677 = vmatprep.subr.mxu0 0.0
      %2678 = vmatpush1.msra.mxu0 0.0
      %2679 = vmatprep.subr.mxu0 0.0
      %2680 = vmatpush1.msra.mxu0 0.0
      %2681 = vmatprep.subr.mxu0 0.0
      %2682 = vmatpush1.msra.mxu0 0.0
      %2683 = vmatprep.mubr.f32.mxu0 0.0
      %2684 = vmatmul.mubr.f32.gmra.mrb[0].mxu0 %v2617
      %v2685 = vpop.f32.mrb[0].mxu0
      %v2686 = vadd.f32 0.0, %v2685
      %v2687 = vpop.f32.mrb[0].mxu0
      %2688 = vdwg.mxu0
      %v2689 = vadd.f32 %v2449, %v2686
      %v2690 = vadd.f32 %v1556, %v2689
      %v2691 = vld [vmem:[%s11] sm:$0x1]
      %v2692 = vmul.f32 %v2690, %v2690
      %v2693 = vsel %vm498, %v2692, 0.0
      %2694 = vadd.xlane.f32.xlu0 %v2693
      %v2695 = vpop.xlane.xlu0 %2694
      %v2696 = vmul.f32 %v2695, %v502
      %v2697 = vadd.f32 %v2696, 1e-06
      %v2698 = vrsqrt.pop %v2697
      %v2699 = vmul.f32 %v2690, %v2698
      %v2701 = vlaneseq
      %v2702 = vshrl.u32 %v2701, 7
      %v2703 = vsub.s32 0, %v2702
      %v2704 = vrot.slane %v2691, %v2703
      %v2706 = vmul.f32 %v2699, %v2704
      %v2707 = vld [vmem:[%s12] sm:$0xff]
      %v2708 = vld [vmem:[%s12 + $0x8] sm:$0xff]
      %v2709 = vld [vmem:[%s12 + $0x10] sm:$0xff]
      %v2710 = vld [vmem:[%s12 + $0x18] sm:$0xff]
      %v2712 = vsel %vm498, %v2706, 0
      %2714 = vmatprep.subr.mxu0 0.0
      %2715 = vmatpush1.msra.mxu0 %v2707
      %2716 = vmatprep.subr.mxu0 0.0
      %2717 = vmatpush1.msra.mxu0 %v2708
      %2718 = vmatprep.subr.mxu0 0.0
      %2719 = vmatpush1.msra.mxu0 %v2709
      %2720 = vmatprep.subr.mxu0 0.0
      %2721 = vmatpush1.msra.mxu0 %v2710
      %2722 = vmatprep.subr.mxu0 0.0
      %2723 = vmatpush1.msra.mxu0 0.0
      %2724 = vmatprep.subr.mxu0 0.0
      %2725 = vmatpush1.msra.mxu0 0.0
      %2726 = vmatprep.subr.mxu0 0.0
      %2727 = vmatpush1.msra.mxu0 0.0
      %2728 = vmatprep.subr.mxu0 0.0
      %2729 = vmatpush1.msra.mxu0 0.0
      %2730 = vmatprep.subr.mxu0 0.0
      %2731 = vmatpush1.msra.mxu0 0.0
      %2732 = vmatprep.subr.mxu0 0.0
      %2733 = vmatpush1.msra.mxu0 0.0
      %2734 = vmatprep.subr.mxu0 0.0
      %2735 = vmatpush1.msra.mxu0 0.0
      %2736 = vmatprep.subr.mxu0 0.0
      %2737 = vmatpush1.msra.mxu0 0.0
      %2738 = vmatprep.subr.mxu0 0.0
      %2739 = vmatpush1.msra.mxu0 0.0
      %2740 = vmatprep.subr.mxu0 0.0
      %2741 = vmatpush1.msra.mxu0 0.0
      %2742 = vmatprep.subr.mxu0 0.0
      %2743 = vmatpush1.msra.mxu0 0.0
      %2744 = vmatprep.subr.mxu0 0.0
      %2745 = vmatpush1.msra.mxu0 0.0
      %2746 = vmatprep.subr.mxu0 0.0
      %2747 = vmatpush1.msra.mxu0 0.0
      %2748 = vmatprep.subr.mxu0 0.0
      %2749 = vmatpush1.msra.mxu0 0.0
      %2750 = vmatprep.subr.mxu0 0.0
      %2751 = vmatpush1.msra.mxu0 0.0
      %2752 = vmatprep.subr.mxu0 0.0
      %2753 = vmatpush1.msra.mxu0 0.0
      %2754 = vmatprep.subr.mxu0 0.0
      %2755 = vmatpush1.msra.mxu0 0.0
      %2756 = vmatprep.subr.mxu0 0.0
      %2757 = vmatpush1.msra.mxu0 0.0
      %2758 = vmatprep.subr.mxu0 0.0
      %2759 = vmatpush1.msra.mxu0 0.0
      %2760 = vmatprep.subr.mxu0 0.0
      %2761 = vmatpush1.msra.mxu0 0.0
      %2762 = vmatprep.subr.mxu0 0.0
      %2763 = vmatpush1.msra.mxu0 0.0
      %2764 = vmatprep.subr.mxu0 0.0
      %2765 = vmatpush1.msra.mxu0 0.0
      %2766 = vmatprep.subr.mxu0 0.0
      %2767 = vmatpush1.msra.mxu0 0.0
      %2768 = vmatprep.subr.mxu0 0.0
      %2769 = vmatpush1.msra.mxu0 0.0
      %2770 = vmatprep.subr.mxu0 0.0
      %2771 = vmatpush1.msra.mxu0 0.0
      %2772 = vmatprep.subr.mxu0 0.0
      %2773 = vmatpush1.msra.mxu0 0.0
      %2774 = vmatprep.subr.mxu0 0.0
      %2775 = vmatpush1.msra.mxu0 0.0
      %2776 = vmatprep.subr.mxu0 0.0
      %2777 = vmatpush1.msra.mxu0 0.0
      %2778 = vmatprep.mubr.f32.mxu0 0.0
      %2779 = vmatmul.mubr.f32.gmra.mrb[0].mxu0 %v2712
      %v2780 = vpop.f32.mrb[0].mxu0
      %v2781 = vadd.f32 0.0, %v2780
      %v2782 = vpop.f32.mrb[0].mxu0
      %2783 = vdwg.mxu0
      %v2784 = vmax.f32 %v2781, 0.0
      %v2785 = vld [vmem:[%s13] sm:$0xff]
      %v2786 = vld [vmem:[%s13 + $0x8] sm:$0xff]
      %v2787 = vld [vmem:[%s13 + $0x10] sm:$0xff]
      %v2788 = vld [vmem:[%s13 + $0x18] sm:$0xff]
      %v2789 = vld [vmem:[%s13 + $0x20] sm:$0xff]
      %v2790 = vld [vmem:[%s13 + $0x28] sm:$0xff]
      %v2791 = vld [vmem:[%s13 + $0x30] sm:$0xff]
      %v2792 = vld [vmem:[%s13 + $0x38] sm:$0xff]
      %vm2793 = vcmask 523264
      %v2795 = vsel %vm2793, %v2784, 0
      %2797 = vmatprep.subr.mxu0 0.0
      %2798 = vmatpush1.msra.mxu0 %v2785
      %2799 = vmatprep.subr.mxu0 0.0
      %2800 = vmatpush1.msra.mxu0 %v2786
      %2801 = vmatprep.subr.mxu0 0.0
      %2802 = vmatpush1.msra.mxu0 %v2787
      %2803 = vmatprep.subr.mxu0 0.0
      %2804 = vmatpush1.msra.mxu0 %v2788
      %2805 = vmatprep.subr.mxu0 0.0
      %2806 = vmatpush1.msra.mxu0 %v2789
      %2807 = vmatprep.subr.mxu0 0.0
      %2808 = vmatpush1.msra.mxu0 %v2790
      %2809 = vmatprep.subr.mxu0 0.0
      %2810 = vmatpush1.msra.mxu0 %v2791
      %2811 = vmatprep.subr.mxu0 0.0
      %2812 = vmatpush1.msra.mxu0 %v2792
      %2813 = vmatprep.subr.mxu0 0.0
      %2814 = vmatpush1.msra.mxu0 0.0
      %2815 = vmatprep.subr.mxu0 0.0
      %2816 = vmatpush1.msra.mxu0 0.0
      %2817 = vmatprep.subr.mxu0 0.0
      %2818 = vmatpush1.msra.mxu0 0.0
      %2819 = vmatprep.subr.mxu0 0.0
      %2820 = vmatpush1.msra.mxu0 0.0
      %2821 = vmatprep.subr.mxu0 0.0
      %2822 = vmatpush1.msra.mxu0 0.0
      %2823 = vmatprep.subr.mxu0 0.0
      %2824 = vmatpush1.msra.mxu0 0.0
      %2825 = vmatprep.subr.mxu0 0.0
      %2826 = vmatpush1.msra.mxu0 0.0
      %2827 = vmatprep.subr.mxu0 0.0
      %2828 = vmatpush1.msra.mxu0 0.0
      %2829 = vmatprep.subr.mxu0 0.0
      %2830 = vmatpush1.msra.mxu0 0.0
      %2831 = vmatprep.subr.mxu0 0.0
      %2832 = vmatpush1.msra.mxu0 0.0
      %2833 = vmatprep.subr.mxu0 0.0
      %2834 = vmatpush1.msra.mxu0 0.0
      %2835 = vmatprep.subr.mxu0 0.0
      %2836 = vmatpush1.msra.mxu0 0.0
      %2837 = vmatprep.subr.mxu0 0.0
      %2838 = vmatpush1.msra.mxu0 0.0
      %2839 = vmatprep.subr.mxu0 0.0
      %2840 = vmatpush1.msra.mxu0 0.0
      %2841 = vmatprep.subr.mxu0 0.0
      %2842 = vmatpush1.msra.mxu0 0.0
      %2843 = vmatprep.subr.mxu0 0.0
      %2844 = vmatpush1.msra.mxu0 0.0
      %2845 = vmatprep.subr.mxu0 0.0
      %2846 = vmatpush1.msra.mxu0 0.0
      %2847 = vmatprep.subr.mxu0 0.0
      %2848 = vmatpush1.msra.mxu0 0.0
      %2849 = vmatprep.subr.mxu0 0.0
      %2850 = vmatpush1.msra.mxu0 0.0
      %2851 = vmatprep.subr.mxu0 0.0
      %2852 = vmatpush1.msra.mxu0 0.0
      %2853 = vmatprep.subr.mxu0 0.0
      %2854 = vmatpush1.msra.mxu0 0.0
      %2855 = vmatprep.subr.mxu0 0.0
      %2856 = vmatpush1.msra.mxu0 0.0
      %2857 = vmatprep.subr.mxu0 0.0
      %2858 = vmatpush1.msra.mxu0 0.0
      %2859 = vmatprep.subr.mxu0 0.0
      %2860 = vmatpush1.msra.mxu0 0.0
      %2861 = vmatprep.mubr.f32.mxu0 0.0
      %2862 = vmatmul.mubr.f32.gmra.mrb[0].mxu0 %v2795
      %v2863 = vpop.f32.mrb[0].mxu0
      %v2864 = vadd.f32 0.0, %v2863
      %v2865 = vpop.f32.mrb[0].mxu0
      %2866 = vdwg.mxu0
      %v2867 = vadd.f32 %v2690, %v2864
      %2868 = vst.msk [vmem:[%s493] sm:$0xff] %vm498, %v2867
      %p2869 = scmp.lt.s32.totalorder %s25, 1
      %s2870 = scalar_select %p2869, %s25, 1
      %s2871 = smul.addr %s2870, 8
      %s2872 = scalar_lea.vmem %s14, %s2871
      // Predicated region
      $region77: #{hf_t5_forward.9} parent=75 // pred_check
        %p2873 = pneg %p352
      $region78: #{hf_t5_forward.9} parent=75 // pred_check_branch
        %2875 = sbr.rel (%p2873) target = $region80
      $region79: #{hf_t5_forward.9} parent=75 // pred_region
        _
      $region80: #{hf_t5_forward.9} parent=75 // pred_fallthru
        _
    $region76: #{hf_t5_forward.9} parent=5 // pred_fallthru
      _
    %p2876 = scmp.le.s32.totalorder 2, %s20
    // Predicated region
    $region81: #{hf_t5_forward.9} parent=5 // pred_check
      %p2877 = pneg %p2876
    $region82: #{hf_t5_forward.9} parent=5 // pred_check_branch
      %2879 = sbr.rel (%p2877) target = $region84
    $region83: #{hf_t5_forward.9} parent=5 // pred_region
      %s2880 = ssub.s32 %s20, 2
      // Predicated region
      $region85: #{hf_t5_forward.9} parent=83 // pred_check
        %p2881 = pneg %p358
      $region86: #{hf_t5_forward.9} parent=83 // pred_check_branch
        %2883 = sbr.rel (%p2881) target = $region88
      $region87: #{hf_t5_forward.9} parent=83 // pred_region
        %p2884 = scmp.lt.s32.totalorder %s26, 1
        %s2885 = scalar_select %p2884, %s26, 1
        %s2886 = smul.addr %s2885, 8
        %s2887 = scalar_lea.vmem %s14, %s2886
      $region88: #{hf_t5_forward.9} parent=83 // pred_fallthru
        _
    $region84: #{hf_t5_forward.9} parent=5 // pred_fallthru
      _
  $region6: #{hf_t5_forward.9} parent=0 // loop_footer
    %s24 = sadd.s32 1, %s20
  $region7: #{hf_t5_forward.9} parent=0 // loop_footer_branch
    %19 = sbr.rel target = $region3
  $region8: #{hf_t5_forward.9} parent=0 // loop_exit
    _

</llo_original>
